<compile_context>
chip_gen: v7x
topology: tpu7x:2x2x1
jax: 0.10.0
libtpu: 0.0.40
codegen_flags: <defaults>
</compile_context>

<pallas_src>
import jax
import jax.numpy as jnp
from jax import lax
from jax.experimental import pallas as pl
from jax.experimental.pallas import tpu as pltpu

NG = 4  # recurrent chains: branch(2) x direction(2)


def _sigmoid(x):
    # tanh-based sigmoid: routes to the EUP (no VPU divide on the serial path).
    return 0.5 * (jnp.tanh(0.5 * x) + 1.0)


def node_bilstm_kernel(x_ref, wih_ref, whh_ref, b_ref, wout_ref, bout_ref,
                       out_ref, xp_ref, h_ref, c_ref):
    """One grid step = one chunk of TC time steps for all NG chains x B notes.

    x_ref:    (TC, NG, B, E)    bf16  streamed activation chunk
    wih_ref:  (NG, E, 4*Hp)     bf16  per-chain input->gate weights (gate-padded)
    whh_ref:  (NG, Hp, 4*Hp)    bf16  per-chain hidden->gate weights
    b_ref:    (NG, 1, 4*Hp)     f32   per-chain gate bias
    wout_ref: (NG, Hp, NLp)     bf16  per-chain slice of the output projection
    bout_ref: (1, NLp)          f32   bout0 + bout1 (lane-padded)
    out_ref:  (B, NLp)          f32   averaged scores (lane-dense, last step)
    xp_ref:   (TC, NG, B, 4*Hp) f32   scratch: per-chunk input proj (+ bias)
    h_ref/c_ref: (NG, B, Hp)    f32   persistent recurrent state across chunks
    """
    TC, n_chain, B, E = x_ref.shape
    Hp4 = xp_ref.shape[-1]
    Hp = Hp4 // 4

    step_i = pl.program_id(0)

    @pl.when(step_i == 0)
    def _init():
        h_ref[...] = jnp.zeros_like(h_ref)
        c_ref[...] = jnp.zeros_like(c_ref)

    # ---- hoisted per-chunk input projection, dense per chain (bias folded in):
    # one (TC*B, E) @ (E, 4Hp) MXU matmul per chain; no zero-padded "wide" x ----
    for g in range(n_chain):
        xg = x_ref[:, g, :, :].reshape(TC * B, E)
        pg = jnp.dot(xg, wih_ref[g], preferred_element_type=jnp.float32)
        xp_ref[:, g, :, :] = (pg + b_ref[g]).reshape(TC, B, Hp4)

    whh = whh_ref[...]                                     # (NG, Hp, 4Hp) bf16

    def step(t, carry):
        h, c = carry                                       # (NG, B, Hp) f32
        xp_t = xp_ref[t]                                   # (NG, B, 4Hp) f32
        # block-diagonal Whh: batched over chains, K depth = Hp (not NG*Hp)
        hproj = lax.dot_general(
            h.astype(jnp.bfloat16), whh,
            dimension_numbers=(((2,), (1,)), ((0,), (0,))),
            preferred_element_type=jnp.float32)            # (NG, B, 4Hp)
        gates = xp_t + hproj
        i_g = _sigmoid(gates[..., 0 * Hp:1 * Hp])          # lane-aligned slices
        f_g = _sigmoid(gates[..., 1 * Hp:2 * Hp])
        g_g = jnp.tanh(gates[..., 2 * Hp:3 * Hp])
        o_g = _sigmoid(gates[..., 3 * Hp:4 * Hp])
        c_new = f_g * c + i_g * g_g
        h_new = o_g * jnp.tanh(c_new)
        return h_new, c_new

    h_fin, c_fin = lax.fori_loop(0, TC, step, (h_ref[...], c_ref[...]),
                                 unroll=min(TC, 8))        # bounded unroll
    h_ref[...] = h_fin
    c_ref[...] = c_fin

    # ---- epilogue (last chunk only): fused two-branch output projection and
    # the (scores0 + scores1) / 2 average; lane-dense (B, NLp) store ----
    @pl.when(step_i == pl.num_programs(0) - 1)
    def _finalize():
        s = jnp.zeros(out_ref.shape, jnp.float32) + bout_ref[...]
        for g in range(n_chain):
            s = s + jnp.dot(h_fin[g].astype(jnp.bfloat16), wout_ref[g],
                            preferred_element_type=jnp.float32)
        out_ref[...] = 0.5 * s


def node_forward(tokens, params, *, chunk_t=8, lane_pad=128):
    """tokens: int32 [B, S, L]; returns float32 scores [B, num_labels]."""
    B, S, L = tokens.shape
    num_first = (S + 1) // 2
    if num_first * 2 != S:
        # TODO(synk): odd sentence counts (ceil/floor split -> unequal T per
        # branch) would need ragged/padded handling; not supported here.
        raise ValueError("node_forward requires an even sentence count")
    T = num_first * L
    E = params["embedding"].shape[1]
    H = params["whh"].shape[2]
    NL = params["wout"].shape[-1]
    Hp = -(-H // lane_pad) * lane_pad        # lane-aligned gate blocks
    NLp = -(-NL // lane_pad) * lane_pad      # lane-dense output store
    # streamed chunk length: largest divisor of T that is <= chunk_t
    tc = 1
    for d in range(min(chunk_t, T), 0, -1):
        if T % d == 0:
            tc = d
            break
    n_chunks = T // tc

    # ---- embedding gather (plain-JAX glue) + time-major per-chain inputs ----
    emb = params["embedding"].astype(jnp.bfloat16)
    tok0 = tokens[:, :num_first].reshape(B, T)
    tok1 = tokens[:, num_first:].reshape(B, T)
    x0 = jnp.transpose(jnp.take(emb, tok0, axis=0), (1, 0, 2))    # (T, B, E)
    x1 = jnp.transpose(jnp.take(emb, tok1, axis=0), (1, 0, 2))
    # chains: 0 = br0 fwd, 1 = br0 bwd (time-reversed), 2 = br1 fwd, 3 = br1 bwd
    # NOTE: fwd/bwd duplication doubles activation HBM; removable via a
    # reversed index_map + in-kernel flip if it ever dominates.
    xg = jnp.stack([x0, x0[::-1], x1, x1[::-1]], axis=1)          # (T,NG,B,E)

    # ---- per-chain weights, gate-padded to Hp (lane-aligned gate slices) ----
    def pad_gate_cols(a):                     # last dim 4*H -> 4*Hp
        lead = a.shape[:-1]
        a4 = a.reshape(lead + (4, H))
        a4 = jnp.pad(a4, [(0, 0)] * (len(lead) + 1) + [(0, Hp - H)])
        return a4.reshape(lead + (4 * Hp,))

    wih_p = pad_gate_cols(params["wih"].reshape(NG, E, 4 * H)
                          ).astype(jnp.bfloat16)                  # (NG,E,4Hp)
    whh_p = jnp.pad(pad_gate_cols(params["whh"].reshape(NG, H, 4 * H)),
                    ((0, 0), (0, Hp - H), (0, 0))
                    ).astype(jnp.bfloat16)                        # (NG,Hp,4Hp)
    b_p = pad_gate_cols(params["b"].reshape(NG, 1, 4 * H)
                        ).astype(jnp.float32)                     # (NG,1,4Hp)
    # chain g -> branch g//2, direction g%2; wout rows per branch = [fwd H; bwd H]
    wout_r = params["wout"].reshape(2, 2, H, NL).reshape(NG, H, NL)
    wout_p = jnp.pad(wout_r, ((0, 0), (0, Hp - H), (0, NLp - NL))
                     ).astype(jnp.bfloat16)                       # (NG,Hp,NLp)
    bout_sum = jnp.zeros((1, NLp), jnp.float32).at[0, :NL].set(
        params["bout"][0] + params["bout"][1])

    # ---- cost estimate (dense x, block-diagonal recurrence) ----
    flops = int(2 * T * NG * B * E * 4 * Hp          # hoisted input projection
                + 2 * T * NG * B * Hp * 4 * Hp       # recurrence
                + 2 * B * NG * Hp * NLp)             # output projection
    bytes_accessed = int(xg.size * 2 + wih_p.size * 2 + whh_p.size * 2
                         + b_p.size * 4 + wout_p.size * 2 + bout_sum.size * 4
                         + B * NLp * 4)
    cost = pl.CostEstimate(flops=flops,
                           transcendentals=int(5 * T * NG * B * Hp),
                           bytes_accessed=bytes_accessed)

    # ---- VMEM budget (double-buffered x chunk + resident weights + scratch) ----
    vmem_need = int(2 * tc * NG * B * E * 2
                    + wih_p.size * 2 + whh_p.size * 2 + b_p.size * 4
                    + wout_p.size * 2 + bout_sum.size * 4
                    + tc * NG * B * 4 * Hp * 4       # xp scratch
                    + 2 * NG * B * Hp * 4            # h, c scratch
                    + 2 * B * NLp * 4)               # output buffers
    vmem_limit = int(min(32 * 1024 * 1024, max(2 * 1024 * 1024, 4 * vmem_need)))

    out = pl.pallas_call(
        node_bilstm_kernel,
        out_shape=jax.ShapeDtypeStruct((B, NLp), jnp.float32),
        grid=(n_chunks,),
        in_specs=[
            pl.BlockSpec((tc, NG, B, E), lambda i: (i, 0, 0, 0)),     # streamed
            pl.BlockSpec((NG, E, 4 * Hp), lambda i: (0, 0, 0)),       # resident
            pl.BlockSpec((NG, Hp, 4 * Hp), lambda i: (0, 0, 0)),
            pl.BlockSpec((NG, 1, 4 * Hp), lambda i: (0, 0, 0)),
            pl.BlockSpec((NG, Hp, NLp), lambda i: (0, 0, 0)),
            pl.BlockSpec((1, NLp), lambda i: (0, 0)),
        ],
        out_specs=pl.BlockSpec((B, NLp), lambda i: (0, 0)),
        scratch_shapes=[
            pltpu.VMEM((tc, NG, B, 4 * Hp), jnp.float32),   # per-chunk x proj
            pltpu.VMEM((NG, B, Hp), jnp.float32),           # h carry
            pltpu.VMEM((NG, B, Hp), jnp.float32),           # c carry
        ],
        compiler_params=pltpu.CompilerParams(
            dimension_semantics=("arbitrary",),
            vmem_limit_bytes=vmem_limit),
        cost_estimate=cost,
    )(xg, wih_p, whh_p, b_p, wout_p, bout_sum)
    return out[:, :NL]


def node_reference(tokens, params):
    """Pure-JAX reference with the same bf16-at-MXU / f32-state numerics."""
    B, S, L = tokens.shape
    num_first = (S + 1) // 2
    T = num_first * L
    H = params["whh"].shape[2]
    emb = params["embedding"].astype(jnp.bfloat16)
    xs = [jnp.take(emb, tokens[:, :num_first].reshape(B, T), axis=0),
          jnp.take(emb, tokens[:, num_first:].reshape(B, T), axis=0)]

    def run_dir(x, wih, whh, b):
        wih = wih.astype(jnp.bfloat16)
        whh = whh.astype(jnp.bfloat16)
        h = jnp.zeros((x.shape[0], H), jnp.float32)
        c = jnp.zeros_like(h)
        for t in range(x.shape[1]):
            gates = (jnp.dot(x[:, t], wih, preferred_element_type=jnp.float32)
                     + jnp.dot(h.astype(jnp.bfloat16), whh,
                               preferred_element_type=jnp.float32) + b)
            i_g = _sigmoid(gates[:, 0 * H:1 * H])
            f_g = _sigmoid(gates[:, 1 * H:2 * H])
            g_g = jnp.tanh(gates[:, 2 * H:3 * H])
            o_g = _sigmoid(gates[:, 3 * H:4 * H])
            c = f_g * c + i_g * g_g
            h = o_g * jnp.tanh(c)
        return h

    scores = []
    for br in range(2):
        x = xs[br]
        h_f = run_dir(x, params["wih"][br, 0], params["whh"][br, 0],
                      params["b"][br, 0])
        h_b = run_dir(x[:, ::-1], params["wih"][br, 1], params["whh"][br, 1],
                      params["b"][br, 1])
        hcat = jnp.concatenate([h_f, h_b], axis=1)
        scores.append(jnp.dot(hcat.astype(jnp.bfloat16),
                              params["wout"][br].astype(jnp.bfloat16),
                              preferred_element_type=jnp.float32)
                      + params["bout"][br])
    return 0.5 * (scores[0] + scores[1])


def init_params(key, vocab_size, embed_size, hidden_size, num_labels):
    ks = jax.random.split(key, 6)
    E, H = embed_size, hidden_size
    s = 0.1
    return {
        # shared embedding table (Node.model_embeddings)
        "embedding": s * jax.random.normal(ks[0], (vocab_size, E), jnp.float32),
        # per-branch, per-direction LSTM weights
        "wih": s * jax.random.normal(ks[1], (2, 2, E, 4 * H), jnp.float32),
        "whh": s * jax.random.normal(ks[2], (2, 2, H, 4 * H), jnp.float32),
        "b": s * jax.random.normal(ks[3], (2, 2, 4 * H), jnp.float32),
        # per-branch output projection
        "wout": s * jax.random.normal(ks[4], (2, 2 * H, num_labels), jnp.float32),
        "bout": s * jax.random.normal(ks[5], (2, num_labels), jnp.float32),
    }


if __name__ == "__main__":
    # small synthetic configuration
    # NOTE: throughput scales near-linearly with more notes per call (B >= 32
    # fills the MXU/VPU rows) since the recurrence is latency-bound.
    B, S, L = 2, 4, 8        # num_notes, sentences/note (even), tokens/sentence
    V, E, H, NL = 64, 32, 32, 8

    key = jax.random.PRNGKey(0)
    k_params, k_tok = jax.random.split(key)
    params = init_params(k_params, V, E, H, NL)
    tokens = jax.random.randint(k_tok, (B, S, L), 0, V, dtype=jnp.int32)

    scores = jax.block_until_ready(jax.jit(node_forward)(tokens, params))
    assert scores.shape == (B, NL)
    assert bool(jnp.all(jnp.isfinite(scores)))

    ref = node_reference(tokens, params)
    assert bool(jnp.allclose(scores, ref, atol=2e-2, rtol=2e-2)), (
        "max abs diff %g" % float(jnp.max(jnp.abs(scores - ref))))
    print("KERNEL_OK")
</pallas_src>

<mosaic_0001>
module attributes {stable_mosaic.version = 11 : i64} {
  func.func @node_bilstm_kernel(%arg0: i32, %arg1: memref<8x4x2x32xbf16, #tpu.memory_space<vmem>>, %arg2: memref<4x32x512xbf16, #tpu.memory_space<vmem>>, %arg3: memref<4x128x512xbf16, #tpu.memory_space<vmem>>, %arg4: memref<4x1x512xf32, #tpu.memory_space<vmem>>, %arg5: memref<4x128x128xbf16, #tpu.memory_space<vmem>>, %arg6: memref<1x128xf32, #tpu.memory_space<vmem>>, %arg7: memref<2x128xf32, #tpu.memory_space<vmem>>, %arg8: memref<8x4x2x512xf32, #tpu.memory_space<vmem>>, %arg9: memref<4x2x128xf32, #tpu.memory_space<vmem>>, %arg10: memref<4x2x128xf32, #tpu.memory_space<vmem>>) attributes {dimension_semantics = [#tpu.dimension_semantics<arbitrary>], iteration_bounds = array<i64: 2>, scalar_prefetch = 0 : i64, scratch_operands = 3 : i64, tpu.core_type = #tpu.core_type<tc>, window_params = [{transform_indices = @transform_0, window_bounds = array<i64: 8, 4, 2, 32>}, {pipeline_mode = #tpu.pipeline_mode<synchronous>, transform_indices = @transform_1, window_bounds = array<i64: 4, 32, 512>}, {pipeline_mode = #tpu.pipeline_mode<synchronous>, transform_indices = @transform_2, window_bounds = array<i64: 4, 128, 512>}, {pipeline_mode = #tpu.pipeline_mode<synchronous>, transform_indices = @transform_3, window_bounds = array<i64: 4, 1, 512>}, {pipeline_mode = #tpu.pipeline_mode<synchronous>, transform_indices = @transform_4, window_bounds = array<i64: 4, 128, 128>}, {pipeline_mode = #tpu.pipeline_mode<synchronous>, transform_indices = @transform_5, window_bounds = array<i64: 1, 128>}, {pipeline_mode = #tpu.pipeline_mode<synchronous>, transform_indices = @transform_6, window_bounds = array<i64: 2, 128>}]} {
    %c0_i32 = arith.constant 0 : i32
    %0 = arith.cmpi eq, %arg0, %c0_i32 : i32
    %1 = arith.extui %0 : i1 to i32
    %c0_i32_0 = arith.constant 0 : i32
    %2 = arith.cmpi ne, %1, %c0_i32_0 : i32
    scf.if %2 {
      %cst_178 = arith.constant 0.000000e+00 : f32
      %363 = vector.broadcast %cst_178 : f32 to vector<4x2x128xf32>
      %c0_179 = arith.constant 0 : index
      %c0_180 = arith.constant 0 : index
      %c0_181 = arith.constant 0 : index
      %364 = vector.load %arg9[%c0_179, %c0_180, %c0_181] : memref<4x2x128xf32, #tpu.memory_space<vmem>>, vector<4x2x128xf32>
      tpu.vector_store %arg9[%c0_179, %c0_180, %c0_181], %363 {strides = array<i32>} : memref<4x2x128xf32, #tpu.memory_space<vmem>>, vector<4x2x128xf32>,
      %cst_182 = arith.constant 0.000000e+00 : f32
      %365 = vector.broadcast %cst_182 : f32 to vector<4x2x128xf32>
      %c0_183 = arith.constant 0 : index
      %c0_184 = arith.constant 0 : index
      %c0_185 = arith.constant 0 : index
      %366 = vector.load %arg10[%c0_183, %c0_184, %c0_185] : memref<4x2x128xf32, #tpu.memory_space<vmem>>, vector<4x2x128xf32>
      tpu.vector_store %arg10[%c0_183, %c0_184, %c0_185], %365 {strides = array<i32>} : memref<4x2x128xf32, #tpu.memory_space<vmem>>, vector<4x2x128xf32>,
    } else {
    }
    %c0 = arith.constant 0 : index
    %c0_1 = arith.constant 0 : index
    %c0_2 = arith.constant 0 : index
    %c0_3 = arith.constant 0 : index
    %3 = vector.load %arg1[%c0, %c0_1, %c0_2, %c0_3] : memref<8x4x2x32xbf16, #tpu.memory_space<vmem>>, vector<8x1x2x32xbf16>
    %4 = vector.shape_cast %3 : vector<8x1x2x32xbf16> to vector<8x2x32xbf16>
    %5 = vector.shape_cast %4 : vector<8x2x32xbf16> to vector<16x32xbf16>
    %c0_4 = arith.constant 0 : index
    %c0_5 = arith.constant 0 : index
    %c0_6 = arith.constant 0 : index
    %6 = vector.load %arg2[%c0_4, %c0_5, %c0_6] : memref<4x32x512xbf16, #tpu.memory_space<vmem>>, vector<1x32x512xbf16>
    %7 = vector.shape_cast %6 : vector<1x32x512xbf16> to vector<32x512xbf16>
    %cst = arith.constant dense<0.000000e+00> : vector<16x512xf32>
    %8 = tpu.matmul %5, %7, %cst {dimension_numbers = #tpu.dot_dimension_numbers<[1], [0], [0], [1], [0, 0, 1, 1], [], []>} : vector<16x32xbf16>, vector<32x512xbf16>, vector<16x512xf32> -> vector<16x512xf32>
    %c0_7 = arith.constant 0 : index
    %c0_8 = arith.constant 0 : index
    %c0_9 = arith.constant 0 : index
    %9 = vector.load %arg4[%c0_7, %c0_8, %c0_9] : memref<4x1x512xf32, #tpu.memory_space<vmem>>, vector<1x1x512xf32>
    %10 = vector.shape_cast %9 : vector<1x1x512xf32> to vector<1x512xf32>
    %11 = vector.broadcast %10 : vector<1x512xf32> to vector<16x512xf32>
    %12 = arith.addf %8, %11 : vector<16x512xf32>
    %13 = vector.shape_cast %12 : vector<16x512xf32> to vector<8x2x512xf32>
    %c0_10 = arith.constant 0 : index
    %c0_11 = arith.constant 0 : index
    %c0_12 = arith.constant 0 : index
    %c0_13 = arith.constant 0 : index
    %14 = vector.load %arg8[%c0_10, %c0_11, %c0_12, %c0_13] : memref<8x4x2x512xf32, #tpu.memory_space<vmem>>, vector<8x1x2x512xf32>
    %15 = vector.shape_cast %14 : vector<8x1x2x512xf32> to vector<8x2x512xf32>
    %16 = vector.shape_cast %13 : vector<8x2x512xf32> to vector<8x1x2x512xf32>
    tpu.vector_store %arg8[%c0_10, %c0_11, %c0_12, %c0_13], %16 {strides = array<i32>} : memref<8x4x2x512xf32, #tpu.memory_space<vmem>>, vector<8x1x2x512xf32>,
    %c0_14 = arith.constant 0 : index
    %c1 = arith.constant 1 : index
    %c0_15 = arith.constant 0 : index
    %c0_16 = arith.constant 0 : index
    %17 = vector.load %arg1[%c0_14, %c1, %c0_15, %c0_16] : memref<8x4x2x32xbf16, #tpu.memory_space<vmem>>, vector<8x1x2x32xbf16>
    %18 = vector.shape_cast %17 : vector<8x1x2x32xbf16> to vector<8x2x32xbf16>
    %19 = vector.shape_cast %18 : vector<8x2x32xbf16> to vector<16x32xbf16>
    %c1_17 = arith.constant 1 : index
    %c0_18 = arith.constant 0 : index
    %c0_19 = arith.constant 0 : index
    %20 = vector.load %arg2[%c1_17, %c0_18, %c0_19] : memref<4x32x512xbf16, #tpu.memory_space<vmem>>, vector<1x32x512xbf16>
    %21 = vector.shape_cast %20 : vector<1x32x512xbf16> to vector<32x512xbf16>
    %cst_20 = arith.constant dense<0.000000e+00> : vector<16x512xf32>
    %22 = tpu.matmul %19, %21, %cst_20 {dimension_numbers = #tpu.dot_dimension_numbers<[1], [0], [0], [1], [0, 0, 1, 1], [], []>} : vector<16x32xbf16>, vector<32x512xbf16>, vector<16x512xf32> -> vector<16x512xf32>
    %c1_21 = arith.constant 1 : index
    %c0_22 = arith.constant 0 : index
    %c0_23 = arith.constant 0 : index
    %23 = vector.load %arg4[%c1_21, %c0_22, %c0_23] : memref<4x1x512xf32, #tpu.memory_space<vmem>>, vector<1x1x512xf32>
    %24 = vector.shape_cast %23 : vector<1x1x512xf32> to vector<1x512xf32>
    %25 = vector.broadcast %24 : vector<1x512xf32> to vector<16x512xf32>
    %26 = arith.addf %22, %25 : vector<16x512xf32>
    %27 = vector.shape_cast %26 : vector<16x512xf32> to vector<8x2x512xf32>
    %c0_24 = arith.constant 0 : index
    %c1_25 = arith.constant 1 : index
    %c0_26 = arith.constant 0 : index
    %c0_27 = arith.constant 0 : index
    %28 = vector.load %arg8[%c0_24, %c1_25, %c0_26, %c0_27] : memref<8x4x2x512xf32, #tpu.memory_space<vmem>>, vector<8x1x2x512xf32>
    %29 = vector.shape_cast %28 : vector<8x1x2x512xf32> to vector<8x2x512xf32>
    %30 = vector.shape_cast %27 : vector<8x2x512xf32> to vector<8x1x2x512xf32>
    tpu.vector_store %arg8[%c0_24, %c1_25, %c0_26, %c0_27], %30 {strides = array<i32>} : memref<8x4x2x512xf32, #tpu.memory_space<vmem>>, vector<8x1x2x512xf32>,
    %c0_28 = arith.constant 0 : index
    %c2 = arith.constant 2 : index
    %c0_29 = arith.constant 0 : index
    %c0_30 = arith.constant 0 : index
    %31 = vector.load %arg1[%c0_28, %c2, %c0_29, %c0_30] : memref<8x4x2x32xbf16, #tpu.memory_space<vmem>>, vector<8x1x2x32xbf16>
    %32 = vector.shape_cast %31 : vector<8x1x2x32xbf16> to vector<8x2x32xbf16>
    %33 = vector.shape_cast %32 : vector<8x2x32xbf16> to vector<16x32xbf16>
    %c2_31 = arith.constant 2 : index
    %c0_32 = arith.constant 0 : index
    %c0_33 = arith.constant 0 : index
    %34 = vector.load %arg2[%c2_31, %c0_32, %c0_33] : memref<4x32x512xbf16, #tpu.memory_space<vmem>>, vector<1x32x512xbf16>
    %35 = vector.shape_cast %34 : vector<1x32x512xbf16> to vector<32x512xbf16>
    %cst_34 = arith.constant dense<0.000000e+00> : vector<16x512xf32>
    %36 = tpu.matmul %33, %35, %cst_34 {dimension_numbers = #tpu.dot_dimension_numbers<[1], [0], [0], [1], [0, 0, 1, 1], [], []>} : vector<16x32xbf16>, vector<32x512xbf16>, vector<16x512xf32> -> vector<16x512xf32>
    %c2_35 = arith.constant 2 : index
    %c0_36 = arith.constant 0 : index
    %c0_37 = arith.constant 0 : index
    %37 = vector.load %arg4[%c2_35, %c0_36, %c0_37] : memref<4x1x512xf32, #tpu.memory_space<vmem>>, vector<1x1x512xf32>
    %38 = vector.shape_cast %37 : vector<1x1x512xf32> to vector<1x512xf32>
    %39 = vector.broadcast %38 : vector<1x512xf32> to vector<16x512xf32>
    %40 = arith.addf %36, %39 : vector<16x512xf32>
    %41 = vector.shape_cast %40 : vector<16x512xf32> to vector<8x2x512xf32>
    %c0_38 = arith.constant 0 : index
    %c2_39 = arith.constant 2 : index
    %c0_40 = arith.constant 0 : index
    %c0_41 = arith.constant 0 : index
    %42 = vector.load %arg8[%c0_38, %c2_39, %c0_40, %c0_41] : memref<8x4x2x512xf32, #tpu.memory_space<vmem>>, vector<8x1x2x512xf32>
    %43 = vector.shape_cast %42 : vector<8x1x2x512xf32> to vector<8x2x512xf32>
    %44 = vector.shape_cast %41 : vector<8x2x512xf32> to vector<8x1x2x512xf32>
    tpu.vector_store %arg8[%c0_38, %c2_39, %c0_40, %c0_41], %44 {strides = array<i32>} : memref<8x4x2x512xf32, #tpu.memory_space<vmem>>, vector<8x1x2x512xf32>,
    %c0_42 = arith.constant 0 : index
    %c3 = arith.constant 3 : index
    %c0_43 = arith.constant 0 : index
    %c0_44 = arith.constant 0 : index
    %45 = vector.load %arg1[%c0_42, %c3, %c0_43, %c0_44] : memref<8x4x2x32xbf16, #tpu.memory_space<vmem>>, vector<8x1x2x32xbf16>
    %46 = vector.shape_cast %45 : vector<8x1x2x32xbf16> to vector<8x2x32xbf16>
    %47 = vector.shape_cast %46 : vector<8x2x32xbf16> to vector<16x32xbf16>
    %c3_45 = arith.constant 3 : index
    %c0_46 = arith.constant 0 : index
    %c0_47 = arith.constant 0 : index
    %48 = vector.load %arg2[%c3_45, %c0_46, %c0_47] : memref<4x32x512xbf16, #tpu.memory_space<vmem>>, vector<1x32x512xbf16>
    %49 = vector.shape_cast %48 : vector<1x32x512xbf16> to vector<32x512xbf16>
    %cst_48 = arith.constant dense<0.000000e+00> : vector<16x512xf32>
    %50 = tpu.matmul %47, %49, %cst_48 {dimension_numbers = #tpu.dot_dimension_numbers<[1], [0], [0], [1], [0, 0, 1, 1], [], []>} : vector<16x32xbf16>, vector<32x512xbf16>, vector<16x512xf32> -> vector<16x512xf32>
    %c3_49 = arith.constant 3 : index
    %c0_50 = arith.constant 0 : index
    %c0_51 = arith.constant 0 : index
    %51 = vector.load %arg4[%c3_49, %c0_50, %c0_51] : memref<4x1x512xf32, #tpu.memory_space<vmem>>, vector<1x1x512xf32>
    %52 = vector.shape_cast %51 : vector<1x1x512xf32> to vector<1x512xf32>
    %53 = vector.broadcast %52 : vector<1x512xf32> to vector<16x512xf32>
    %54 = arith.addf %50, %53 : vector<16x512xf32>
    %55 = vector.shape_cast %54 : vector<16x512xf32> to vector<8x2x512xf32>
    %c0_52 = arith.constant 0 : index
    %c3_53 = arith.constant 3 : index
    %c0_54 = arith.constant 0 : index
    %c0_55 = arith.constant 0 : index
    %56 = vector.load %arg8[%c0_52, %c3_53, %c0_54, %c0_55] : memref<8x4x2x512xf32, #tpu.memory_space<vmem>>, vector<8x1x2x512xf32>
    %57 = vector.shape_cast %56 : vector<8x1x2x512xf32> to vector<8x2x512xf32>
    %58 = vector.shape_cast %55 : vector<8x2x512xf32> to vector<8x1x2x512xf32>
    tpu.vector_store %arg8[%c0_52, %c3_53, %c0_54, %c0_55], %58 {strides = array<i32>} : memref<8x4x2x512xf32, #tpu.memory_space<vmem>>, vector<8x1x2x512xf32>,
    %c0_56 = arith.constant 0 : index
    %c0_57 = arith.constant 0 : index
    %c0_58 = arith.constant 0 : index
    %59 = vector.load %arg3[%c0_56, %c0_57, %c0_58] : memref<4x128x512xbf16, #tpu.memory_space<vmem>>, vector<4x128x512xbf16>
    %c0_59 = arith.constant 0 : index
    %c0_60 = arith.constant 0 : index
    %c0_61 = arith.constant 0 : index
    %60 = vector.load %arg9[%c0_59, %c0_60, %c0_61] : memref<4x2x128xf32, #tpu.memory_space<vmem>>, vector<4x2x128xf32>
    %c0_62 = arith.constant 0 : index
    %c0_63 = arith.constant 0 : index
    %c0_64 = arith.constant 0 : index
    %61 = vector.load %arg10[%c0_62, %c0_63, %c0_64] : memref<4x2x128xf32, #tpu.memory_space<vmem>>, vector<4x2x128xf32>
    %c0_i32_65 = arith.constant 0 : i32
    %62 = arith.index_cast %c0_i32_65 : i32 to index
    %c0_66 = arith.constant 0 : index
    %c0_67 = arith.constant 0 : index
    %c0_68 = arith.constant 0 : index
    %63 = vector.load %arg8[%62, %c0_66, %c0_67, %c0_68] : memref<8x4x2x512xf32, #tpu.memory_space<vmem>>, vector<1x4x2x512xf32>
    %64 = vector.shape_cast %63 : vector<1x4x2x512xf32> to vector<4x2x512xf32>
    %65 = arith.truncf %60 : vector<4x2x128xf32> to vector<4x2x128xbf16>
    %cst_69 = arith.constant dense<0.000000e+00> : vector<4x2x512xf32>
    %66 = tpu.matmul %65, %59, %cst_69 {dimension_numbers = #tpu.dot_dimension_numbers<[2], [1], [1], [2], [0, 0, 0, 1, 1, 2], [0], [0]>} : vector<4x2x128xbf16>, vector<4x128x512xbf16>, vector<4x2x512xf32> -> vector<4x2x512xf32>
    %67 = arith.addf %64, %66 : vector<4x2x512xf32>
    %68 = vector.extract_strided_slice %67 {offsets = [0, 0, 0], sizes = [4, 2, 128], strides = [1, 1, 1]} : vector<4x2x512xf32> to vector<4x2x128xf32>
    %cst_70 = arith.constant 5.000000e-01 : f32
    %69 = vector.broadcast %cst_70 : f32 to vector<4x2x128xf32>
    %70 = arith.mulf %69, %68 : vector<4x2x128xf32>
    %71 = math.tanh %70 : vector<4x2x128xf32>
    %cst_71 = arith.constant 1.000000e+00 : f32
    %72 = vector.broadcast %cst_71 : f32 to vector<4x2x128xf32>
    %73 = arith.addf %71, %72 : vector<4x2x128xf32>
    %cst_72 = arith.constant 5.000000e-01 : f32
    %74 = vector.broadcast %cst_72 : f32 to vector<4x2x128xf32>
    %75 = arith.mulf %74, %73 : vector<4x2x128xf32>
    %76 = vector.extract_strided_slice %67 {offsets = [0, 0, 128], sizes = [4, 2, 128], strides = [1, 1, 1]} : vector<4x2x512xf32> to vector<4x2x128xf32>
    %cst_73 = arith.constant 5.000000e-01 : f32
    %77 = vector.broadcast %cst_73 : f32 to vector<4x2x128xf32>
    %78 = arith.mulf %77, %76 : vector<4x2x128xf32>
    %79 = math.tanh %78 : vector<4x2x128xf32>
    %cst_74 = arith.constant 1.000000e+00 : f32
    %80 = vector.broadcast %cst_74 : f32 to vector<4x2x128xf32>
    %81 = arith.addf %79, %80 : vector<4x2x128xf32>
    %cst_75 = arith.constant 5.000000e-01 : f32
    %82 = vector.broadcast %cst_75 : f32 to vector<4x2x128xf32>
    %83 = arith.mulf %82, %81 : vector<4x2x128xf32>
    %84 = vector.extract_strided_slice %67 {offsets = [0, 0, 256], sizes = [4, 2, 128], strides = [1, 1, 1]} : vector<4x2x512xf32> to vector<4x2x128xf32>
    %85 = math.tanh %84 : vector<4x2x128xf32>
    %86 = vector.extract_strided_slice %67 {offsets = [0, 0, 384], sizes = [4, 2, 128], strides = [1, 1, 1]} : vector<4x2x512xf32> to vector<4x2x128xf32>
    %cst_76 = arith.constant 5.000000e-01 : f32
    %87 = vector.broadcast %cst_76 : f32 to vector<4x2x128xf32>
    %88 = arith.mulf %87, %86 : vector<4x2x128xf32>
    %89 = math.tanh %88 : vector<4x2x128xf32>
    %cst_77 = arith.constant 1.000000e+00 : f32
    %90 = vector.broadcast %cst_77 : f32 to vector<4x2x128xf32>
    %91 = arith.addf %89, %90 : vector<4x2x128xf32>
    %cst_78 = arith.constant 5.000000e-01 : f32
    %92 = vector.broadcast %cst_78 : f32 to vector<4x2x128xf32>
    %93 = arith.mulf %92, %91 : vector<4x2x128xf32>
    %94 = arith.mulf %83, %61 : vector<4x2x128xf32>
    %95 = arith.mulf %75, %85 : vector<4x2x128xf32>
    %96 = arith.addf %94, %95 : vector<4x2x128xf32>
    %97 = math.tanh %96 : vector<4x2x128xf32>
    %98 = arith.mulf %93, %97 : vector<4x2x128xf32>
    %c1_i32 = arith.constant 1 : i32
    %99 = arith.index_cast %c1_i32 : i32 to index
    %c0_79 = arith.constant 0 : index
    %c0_80 = arith.constant 0 : index
    %c0_81 = arith.constant 0 : index
    %100 = vector.load %arg8[%99, %c0_79, %c0_80, %c0_81] : memref<8x4x2x512xf32, #tpu.memory_space<vmem>>, vector<1x4x2x512xf32>
    %101 = vector.shape_cast %100 : vector<1x4x2x512xf32> to vector<4x2x512xf32>
    %102 = arith.truncf %98 : vector<4x2x128xf32> to vector<4x2x128xbf16>
    %cst_82 = arith.constant dense<0.000000e+00> : vector<4x2x512xf32>
    %103 = tpu.matmul %102, %59, %cst_82 {dimension_numbers = #tpu.dot_dimension_numbers<[2], [1], [1], [2], [0, 0, 0, 1, 1, 2], [0], [0]>} : vector<4x2x128xbf16>, vector<4x128x512xbf16>, vector<4x2x512xf32> -> vector<4x2x512xf32>
    %104 = arith.addf %101, %103 : vector<4x2x512xf32>
    %105 = vector.extract_strided_slice %104 {offsets = [0, 0, 0], sizes = [4, 2, 128], strides = [1, 1, 1]} : vector<4x2x512xf32> to vector<4x2x128xf32>
    %cst_83 = arith.constant 5.000000e-01 : f32
    %106 = vector.broadcast %cst_83 : f32 to vector<4x2x128xf32>
    %107 = arith.mulf %106, %105 : vector<4x2x128xf32>
    %108 = math.tanh %107 : vector<4x2x128xf32>
    %cst_84 = arith.constant 1.000000e+00 : f32
    %109 = vector.broadcast %cst_84 : f32 to vector<4x2x128xf32>
    %110 = arith.addf %108, %109 : vector<4x2x128xf32>
    %cst_85 = arith.constant 5.000000e-01 : f32
    %111 = vector.broadcast %cst_85 : f32 to vector<4x2x128xf32>
    %112 = arith.mulf %111, %110 : vector<4x2x128xf32>
    %113 = vector.extract_strided_slice %104 {offsets = [0, 0, 128], sizes = [4, 2, 128], strides = [1, 1, 1]} : vector<4x2x512xf32> to vector<4x2x128xf32>
    %cst_86 = arith.constant 5.000000e-01 : f32
    %114 = vector.broadcast %cst_86 : f32 to vector<4x2x128xf32>
    %115 = arith.mulf %114, %113 : vector<4x2x128xf32>
    %116 = math.tanh %115 : vector<4x2x128xf32>
    %cst_87 = arith.constant 1.000000e+00 : f32
    %117 = vector.broadcast %cst_87 : f32 to vector<4x2x128xf32>
    %118 = arith.addf %116, %117 : vector<4x2x128xf32>
    %cst_88 = arith.constant 5.000000e-01 : f32
    %119 = vector.broadcast %cst_88 : f32 to vector<4x2x128xf32>
    %120 = arith.mulf %119, %118 : vector<4x2x128xf32>
    %121 = vector.extract_strided_slice %104 {offsets = [0, 0, 256], sizes = [4, 2, 128], strides = [1, 1, 1]} : vector<4x2x512xf32> to vector<4x2x128xf32>
    %122 = math.tanh %121 : vector<4x2x128xf32>
    %123 = vector.extract_strided_slice %104 {offsets = [0, 0, 384], sizes = [4, 2, 128], strides = [1, 1, 1]} : vector<4x2x512xf32> to vector<4x2x128xf32>
    %cst_89 = arith.constant 5.000000e-01 : f32
    %124 = vector.broadcast %cst_89 : f32 to vector<4x2x128xf32>
    %125 = arith.mulf %124, %123 : vector<4x2x128xf32>
    %126 = math.tanh %125 : vector<4x2x128xf32>
    %cst_90 = arith.constant 1.000000e+00 : f32
    %127 = vector.broadcast %cst_90 : f32 to vector<4x2x128xf32>
    %128 = arith.addf %126, %127 : vector<4x2x128xf32>
    %cst_91 = arith.constant 5.000000e-01 : f32
    %129 = vector.broadcast %cst_91 : f32 to vector<4x2x128xf32>
    %130 = arith.mulf %129, %128 : vector<4x2x128xf32>
    %131 = arith.mulf %120, %96 : vector<4x2x128xf32>
    %132 = arith.mulf %112, %122 : vector<4x2x128xf32>
    %133 = arith.addf %131, %132 : vector<4x2x128xf32>
    %134 = math.tanh %133 : vector<4x2x128xf32>
    %135 = arith.mulf %130, %134 : vector<4x2x128xf32>
    %c2_i32 = arith.constant 2 : i32
    %136 = arith.index_cast %c2_i32 : i32 to index
    %c0_92 = arith.constant 0 : index
    %c0_93 = arith.constant 0 : index
    %c0_94 = arith.constant 0 : index
    %137 = vector.load %arg8[%136, %c0_92, %c0_93, %c0_94] : memref<8x4x2x512xf32, #tpu.memory_space<vmem>>, vector<1x4x2x512xf32>
    %138 = vector.shape_cast %137 : vector<1x4x2x512xf32> to vector<4x2x512xf32>
    %139 = arith.truncf %135 : vector<4x2x128xf32> to vector<4x2x128xbf16>
    %cst_95 = arith.constant dense<0.000000e+00> : vector<4x2x512xf32>
    %140 = tpu.matmul %139, %59, %cst_95 {dimension_numbers = #tpu.dot_dimension_numbers<[2], [1], [1], [2], [0, 0, 0, 1, 1, 2], [0], [0]>} : vector<4x2x128xbf16>, vector<4x128x512xbf16>, vector<4x2x512xf32> -> vector<4x2x512xf32>
    %141 = arith.addf %138, %140 : vector<4x2x512xf32>
    %142 = vector.extract_strided_slice %141 {offsets = [0, 0, 0], sizes = [4, 2, 128], strides = [1, 1, 1]} : vector<4x2x512xf32> to vector<4x2x128xf32>
    %cst_96 = arith.constant 5.000000e-01 : f32
    %143 = vector.broadcast %cst_96 : f32 to vector<4x2x128xf32>
    %144 = arith.mulf %143, %142 : vector<4x2x128xf32>
    %145 = math.tanh %144 : vector<4x2x128xf32>
    %cst_97 = arith.constant 1.000000e+00 : f32
    %146 = vector.broadcast %cst_97 : f32 to vector<4x2x128xf32>
    %147 = arith.addf %145, %146 : vector<4x2x128xf32>
    %cst_98 = arith.constant 5.000000e-01 : f32
    %148 = vector.broadcast %cst_98 : f32 to vector<4x2x128xf32>
    %149 = arith.mulf %148, %147 : vector<4x2x128xf32>
    %150 = vector.extract_strided_slice %141 {offsets = [0, 0, 128], sizes = [4, 2, 128], strides = [1, 1, 1]} : vector<4x2x512xf32> to vector<4x2x128xf32>
    %cst_99 = arith.constant 5.000000e-01 : f32
    %151 = vector.broadcast %cst_99 : f32 to vector<4x2x128xf32>
    %152 = arith.mulf %151, %150 : vector<4x2x128xf32>
    %153 = math.tanh %152 : vector<4x2x128xf32>
    %cst_100 = arith.constant 1.000000e+00 : f32
    %154 = vector.broadcast %cst_100 : f32 to vector<4x2x128xf32>
    %155 = arith.addf %153, %154 : vector<4x2x128xf32>
    %cst_101 = arith.constant 5.000000e-01 : f32
    %156 = vector.broadcast %cst_101 : f32 to vector<4x2x128xf32>
    %157 = arith.mulf %156, %155 : vector<4x2x128xf32>
    %158 = vector.extract_strided_slice %141 {offsets = [0, 0, 256], sizes = [4, 2, 128], strides = [1, 1, 1]} : vector<4x2x512xf32> to vector<4x2x128xf32>
    %159 = math.tanh %158 : vector<4x2x128xf32>
    %160 = vector.extract_strided_slice %141 {offsets = [0, 0, 384], sizes = [4, 2, 128], strides = [1, 1, 1]} : vector<4x2x512xf32> to vector<4x2x128xf32>
    %cst_102 = arith.constant 5.000000e-01 : f32
    %161 = vector.broadcast %cst_102 : f32 to vector<4x2x128xf32>
    %162 = arith.mulf %161, %160 : vector<4x2x128xf32>
    %163 = math.tanh %162 : vector<4x2x128xf32>
    %cst_103 = arith.constant 1.000000e+00 : f32
    %164 = vector.broadcast %cst_103 : f32 to vector<4x2x128xf32>
    %165 = arith.addf %163, %164 : vector<4x2x128xf32>
    %cst_104 = arith.constant 5.000000e-01 : f32
    %166 = vector.broadcast %cst_104 : f32 to vector<4x2x128xf32>
    %167 = arith.mulf %166, %165 : vector<4x2x128xf32>
    %168 = arith.mulf %157, %133 : vector<4x2x128xf32>
    %169 = arith.mulf %149, %159 : vector<4x2x128xf32>
    %170 = arith.addf %168, %169 : vector<4x2x128xf32>
    %171 = math.tanh %170 : vector<4x2x128xf32>
    %172 = arith.mulf %167, %171 : vector<4x2x128xf32>
    %c3_i32 = arith.constant 3 : i32
    %173 = arith.index_cast %c3_i32 : i32 to index
    %c0_105 = arith.constant 0 : index
    %c0_106 = arith.constant 0 : index
    %c0_107 = arith.constant 0 : index
    %174 = vector.load %arg8[%173, %c0_105, %c0_106, %c0_107] : memref<8x4x2x512xf32, #tpu.memory_space<vmem>>, vector<1x4x2x512xf32>
    %175 = vector.shape_cast %174 : vector<1x4x2x512xf32> to vector<4x2x512xf32>
    %176 = arith.truncf %172 : vector<4x2x128xf32> to vector<4x2x128xbf16>
    %cst_108 = arith.constant dense<0.000000e+00> : vector<4x2x512xf32>
    %177 = tpu.matmul %176, %59, %cst_108 {dimension_numbers = #tpu.dot_dimension_numbers<[2], [1], [1], [2], [0, 0, 0, 1, 1, 2], [0], [0]>} : vector<4x2x128xbf16>, vector<4x128x512xbf16>, vector<4x2x512xf32> -> vector<4x2x512xf32>
    %178 = arith.addf %175, %177 : vector<4x2x512xf32>
    %179 = vector.extract_strided_slice %178 {offsets = [0, 0, 0], sizes = [4, 2, 128], strides = [1, 1, 1]} : vector<4x2x512xf32> to vector<4x2x128xf32>
    %cst_109 = arith.constant 5.000000e-01 : f32
    %180 = vector.broadcast %cst_109 : f32 to vector<4x2x128xf32>
    %181 = arith.mulf %180, %179 : vector<4x2x128xf32>
    %182 = math.tanh %181 : vector<4x2x128xf32>
    %cst_110 = arith.constant 1.000000e+00 : f32
    %183 = vector.broadcast %cst_110 : f32 to vector<4x2x128xf32>
    %184 = arith.addf %182, %183 : vector<4x2x128xf32>
    %cst_111 = arith.constant 5.000000e-01 : f32
    %185 = vector.broadcast %cst_111 : f32 to vector<4x2x128xf32>
    %186 = arith.mulf %185, %184 : vector<4x2x128xf32>
    %187 = vector.extract_strided_slice %178 {offsets = [0, 0, 128], sizes = [4, 2, 128], strides = [1, 1, 1]} : vector<4x2x512xf32> to vector<4x2x128xf32>
    %cst_112 = arith.constant 5.000000e-01 : f32
    %188 = vector.broadcast %cst_112 : f32 to vector<4x2x128xf32>
    %189 = arith.mulf %188, %187 : vector<4x2x128xf32>
    %190 = math.tanh %189 : vector<4x2x128xf32>
    %cst_113 = arith.constant 1.000000e+00 : f32
    %191 = vector.broadcast %cst_113 : f32 to vector<4x2x128xf32>
    %192 = arith.addf %190, %191 : vector<4x2x128xf32>
    %cst_114 = arith.constant 5.000000e-01 : f32
    %193 = vector.broadcast %cst_114 : f32 to vector<4x2x128xf32>
    %194 = arith.mulf %193, %192 : vector<4x2x128xf32>
    %195 = vector.extract_strided_slice %178 {offsets = [0, 0, 256], sizes = [4, 2, 128], strides = [1, 1, 1]} : vector<4x2x512xf32> to vector<4x2x128xf32>
    %196 = math.tanh %195 : vector<4x2x128xf32>
    %197 = vector.extract_strided_slice %178 {offsets = [0, 0, 384], sizes = [4, 2, 128], strides = [1, 1, 1]} : vector<4x2x512xf32> to vector<4x2x128xf32>
    %cst_115 = arith.constant 5.000000e-01 : f32
    %198 = vector.broadcast %cst_115 : f32 to vector<4x2x128xf32>
    %199 = arith.mulf %198, %197 : vector<4x2x128xf32>
    %200 = math.tanh %199 : vector<4x2x128xf32>
    %cst_116 = arith.constant 1.000000e+00 : f32
    %201 = vector.broadcast %cst_116 : f32 to vector<4x2x128xf32>
    %202 = arith.addf %200, %201 : vector<4x2x128xf32>
    %cst_117 = arith.constant 5.000000e-01 : f32
    %203 = vector.broadcast %cst_117 : f32 to vector<4x2x128xf32>
    %204 = arith.mulf %203, %202 : vector<4x2x128xf32>
    %205 = arith.mulf %194, %170 : vector<4x2x128xf32>
    %206 = arith.mulf %186, %196 : vector<4x2x128xf32>
    %207 = arith.addf %205, %206 : vector<4x2x128xf32>
    %208 = math.tanh %207 : vector<4x2x128xf32>
    %209 = arith.mulf %204, %208 : vector<4x2x128xf32>
    %c4_i32 = arith.constant 4 : i32
    %210 = arith.index_cast %c4_i32 : i32 to index
    %c0_118 = arith.constant 0 : index
    %c0_119 = arith.constant 0 : index
    %c0_120 = arith.constant 0 : index
    %211 = vector.load %arg8[%210, %c0_118, %c0_119, %c0_120] : memref<8x4x2x512xf32, #tpu.memory_space<vmem>>, vector<1x4x2x512xf32>
    %212 = vector.shape_cast %211 : vector<1x4x2x512xf32> to vector<4x2x512xf32>
    %213 = arith.truncf %209 : vector<4x2x128xf32> to vector<4x2x128xbf16>
    %cst_121 = arith.constant dense<0.000000e+00> : vector<4x2x512xf32>
    %214 = tpu.matmul %213, %59, %cst_121 {dimension_numbers = #tpu.dot_dimension_numbers<[2], [1], [1], [2], [0, 0, 0, 1, 1, 2], [0], [0]>} : vector<4x2x128xbf16>, vector<4x128x512xbf16>, vector<4x2x512xf32> -> vector<4x2x512xf32>
    %215 = arith.addf %212, %214 : vector<4x2x512xf32>
    %216 = vector.extract_strided_slice %215 {offsets = [0, 0, 0], sizes = [4, 2, 128], strides = [1, 1, 1]} : vector<4x2x512xf32> to vector<4x2x128xf32>
    %cst_122 = arith.constant 5.000000e-01 : f32
    %217 = vector.broadcast %cst_122 : f32 to vector<4x2x128xf32>
    %218 = arith.mulf %217, %216 : vector<4x2x128xf32>
    %219 = math.tanh %218 : vector<4x2x128xf32>
    %cst_123 = arith.constant 1.000000e+00 : f32
    %220 = vector.broadcast %cst_123 : f32 to vector<4x2x128xf32>
    %221 = arith.addf %219, %220 : vector<4x2x128xf32>
    %cst_124 = arith.constant 5.000000e-01 : f32
    %222 = vector.broadcast %cst_124 : f32 to vector<4x2x128xf32>
    %223 = arith.mulf %222, %221 : vector<4x2x128xf32>
    %224 = vector.extract_strided_slice %215 {offsets = [0, 0, 128], sizes = [4, 2, 128], strides = [1, 1, 1]} : vector<4x2x512xf32> to vector<4x2x128xf32>
    %cst_125 = arith.constant 5.000000e-01 : f32
    %225 = vector.broadcast %cst_125 : f32 to vector<4x2x128xf32>
    %226 = arith.mulf %225, %224 : vector<4x2x128xf32>
    %227 = math.tanh %226 : vector<4x2x128xf32>
    %cst_126 = arith.constant 1.000000e+00 : f32
    %228 = vector.broadcast %cst_126 : f32 to vector<4x2x128xf32>
    %229 = arith.addf %227, %228 : vector<4x2x128xf32>
    %cst_127 = arith.constant 5.000000e-01 : f32
    %230 = vector.broadcast %cst_127 : f32 to vector<4x2x128xf32>
    %231 = arith.mulf %230, %229 : vector<4x2x128xf32>
    %232 = vector.extract_strided_slice %215 {offsets = [0, 0, 256], sizes = [4, 2, 128], strides = [1, 1, 1]} : vector<4x2x512xf32> to vector<4x2x128xf32>
    %233 = math.tanh %232 : vector<4x2x128xf32>
    %234 = vector.extract_strided_slice %215 {offsets = [0, 0, 384], sizes = [4, 2, 128], strides = [1, 1, 1]} : vector<4x2x512xf32> to vector<4x2x128xf32>
    %cst_128 = arith.constant 5.000000e-01 : f32
    %235 = vector.broadcast %cst_128 : f32 to vector<4x2x128xf32>
    %236 = arith.mulf %235, %234 : vector<4x2x128xf32>
    %237 = math.tanh %236 : vector<4x2x128xf32>
    %cst_129 = arith.constant 1.000000e+00 : f32
    %238 = vector.broadcast %cst_129 : f32 to vector<4x2x128xf32>
    %239 = arith.addf %237, %238 : vector<4x2x128xf32>
    %cst_130 = arith.constant 5.000000e-01 : f32
    %240 = vector.broadcast %cst_130 : f32 to vector<4x2x128xf32>
    %241 = arith.mulf %240, %239 : vector<4x2x128xf32>
    %242 = arith.mulf %231, %207 : vector<4x2x128xf32>
    %243 = arith.mulf %223, %233 : vector<4x2x128xf32>
    %244 = arith.addf %242, %243 : vector<4x2x128xf32>
    %245 = math.tanh %244 : vector<4x2x128xf32>
    %246 = arith.mulf %241, %245 : vector<4x2x128xf32>
    %c5_i32 = arith.constant 5 : i32
    %247 = arith.index_cast %c5_i32 : i32 to index
    %c0_131 = arith.constant 0 : index
    %c0_132 = arith.constant 0 : index
    %c0_133 = arith.constant 0 : index
    %248 = vector.load %arg8[%247, %c0_131, %c0_132, %c0_133] : memref<8x4x2x512xf32, #tpu.memory_space<vmem>>, vector<1x4x2x512xf32>
    %249 = vector.shape_cast %248 : vector<1x4x2x512xf32> to vector<4x2x512xf32>
    %250 = arith.truncf %246 : vector<4x2x128xf32> to vector<4x2x128xbf16>
    %cst_134 = arith.constant dense<0.000000e+00> : vector<4x2x512xf32>
    %251 = tpu.matmul %250, %59, %cst_134 {dimension_numbers = #tpu.dot_dimension_numbers<[2], [1], [1], [2], [0, 0, 0, 1, 1, 2], [0], [0]>} : vector<4x2x128xbf16>, vector<4x128x512xbf16>, vector<4x2x512xf32> -> vector<4x2x512xf32>
    %252 = arith.addf %249, %251 : vector<4x2x512xf32>
    %253 = vector.extract_strided_slice %252 {offsets = [0, 0, 0], sizes = [4, 2, 128], strides = [1, 1, 1]} : vector<4x2x512xf32> to vector<4x2x128xf32>
    %cst_135 = arith.constant 5.000000e-01 : f32
    %254 = vector.broadcast %cst_135 : f32 to vector<4x2x128xf32>
    %255 = arith.mulf %254, %253 : vector<4x2x128xf32>
    %256 = math.tanh %255 : vector<4x2x128xf32>
    %cst_136 = arith.constant 1.000000e+00 : f32
    %257 = vector.broadcast %cst_136 : f32 to vector<4x2x128xf32>
    %258 = arith.addf %256, %257 : vector<4x2x128xf32>
    %cst_137 = arith.constant 5.000000e-01 : f32
    %259 = vector.broadcast %cst_137 : f32 to vector<4x2x128xf32>
    %260 = arith.mulf %259, %258 : vector<4x2x128xf32>
    %261 = vector.extract_strided_slice %252 {offsets = [0, 0, 128], sizes = [4, 2, 128], strides = [1, 1, 1]} : vector<4x2x512xf32> to vector<4x2x128xf32>
    %cst_138 = arith.constant 5.000000e-01 : f32
    %262 = vector.broadcast %cst_138 : f32 to vector<4x2x128xf32>
    %263 = arith.mulf %262, %261 : vector<4x2x128xf32>
    %264 = math.tanh %263 : vector<4x2x128xf32>
    %cst_139 = arith.constant 1.000000e+00 : f32
    %265 = vector.broadcast %cst_139 : f32 to vector<4x2x128xf32>
    %266 = arith.addf %264, %265 : vector<4x2x128xf32>
    %cst_140 = arith.constant 5.000000e-01 : f32
    %267 = vector.broadcast %cst_140 : f32 to vector<4x2x128xf32>
    %268 = arith.mulf %267, %266 : vector<4x2x128xf32>
    %269 = vector.extract_strided_slice %252 {offsets = [0, 0, 256], sizes = [4, 2, 128], strides = [1, 1, 1]} : vector<4x2x512xf32> to vector<4x2x128xf32>
    %270 = math.tanh %269 : vector<4x2x128xf32>
    %271 = vector.extract_strided_slice %252 {offsets = [0, 0, 384], sizes = [4, 2, 128], strides = [1, 1, 1]} : vector<4x2x512xf32> to vector<4x2x128xf32>
    %cst_141 = arith.constant 5.000000e-01 : f32
    %272 = vector.broadcast %cst_141 : f32 to vector<4x2x128xf32>
    %273 = arith.mulf %272, %271 : vector<4x2x128xf32>
    %274 = math.tanh %273 : vector<4x2x128xf32>
    %cst_142 = arith.constant 1.000000e+00 : f32
    %275 = vector.broadcast %cst_142 : f32 to vector<4x2x128xf32>
    %276 = arith.addf %274, %275 : vector<4x2x128xf32>
    %cst_143 = arith.constant 5.000000e-01 : f32
    %277 = vector.broadcast %cst_143 : f32 to vector<4x2x128xf32>
    %278 = arith.mulf %277, %276 : vector<4x2x128xf32>
    %279 = arith.mulf %268, %244 : vector<4x2x128xf32>
    %280 = arith.mulf %260, %270 : vector<4x2x128xf32>
    %281 = arith.addf %279, %280 : vector<4x2x128xf32>
    %282 = math.tanh %281 : vector<4x2x128xf32>
    %283 = arith.mulf %278, %282 : vector<4x2x128xf32>
    %c6_i32 = arith.constant 6 : i32
    %284 = arith.index_cast %c6_i32 : i32 to index
    %c0_144 = arith.constant 0 : index
    %c0_145 = arith.constant 0 : index
    %c0_146 = arith.constant 0 : index
    %285 = vector.load %arg8[%284, %c0_144, %c0_145, %c0_146] : memref<8x4x2x512xf32, #tpu.memory_space<vmem>>, vector<1x4x2x512xf32>
    %286 = vector.shape_cast %285 : vector<1x4x2x512xf32> to vector<4x2x512xf32>
    %287 = arith.truncf %283 : vector<4x2x128xf32> to vector<4x2x128xbf16>
    %cst_147 = arith.constant dense<0.000000e+00> : vector<4x2x512xf32>
    %288 = tpu.matmul %287, %59, %cst_147 {dimension_numbers = #tpu.dot_dimension_numbers<[2], [1], [1], [2], [0, 0, 0, 1, 1, 2], [0], [0]>} : vector<4x2x128xbf16>, vector<4x128x512xbf16>, vector<4x2x512xf32> -> vector<4x2x512xf32>
    %289 = arith.addf %286, %288 : vector<4x2x512xf32>
    %290 = vector.extract_strided_slice %289 {offsets = [0, 0, 0], sizes = [4, 2, 128], strides = [1, 1, 1]} : vector<4x2x512xf32> to vector<4x2x128xf32>
    %cst_148 = arith.constant 5.000000e-01 : f32
    %291 = vector.broadcast %cst_148 : f32 to vector<4x2x128xf32>
    %292 = arith.mulf %291, %290 : vector<4x2x128xf32>
    %293 = math.tanh %292 : vector<4x2x128xf32>
    %cst_149 = arith.constant 1.000000e+00 : f32
    %294 = vector.broadcast %cst_149 : f32 to vector<4x2x128xf32>
    %295 = arith.addf %293, %294 : vector<4x2x128xf32>
    %cst_150 = arith.constant 5.000000e-01 : f32
    %296 = vector.broadcast %cst_150 : f32 to vector<4x2x128xf32>
    %297 = arith.mulf %296, %295 : vector<4x2x128xf32>
    %298 = vector.extract_strided_slice %289 {offsets = [0, 0, 128], sizes = [4, 2, 128], strides = [1, 1, 1]} : vector<4x2x512xf32> to vector<4x2x128xf32>
    %cst_151 = arith.constant 5.000000e-01 : f32
    %299 = vector.broadcast %cst_151 : f32 to vector<4x2x128xf32>
    %300 = arith.mulf %299, %298 : vector<4x2x128xf32>
    %301 = math.tanh %300 : vector<4x2x128xf32>
    %cst_152 = arith.constant 1.000000e+00 : f32
    %302 = vector.broadcast %cst_152 : f32 to vector<4x2x128xf32>
    %303 = arith.addf %301, %302 : vector<4x2x128xf32>
    %cst_153 = arith.constant 5.000000e-01 : f32
    %304 = vector.broadcast %cst_153 : f32 to vector<4x2x128xf32>
    %305 = arith.mulf %304, %303 : vector<4x2x128xf32>
    %306 = vector.extract_strided_slice %289 {offsets = [0, 0, 256], sizes = [4, 2, 128], strides = [1, 1, 1]} : vector<4x2x512xf32> to vector<4x2x128xf32>
    %307 = math.tanh %306 : vector<4x2x128xf32>
    %308 = vector.extract_strided_slice %289 {offsets = [0, 0, 384], sizes = [4, 2, 128], strides = [1, 1, 1]} : vector<4x2x512xf32> to vector<4x2x128xf32>
    %cst_154 = arith.constant 5.000000e-01 : f32
    %309 = vector.broadcast %cst_154 : f32 to vector<4x2x128xf32>
    %310 = arith.mulf %309, %308 : vector<4x2x128xf32>
    %311 = math.tanh %310 : vector<4x2x128xf32>
    %cst_155 = arith.constant 1.000000e+00 : f32
    %312 = vector.broadcast %cst_155 : f32 to vector<4x2x128xf32>
    %313 = arith.addf %311, %312 : vector<4x2x128xf32>
    %cst_156 = arith.constant 5.000000e-01 : f32
    %314 = vector.broadcast %cst_156 : f32 to vector<4x2x128xf32>
    %315 = arith.mulf %314, %313 : vector<4x2x128xf32>
    %316 = arith.mulf %305, %281 : vector<4x2x128xf32>
    %317 = arith.mulf %297, %307 : vector<4x2x128xf32>
    %318 = arith.addf %316, %317 : vector<4x2x128xf32>
    %319 = math.tanh %318 : vector<4x2x128xf32>
    %320 = arith.mulf %315, %319 : vector<4x2x128xf32>
    %c7_i32 = arith.constant 7 : i32
    %321 = arith.index_cast %c7_i32 : i32 to index
    %c0_157 = arith.constant 0 : index
    %c0_158 = arith.constant 0 : index
    %c0_159 = arith.constant 0 : index
    %322 = vector.load %arg8[%321, %c0_157, %c0_158, %c0_159] : memref<8x4x2x512xf32, #tpu.memory_space<vmem>>, vector<1x4x2x512xf32>
    %323 = vector.shape_cast %322 : vector<1x4x2x512xf32> to vector<4x2x512xf32>
    %324 = arith.truncf %320 : vector<4x2x128xf32> to vector<4x2x128xbf16>
    %cst_160 = arith.constant dense<0.000000e+00> : vector<4x2x512xf32>
    %325 = tpu.matmul %324, %59, %cst_160 {dimension_numbers = #tpu.dot_dimension_numbers<[2], [1], [1], [2], [0, 0, 0, 1, 1, 2], [0], [0]>} : vector<4x2x128xbf16>, vector<4x128x512xbf16>, vector<4x2x512xf32> -> vector<4x2x512xf32>
    %326 = arith.addf %323, %325 : vector<4x2x512xf32>
    %327 = vector.extract_strided_slice %326 {offsets = [0, 0, 0], sizes = [4, 2, 128], strides = [1, 1, 1]} : vector<4x2x512xf32> to vector<4x2x128xf32>
    %cst_161 = arith.constant 5.000000e-01 : f32
    %328 = vector.broadcast %cst_161 : f32 to vector<4x2x128xf32>
    %329 = arith.mulf %328, %327 : vector<4x2x128xf32>
    %330 = math.tanh %329 : vector<4x2x128xf32>
    %cst_162 = arith.constant 1.000000e+00 : f32
    %331 = vector.broadcast %cst_162 : f32 to vector<4x2x128xf32>
    %332 = arith.addf %330, %331 : vector<4x2x128xf32>
    %cst_163 = arith.constant 5.000000e-01 : f32
    %333 = vector.broadcast %cst_163 : f32 to vector<4x2x128xf32>
    %334 = arith.mulf %333, %332 : vector<4x2x128xf32>
    %335 = vector.extract_strided_slice %326 {offsets = [0, 0, 128], sizes = [4, 2, 128], strides = [1, 1, 1]} : vector<4x2x512xf32> to vector<4x2x128xf32>
    %cst_164 = arith.constant 5.000000e-01 : f32
    %336 = vector.broadcast %cst_164 : f32 to vector<4x2x128xf32>
    %337 = arith.mulf %336, %335 : vector<4x2x128xf32>
    %338 = math.tanh %337 : vector<4x2x128xf32>
    %cst_165 = arith.constant 1.000000e+00 : f32
    %339 = vector.broadcast %cst_165 : f32 to vector<4x2x128xf32>
    %340 = arith.addf %338, %339 : vector<4x2x128xf32>
    %cst_166 = arith.constant 5.000000e-01 : f32
    %341 = vector.broadcast %cst_166 : f32 to vector<4x2x128xf32>
    %342 = arith.mulf %341, %340 : vector<4x2x128xf32>
    %343 = vector.extract_strided_slice %326 {offsets = [0, 0, 256], sizes = [4, 2, 128], strides = [1, 1, 1]} : vector<4x2x512xf32> to vector<4x2x128xf32>
    %344 = math.tanh %343 : vector<4x2x128xf32>
    %345 = vector.extract_strided_slice %326 {offsets = [0, 0, 384], sizes = [4, 2, 128], strides = [1, 1, 1]} : vector<4x2x512xf32> to vector<4x2x128xf32>
    %cst_167 = arith.constant 5.000000e-01 : f32
    %346 = vector.broadcast %cst_167 : f32 to vector<4x2x128xf32>
    %347 = arith.mulf %346, %345 : vector<4x2x128xf32>
    %348 = math.tanh %347 : vector<4x2x128xf32>
    %cst_168 = arith.constant 1.000000e+00 : f32
    %349 = vector.broadcast %cst_168 : f32 to vector<4x2x128xf32>
    %350 = arith.addf %348, %349 : vector<4x2x128xf32>
    %cst_169 = arith.constant 5.000000e-01 : f32
    %351 = vector.broadcast %cst_169 : f32 to vector<4x2x128xf32>
    %352 = arith.mulf %351, %350 : vector<4x2x128xf32>
    %353 = arith.mulf %342, %318 : vector<4x2x128xf32>
    %354 = arith.mulf %334, %344 : vector<4x2x128xf32>
    %355 = arith.addf %353, %354 : vector<4x2x128xf32>
    %356 = math.tanh %355 : vector<4x2x128xf32>
    %357 = arith.mulf %352, %356 : vector<4x2x128xf32>
    %c8_i32 = arith.constant 8 : i32
    %c0_170 = arith.constant 0 : index
    %c0_171 = arith.constant 0 : index
    %c0_172 = arith.constant 0 : index
    %358 = vector.load %arg9[%c0_170, %c0_171, %c0_172] : memref<4x2x128xf32, #tpu.memory_space<vmem>>, vector<4x2x128xf32>
    tpu.vector_store %arg9[%c0_170, %c0_171, %c0_172], %357 {strides = array<i32>} : memref<4x2x128xf32, #tpu.memory_space<vmem>>, vector<4x2x128xf32>,
    %c0_173 = arith.constant 0 : index
    %c0_174 = arith.constant 0 : index
    %c0_175 = arith.constant 0 : index
    %359 = vector.load %arg10[%c0_173, %c0_174, %c0_175] : memref<4x2x128xf32, #tpu.memory_space<vmem>>, vector<4x2x128xf32>
    tpu.vector_store %arg10[%c0_173, %c0_174, %c0_175], %355 {strides = array<i32>} : memref<4x2x128xf32, #tpu.memory_space<vmem>>, vector<4x2x128xf32>,
    %c1_i32_176 = arith.constant 1 : i32
    %360 = arith.cmpi eq, %arg0, %c1_i32_176 : i32
    %361 = arith.extui %360 : i1 to i32
    %c0_i32_177 = arith.constant 0 : i32
    %362 = arith.cmpi ne, %361, %c0_i32_177 : i32
    scf.if %362 {
      %cst_178 = arith.constant 0.000000e+00 : f32
      %363 = vector.broadcast %cst_178 : f32 to vector<2x128xf32>
      %c0_179 = arith.constant 0 : index
      %c0_180 = arith.constant 0 : index
      %364 = vector.load %arg6[%c0_179, %c0_180] : memref<1x128xf32, #tpu.memory_space<vmem>>, vector<1x128xf32>
      %365 = vector.broadcast %364 : vector<1x128xf32> to vector<2x128xf32>
      %366 = arith.addf %363, %365 : vector<2x128xf32>
      %367 = vector.extract_strided_slice %357 {offsets = [0, 0, 0], sizes = [1, 2, 128], strides = [1, 1, 1]} : vector<4x2x128xf32> to vector<1x2x128xf32>
      %368 = vector.shape_cast %367 : vector<1x2x128xf32> to vector<2x128xf32>
      %369 = arith.truncf %368 : vector<2x128xf32> to vector<2x128xbf16>
      %c0_181 = arith.constant 0 : index
      %c0_182 = arith.constant 0 : index
      %c0_183 = arith.constant 0 : index
      %370 = vector.load %arg5[%c0_181, %c0_182, %c0_183] : memref<4x128x128xbf16, #tpu.memory_space<vmem>>, vector<1x128x128xbf16>
      %371 = vector.shape_cast %370 : vector<1x128x128xbf16> to vector<128x128xbf16>
      %cst_184 = arith.constant dense<0.000000e+00> : vector<2x128xf32>
      %372 = tpu.matmul %369, %371, %cst_184 {dimension_numbers = #tpu.dot_dimension_numbers<[1], [0], [0], [1], [0, 0, 1, 1], [], []>} : vector<2x128xbf16>, vector<128x128xbf16>, vector<2x128xf32> -> vector<2x128xf32>
      %373 = arith.addf %366, %372 : vector<2x128xf32>
      %374 = vector.extract_strided_slice %357 {offsets = [1, 0, 0], sizes = [1, 2, 128], strides = [1, 1, 1]} : vector<4x2x128xf32> to vector<1x2x128xf32>
      %375 = vector.shape_cast %374 : vector<1x2x128xf32> to vector<2x128xf32>
      %376 = arith.truncf %375 : vector<2x128xf32> to vector<2x128xbf16>
      %c1_185 = arith.constant 1 : index
      %c0_186 = arith.constant 0 : index
      %c0_187 = arith.constant 0 : index
      %377 = vector.load %arg5[%c1_185, %c0_186, %c0_187] : memref<4x128x128xbf16, #tpu.memory_space<vmem>>, vector<1x128x128xbf16>
      %378 = vector.shape_cast %377 : vector<1x128x128xbf16> to vector<128x128xbf16>
      %cst_188 = arith.constant dense<0.000000e+00> : vector<2x128xf32>
      %379 = tpu.matmul %376, %378, %cst_188 {dimension_numbers = #tpu.dot_dimension_numbers<[1], [0], [0], [1], [0, 0, 1, 1], [], []>} : vector<2x128xbf16>, vector<128x128xbf16>, vector<2x128xf32> -> vector<2x128xf32>
      %380 = arith.addf %373, %379 : vector<2x128xf32>
      %381 = vector.extract_strided_slice %357 {offsets = [2, 0, 0], sizes = [1, 2, 128], strides = [1, 1, 1]} : vector<4x2x128xf32> to vector<1x2x128xf32>
      %382 = vector.shape_cast %381 : vector<1x2x128xf32> to vector<2x128xf32>
      %383 = arith.truncf %382 : vector<2x128xf32> to vector<2x128xbf16>
      %c2_189 = arith.constant 2 : index
      %c0_190 = arith.constant 0 : index
      %c0_191 = arith.constant 0 : index
      %384 = vector.load %arg5[%c2_189, %c0_190, %c0_191] : memref<4x128x128xbf16, #tpu.memory_space<vmem>>, vector<1x128x128xbf16>
      %385 = vector.shape_cast %384 : vector<1x128x128xbf16> to vector<128x128xbf16>
      %cst_192 = arith.constant dense<0.000000e+00> : vector<2x128xf32>
      %386 = tpu.matmul %383, %385, %cst_192 {dimension_numbers = #tpu.dot_dimension_numbers<[1], [0], [0], [1], [0, 0, 1, 1], [], []>} : vector<2x128xbf16>, vector<128x128xbf16>, vector<2x128xf32> -> vector<2x128xf32>
      %387 = arith.addf %380, %386 : vector<2x128xf32>
      %388 = vector.extract_strided_slice %357 {offsets = [3, 0, 0], sizes = [1, 2, 128], strides = [1, 1, 1]} : vector<4x2x128xf32> to vector<1x2x128xf32>
      %389 = vector.shape_cast %388 : vector<1x2x128xf32> to vector<2x128xf32>
      %390 = arith.truncf %389 : vector<2x128xf32> to vector<2x128xbf16>
      %c3_193 = arith.constant 3 : index
      %c0_194 = arith.constant 0 : index
      %c0_195 = arith.constant 0 : index
      %391 = vector.load %arg5[%c3_193, %c0_194, %c0_195] : memref<4x128x128xbf16, #tpu.memory_space<vmem>>, vector<1x128x128xbf16>
      %392 = vector.shape_cast %391 : vector<1x128x128xbf16> to vector<128x128xbf16>
      %cst_196 = arith.constant dense<0.000000e+00> : vector<2x128xf32>
      %393 = tpu.matmul %390, %392, %cst_196 {dimension_numbers = #tpu.dot_dimension_numbers<[1], [0], [0], [1], [0, 0, 1, 1], [], []>} : vector<2x128xbf16>, vector<128x128xbf16>, vector<2x128xf32> -> vector<2x128xf32>
      %394 = arith.addf %387, %393 : vector<2x128xf32>
      %cst_197 = arith.constant 5.000000e-01 : f32
      %395 = vector.broadcast %cst_197 : f32 to vector<2x128xf32>
      %396 = arith.mulf %395, %394 : vector<2x128xf32>
      %c0_198 = arith.constant 0 : index
      %c0_199 = arith.constant 0 : index
      %397 = vector.load %arg7[%c0_198, %c0_199] : memref<2x128xf32, #tpu.memory_space<vmem>>, vector<2x128xf32>
      tpu.vector_store %arg7[%c0_198, %c0_199], %396 {strides = array<i32>} : memref<2x128xf32, #tpu.memory_space<vmem>>, vector<2x128xf32>,
    } else {
    }
    return
  }
  func.func @transform_0(%arg0: i32) -> (i32, i32, i32, i32) {
    %c0_i32 = arith.constant 0 : i32
    %c0_i32_0 = arith.constant 0 : i32
    %c0_i32_1 = arith.constant 0 : i32
    %c0_i32_2 = arith.constant 0 : i32
    return %arg0, %c0_i32, %c0_i32_0, %c0_i32_1 : i32, i32, i32, i32
  }
  func.func @transform_1(%arg0: i32) -> (i32, i32, i32) {
    %c0_i32 = arith.constant 0 : i32
    %c0_i32_0 = arith.constant 0 : i32
    %c0_i32_1 = arith.constant 0 : i32
    %c0_i32_2 = arith.constant 0 : i32
    return %c0_i32, %c0_i32_0, %c0_i32_1 : i32, i32, i32
  }
  func.func @transform_2(%arg0: i32) -> (i32, i32, i32) {
    %c0_i32 = arith.constant 0 : i32
    %c0_i32_0 = arith.constant 0 : i32
    %c0_i32_1 = arith.constant 0 : i32
    %c0_i32_2 = arith.constant 0 : i32
    return %c0_i32, %c0_i32_0, %c0_i32_1 : i32, i32, i32
  }
  func.func @transform_3(%arg0: i32) -> (i32, i32, i32) {
    %c0_i32 = arith.constant 0 : i32
    %c0_i32_0 = arith.constant 0 : i32
    %c0_i32_1 = arith.constant 0 : i32
    %c0_i32_2 = arith.constant 0 : i32
    return %c0_i32, %c0_i32_0, %c0_i32_1 : i32, i32, i32
  }
  func.func @transform_4(%arg0: i32) -> (i32, i32, i32) {
    %c0_i32 = arith.constant 0 : i32
    %c0_i32_0 = arith.constant 0 : i32
    %c0_i32_1 = arith.constant 0 : i32
    %c0_i32_2 = arith.constant 0 : i32
    return %c0_i32, %c0_i32_0, %c0_i32_1 : i32, i32, i32
  }
  func.func @transform_5(%arg0: i32) -> (i32, i32) {
    %c0_i32 = arith.constant 0 : i32
    %c0_i32_0 = arith.constant 0 : i32
    %c0_i32_1 = arith.constant 0 : i32
    return %c0_i32, %c0_i32_0 : i32, i32
  }
  func.func @transform_6(%arg0: i32) -> (i32, i32) {
    %c0_i32 = arith.constant 0 : i32
    %c0_i32_0 = arith.constant 0 : i32
    %c0_i32_1 = arith.constant 0 : i32
    return %c0_i32, %c0_i32_0 : i32, i32
  }
}

</mosaic_0001>

<llo_original>
// kernel: node_forward.1
$region0: #{node_forward.1}
  #allocation0 [shape = 'u32[]', space=smem, size = 0x4, offset = 0x4, fixed_abs, tag = 'smem constant byte address 0x4 - core index']
  #allocation1 [shape = 'u32[144,128]{1,0:T(1,128)}', space=vmem, size = 0x12000, scoped, tag = 'internal scratch']
  #allocation2 [shape = 'f32[8,4,2,512]{3,2,1,0:T(2,128)}', space=vmem, size = 0x20000, scoped, tag = 'scratch operand']
  #allocation3 [shape = 'f32[4,2,128]{2,1,0:T(2,128)}', space=vmem, size = 0x1000, scoped, tag = 'scratch operand']
  #allocation4 [shape = 'f32[4,2,128]{2,1,0:T(2,128)}', space=vmem, size = 0x1000, scoped, tag = 'scratch operand']
  %s0 = inlined_call_operand.vmem [shape: bf16[16,4,2,32], index: 0, kind: input, shape index: {}]
  %s1 = inlined_call_operand.vmem [shape: bf16[4,32,512], index: 1, kind: input, shape index: {}]
  %s2 = inlined_call_operand.vmem [shape: bf16[4,128,512], index: 2, kind: input, shape index: {}]
  %s3 = inlined_call_operand.vmem [shape: f32[4,1,512], index: 3, kind: input, shape index: {}]
  %s4 = inlined_call_operand.vmem [shape: bf16[4,128,128], index: 4, kind: input, shape index: {}]
  %s5 = inlined_call_operand.vmem [shape: f32[1,128], index: 5, kind: input, shape index: {}]
  %s6 = inlined_call_operand.hbm [shape: f32[2,128], index: 6, kind: output, shape index: {}]
  %s7 = sld [smem:[#allocation0]]
  $region65: #{node_forward.1} parent=0
    _
  %s9 = ssub.s32 1, %s7
  %s10 = scalar_select 0, %s9, %s7
  $region1: #{node_forward.1} parent=0
    #allocation5 [shape = 'u8[1024]{0}', space=vmem, size = 0x400, scoped, tag = 'output window, operand 0, single buffered']
    #allocation6 [shape = 's32[2]{0}', space=sflag, size = 0x8, scoped, tag = 'scoped memory for node_forward.1']
    %11 = vsyncpa [#allocation6], 0
    loop: start=0, step=1, limit=4
    $region2: #{node_forward.1} parent=1 // loop_pre_header
      _
    $region3: #{node_forward.1} parent=1 // loop_header
      %s13 = sphi 0, %s17
      %p14 = scmp.ge.s32.totalorder %s13, 4
      %s23 = sphi 0, %s25
      %s26 = sphi 0, %s23
      %s27 = sphi 0, %s26
      %s43 = sphi 0, %s27
      %s47 = sphi 0, %s47
      %s49 = sphi 0, %s47
      %s50 = sphi 0, %s49
      %s64 = sphi 0, %s50
      %s68 = sphi 0, %s68
      %s70 = sphi 0, %s68
      %s71 = sphi 0, %s70
      %s85 = sphi 0, %s71
      %s89 = sphi 0, %s89
      %s91 = sphi 0, %s89
      %s92 = sphi 0, %s91
      %s106 = sphi 0, %s92
      %s110 = sphi 0, %s110
      %s112 = sphi 0, %s110
      %s113 = sphi 0, %s112
      %s127 = sphi 0, %s113
      %s131 = sphi 0, %s131
      %s133 = sphi 0, %s131
      %s134 = sphi 0, %s133
      %s148 = sphi 0, %s134
      %s152 = sphi 0, %s152
      %s154 = sphi 0, %s152
      %s155 = sphi 0, %s154
      %s169 = sphi 0, %s155
    $region4: #{node_forward.1} parent=1 // loop_header_branch
      %16 = sbr.rel (%p14) target = $region8
    $region5: #{node_forward.1} parent=1 // loop_body
      %s18 = ssub.s32 %s13, 1
      %s19 = ssub.s32 %s13, 2
      %s20 = sadd.s32 %s13, 1
      %s21 = ssub.s32 %s13, %s20
      %p22 = scmp.eq.s32.totalorder %s21, 0
      %s24 = sadd.s32 %s23, 1
      %s25 = scalar_select %p22, %s23, %s24
      %p28 = pneg %p22
      %p29 = scmp.eq.s32.totalorder %s13, 1
      %p30 = por %p28, %p29
      %p31 = scmp.ne.s32.totalorder %s23, %s26
      %p32 = scmp.eq.s32.totalorder %s13, 0
      %p33 = por %p31, %p32
      %p34 = scmp.ne.s32.totalorder %s23, %s26
      %p35 = scmp.eq.s32.totalorder %s18, 1
      %p36 = por %p34, %p35
      %p37 = scmp.ne.s32.totalorder %s26, %s27
      %p38 = scmp.eq.s32.totalorder %s18, 0
      %p39 = por %p37, %p38
      %p40 = scmp.ne.s32.totalorder %s26, %s27
      %p41 = scmp.eq.s32.totalorder %s19, 1
      %p42 = por %p40, %p41
      %p44 = scmp.ne.s32.totalorder %s27, %s43
      %p45 = scmp.eq.s32.totalorder %s19, 0
      %p46 = por %p44, %p45
      %s48 = sadd.s32 %s47, 1
      %p51 = scmp.eq.s32.totalorder %s13, 1
      %p52 = scmp.ne.s32.totalorder %s47, %s49
      %p53 = scmp.eq.s32.totalorder %s13, 0
      %p54 = por %p52, %p53
      %p55 = scmp.ne.s32.totalorder %s47, %s49
      %p56 = scmp.eq.s32.totalorder %s18, 1
      %p57 = por %p55, %p56
      %p58 = scmp.ne.s32.totalorder %s49, %s50
      %p59 = scmp.eq.s32.totalorder %s18, 0
      %p60 = por %p58, %p59
      %p61 = scmp.ne.s32.totalorder %s49, %s50
      %p62 = scmp.eq.s32.totalorder %s19, 1
      %p63 = por %p61, %p62
      %p65 = scmp.ne.s32.totalorder %s50, %s64
      %p66 = scmp.eq.s32.totalorder %s19, 0
      %p67 = por %p65, %p66
      %s69 = sadd.s32 %s68, 1
      %p72 = scmp.eq.s32.totalorder %s13, 1
      %p73 = scmp.ne.s32.totalorder %s68, %s70
      %p74 = scmp.eq.s32.totalorder %s13, 0
      %p75 = por %p73, %p74
      %p76 = scmp.ne.s32.totalorder %s68, %s70
      %p77 = scmp.eq.s32.totalorder %s18, 1
      %p78 = por %p76, %p77
      %p79 = scmp.ne.s32.totalorder %s70, %s71
      %p80 = scmp.eq.s32.totalorder %s18, 0
      %p81 = por %p79, %p80
      %p82 = scmp.ne.s32.totalorder %s70, %s71
      %p83 = scmp.eq.s32.totalorder %s19, 1
      %p84 = por %p82, %p83
      %p86 = scmp.ne.s32.totalorder %s71, %s85
      %p87 = scmp.eq.s32.totalorder %s19, 0
      %p88 = por %p86, %p87
      %s90 = sadd.s32 %s89, 1
      %p93 = scmp.eq.s32.totalorder %s13, 1
      %p94 = scmp.ne.s32.totalorder %s89, %s91
      %p95 = scmp.eq.s32.totalorder %s13, 0
      %p96 = por %p94, %p95
      %p97 = scmp.ne.s32.totalorder %s89, %s91
      %p98 = scmp.eq.s32.totalorder %s18, 1
      %p99 = por %p97, %p98
      %p100 = scmp.ne.s32.totalorder %s91, %s92
      %p101 = scmp.eq.s32.totalorder %s18, 0
      %p102 = por %p100, %p101
      %p103 = scmp.ne.s32.totalorder %s91, %s92
      %p104 = scmp.eq.s32.totalorder %s19, 1
      %p105 = por %p103, %p104
      %p107 = scmp.ne.s32.totalorder %s92, %s106
      %p108 = scmp.eq.s32.totalorder %s19, 0
      %p109 = por %p107, %p108
      %s111 = sadd.s32 %s110, 1
      %p114 = scmp.eq.s32.totalorder %s13, 1
      %p115 = scmp.ne.s32.totalorder %s110, %s112
      %p116 = scmp.eq.s32.totalorder %s13, 0
      %p117 = por %p115, %p116
      %p118 = scmp.ne.s32.totalorder %s110, %s112
      %p119 = scmp.eq.s32.totalorder %s18, 1
      %p120 = por %p118, %p119
      %p121 = scmp.ne.s32.totalorder %s112, %s113
      %p122 = scmp.eq.s32.totalorder %s18, 0
      %p123 = por %p121, %p122
      %p124 = scmp.ne.s32.totalorder %s112, %s113
      %p125 = scmp.eq.s32.totalorder %s19, 1
      %p126 = por %p124, %p125
      %p128 = scmp.ne.s32.totalorder %s113, %s127
      %p129 = scmp.eq.s32.totalorder %s19, 0
      %p130 = por %p128, %p129
      %s132 = sadd.s32 %s131, 1
      %p135 = scmp.eq.s32.totalorder %s13, 1
      %p136 = scmp.ne.s32.totalorder %s131, %s133
      %p137 = scmp.eq.s32.totalorder %s13, 0
      %p138 = por %p136, %p137
      %p139 = scmp.ne.s32.totalorder %s131, %s133
      %p140 = scmp.eq.s32.totalorder %s18, 1
      %p141 = por %p139, %p140
      %p142 = scmp.ne.s32.totalorder %s133, %s134
      %p143 = scmp.eq.s32.totalorder %s18, 0
      %p144 = por %p142, %p143
      %p145 = scmp.ne.s32.totalorder %s133, %s134
      %p146 = scmp.eq.s32.totalorder %s19, 1
      %p147 = por %p145, %p146
      %p149 = scmp.ne.s32.totalorder %s134, %s148
      %p150 = scmp.eq.s32.totalorder %s19, 0
      %p151 = por %p149, %p150
      %s153 = sadd.s32 %s152, 1
      %p156 = scmp.eq.s32.totalorder %s13, 1
      %p157 = scmp.ne.s32.totalorder %s152, %s154
      %p158 = scmp.eq.s32.totalorder %s13, 0
      %p159 = por %p157, %p158
      %p160 = scmp.ne.s32.totalorder %s152, %s154
      %p161 = scmp.eq.s32.totalorder %s18, 1
      %p162 = por %p160, %p161
      %p163 = scmp.ne.s32.totalorder %s154, %s155
      %p164 = scmp.eq.s32.totalorder %s18, 0
      %p165 = por %p163, %p164
      %p166 = scmp.ne.s32.totalorder %s154, %s155
      %p167 = scmp.eq.s32.totalorder %s19, 1
      %p168 = por %p166, %p167
      %p170 = scmp.ne.s32.totalorder %s155, %s169
      %p171 = scmp.eq.s32.totalorder %s19, 0
      %p172 = por %p170, %p171
      %p173 = scmp.le.s32.totalorder 1, %s13
      %p174 = scmp.lt.s32.totalorder %s13, 3
      %p175 = pnand %p173, %p174
      %p176 = pneg %p175
      // Predicated region
      $region9: #{node_forward.1} parent=5 // pred_check
        _
      $region10: #{node_forward.1} parent=5 // pred_check_branch
        %178 = sbr.rel (%p175) target = $region12
      $region11: #{node_forward.1} parent=5 // pred_region
        %s179 = ssub.s32 %s13, 1
        // Predicated region
        $region13: #{node_forward.1} parent=11 // pred_check
          %p180 = pneg %p60
        $region14: #{node_forward.1} parent=11 // pred_check_branch
          %182 = sbr.rel (%p180) target = $region16
        $region15: #{node_forward.1} parent=11 // pred_region
          _
        $region16: #{node_forward.1} parent=11 // pred_fallthru
          _
        // Predicated region
        $region17: #{node_forward.1} parent=11 // pred_check
          %p183 = pneg %p81
        $region18: #{node_forward.1} parent=11 // pred_check_branch
          %185 = sbr.rel (%p183) target = $region20
        $region19: #{node_forward.1} parent=11 // pred_region
          _
        $region20: #{node_forward.1} parent=11 // pred_fallthru
          _
        // Predicated region
        $region21: #{node_forward.1} parent=11 // pred_check
          %p186 = pneg %p102
        $region22: #{node_forward.1} parent=11 // pred_check_branch
          %188 = sbr.rel (%p186) target = $region24
        $region23: #{node_forward.1} parent=11 // pred_region
          _
        $region24: #{node_forward.1} parent=11 // pred_fallthru
          _
        // Predicated region
        $region25: #{node_forward.1} parent=11 // pred_check
          %p189 = pneg %p123
        $region26: #{node_forward.1} parent=11 // pred_check_branch
          %191 = sbr.rel (%p189) target = $region28
        $region27: #{node_forward.1} parent=11 // pred_region
          _
        $region28: #{node_forward.1} parent=11 // pred_fallthru
          _
        // Predicated region
        $region29: #{node_forward.1} parent=11 // pred_check
          %p192 = pneg %p144
        $region30: #{node_forward.1} parent=11 // pred_check_branch
          %194 = sbr.rel (%p192) target = $region32
        $region31: #{node_forward.1} parent=11 // pred_region
          _
        $region32: #{node_forward.1} parent=11 // pred_fallthru
          _
      $region12: #{node_forward.1} parent=5 // pred_fallthru
        _
      %p195 = scmp.lt.s32.totalorder %s13, 2
      // Predicated region
      $region33: #{node_forward.1} parent=5 // pred_check
        %p196 = pneg %p195
      $region34: #{node_forward.1} parent=5 // pred_check_branch
        %198 = sbr.rel (%p196) target = $region36
      $region35: #{node_forward.1} parent=5 // pred_region
        // Predicated region
        $region37: #{node_forward.1} parent=35 // pred_check
          %p199 = pneg %p33
        $region38: #{node_forward.1} parent=35 // pred_check_branch
          %201 = sbr.rel (%p199) target = $region40
        $region39: #{node_forward.1} parent=35 // pred_region
          %s202 = smul.u32 8, %s13
          %p203 = scmp.lt.s32.totalorder %s202, 15
          %s204 = scalar_select %p203, %s202, 15
          %s205 = smul.addr %s204, 4
          %s206 = scalar_lea.vmem %s0, %s205
          %s207 = smul.u32 8, %s13
        $region40: #{node_forward.1} parent=35 // pred_fallthru
          _
      $region36: #{node_forward.1} parent=5 // pred_fallthru
        _
      %p208 = scmp.le.s32.totalorder 1, %s13
      %p209 = scmp.lt.s32.totalorder %s13, 3
      %p210 = pnand %p208, %p209
      %p211 = pneg %p210
      // Predicated region
      $region41: #{node_forward.1} parent=5 // pred_check
        _
      $region42: #{node_forward.1} parent=5 // pred_check_branch
        %213 = sbr.rel (%p210) target = $region44
      $region43: #{node_forward.1} parent=5 // pred_region
        %s214 = ssub.s32 %s13, 1
        %s215 = smul.u32 8, %s18
        %p216 = scmp.lt.s32.totalorder %s215, 15
        %s217 = scalar_select %p216, %s215, 15
        %s218 = smul.addr %s217, 4
        %s219 = scalar_lea.vmem %s0, %s218
        %p220 = pneg %p39
        %p221 = pneg %p36
        %p222 = pneg %p60
        %p223 = pneg %p57
        %p224 = pneg %p81
        %p225 = pneg %p78
        %p226 = pneg %p102
        %p227 = pneg %p99
        %p228 = pneg %p123
        %p229 = pneg %p120
        %p230 = pneg %p144
        %p231 = pneg %p141
        %p232 = pneg %p165
        %p233 = pneg %p162
        %s234 = smul.u32 8, %s18
        %p235 = scmp.lt.s32.totalorder %s234, 15
        %s236 = scalar_select %p235, %s234, 15
        %s237 = smul.addr %s236, 4
        %s238 = scalar_lea.vmem %s0, %s237
        %s239 = smul.u32 8, %s18
        %p241 = scmp.eq.s32.totalorder %s18, 0
        // Predicated region
        $region45: #{node_forward.1} parent=43 // pred_check
          %p242 = pneg %p241
        $region46: #{node_forward.1} parent=43 // pred_check_branch
          %244 = sbr.rel (%p242) target = $region48
        $region47: #{node_forward.1} parent=43 // pred_region
          %245 = vst [vmem:[#allocation3] sm:$0x3] 0.0
          %246 = vst [vmem:[#allocation3 + $0x2] sm:$0x3] 0.0
          %247 = vst [vmem:[#allocation3 + $0x4] sm:$0x3] 0.0
          %248 = vst [vmem:[#allocation3 + $0x6] sm:$0x3] 0.0
          %249 = vst [vmem:[#allocation4] sm:$0x3] 0.0
          %250 = vst [vmem:[#allocation4 + $0x2] sm:$0x3] 0.0
          %251 = vst [vmem:[#allocation4 + $0x4] sm:$0x3] 0.0
          %252 = vst [vmem:[#allocation4 + $0x6] sm:$0x3] 0.0
        $region48: #{node_forward.1} parent=43 // pred_fallthru
          _
        %v253 = vld [vmem:[%s238] sm:$0x1]
        %v254 = vld [vmem:[%s238 + $0x4] sm:$0x1]
        %v255 = vld [vmem:[%s238 + $0x8] sm:$0x1]
        %v256 = vld [vmem:[%s238 + $0xc] sm:$0x1]
        %v257 = vld [vmem:[%s238 + $0x10] sm:$0x1]
        %v258 = vld [vmem:[%s238 + $0x14] sm:$0x1]
        %v259 = vld [vmem:[%s238 + $0x18] sm:$0x1]
        %v260 = vld [vmem:[%s238 + $0x1c] sm:$0x1]
        %v261 = vld [vmem:[%s1] sm:$0xff]
        %v262 = vld [vmem:[%s1 + $0x8] sm:$0xff]
        %v263 = vld [vmem:[%s1 + $0x10] sm:$0xff]
        %v264 = vld [vmem:[%s1 + $0x18] sm:$0xff]
        %v265 = vld [vmem:[%s1 + $0x20] sm:$0xff]
        %v266 = vld [vmem:[%s1 + $0x28] sm:$0xff]
        %v267 = vld [vmem:[%s1 + $0x30] sm:$0xff]
        %v268 = vld [vmem:[%s1 + $0x38] sm:$0xff]
        %v269 = vld [vmem:[%s3] sm:$0xf]
        %v271 = vlaneseq
        %v272 = vshrl.u32 %v271, 7
        %v273 = vsub.s32 0, %v272
        %v274 = vrot.slane %v269, %v273
        %v275 = vlaneseq
        %v276 = vshrl.u32 %v275, 7
        %v277 = vsub.s32 1, %v276
        %v278 = vrot.slane %v269, %v277
        %v279 = vlaneseq
        %v280 = vshrl.u32 %v279, 7
        %v281 = vsub.s32 2, %v280
        %v282 = vrot.slane %v269, %v281
        %v283 = vlaneseq
        %v284 = vshrl.u32 %v283, 7
        %v285 = vsub.s32 3, %v284
        %v286 = vrot.slane %v269, %v285
        %v299 = vcombine.low %v253, %v254
        %v300 = vcombine.low %v255, %v256
        %v301 = vcombine.low %v257, %v258
        %v302 = vcombine.low %v259, %v260
        %v304 = vunpack.c.l.s4 1966171168
        %v305 = vunpack.c.0.s8 %v304
        %v306 = vlaneseq
        %v307 = vshrl.u32 %v306, 7
        %v308 = vsub.s32 %v305, %v307
        %v309 = vrot.slane %v299, %v308
        %v311 = vunpack.c.l.s4 1966171168
        %v312 = vunpack.c.0.s8 %v311
        %v313 = vlaneseq
        %v314 = vshrl.u32 %v313, 7
        %v315 = vsub.s32 %v312, %v314
        %v316 = vrot.slane %v300, %v315
        %v318 = vunpack.c.l.s4 1966171168
        %v319 = vunpack.c.0.s8 %v318
        %v320 = vlaneseq
        %v321 = vshrl.u32 %v320, 7
        %v322 = vsub.s32 %v319, %v321
        %v323 = vrot.slane %v301, %v322
        %v325 = vunpack.c.l.s4 1966171168
        %v326 = vunpack.c.0.s8 %v325
        %v327 = vlaneseq
        %v328 = vshrl.u32 %v327, 7
        %v329 = vsub.s32 %v326, %v328
        %v330 = vrot.slane %v302, %v329
        %v331 = vcombine.low %v309, %v316
        %v332 = vcombine.low %v323, %v330
        %v334 = vunpack.c.l.s4 1966171168
        %v335 = vunpack.c.0.s8 %v334
        %v336 = vlaneseq
        %v337 = vshrl.u32 %v336, 7
        %v338 = vsub.s32 %v335, %v337
        %v339 = vrot.slane %v331, %v338
        %v341 = vunpack.c.l.s4 1966171168
        %v342 = vunpack.c.0.s8 %v341
        %v343 = vlaneseq
        %v344 = vshrl.u32 %v343, 7
        %v345 = vsub.s32 %v342, %v344
        %v346 = vrot.slane %v332, %v345
        %v347 = vcombine.low %v339, %v346
        %v356 = vunpack.c.l.b16 %v261
        %v357 = vunpack.c.h.b16 %v261
        %v358 = vunpack.c.l.b16 %v262
        %v359 = vunpack.c.h.b16 %v262
        %v360 = vunpack.c.l.b16 %v263
        %v361 = vunpack.c.h.b16 %v263
        %v362 = vunpack.c.l.b16 %v264
        %v363 = vunpack.c.h.b16 %v264
        %v364 = vunpack.c.l.b16 %v265
        %v365 = vunpack.c.h.b16 %v265
        %v366 = vunpack.c.l.b16 %v266
        %v367 = vunpack.c.h.b16 %v266
        %v368 = vunpack.c.l.b16 %v267
        %v369 = vunpack.c.h.b16 %v267
        %v370 = vunpack.c.l.b16 %v268
        %v371 = vunpack.c.h.b16 %v268
        %v372 = vpack.c.b16 %v360, %v356
        %v373 = vpack.c.b16 %v361, %v357
        %v374 = vpack.c.b16 %v362, %v358
        %v375 = vpack.c.b16 %v363, %v359
        %v376 = vpack.c.b16 %v368, %v364
        %v377 = vpack.c.b16 %v369, %v365
        %v378 = vpack.c.b16 %v370, %v366
        %v379 = vpack.c.b16 %v371, %v367
        %vm388 = vcmask 261120
        %v390 = vsel %vm388, %v347, 0
        %392 = vmatprep.subr.bf16.mxu0 %v373
        %393 = vmatpush1.bf16.msra.mxu0 %v372
        %394 = vmatprep.subr.bf16.mxu0 %v377
        %395 = vmatpush1.bf16.msra.mxu0 %v376
        %396 = vmatprep.subr.bf16.mxu0 0
        %397 = vmatpush1.bf16.msra.mxu0 0
        %398 = vmatprep.subr.bf16.mxu0 0
        %399 = vmatpush1.bf16.msra.mxu0 0
        %400 = vmatprep.subr.bf16.mxu0 0
        %401 = vmatpush1.bf16.msra.mxu0 0
        %402 = vmatprep.subr.bf16.mxu0 0
        %403 = vmatpush1.bf16.msra.mxu0 0
        %404 = vmatprep.subr.bf16.mxu0 0
        %405 = vmatpush1.bf16.msra.mxu0 0
        %406 = vmatprep.subr.bf16.mxu0 0
        %407 = vmatpush1.bf16.msra.mxu0 0
        %408 = vmatprep.subr.bf16.mxu0 0
        %409 = vmatpush1.bf16.msra.mxu0 0
        %410 = vmatprep.subr.bf16.mxu0 0
        %411 = vmatpush1.bf16.msra.mxu0 0
        %412 = vmatprep.subr.bf16.mxu0 0
        %413 = vmatpush1.bf16.msra.mxu0 0
        %414 = vmatprep.subr.bf16.mxu0 0
        %415 = vmatpush1.bf16.msra.mxu0 0
        %416 = vmatprep.subr.bf16.mxu0 0
        %417 = vmatpush1.bf16.msra.mxu0 0
        %418 = vmatprep.subr.bf16.mxu0 0
        %419 = vmatpush1.bf16.msra.mxu0 0
        %420 = vmatprep.subr.bf16.mxu0 0
        %421 = vmatpush1.bf16.msra.mxu0 0
        %422 = vmatprep.subr.bf16.mxu0 0
        %423 = vmatpush1.bf16.msra.mxu0 0
        %424 = vmatprep.mubr.bf16.mxu0 0
        %425 = vmatmul.mubr.bf16.gmra.mrb[0].mxu0 %v390
        %v426 = vpop.f32.mrb[0].mxu0
        %v427 = vadd.f32 %v274, %v426
        %v428 = vpop.f32.mrb[0].mxu0
        %v429 = vadd.f32 %v278, %v428
        %v430 = vpop.f32.mrb[0].mxu0
        %v431 = vadd.f32 %v274, %v430
        %v432 = vpop.f32.mrb[0].mxu0
        %v433 = vadd.f32 %v278, %v432
        %434 = vdwg.mxu0
        %435 = vmatprep.subr.bf16.mxu0 %v375
        %436 = vmatpush1.bf16.msra.mxu0 %v374
        %437 = vmatprep.subr.bf16.mxu0 %v379
        %438 = vmatpush1.bf16.msra.mxu0 %v378
        %439 = vmatprep.subr.bf16.mxu0 0
        %440 = vmatpush1.bf16.msra.mxu0 0
        %441 = vmatprep.subr.bf16.mxu0 0
        %442 = vmatpush1.bf16.msra.mxu0 0
        %443 = vmatprep.subr.bf16.mxu0 0
        %444 = vmatpush1.bf16.msra.mxu0 0
        %445 = vmatprep.subr.bf16.mxu0 0
        %446 = vmatpush1.bf16.msra.mxu0 0
        %447 = vmatprep.subr.bf16.mxu0 0
        %448 = vmatpush1.bf16.msra.mxu0 0
        %449 = vmatprep.subr.bf16.mxu0 0
        %450 = vmatpush1.bf16.msra.mxu0 0
        %451 = vmatprep.subr.bf16.mxu0 0
        %452 = vmatpush1.bf16.msra.mxu0 0
        %453 = vmatprep.subr.bf16.mxu0 0
        %454 = vmatpush1.bf16.msra.mxu0 0
        %455 = vmatprep.subr.bf16.mxu0 0
        %456 = vmatpush1.bf16.msra.mxu0 0
        %457 = vmatprep.subr.bf16.mxu0 0
        %458 = vmatpush1.bf16.msra.mxu0 0
        %459 = vmatprep.subr.bf16.mxu0 0
        %460 = vmatpush1.bf16.msra.mxu0 0
        %461 = vmatprep.subr.bf16.mxu0 0
        %462 = vmatpush1.bf16.msra.mxu0 0
        %463 = vmatprep.subr.bf16.mxu0 0
        %464 = vmatpush1.bf16.msra.mxu0 0
        %465 = vmatprep.subr.bf16.mxu0 0
        %466 = vmatpush1.bf16.msra.mxu0 0
        %467 = vmatprep.mubr.bf16.mxu0 0
        %468 = vmatmul.mubr.bf16.gmra.mrb[0].mxu0 %v390
        %v469 = vpop.f32.mrb[0].mxu0
        %v470 = vadd.f32 %v282, %v469
        %v471 = vpop.f32.mrb[0].mxu0
        %v472 = vadd.f32 %v286, %v471
        %v473 = vpop.f32.mrb[0].mxu0
        %v474 = vadd.f32 %v282, %v473
        %v475 = vpop.f32.mrb[0].mxu0
        %v476 = vadd.f32 %v286, %v475
        %477 = vdwg.mxu0
        %v486 = vcombine.low %v427, %v429
        %v487 = vcombine.high %v427, %v429
        %v488 = vcombine.low %v470, %v472
        %v489 = vcombine.high %v470, %v472
        %v491 = vunpack.c.l.s4 1983009808
        %v492 = vunpack.c.0.s8 %v491
        %v493 = vlaneseq
        %v494 = vshrl.u32 %v493, 7
        %v495 = vsub.s32 %v492, %v494
        %v496 = vrot.slane %v486, %v495
        %v498 = vunpack.c.l.s4 1983009808
        %v499 = vunpack.c.0.s8 %v498
        %v500 = vlaneseq
        %v501 = vshrl.u32 %v500, 7
        %v502 = vsub.s32 %v499, %v501
        %v503 = vrot.slane %v487, %v502
        %v505 = vunpack.c.l.s4 1983009808
        %v506 = vunpack.c.0.s8 %v505
        %v507 = vlaneseq
        %v508 = vshrl.u32 %v507, 7
        %v509 = vsub.s32 %v506, %v508
        %v510 = vrot.slane %v488, %v509
        %v512 = vunpack.c.l.s4 1983009808
        %v513 = vunpack.c.0.s8 %v512
        %v514 = vlaneseq
        %v515 = vshrl.u32 %v514, 7
        %v516 = vsub.s32 %v513, %v515
        %v517 = vrot.slane %v489, %v516
        %v518 = vcombine.low %v496, %v510
        %v519 = vcombine.high %v496, %v510
        %v520 = vcombine.low %v503, %v517
        %v521 = vcombine.high %v503, %v517
        %v522 = vcombine.low %v431, %v433
        %v523 = vcombine.high %v431, %v433
        %v524 = vcombine.low %v474, %v476
        %v525 = vcombine.high %v474, %v476
        %v527 = vunpack.c.l.s4 1983009808
        %v528 = vunpack.c.0.s8 %v527
        %v529 = vlaneseq
        %v530 = vshrl.u32 %v529, 7
        %v531 = vsub.s32 %v528, %v530
        %v532 = vrot.slane %v522, %v531
        %v534 = vunpack.c.l.s4 1983009808
        %v535 = vunpack.c.0.s8 %v534
        %v536 = vlaneseq
        %v537 = vshrl.u32 %v536, 7
        %v538 = vsub.s32 %v535, %v537
        %v539 = vrot.slane %v523, %v538
        %v541 = vunpack.c.l.s4 1983009808
        %v542 = vunpack.c.0.s8 %v541
        %v543 = vlaneseq
        %v544 = vshrl.u32 %v543, 7
        %v545 = vsub.s32 %v542, %v544
        %v546 = vrot.slane %v524, %v545
        %v548 = vunpack.c.l.s4 1983009808
        %v549 = vunpack.c.0.s8 %v548
        %v550 = vlaneseq
        %v551 = vshrl.u32 %v550, 7
        %v552 = vsub.s32 %v549, %v551
        %v553 = vrot.slane %v525, %v552
        %v554 = vcombine.low %v532, %v546
        %v555 = vcombine.high %v532, %v546
        %v556 = vcombine.low %v539, %v553
        %v557 = vcombine.high %v539, %v553
        %566 = vst [vmem:[#allocation2] sm:$0xff] %v518
        %567 = vst [vmem:[#allocation2 + $0x20] sm:$0xff] %v519
        %568 = vst [vmem:[#allocation2 + $0x40] sm:$0xff] %v520
        %569 = vst [vmem:[#allocation2 + $0x60] sm:$0xff] %v521
        %570 = vst [vmem:[#allocation2 + $0x80] sm:$0xff] %v554
        %571 = vst [vmem:[#allocation2 + $0xa0] sm:$0xff] %v555
        %572 = vst [vmem:[#allocation2 + $0xc0] sm:$0xff] %v556
        %573 = vst [vmem:[#allocation2 + $0xe0] sm:$0xff] %v557
        %s574 = scalar_lea.vmem %s238, 1
        %v575 = vld [vmem:[%s574] sm:$0x1]
        %v576 = vld [vmem:[%s574 + $0x4] sm:$0x1]
        %v577 = vld [vmem:[%s574 + $0x8] sm:$0x1]
        %v578 = vld [vmem:[%s574 + $0xc] sm:$0x1]
        %v579 = vld [vmem:[%s574 + $0x10] sm:$0x1]
        %v580 = vld [vmem:[%s574 + $0x14] sm:$0x1]
        %v581 = vld [vmem:[%s574 + $0x18] sm:$0x1]
        %v582 = vld [vmem:[%s574 + $0x1c] sm:$0x1]
        %s583 = scalar_lea.vmem %s1, 64
        %v584 = vld [vmem:[%s583] sm:$0xff]
        %v585 = vld [vmem:[%s583 + $0x8] sm:$0xff]
        %v586 = vld [vmem:[%s583 + $0x10] sm:$0xff]
        %v587 = vld [vmem:[%s583 + $0x18] sm:$0xff]
        %v588 = vld [vmem:[%s583 + $0x20] sm:$0xff]
        %v589 = vld [vmem:[%s583 + $0x28] sm:$0xff]
        %v590 = vld [vmem:[%s583 + $0x30] sm:$0xff]
        %v591 = vld [vmem:[%s583 + $0x38] sm:$0xff]
        %s592 = scalar_lea.vmem %s3, 4
        %v593 = vld [vmem:[%s592] sm:$0xf]
        %v595 = vlaneseq
        %v596 = vshrl.u32 %v595, 7
        %v597 = vsub.s32 0, %v596
        %v598 = vrot.slane %v593, %v597
        %v599 = vlaneseq
        %v600 = vshrl.u32 %v599, 7
        %v601 = vsub.s32 1, %v600
        %v602 = vrot.slane %v593, %v601
        %v603 = vlaneseq
        %v604 = vshrl.u32 %v603, 7
        %v605 = vsub.s32 2, %v604
        %v606 = vrot.slane %v593, %v605
        %v607 = vlaneseq
        %v608 = vshrl.u32 %v607, 7
        %v609 = vsub.s32 3, %v608
        %v610 = vrot.slane %v593, %v609
        %v623 = vcombine.low %v575, %v576
        %v624 = vcombine.low %v577, %v578
        %v625 = vcombine.low %v579, %v580
        %v626 = vcombine.low %v581, %v582
        %v628 = vunpack.c.l.s4 1966171168
        %v629 = vunpack.c.0.s8 %v628
        %v630 = vlaneseq
        %v631 = vshrl.u32 %v630, 7
        %v632 = vsub.s32 %v629, %v631
        %v633 = vrot.slane %v623, %v632
        %v635 = vunpack.c.l.s4 1966171168
        %v636 = vunpack.c.0.s8 %v635
        %v637 = vlaneseq
        %v638 = vshrl.u32 %v637, 7
        %v639 = vsub.s32 %v636, %v638
        %v640 = vrot.slane %v624, %v639
        %v642 = vunpack.c.l.s4 1966171168
        %v643 = vunpack.c.0.s8 %v642
        %v644 = vlaneseq
        %v645 = vshrl.u32 %v644, 7
        %v646 = vsub.s32 %v643, %v645
        %v647 = vrot.slane %v625, %v646
        %v649 = vunpack.c.l.s4 1966171168
        %v650 = vunpack.c.0.s8 %v649
        %v651 = vlaneseq
        %v652 = vshrl.u32 %v651, 7
        %v653 = vsub.s32 %v650, %v652
        %v654 = vrot.slane %v626, %v653
        %v655 = vcombine.low %v633, %v640
        %v656 = vcombine.low %v647, %v654
        %v658 = vunpack.c.l.s4 1966171168
        %v659 = vunpack.c.0.s8 %v658
        %v660 = vlaneseq
        %v661 = vshrl.u32 %v660, 7
        %v662 = vsub.s32 %v659, %v661
        %v663 = vrot.slane %v655, %v662
        %v665 = vunpack.c.l.s4 1966171168
        %v666 = vunpack.c.0.s8 %v665
        %v667 = vlaneseq
        %v668 = vshrl.u32 %v667, 7
        %v669 = vsub.s32 %v666, %v668
        %v670 = vrot.slane %v656, %v669
        %v671 = vcombine.low %v663, %v670
        %v680 = vunpack.c.l.b16 %v584
        %v681 = vunpack.c.h.b16 %v584
        %v682 = vunpack.c.l.b16 %v585
        %v683 = vunpack.c.h.b16 %v585
        %v684 = vunpack.c.l.b16 %v586
        %v685 = vunpack.c.h.b16 %v586
        %v686 = vunpack.c.l.b16 %v587
        %v687 = vunpack.c.h.b16 %v587
        %v688 = vunpack.c.l.b16 %v588
        %v689 = vunpack.c.h.b16 %v588
        %v690 = vunpack.c.l.b16 %v589
        %v691 = vunpack.c.h.b16 %v589
        %v692 = vunpack.c.l.b16 %v590
        %v693 = vunpack.c.h.b16 %v590
        %v694 = vunpack.c.l.b16 %v591
        %v695 = vunpack.c.h.b16 %v591
        %v696 = vpack.c.b16 %v684, %v680
        %v697 = vpack.c.b16 %v685, %v681
        %v698 = vpack.c.b16 %v686, %v682
        %v699 = vpack.c.b16 %v687, %v683
        %v700 = vpack.c.b16 %v692, %v688
        %v701 = vpack.c.b16 %v693, %v689
        %v702 = vpack.c.b16 %v694, %v690
        %v703 = vpack.c.b16 %v695, %v691
        %v713 = vsel %vm388, %v671, 0
        %715 = vmatprep.subr.bf16.mxu0 %v697
        %716 = vmatpush1.bf16.msra.mxu0 %v696
        %717 = vmatprep.subr.bf16.mxu0 %v701
        %718 = vmatpush1.bf16.msra.mxu0 %v700
        %719 = vmatprep.subr.bf16.mxu0 0
        %720 = vmatpush1.bf16.msra.mxu0 0
        %721 = vmatprep.subr.bf16.mxu0 0
        %722 = vmatpush1.bf16.msra.mxu0 0
        %723 = vmatprep.subr.bf16.mxu0 0
        %724 = vmatpush1.bf16.msra.mxu0 0
        %725 = vmatprep.subr.bf16.mxu0 0
        %726 = vmatpush1.bf16.msra.mxu0 0
        %727 = vmatprep.subr.bf16.mxu0 0
        %728 = vmatpush1.bf16.msra.mxu0 0
        %729 = vmatprep.subr.bf16.mxu0 0
        %730 = vmatpush1.bf16.msra.mxu0 0
        %731 = vmatprep.subr.bf16.mxu0 0
        %732 = vmatpush1.bf16.msra.mxu0 0
        %733 = vmatprep.subr.bf16.mxu0 0
        %734 = vmatpush1.bf16.msra.mxu0 0
        %735 = vmatprep.subr.bf16.mxu0 0
        %736 = vmatpush1.bf16.msra.mxu0 0
        %737 = vmatprep.subr.bf16.mxu0 0
        %738 = vmatpush1.bf16.msra.mxu0 0
        %739 = vmatprep.subr.bf16.mxu0 0
        %740 = vmatpush1.bf16.msra.mxu0 0
        %741 = vmatprep.subr.bf16.mxu0 0
        %742 = vmatpush1.bf16.msra.mxu0 0
        %743 = vmatprep.subr.bf16.mxu0 0
        %744 = vmatpush1.bf16.msra.mxu0 0
        %745 = vmatprep.subr.bf16.mxu0 0
        %746 = vmatpush1.bf16.msra.mxu0 0
        %747 = vmatprep.mubr.bf16.mxu0 0
        %748 = vmatmul.mubr.bf16.gmra.mrb[0].mxu0 %v713
        %v749 = vpop.f32.mrb[0].mxu0
        %v750 = vadd.f32 %v598, %v749
        %v751 = vpop.f32.mrb[0].mxu0
        %v752 = vadd.f32 %v602, %v751
        %v753 = vpop.f32.mrb[0].mxu0
        %v754 = vadd.f32 %v598, %v753
        %v755 = vpop.f32.mrb[0].mxu0
        %v756 = vadd.f32 %v602, %v755
        %757 = vdwg.mxu0
        %758 = vmatprep.subr.bf16.mxu0 %v699
        %759 = vmatpush1.bf16.msra.mxu0 %v698
        %760 = vmatprep.subr.bf16.mxu0 %v703
        %761 = vmatpush1.bf16.msra.mxu0 %v702
        %762 = vmatprep.subr.bf16.mxu0 0
        %763 = vmatpush1.bf16.msra.mxu0 0
        %764 = vmatprep.subr.bf16.mxu0 0
        %765 = vmatpush1.bf16.msra.mxu0 0
        %766 = vmatprep.subr.bf16.mxu0 0
        %767 = vmatpush1.bf16.msra.mxu0 0
        %768 = vmatprep.subr.bf16.mxu0 0
        %769 = vmatpush1.bf16.msra.mxu0 0
        %770 = vmatprep.subr.bf16.mxu0 0
        %771 = vmatpush1.bf16.msra.mxu0 0
        %772 = vmatprep.subr.bf16.mxu0 0
        %773 = vmatpush1.bf16.msra.mxu0 0
        %774 = vmatprep.subr.bf16.mxu0 0
        %775 = vmatpush1.bf16.msra.mxu0 0
        %776 = vmatprep.subr.bf16.mxu0 0
        %777 = vmatpush1.bf16.msra.mxu0 0
        %778 = vmatprep.subr.bf16.mxu0 0
        %779 = vmatpush1.bf16.msra.mxu0 0
        %780 = vmatprep.subr.bf16.mxu0 0
        %781 = vmatpush1.bf16.msra.mxu0 0
        %782 = vmatprep.subr.bf16.mxu0 0
        %783 = vmatpush1.bf16.msra.mxu0 0
        %784 = vmatprep.subr.bf16.mxu0 0
        %785 = vmatpush1.bf16.msra.mxu0 0
        %786 = vmatprep.subr.bf16.mxu0 0
        %787 = vmatpush1.bf16.msra.mxu0 0
        %788 = vmatprep.subr.bf16.mxu0 0
        %789 = vmatpush1.bf16.msra.mxu0 0
        %790 = vmatprep.mubr.bf16.mxu0 0
        %791 = vmatmul.mubr.bf16.gmra.mrb[0].mxu0 %v713
        %v792 = vpop.f32.mrb[0].mxu0
        %v793 = vadd.f32 %v606, %v792
        %v794 = vpop.f32.mrb[0].mxu0
        %v795 = vadd.f32 %v610, %v794
        %v796 = vpop.f32.mrb[0].mxu0
        %v797 = vadd.f32 %v606, %v796
        %v798 = vpop.f32.mrb[0].mxu0
        %v799 = vadd.f32 %v610, %v798
        %800 = vdwg.mxu0
        %v809 = vcombine.low %v750, %v752
        %v810 = vcombine.high %v750, %v752
        %v811 = vcombine.low %v793, %v795
        %v812 = vcombine.high %v793, %v795
        %v814 = vunpack.c.l.s4 1983009808
        %v815 = vunpack.c.0.s8 %v814
        %v816 = vlaneseq
        %v817 = vshrl.u32 %v816, 7
        %v818 = vsub.s32 %v815, %v817
        %v819 = vrot.slane %v809, %v818
        %v821 = vunpack.c.l.s4 1983009808
        %v822 = vunpack.c.0.s8 %v821
        %v823 = vlaneseq
        %v824 = vshrl.u32 %v823, 7
        %v825 = vsub.s32 %v822, %v824
        %v826 = vrot.slane %v810, %v825
        %v828 = vunpack.c.l.s4 1983009808
        %v829 = vunpack.c.0.s8 %v828
        %v830 = vlaneseq
        %v831 = vshrl.u32 %v830, 7
        %v832 = vsub.s32 %v829, %v831
        %v833 = vrot.slane %v811, %v832
        %v835 = vunpack.c.l.s4 1983009808
        %v836 = vunpack.c.0.s8 %v835
        %v837 = vlaneseq
        %v838 = vshrl.u32 %v837, 7
        %v839 = vsub.s32 %v836, %v838
        %v840 = vrot.slane %v812, %v839
        %v841 = vcombine.low %v819, %v833
        %v842 = vcombine.high %v819, %v833
        %v843 = vcombine.low %v826, %v840
        %v844 = vcombine.high %v826, %v840
        %v845 = vcombine.low %v754, %v756
        %v846 = vcombine.high %v754, %v756
        %v847 = vcombine.low %v797, %v799
        %v848 = vcombine.high %v797, %v799
        %v850 = vunpack.c.l.s4 1983009808
        %v851 = vunpack.c.0.s8 %v850
        %v852 = vlaneseq
        %v853 = vshrl.u32 %v852, 7
        %v854 = vsub.s32 %v851, %v853
        %v855 = vrot.slane %v845, %v854
        %v857 = vunpack.c.l.s4 1983009808
        %v858 = vunpack.c.0.s8 %v857
        %v859 = vlaneseq
        %v860 = vshrl.u32 %v859, 7
        %v861 = vsub.s32 %v858, %v860
        %v862 = vrot.slane %v846, %v861
        %v864 = vunpack.c.l.s4 1983009808
        %v865 = vunpack.c.0.s8 %v864
        %v866 = vlaneseq
        %v867 = vshrl.u32 %v866, 7
        %v868 = vsub.s32 %v865, %v867
        %v869 = vrot.slane %v847, %v868
        %v871 = vunpack.c.l.s4 1983009808
        %v872 = vunpack.c.0.s8 %v871
        %v873 = vlaneseq
        %v874 = vshrl.u32 %v873, 7
        %v875 = vsub.s32 %v872, %v874
        %v876 = vrot.slane %v848, %v875
        %v877 = vcombine.low %v855, %v869
        %v878 = vcombine.high %v855, %v869
        %v879 = vcombine.low %v862, %v876
        %v880 = vcombine.high %v862, %v876
        %s889 = scalar_lea.vmem [#allocation2], 8
        %890 = vst [vmem:[%s889] sm:$0xff] %v841
        %891 = vst [vmem:[%s889 + $0x20] sm:$0xff] %v842
        %892 = vst [vmem:[%s889 + $0x40] sm:$0xff] %v843
        %893 = vst [vmem:[%s889 + $0x60] sm:$0xff] %v844
        %894 = vst [vmem:[%s889 + $0x80] sm:$0xff] %v877
        %895 = vst [vmem:[%s889 + $0xa0] sm:$0xff] %v878
        %896 = vst [vmem:[%s889 + $0xc0] sm:$0xff] %v879
        %897 = vst [vmem:[%s889 + $0xe0] sm:$0xff] %v880
        %s898 = scalar_lea.vmem %s238, 2
        %v899 = vld [vmem:[%s898] sm:$0x1]
        %v900 = vld [vmem:[%s898 + $0x4] sm:$0x1]
        %v901 = vld [vmem:[%s898 + $0x8] sm:$0x1]
        %v902 = vld [vmem:[%s898 + $0xc] sm:$0x1]
        %v903 = vld [vmem:[%s898 + $0x10] sm:$0x1]
        %v904 = vld [vmem:[%s898 + $0x14] sm:$0x1]
        %v905 = vld [vmem:[%s898 + $0x18] sm:$0x1]
        %v906 = vld [vmem:[%s898 + $0x1c] sm:$0x1]
        %s907 = scalar_lea.vmem %s1, 128
        %v908 = vld [vmem:[%s907] sm:$0xff]
        %v909 = vld [vmem:[%s907 + $0x8] sm:$0xff]
        %v910 = vld [vmem:[%s907 + $0x10] sm:$0xff]
        %v911 = vld [vmem:[%s907 + $0x18] sm:$0xff]
        %v912 = vld [vmem:[%s907 + $0x20] sm:$0xff]
        %v913 = vld [vmem:[%s907 + $0x28] sm:$0xff]
        %v914 = vld [vmem:[%s907 + $0x30] sm:$0xff]
        %v915 = vld [vmem:[%s907 + $0x38] sm:$0xff]
        %s916 = scalar_lea.vmem %s3, 8
        %v917 = vld [vmem:[%s916] sm:$0xf]
        %v919 = vlaneseq
        %v920 = vshrl.u32 %v919, 7
        %v921 = vsub.s32 0, %v920
        %v922 = vrot.slane %v917, %v921
        %v923 = vlaneseq
        %v924 = vshrl.u32 %v923, 7
        %v925 = vsub.s32 1, %v924
        %v926 = vrot.slane %v917, %v925
        %v927 = vlaneseq
        %v928 = vshrl.u32 %v927, 7
        %v929 = vsub.s32 2, %v928
        %v930 = vrot.slane %v917, %v929
        %v931 = vlaneseq
        %v932 = vshrl.u32 %v931, 7
        %v933 = vsub.s32 3, %v932
        %v934 = vrot.slane %v917, %v933
        %v947 = vcombine.low %v899, %v900
        %v948 = vcombine.low %v901, %v902
        %v949 = vcombine.low %v903, %v904
        %v950 = vcombine.low %v905, %v906
        %v952 = vunpack.c.l.s4 1966171168
        %v953 = vunpack.c.0.s8 %v952
        %v954 = vlaneseq
        %v955 = vshrl.u32 %v954, 7
        %v956 = vsub.s32 %v953, %v955
        %v957 = vrot.slane %v947, %v956
        %v959 = vunpack.c.l.s4 1966171168
        %v960 = vunpack.c.0.s8 %v959
        %v961 = vlaneseq
        %v962 = vshrl.u32 %v961, 7
        %v963 = vsub.s32 %v960, %v962
        %v964 = vrot.slane %v948, %v963
        %v966 = vunpack.c.l.s4 1966171168
        %v967 = vunpack.c.0.s8 %v966
        %v968 = vlaneseq
        %v969 = vshrl.u32 %v968, 7
        %v970 = vsub.s32 %v967, %v969
        %v971 = vrot.slane %v949, %v970
        %v973 = vunpack.c.l.s4 1966171168
        %v974 = vunpack.c.0.s8 %v973
        %v975 = vlaneseq
        %v976 = vshrl.u32 %v975, 7
        %v977 = vsub.s32 %v974, %v976
        %v978 = vrot.slane %v950, %v977
        %v979 = vcombine.low %v957, %v964
        %v980 = vcombine.low %v971, %v978
        %v982 = vunpack.c.l.s4 1966171168
        %v983 = vunpack.c.0.s8 %v982
        %v984 = vlaneseq
        %v985 = vshrl.u32 %v984, 7
        %v986 = vsub.s32 %v983, %v985
        %v987 = vrot.slane %v979, %v986
        %v989 = vunpack.c.l.s4 1966171168
        %v990 = vunpack.c.0.s8 %v989
        %v991 = vlaneseq
        %v992 = vshrl.u32 %v991, 7
        %v993 = vsub.s32 %v990, %v992
        %v994 = vrot.slane %v980, %v993
        %v995 = vcombine.low %v987, %v994
        %v1004 = vunpack.c.l.b16 %v908
        %v1005 = vunpack.c.h.b16 %v908
        %v1006 = vunpack.c.l.b16 %v909
        %v1007 = vunpack.c.h.b16 %v909
        %v1008 = vunpack.c.l.b16 %v910
        %v1009 = vunpack.c.h.b16 %v910
        %v1010 = vunpack.c.l.b16 %v911
        %v1011 = vunpack.c.h.b16 %v911
        %v1012 = vunpack.c.l.b16 %v912
        %v1013 = vunpack.c.h.b16 %v912
        %v1014 = vunpack.c.l.b16 %v913
        %v1015 = vunpack.c.h.b16 %v913
        %v1016 = vunpack.c.l.b16 %v914
        %v1017 = vunpack.c.h.b16 %v914
        %v1018 = vunpack.c.l.b16 %v915
        %v1019 = vunpack.c.h.b16 %v915
        %v1020 = vpack.c.b16 %v1008, %v1004
        %v1021 = vpack.c.b16 %v1009, %v1005
        %v1022 = vpack.c.b16 %v1010, %v1006
        %v1023 = vpack.c.b16 %v1011, %v1007
        %v1024 = vpack.c.b16 %v1016, %v1012
        %v1025 = vpack.c.b16 %v1017, %v1013
        %v1026 = vpack.c.b16 %v1018, %v1014
        %v1027 = vpack.c.b16 %v1019, %v1015
        %v1037 = vsel %vm388, %v995, 0
        %1039 = vmatprep.subr.bf16.mxu0 %v1021
        %1040 = vmatpush1.bf16.msra.mxu0 %v1020
        %1041 = vmatprep.subr.bf16.mxu0 %v1025
        %1042 = vmatpush1.bf16.msra.mxu0 %v1024
        %1043 = vmatprep.subr.bf16.mxu0 0
        %1044 = vmatpush1.bf16.msra.mxu0 0
        %1045 = vmatprep.subr.bf16.mxu0 0
        %1046 = vmatpush1.bf16.msra.mxu0 0
        %1047 = vmatprep.subr.bf16.mxu0 0
        %1048 = vmatpush1.bf16.msra.mxu0 0
        %1049 = vmatprep.subr.bf16.mxu0 0
        %1050 = vmatpush1.bf16.msra.mxu0 0
        %1051 = vmatprep.subr.bf16.mxu0 0
        %1052 = vmatpush1.bf16.msra.mxu0 0
        %1053 = vmatprep.subr.bf16.mxu0 0
        %1054 = vmatpush1.bf16.msra.mxu0 0
        %1055 = vmatprep.subr.bf16.mxu0 0
        %1056 = vmatpush1.bf16.msra.mxu0 0
        %1057 = vmatprep.subr.bf16.mxu0 0
        %1058 = vmatpush1.bf16.msra.mxu0 0
        %1059 = vmatprep.subr.bf16.mxu0 0
        %1060 = vmatpush1.bf16.msra.mxu0 0
        %1061 = vmatprep.subr.bf16.mxu0 0
        %1062 = vmatpush1.bf16.msra.mxu0 0
        %1063 = vmatprep.subr.bf16.mxu0 0
        %1064 = vmatpush1.bf16.msra.mxu0 0
        %1065 = vmatprep.subr.bf16.mxu0 0
        %1066 = vmatpush1.bf16.msra.mxu0 0
        %1067 = vmatprep.subr.bf16.mxu0 0
        %1068 = vmatpush1.bf16.msra.mxu0 0
        %1069 = vmatprep.subr.bf16.mxu0 0
        %1070 = vmatpush1.bf16.msra.mxu0 0
        %1071 = vmatprep.mubr.bf16.mxu0 0
        %1072 = vmatmul.mubr.bf16.gmra.mrb[0].mxu0 %v1037
        %v1073 = vpop.f32.mrb[0].mxu0
        %v1074 = vadd.f32 %v922, %v1073
        %v1075 = vpop.f32.mrb[0].mxu0
        %v1076 = vadd.f32 %v926, %v1075
        %v1077 = vpop.f32.mrb[0].mxu0
        %v1078 = vadd.f32 %v922, %v1077
        %v1079 = vpop.f32.mrb[0].mxu0
        %v1080 = vadd.f32 %v926, %v1079
        %1081 = vdwg.mxu0
        %1082 = vmatprep.subr.bf16.mxu0 %v1023
        %1083 = vmatpush1.bf16.msra.mxu0 %v1022
        %1084 = vmatprep.subr.bf16.mxu0 %v1027
        %1085 = vmatpush1.bf16.msra.mxu0 %v1026
        %1086 = vmatprep.subr.bf16.mxu0 0
        %1087 = vmatpush1.bf16.msra.mxu0 0
        %1088 = vmatprep.subr.bf16.mxu0 0
        %1089 = vmatpush1.bf16.msra.mxu0 0
        %1090 = vmatprep.subr.bf16.mxu0 0
        %1091 = vmatpush1.bf16.msra.mxu0 0
        %1092 = vmatprep.subr.bf16.mxu0 0
        %1093 = vmatpush1.bf16.msra.mxu0 0
        %1094 = vmatprep.subr.bf16.mxu0 0
        %1095 = vmatpush1.bf16.msra.mxu0 0
        %1096 = vmatprep.subr.bf16.mxu0 0
        %1097 = vmatpush1.bf16.msra.mxu0 0
        %1098 = vmatprep.subr.bf16.mxu0 0
        %1099 = vmatpush1.bf16.msra.mxu0 0
        %1100 = vmatprep.subr.bf16.mxu0 0
        %1101 = vmatpush1.bf16.msra.mxu0 0
        %1102 = vmatprep.subr.bf16.mxu0 0
        %1103 = vmatpush1.bf16.msra.mxu0 0
        %1104 = vmatprep.subr.bf16.mxu0 0
        %1105 = vmatpush1.bf16.msra.mxu0 0
        %1106 = vmatprep.subr.bf16.mxu0 0
        %1107 = vmatpush1.bf16.msra.mxu0 0
        %1108 = vmatprep.subr.bf16.mxu0 0
        %1109 = vmatpush1.bf16.msra.mxu0 0
        %1110 = vmatprep.subr.bf16.mxu0 0
        %1111 = vmatpush1.bf16.msra.mxu0 0
        %1112 = vmatprep.subr.bf16.mxu0 0
        %1113 = vmatpush1.bf16.msra.mxu0 0
        %1114 = vmatprep.mubr.bf16.mxu0 0
        %1115 = vmatmul.mubr.bf16.gmra.mrb[0].mxu0 %v1037
        %v1116 = vpop.f32.mrb[0].mxu0
        %v1117 = vadd.f32 %v930, %v1116
        %v1118 = vpop.f32.mrb[0].mxu0
        %v1119 = vadd.f32 %v934, %v1118
        %v1120 = vpop.f32.mrb[0].mxu0
        %v1121 = vadd.f32 %v930, %v1120
        %v1122 = vpop.f32.mrb[0].mxu0
        %v1123 = vadd.f32 %v934, %v1122
        %1124 = vdwg.mxu0
        %v1133 = vcombine.low %v1074, %v1076
        %v1134 = vcombine.high %v1074, %v1076
        %v1135 = vcombine.low %v1117, %v1119
        %v1136 = vcombine.high %v1117, %v1119
        %v1138 = vunpack.c.l.s4 1983009808
        %v1139 = vunpack.c.0.s8 %v1138
        %v1140 = vlaneseq
        %v1141 = vshrl.u32 %v1140, 7
        %v1142 = vsub.s32 %v1139, %v1141
        %v1143 = vrot.slane %v1133, %v1142
        %v1145 = vunpack.c.l.s4 1983009808
        %v1146 = vunpack.c.0.s8 %v1145
        %v1147 = vlaneseq
        %v1148 = vshrl.u32 %v1147, 7
        %v1149 = vsub.s32 %v1146, %v1148
        %v1150 = vrot.slane %v1134, %v1149
        %v1152 = vunpack.c.l.s4 1983009808
        %v1153 = vunpack.c.0.s8 %v1152
        %v1154 = vlaneseq
        %v1155 = vshrl.u32 %v1154, 7
        %v1156 = vsub.s32 %v1153, %v1155
        %v1157 = vrot.slane %v1135, %v1156
        %v1159 = vunpack.c.l.s4 1983009808
        %v1160 = vunpack.c.0.s8 %v1159
        %v1161 = vlaneseq
        %v1162 = vshrl.u32 %v1161, 7
        %v1163 = vsub.s32 %v1160, %v1162
        %v1164 = vrot.slane %v1136, %v1163
        %v1165 = vcombine.low %v1143, %v1157
        %v1166 = vcombine.high %v1143, %v1157
        %v1167 = vcombine.low %v1150, %v1164
        %v1168 = vcombine.high %v1150, %v1164
        %v1169 = vcombine.low %v1078, %v1080
        %v1170 = vcombine.high %v1078, %v1080
        %v1171 = vcombine.low %v1121, %v1123
        %v1172 = vcombine.high %v1121, %v1123
        %v1174 = vunpack.c.l.s4 1983009808
        %v1175 = vunpack.c.0.s8 %v1174
        %v1176 = vlaneseq
        %v1177 = vshrl.u32 %v1176, 7
        %v1178 = vsub.s32 %v1175, %v1177
        %v1179 = vrot.slane %v1169, %v1178
        %v1181 = vunpack.c.l.s4 1983009808
        %v1182 = vunpack.c.0.s8 %v1181
        %v1183 = vlaneseq
        %v1184 = vshrl.u32 %v1183, 7
        %v1185 = vsub.s32 %v1182, %v1184
        %v1186 = vrot.slane %v1170, %v1185
        %v1188 = vunpack.c.l.s4 1983009808
        %v1189 = vunpack.c.0.s8 %v1188
        %v1190 = vlaneseq
        %v1191 = vshrl.u32 %v1190, 7
        %v1192 = vsub.s32 %v1189, %v1191
        %v1193 = vrot.slane %v1171, %v1192
        %v1195 = vunpack.c.l.s4 1983009808
        %v1196 = vunpack.c.0.s8 %v1195
        %v1197 = vlaneseq
        %v1198 = vshrl.u32 %v1197, 7
        %v1199 = vsub.s32 %v1196, %v1198
        %v1200 = vrot.slane %v1172, %v1199
        %v1201 = vcombine.low %v1179, %v1193
        %v1202 = vcombine.high %v1179, %v1193
        %v1203 = vcombine.low %v1186, %v1200
        %v1204 = vcombine.high %v1186, %v1200
        %s1213 = scalar_lea.vmem [#allocation2], 16
        %1214 = vst [vmem:[%s1213] sm:$0xff] %v1165
        %1215 = vst [vmem:[%s1213 + $0x20] sm:$0xff] %v1166
        %1216 = vst [vmem:[%s1213 + $0x40] sm:$0xff] %v1167
        %1217 = vst [vmem:[%s1213 + $0x60] sm:$0xff] %v1168
        %1218 = vst [vmem:[%s1213 + $0x80] sm:$0xff] %v1201
        %1219 = vst [vmem:[%s1213 + $0xa0] sm:$0xff] %v1202
        %1220 = vst [vmem:[%s1213 + $0xc0] sm:$0xff] %v1203
        %1221 = vst [vmem:[%s1213 + $0xe0] sm:$0xff] %v1204
        %s1222 = scalar_lea.vmem %s238, 3
        %v1223 = vld [vmem:[%s1222] sm:$0x1]
        %v1224 = vld [vmem:[%s1222 + $0x4] sm:$0x1]
        %v1225 = vld [vmem:[%s1222 + $0x8] sm:$0x1]
        %v1226 = vld [vmem:[%s1222 + $0xc] sm:$0x1]
        %v1227 = vld [vmem:[%s1222 + $0x10] sm:$0x1]
        %v1228 = vld [vmem:[%s1222 + $0x14] sm:$0x1]
        %v1229 = vld [vmem:[%s1222 + $0x18] sm:$0x1]
        %v1230 = vld [vmem:[%s1222 + $0x1c] sm:$0x1]
        %s1231 = scalar_lea.vmem %s1, 192
        %v1232 = vld [vmem:[%s1231] sm:$0xff]
        %v1233 = vld [vmem:[%s1231 + $0x8] sm:$0xff]
        %v1234 = vld [vmem:[%s1231 + $0x10] sm:$0xff]
        %v1235 = vld [vmem:[%s1231 + $0x18] sm:$0xff]
        %v1236 = vld [vmem:[%s1231 + $0x20] sm:$0xff]
        %v1237 = vld [vmem:[%s1231 + $0x28] sm:$0xff]
        %v1238 = vld [vmem:[%s1231 + $0x30] sm:$0xff]
        %v1239 = vld [vmem:[%s1231 + $0x38] sm:$0xff]
        %s1240 = scalar_lea.vmem %s3, 12
        %v1241 = vld [vmem:[%s1240] sm:$0xf]
        %v1243 = vlaneseq
        %v1244 = vshrl.u32 %v1243, 7
        %v1245 = vsub.s32 0, %v1244
        %v1246 = vrot.slane %v1241, %v1245
        %v1247 = vlaneseq
        %v1248 = vshrl.u32 %v1247, 7
        %v1249 = vsub.s32 1, %v1248
        %v1250 = vrot.slane %v1241, %v1249
        %v1251 = vlaneseq
        %v1252 = vshrl.u32 %v1251, 7
        %v1253 = vsub.s32 2, %v1252
        %v1254 = vrot.slane %v1241, %v1253
        %v1255 = vlaneseq
        %v1256 = vshrl.u32 %v1255, 7
        %v1257 = vsub.s32 3, %v1256
        %v1258 = vrot.slane %v1241, %v1257
        %v1271 = vcombine.low %v1223, %v1224
        %v1272 = vcombine.low %v1225, %v1226
        %v1273 = vcombine.low %v1227, %v1228
        %v1274 = vcombine.low %v1229, %v1230
        %v1276 = vunpack.c.l.s4 1966171168
        %v1277 = vunpack.c.0.s8 %v1276
        %v1278 = vlaneseq
        %v1279 = vshrl.u32 %v1278, 7
        %v1280 = vsub.s32 %v1277, %v1279
        %v1281 = vrot.slane %v1271, %v1280
        %v1283 = vunpack.c.l.s4 1966171168
        %v1284 = vunpack.c.0.s8 %v1283
        %v1285 = vlaneseq
        %v1286 = vshrl.u32 %v1285, 7
        %v1287 = vsub.s32 %v1284, %v1286
        %v1288 = vrot.slane %v1272, %v1287
        %v1290 = vunpack.c.l.s4 1966171168
        %v1291 = vunpack.c.0.s8 %v1290
        %v1292 = vlaneseq
        %v1293 = vshrl.u32 %v1292, 7
        %v1294 = vsub.s32 %v1291, %v1293
        %v1295 = vrot.slane %v1273, %v1294
        %v1297 = vunpack.c.l.s4 1966171168
        %v1298 = vunpack.c.0.s8 %v1297
        %v1299 = vlaneseq
        %v1300 = vshrl.u32 %v1299, 7
        %v1301 = vsub.s32 %v1298, %v1300
        %v1302 = vrot.slane %v1274, %v1301
        %v1303 = vcombine.low %v1281, %v1288
        %v1304 = vcombine.low %v1295, %v1302
        %v1306 = vunpack.c.l.s4 1966171168
        %v1307 = vunpack.c.0.s8 %v1306
        %v1308 = vlaneseq
        %v1309 = vshrl.u32 %v1308, 7
        %v1310 = vsub.s32 %v1307, %v1309
        %v1311 = vrot.slane %v1303, %v1310
        %v1313 = vunpack.c.l.s4 1966171168
        %v1314 = vunpack.c.0.s8 %v1313
        %v1315 = vlaneseq
        %v1316 = vshrl.u32 %v1315, 7
        %v1317 = vsub.s32 %v1314, %v1316
        %v1318 = vrot.slane %v1304, %v1317
        %v1319 = vcombine.low %v1311, %v1318
        %v1328 = vunpack.c.l.b16 %v1232
        %v1329 = vunpack.c.h.b16 %v1232
        %v1330 = vunpack.c.l.b16 %v1233
        %v1331 = vunpack.c.h.b16 %v1233
        %v1332 = vunpack.c.l.b16 %v1234
        %v1333 = vunpack.c.h.b16 %v1234
        %v1334 = vunpack.c.l.b16 %v1235
        %v1335 = vunpack.c.h.b16 %v1235
        %v1336 = vunpack.c.l.b16 %v1236
        %v1337 = vunpack.c.h.b16 %v1236
        %v1338 = vunpack.c.l.b16 %v1237
        %v1339 = vunpack.c.h.b16 %v1237
        %v1340 = vunpack.c.l.b16 %v1238
        %v1341 = vunpack.c.h.b16 %v1238
        %v1342 = vunpack.c.l.b16 %v1239
        %v1343 = vunpack.c.h.b16 %v1239
        %v1344 = vpack.c.b16 %v1332, %v1328
        %v1345 = vpack.c.b16 %v1333, %v1329
        %v1346 = vpack.c.b16 %v1334, %v1330
        %v1347 = vpack.c.b16 %v1335, %v1331
        %v1348 = vpack.c.b16 %v1340, %v1336
        %v1349 = vpack.c.b16 %v1341, %v1337
        %v1350 = vpack.c.b16 %v1342, %v1338
        %v1351 = vpack.c.b16 %v1343, %v1339
        %v1361 = vsel %vm388, %v1319, 0
        %1363 = vmatprep.subr.bf16.mxu0 %v1345
        %1364 = vmatpush1.bf16.msra.mxu0 %v1344
        %1365 = vmatprep.subr.bf16.mxu0 %v1349
        %1366 = vmatpush1.bf16.msra.mxu0 %v1348
        %1367 = vmatprep.subr.bf16.mxu0 0
        %1368 = vmatpush1.bf16.msra.mxu0 0
        %1369 = vmatprep.subr.bf16.mxu0 0
        %1370 = vmatpush1.bf16.msra.mxu0 0
        %1371 = vmatprep.subr.bf16.mxu0 0
        %1372 = vmatpush1.bf16.msra.mxu0 0
        %1373 = vmatprep.subr.bf16.mxu0 0
        %1374 = vmatpush1.bf16.msra.mxu0 0
        %1375 = vmatprep.subr.bf16.mxu0 0
        %1376 = vmatpush1.bf16.msra.mxu0 0
        %1377 = vmatprep.subr.bf16.mxu0 0
        %1378 = vmatpush1.bf16.msra.mxu0 0
        %1379 = vmatprep.subr.bf16.mxu0 0
        %1380 = vmatpush1.bf16.msra.mxu0 0
        %1381 = vmatprep.subr.bf16.mxu0 0
        %1382 = vmatpush1.bf16.msra.mxu0 0
        %1383 = vmatprep.subr.bf16.mxu0 0
        %1384 = vmatpush1.bf16.msra.mxu0 0
        %1385 = vmatprep.subr.bf16.mxu0 0
        %1386 = vmatpush1.bf16.msra.mxu0 0
        %1387 = vmatprep.subr.bf16.mxu0 0
        %1388 = vmatpush1.bf16.msra.mxu0 0
        %1389 = vmatprep.subr.bf16.mxu0 0
        %1390 = vmatpush1.bf16.msra.mxu0 0
        %1391 = vmatprep.subr.bf16.mxu0 0
        %1392 = vmatpush1.bf16.msra.mxu0 0
        %1393 = vmatprep.subr.bf16.mxu0 0
        %1394 = vmatpush1.bf16.msra.mxu0 0
        %1395 = vmatprep.mubr.bf16.mxu0 0
        %1396 = vmatmul.mubr.bf16.gmra.mrb[0].mxu0 %v1361
        %v1397 = vpop.f32.mrb[0].mxu0
        %v1398 = vadd.f32 %v1246, %v1397
        %v1399 = vpop.f32.mrb[0].mxu0
        %v1400 = vadd.f32 %v1250, %v1399
        %v1401 = vpop.f32.mrb[0].mxu0
        %v1402 = vadd.f32 %v1246, %v1401
        %v1403 = vpop.f32.mrb[0].mxu0
        %v1404 = vadd.f32 %v1250, %v1403
        %1405 = vdwg.mxu0
        %1406 = vmatprep.subr.bf16.mxu0 %v1347
        %1407 = vmatpush1.bf16.msra.mxu0 %v1346
        %1408 = vmatprep.subr.bf16.mxu0 %v1351
        %1409 = vmatpush1.bf16.msra.mxu0 %v1350
        %1410 = vmatprep.subr.bf16.mxu0 0
        %1411 = vmatpush1.bf16.msra.mxu0 0
        %1412 = vmatprep.subr.bf16.mxu0 0
        %1413 = vmatpush1.bf16.msra.mxu0 0
        %1414 = vmatprep.subr.bf16.mxu0 0
        %1415 = vmatpush1.bf16.msra.mxu0 0
        %1416 = vmatprep.subr.bf16.mxu0 0
        %1417 = vmatpush1.bf16.msra.mxu0 0
        %1418 = vmatprep.subr.bf16.mxu0 0
        %1419 = vmatpush1.bf16.msra.mxu0 0
        %1420 = vmatprep.subr.bf16.mxu0 0
        %1421 = vmatpush1.bf16.msra.mxu0 0
        %1422 = vmatprep.subr.bf16.mxu0 0
        %1423 = vmatpush1.bf16.msra.mxu0 0
        %1424 = vmatprep.subr.bf16.mxu0 0
        %1425 = vmatpush1.bf16.msra.mxu0 0
        %1426 = vmatprep.subr.bf16.mxu0 0
        %1427 = vmatpush1.bf16.msra.mxu0 0
        %1428 = vmatprep.subr.bf16.mxu0 0
        %1429 = vmatpush1.bf16.msra.mxu0 0
        %1430 = vmatprep.subr.bf16.mxu0 0
        %1431 = vmatpush1.bf16.msra.mxu0 0
        %1432 = vmatprep.subr.bf16.mxu0 0
        %1433 = vmatpush1.bf16.msra.mxu0 0
        %1434 = vmatprep.subr.bf16.mxu0 0
        %1435 = vmatpush1.bf16.msra.mxu0 0
        %1436 = vmatprep.subr.bf16.mxu0 0
        %1437 = vmatpush1.bf16.msra.mxu0 0
        %1438 = vmatprep.mubr.bf16.mxu0 0
        %1439 = vmatmul.mubr.bf16.gmra.mrb[0].mxu0 %v1361
        %v1440 = vpop.f32.mrb[0].mxu0
        %v1441 = vadd.f32 %v1254, %v1440
        %v1442 = vpop.f32.mrb[0].mxu0
        %v1443 = vadd.f32 %v1258, %v1442
        %v1444 = vpop.f32.mrb[0].mxu0
        %v1445 = vadd.f32 %v1254, %v1444
        %v1446 = vpop.f32.mrb[0].mxu0
        %v1447 = vadd.f32 %v1258, %v1446
        %1448 = vdwg.mxu0
        %v1457 = vcombine.low %v1398, %v1400
        %v1458 = vcombine.high %v1398, %v1400
        %v1459 = vcombine.low %v1441, %v1443
        %v1460 = vcombine.high %v1441, %v1443
        %v1462 = vunpack.c.l.s4 1983009808
        %v1463 = vunpack.c.0.s8 %v1462
        %v1464 = vlaneseq
        %v1465 = vshrl.u32 %v1464, 7
        %v1466 = vsub.s32 %v1463, %v1465
        %v1467 = vrot.slane %v1457, %v1466
        %v1469 = vunpack.c.l.s4 1983009808
        %v1470 = vunpack.c.0.s8 %v1469
        %v1471 = vlaneseq
        %v1472 = vshrl.u32 %v1471, 7
        %v1473 = vsub.s32 %v1470, %v1472
        %v1474 = vrot.slane %v1458, %v1473
        %v1476 = vunpack.c.l.s4 1983009808
        %v1477 = vunpack.c.0.s8 %v1476
        %v1478 = vlaneseq
        %v1479 = vshrl.u32 %v1478, 7
        %v1480 = vsub.s32 %v1477, %v1479
        %v1481 = vrot.slane %v1459, %v1480
        %v1483 = vunpack.c.l.s4 1983009808
        %v1484 = vunpack.c.0.s8 %v1483
        %v1485 = vlaneseq
        %v1486 = vshrl.u32 %v1485, 7
        %v1487 = vsub.s32 %v1484, %v1486
        %v1488 = vrot.slane %v1460, %v1487
        %v1489 = vcombine.low %v1467, %v1481
        %v1490 = vcombine.high %v1467, %v1481
        %v1491 = vcombine.low %v1474, %v1488
        %v1492 = vcombine.high %v1474, %v1488
        %v1493 = vcombine.low %v1402, %v1404
        %v1494 = vcombine.high %v1402, %v1404
        %v1495 = vcombine.low %v1445, %v1447
        %v1496 = vcombine.high %v1445, %v1447
        %v1498 = vunpack.c.l.s4 1983009808
        %v1499 = vunpack.c.0.s8 %v1498
        %v1500 = vlaneseq
        %v1501 = vshrl.u32 %v1500, 7
        %v1502 = vsub.s32 %v1499, %v1501
        %v1503 = vrot.slane %v1493, %v1502
        %v1505 = vunpack.c.l.s4 1983009808
        %v1506 = vunpack.c.0.s8 %v1505
        %v1507 = vlaneseq
        %v1508 = vshrl.u32 %v1507, 7
        %v1509 = vsub.s32 %v1506, %v1508
        %v1510 = vrot.slane %v1494, %v1509
        %v1512 = vunpack.c.l.s4 1983009808
        %v1513 = vunpack.c.0.s8 %v1512
        %v1514 = vlaneseq
        %v1515 = vshrl.u32 %v1514, 7
        %v1516 = vsub.s32 %v1513, %v1515
        %v1517 = vrot.slane %v1495, %v1516
        %v1519 = vunpack.c.l.s4 1983009808
        %v1520 = vunpack.c.0.s8 %v1519
        %v1521 = vlaneseq
        %v1522 = vshrl.u32 %v1521, 7
        %v1523 = vsub.s32 %v1520, %v1522
        %v1524 = vrot.slane %v1496, %v1523
        %v1525 = vcombine.low %v1503, %v1517
        %v1526 = vcombine.high %v1503, %v1517
        %v1527 = vcombine.low %v1510, %v1524
        %v1528 = vcombine.high %v1510, %v1524
        %s1537 = scalar_lea.vmem [#allocation2], 24
        %1538 = vst [vmem:[%s1537] sm:$0xff] %v1489
        %1539 = vst [vmem:[%s1537 + $0x20] sm:$0xff] %v1490
        %1540 = vst [vmem:[%s1537 + $0x40] sm:$0xff] %v1491
        %1541 = vst [vmem:[%s1537 + $0x60] sm:$0xff] %v1492
        %1542 = vst [vmem:[%s1537 + $0x80] sm:$0xff] %v1525
        %1543 = vst [vmem:[%s1537 + $0xa0] sm:$0xff] %v1526
        %1544 = vst [vmem:[%s1537 + $0xc0] sm:$0xff] %v1527
        %1545 = vst [vmem:[%s1537 + $0xe0] sm:$0xff] %v1528
        %v1546 = vld [vmem:[%s2] sm:$0xff]
        %v1547 = vld [vmem:[%s2 + $0x8] sm:$0xff]
        %v1548 = vld [vmem:[%s2 + $0x10] sm:$0xff]
        %v1549 = vld [vmem:[%s2 + $0x18] sm:$0xff]
        %v1550 = vld [vmem:[%s2 + $0x20] sm:$0xff]
        %v1551 = vld [vmem:[%s2 + $0x28] sm:$0xff]
        %v1552 = vld [vmem:[%s2 + $0x30] sm:$0xff]
        %v1553 = vld [vmem:[%s2 + $0x38] sm:$0xff]
        %v1554 = vld [vmem:[%s2 + $0x40] sm:$0xff]
        %v1555 = vld [vmem:[%s2 + $0x48] sm:$0xff]
        %v1556 = vld [vmem:[%s2 + $0x50] sm:$0xff]
        %v1557 = vld [vmem:[%s2 + $0x58] sm:$0xff]
        %v1558 = vld [vmem:[%s2 + $0x60] sm:$0xff]
        %v1559 = vld [vmem:[%s2 + $0x68] sm:$0xff]
        %v1560 = vld [vmem:[%s2 + $0x70] sm:$0xff]
        %v1561 = vld [vmem:[%s2 + $0x78] sm:$0xff]
        %v1562 = vld [vmem:[%s2 + $0x80] sm:$0xff]
        %v1563 = vld [vmem:[%s2 + $0x88] sm:$0xff]
        %v1564 = vld [vmem:[%s2 + $0x90] sm:$0xff]
        %v1565 = vld [vmem:[%s2 + $0x98] sm:$0xff]
        %v1566 = vld [vmem:[%s2 + $0xa0] sm:$0xff]
        %v1567 = vld [vmem:[%s2 + $0xa8] sm:$0xff]
        %v1568 = vld [vmem:[%s2 + $0xb0] sm:$0xff]
        %v1569 = vld [vmem:[%s2 + $0xb8] sm:$0xff]
        %v1570 = vld [vmem:[%s2 + $0xc0] sm:$0xff]
        %v1571 = vld [vmem:[%s2 + $0xc8] sm:$0xff]
        %v1572 = vld [vmem:[%s2 + $0xd0] sm:$0xff]
        %v1573 = vld [vmem:[%s2 + $0xd8] sm:$0xff]
        %v1574 = vld [vmem:[%s2 + $0xe0] sm:$0xff]
        %v1575 = vld [vmem:[%s2 + $0xe8] sm:$0xff]
        %v1576 = vld [vmem:[%s2 + $0xf0] sm:$0xff]
        %v1577 = vld [vmem:[%s2 + $0xf8] sm:$0xff]
        %v1578 = vld [vmem:[%s2 + $0x100] sm:$0xff]
        %v1579 = vld [vmem:[%s2 + $0x108] sm:$0xff]
        %v1580 = vld [vmem:[%s2 + $0x110] sm:$0xff]
        %v1581 = vld [vmem:[%s2 + $0x118] sm:$0xff]
        %v1582 = vld [vmem:[%s2 + $0x120] sm:$0xff]
        %v1583 = vld [vmem:[%s2 + $0x128] sm:$0xff]
        %v1584 = vld [vmem:[%s2 + $0x130] sm:$0xff]
        %v1585 = vld [vmem:[%s2 + $0x138] sm:$0xff]
        %v1586 = vld [vmem:[%s2 + $0x140] sm:$0xff]
        %v1587 = vld [vmem:[%s2 + $0x148] sm:$0xff]
        %v1588 = vld [vmem:[%s2 + $0x150] sm:$0xff]
        %v1589 = vld [vmem:[%s2 + $0x158] sm:$0xff]
        %v1590 = vld [vmem:[%s2 + $0x160] sm:$0xff]
        %v1591 = vld [vmem:[%s2 + $0x168] sm:$0xff]
        %v1592 = vld [vmem:[%s2 + $0x170] sm:$0xff]
        %v1593 = vld [vmem:[%s2 + $0x178] sm:$0xff]
        %v1594 = vld [vmem:[%s2 + $0x180] sm:$0xff]
        %v1595 = vld [vmem:[%s2 + $0x188] sm:$0xff]
        %v1596 = vld [vmem:[%s2 + $0x190] sm:$0xff]
        %v1597 = vld [vmem:[%s2 + $0x198] sm:$0xff]
        %v1598 = vld [vmem:[%s2 + $0x1a0] sm:$0xff]
        %v1599 = vld [vmem:[%s2 + $0x1a8] sm:$0xff]
        %v1600 = vld [vmem:[%s2 + $0x1b0] sm:$0xff]
        %v1601 = vld [vmem:[%s2 + $0x1b8] sm:$0xff]
        %v1602 = vld [vmem:[%s2 + $0x1c0] sm:$0xff]
        %v1603 = vld [vmem:[%s2 + $0x1c8] sm:$0xff]
        %v1604 = vld [vmem:[%s2 + $0x1d0] sm:$0xff]
        %v1605 = vld [vmem:[%s2 + $0x1d8] sm:$0xff]
        %v1606 = vld [vmem:[%s2 + $0x1e0] sm:$0xff]
        %v1607 = vld [vmem:[%s2 + $0x1e8] sm:$0xff]
        %v1608 = vld [vmem:[%s2 + $0x1f0] sm:$0xff]
        %v1609 = vld [vmem:[%s2 + $0x1f8] sm:$0xff]
        %v1610 = vld [vmem:[%s2 + $0x200] sm:$0xff]
        %v1611 = vld [vmem:[%s2 + $0x208] sm:$0xff]
        %v1612 = vld [vmem:[%s2 + $0x210] sm:$0xff]
        %v1613 = vld [vmem:[%s2 + $0x218] sm:$0xff]
        %v1614 = vld [vmem:[%s2 + $0x220] sm:$0xff]
        %v1615 = vld [vmem:[%s2 + $0x228] sm:$0xff]
        %v1616 = vld [vmem:[%s2 + $0x230] sm:$0xff]
        %v1617 = vld [vmem:[%s2 + $0x238] sm:$0xff]
        %v1618 = vld [vmem:[%s2 + $0x240] sm:$0xff]
        %v1619 = vld [vmem:[%s2 + $0x248] sm:$0xff]
        %v1620 = vld [vmem:[%s2 + $0x250] sm:$0xff]
        %v1621 = vld [vmem:[%s2 + $0x258] sm:$0xff]
        %v1622 = vld [vmem:[%s2 + $0x260] sm:$0xff]
        %v1623 = vld [vmem:[%s2 + $0x268] sm:$0xff]
        %v1624 = vld [vmem:[%s2 + $0x270] sm:$0xff]
        %v1625 = vld [vmem:[%s2 + $0x278] sm:$0xff]
        %v1626 = vld [vmem:[%s2 + $0x280] sm:$0xff]
        %v1627 = vld [vmem:[%s2 + $0x288] sm:$0xff]
        %v1628 = vld [vmem:[%s2 + $0x290] sm:$0xff]
        %v1629 = vld [vmem:[%s2 + $0x298] sm:$0xff]
        %v1630 = vld [vmem:[%s2 + $0x2a0] sm:$0xff]
        %v1631 = vld [vmem:[%s2 + $0x2a8] sm:$0xff]
        %v1632 = vld [vmem:[%s2 + $0x2b0] sm:$0xff]
        %v1633 = vld [vmem:[%s2 + $0x2b8] sm:$0xff]
        %v1634 = vld [vmem:[%s2 + $0x2c0] sm:$0xff]
        %v1635 = vld [vmem:[%s2 + $0x2c8] sm:$0xff]
        %v1636 = vld [vmem:[%s2 + $0x2d0] sm:$0xff]
        %v1637 = vld [vmem:[%s2 + $0x2d8] sm:$0xff]
        %v1638 = vld [vmem:[%s2 + $0x2e0] sm:$0xff]
        %v1639 = vld [vmem:[%s2 + $0x2e8] sm:$0xff]
        %v1640 = vld [vmem:[%s2 + $0x2f0] sm:$0xff]
        %v1641 = vld [vmem:[%s2 + $0x2f8] sm:$0xff]
        %v1642 = vld [vmem:[%s2 + $0x300] sm:$0xff]
        %v1643 = vld [vmem:[%s2 + $0x308] sm:$0xff]
        %v1644 = vld [vmem:[%s2 + $0x310] sm:$0xff]
        %v1645 = vld [vmem:[%s2 + $0x318] sm:$0xff]
        %v1646 = vld [vmem:[%s2 + $0x320] sm:$0xff]
        %v1647 = vld [vmem:[%s2 + $0x328] sm:$0xff]
        %v1648 = vld [vmem:[%s2 + $0x330] sm:$0xff]
        %v1649 = vld [vmem:[%s2 + $0x338] sm:$0xff]
        %v1650 = vld [vmem:[%s2 + $0x340] sm:$0xff]
        %v1651 = vld [vmem:[%s2 + $0x348] sm:$0xff]
        %v1652 = vld [vmem:[%s2 + $0x350] sm:$0xff]
        %v1653 = vld [vmem:[%s2 + $0x358] sm:$0xff]
        %v1654 = vld [vmem:[%s2 + $0x360] sm:$0xff]
        %v1655 = vld [vmem:[%s2 + $0x368] sm:$0xff]
        %v1656 = vld [vmem:[%s2 + $0x370] sm:$0xff]
        %v1657 = vld [vmem:[%s2 + $0x378] sm:$0xff]
        %v1658 = vld [vmem:[%s2 + $0x380] sm:$0xff]
        %v1659 = vld [vmem:[%s2 + $0x388] sm:$0xff]
        %v1660 = vld [vmem:[%s2 + $0x390] sm:$0xff]
        %v1661 = vld [vmem:[%s2 + $0x398] sm:$0xff]
        %v1662 = vld [vmem:[%s2 + $0x3a0] sm:$0xff]
        %v1663 = vld [vmem:[%s2 + $0x3a8] sm:$0xff]
        %v1664 = vld [vmem:[%s2 + $0x3b0] sm:$0xff]
        %v1665 = vld [vmem:[%s2 + $0x3b8] sm:$0xff]
        %v1666 = vld [vmem:[%s2 + $0x3c0] sm:$0xff]
        %v1667 = vld [vmem:[%s2 + $0x3c8] sm:$0xff]
        %v1668 = vld [vmem:[%s2 + $0x3d0] sm:$0xff]
        %v1669 = vld [vmem:[%s2 + $0x3d8] sm:$0xff]
        %v1670 = vld [vmem:[%s2 + $0x3e0] sm:$0xff]
        %v1671 = vld [vmem:[%s2 + $0x3e8] sm:$0xff]
        %v1672 = vld [vmem:[%s2 + $0x3f0] sm:$0xff]
        %v1673 = vld [vmem:[%s2 + $0x3f8] sm:$0xff]
        %v1674 = vld [vmem:[#allocation3] sm:$0x3]
        %v1675 = vld [vmem:[#allocation3 + $0x2] sm:$0x3]
        %v1676 = vld [vmem:[#allocation3 + $0x4] sm:$0x3]
        %v1677 = vld [vmem:[#allocation3 + $0x6] sm:$0x3]
        %v1678 = vld [vmem:[#allocation4] sm:$0x3]
        %v1679 = vld [vmem:[#allocation4 + $0x2] sm:$0x3]
        %v1680 = vld [vmem:[#allocation4 + $0x4] sm:$0x3]
        %v1681 = vld [vmem:[#allocation4 + $0x6] sm:$0x3]
        %v1682 = vld [vmem:[#allocation2] sm:$0xff]
        %v1683 = vld [vmem:[#allocation2 + $0x8] sm:$0xff]
        %v1684 = vld [vmem:[#allocation2 + $0x10] sm:$0xff]
        %v1685 = vld [vmem:[#allocation2 + $0x18] sm:$0xff]
        %v1686 = vpack.c.bf16 %v1674, %v1674
        %v1687 = vpack.c.bf16 %v1675, %v1675
        %v1688 = vpack.c.bf16 %v1676, %v1676
        %v1689 = vpack.c.bf16 %v1677, %v1677
        %v1722 = vunpack.c.l.b16 %v1546
        %v1723 = vunpack.c.h.b16 %v1546
        %v1724 = vunpack.c.l.b16 %v1547
        %v1725 = vunpack.c.h.b16 %v1547
        %v1726 = vunpack.c.l.b16 %v1548
        %v1727 = vunpack.c.h.b16 %v1548
        %v1728 = vunpack.c.l.b16 %v1549
        %v1729 = vunpack.c.h.b16 %v1549
        %v1730 = vunpack.c.l.b16 %v1550
        %v1731 = vunpack.c.h.b16 %v1550
        %v1732 = vunpack.c.l.b16 %v1551
        %v1733 = vunpack.c.h.b16 %v1551
        %v1734 = vunpack.c.l.b16 %v1552
        %v1735 = vunpack.c.h.b16 %v1552
        %v1736 = vunpack.c.l.b16 %v1553
        %v1737 = vunpack.c.h.b16 %v1553
        %v1738 = vunpack.c.l.b16 %v1554
        %v1739 = vunpack.c.h.b16 %v1554
        %v1740 = vunpack.c.l.b16 %v1555
        %v1741 = vunpack.c.h.b16 %v1555
        %v1742 = vunpack.c.l.b16 %v1556
        %v1743 = vunpack.c.h.b16 %v1556
        %v1744 = vunpack.c.l.b16 %v1557
        %v1745 = vunpack.c.h.b16 %v1557
        %v1746 = vunpack.c.l.b16 %v1558
        %v1747 = vunpack.c.h.b16 %v1558
        %v1748 = vunpack.c.l.b16 %v1559
        %v1749 = vunpack.c.h.b16 %v1559
        %v1750 = vunpack.c.l.b16 %v1560
        %v1751 = vunpack.c.h.b16 %v1560
        %v1752 = vunpack.c.l.b16 %v1561
        %v1753 = vunpack.c.h.b16 %v1561
        %v1754 = vunpack.c.l.b16 %v1562
        %v1755 = vunpack.c.h.b16 %v1562
        %v1756 = vunpack.c.l.b16 %v1563
        %v1757 = vunpack.c.h.b16 %v1563
        %v1758 = vunpack.c.l.b16 %v1564
        %v1759 = vunpack.c.h.b16 %v1564
        %v1760 = vunpack.c.l.b16 %v1565
        %v1761 = vunpack.c.h.b16 %v1565
        %v1762 = vunpack.c.l.b16 %v1566
        %v1763 = vunpack.c.h.b16 %v1566
        %v1764 = vunpack.c.l.b16 %v1567
        %v1765 = vunpack.c.h.b16 %v1567
        %v1766 = vunpack.c.l.b16 %v1568
        %v1767 = vunpack.c.h.b16 %v1568
        %v1768 = vunpack.c.l.b16 %v1569
        %v1769 = vunpack.c.h.b16 %v1569
        %v1770 = vunpack.c.l.b16 %v1570
        %v1771 = vunpack.c.h.b16 %v1570
        %v1772 = vunpack.c.l.b16 %v1571
        %v1773 = vunpack.c.h.b16 %v1571
        %v1774 = vunpack.c.l.b16 %v1572
        %v1775 = vunpack.c.h.b16 %v1572
        %v1776 = vunpack.c.l.b16 %v1573
        %v1777 = vunpack.c.h.b16 %v1573
        %v1778 = vunpack.c.l.b16 %v1574
        %v1779 = vunpack.c.h.b16 %v1574
        %v1780 = vunpack.c.l.b16 %v1575
        %v1781 = vunpack.c.h.b16 %v1575
        %v1782 = vunpack.c.l.b16 %v1576
        %v1783 = vunpack.c.h.b16 %v1576
        %v1784 = vunpack.c.l.b16 %v1577
        %v1785 = vunpack.c.h.b16 %v1577
        %v1786 = vpack.c.b16 %v1726, %v1722
        %v1787 = vpack.c.b16 %v1727, %v1723
        %v1788 = vpack.c.b16 %v1728, %v1724
        %v1789 = vpack.c.b16 %v1729, %v1725
        %v1790 = vpack.c.b16 %v1734, %v1730
        %v1791 = vpack.c.b16 %v1735, %v1731
        %v1792 = vpack.c.b16 %v1736, %v1732
        %v1793 = vpack.c.b16 %v1737, %v1733
        %v1794 = vpack.c.b16 %v1742, %v1738
        %v1795 = vpack.c.b16 %v1743, %v1739
        %v1796 = vpack.c.b16 %v1744, %v1740
        %v1797 = vpack.c.b16 %v1745, %v1741
        %v1798 = vpack.c.b16 %v1750, %v1746
        %v1799 = vpack.c.b16 %v1751, %v1747
        %v1800 = vpack.c.b16 %v1752, %v1748
        %v1801 = vpack.c.b16 %v1753, %v1749
        %v1802 = vpack.c.b16 %v1758, %v1754
        %v1803 = vpack.c.b16 %v1759, %v1755
        %v1804 = vpack.c.b16 %v1760, %v1756
        %v1805 = vpack.c.b16 %v1761, %v1757
        %v1806 = vpack.c.b16 %v1766, %v1762
        %v1807 = vpack.c.b16 %v1767, %v1763
        %v1808 = vpack.c.b16 %v1768, %v1764
        %v1809 = vpack.c.b16 %v1769, %v1765
        %v1810 = vpack.c.b16 %v1774, %v1770
        %v1811 = vpack.c.b16 %v1775, %v1771
        %v1812 = vpack.c.b16 %v1776, %v1772
        %v1813 = vpack.c.b16 %v1777, %v1773
        %v1814 = vpack.c.b16 %v1782, %v1778
        %v1815 = vpack.c.b16 %v1783, %v1779
        %v1816 = vpack.c.b16 %v1784, %v1780
        %v1817 = vpack.c.b16 %v1785, %v1781
        %1850 = vmatprep.subr.bf16.mxu0 %v1787
        %1851 = vmatpush1.bf16.msra.mxu0 %v1786
        %1852 = vmatprep.subr.bf16.mxu0 %v1791
        %1853 = vmatpush1.bf16.msra.mxu0 %v1790
        %1854 = vmatprep.subr.bf16.mxu0 %v1795
        %1855 = vmatpush1.bf16.msra.mxu0 %v1794
        %1856 = vmatprep.subr.bf16.mxu0 %v1799
        %1857 = vmatpush1.bf16.msra.mxu0 %v1798
        %1858 = vmatprep.subr.bf16.mxu0 %v1803
        %1859 = vmatpush1.bf16.msra.mxu0 %v1802
        %1860 = vmatprep.subr.bf16.mxu0 %v1807
        %1861 = vmatpush1.bf16.msra.mxu0 %v1806
        %1862 = vmatprep.subr.bf16.mxu0 %v1811
        %1863 = vmatpush1.bf16.msra.mxu0 %v1810
        %1864 = vmatprep.subr.bf16.mxu0 %v1815
        %1865 = vmatpush1.bf16.msra.mxu0 %v1814
        %1866 = vmatprep.subr.bf16.mxu0 0
        %1867 = vmatpush1.bf16.msra.mxu0 0
        %1868 = vmatprep.subr.bf16.mxu0 0
        %1869 = vmatpush1.bf16.msra.mxu0 0
        %1870 = vmatprep.subr.bf16.mxu0 0
        %1871 = vmatpush1.bf16.msra.mxu0 0
        %1872 = vmatprep.subr.bf16.mxu0 0
        %1873 = vmatpush1.bf16.msra.mxu0 0
        %1874 = vmatprep.subr.bf16.mxu0 0
        %1875 = vmatpush1.bf16.msra.mxu0 0
        %1876 = vmatprep.subr.bf16.mxu0 0
        %1877 = vmatpush1.bf16.msra.mxu0 0
        %1878 = vmatprep.subr.bf16.mxu0 0
        %1879 = vmatpush1.bf16.msra.mxu0 0
        %1880 = vmatprep.subr.bf16.mxu0 0
        %1881 = vmatpush1.bf16.msra.mxu0 0
        %1882 = vmatprep.mubr.bf16.mxu0 0
        %1883 = vmatmul.mubr.bf16.gmra.mrb[0].mxu0 %v1686
        %v1884 = vpop.f32.mrb[0].mxu0
        %v1885 = vadd.f32 0.0, %v1884
        %v1886 = vpop.f32.mrb[0].mxu0
        %v1887 = vadd.f32 0.0, %v1886
        %v1888 = vpop.f32.mrb[0].mxu0
        %v1889 = vpop.f32.mrb[0].mxu0
        %1890 = vdwg.mxu0
        %1891 = vmatprep.subr.bf16.mxu0 %v1789
        %1892 = vmatpush1.bf16.msra.mxu0 %v1788
        %1893 = vmatprep.subr.bf16.mxu0 %v1793
        %1894 = vmatpush1.bf16.msra.mxu0 %v1792
        %1895 = vmatprep.subr.bf16.mxu0 %v1797
        %1896 = vmatpush1.bf16.msra.mxu0 %v1796
        %1897 = vmatprep.subr.bf16.mxu0 %v1801
        %1898 = vmatpush1.bf16.msra.mxu0 %v1800
        %1899 = vmatprep.subr.bf16.mxu0 %v1805
        %1900 = vmatpush1.bf16.msra.mxu0 %v1804
        %1901 = vmatprep.subr.bf16.mxu0 %v1809
        %1902 = vmatpush1.bf16.msra.mxu0 %v1808
        %1903 = vmatprep.subr.bf16.mxu0 %v1813
        %1904 = vmatpush1.bf16.msra.mxu0 %v1812
        %1905 = vmatprep.subr.bf16.mxu0 %v1817
        %1906 = vmatpush1.bf16.msra.mxu0 %v1816
        %1907 = vmatprep.subr.bf16.mxu0 0
        %1908 = vmatpush1.bf16.msra.mxu0 0
        %1909 = vmatprep.subr.bf16.mxu0 0
        %1910 = vmatpush1.bf16.msra.mxu0 0
        %1911 = vmatprep.subr.bf16.mxu0 0
        %1912 = vmatpush1.bf16.msra.mxu0 0
        %1913 = vmatprep.subr.bf16.mxu0 0
        %1914 = vmatpush1.bf16.msra.mxu0 0
        %1915 = vmatprep.subr.bf16.mxu0 0
        %1916 = vmatpush1.bf16.msra.mxu0 0
        %1917 = vmatprep.subr.bf16.mxu0 0
        %1918 = vmatpush1.bf16.msra.mxu0 0
        %1919 = vmatprep.subr.bf16.mxu0 0
        %1920 = vmatpush1.bf16.msra.mxu0 0
        %1921 = vmatprep.subr.bf16.mxu0 0
        %1922 = vmatpush1.bf16.msra.mxu0 0
        %1923 = vmatprep.mubr.bf16.mxu0 0
        %1924 = vmatmul.mubr.bf16.gmra.mrb[0].mxu0 %v1686
        %v1925 = vpop.f32.mrb[0].mxu0
        %v1926 = vadd.f32 0.0, %v1925
        %v1927 = vpop.f32.mrb[0].mxu0
        %v1928 = vadd.f32 0.0, %v1927
        %v1929 = vpop.f32.mrb[0].mxu0
        %v1930 = vpop.f32.mrb[0].mxu0
        %1931 = vdwg.mxu0
        %v1964 = vunpack.c.l.b16 %v1578
        %v1965 = vunpack.c.h.b16 %v1578
        %v1966 = vunpack.c.l.b16 %v1579
        %v1967 = vunpack.c.h.b16 %v1579
        %v1968 = vunpack.c.l.b16 %v1580
        %v1969 = vunpack.c.h.b16 %v1580
        %v1970 = vunpack.c.l.b16 %v1581
        %v1971 = vunpack.c.h.b16 %v1581
        %v1972 = vunpack.c.l.b16 %v1582
        %v1973 = vunpack.c.h.b16 %v1582
        %v1974 = vunpack.c.l.b16 %v1583
        %v1975 = vunpack.c.h.b16 %v1583
        %v1976 = vunpack.c.l.b16 %v1584
        %v1977 = vunpack.c.h.b16 %v1584
        %v1978 = vunpack.c.l.b16 %v1585
        %v1979 = vunpack.c.h.b16 %v1585
        %v1980 = vunpack.c.l.b16 %v1586
        %v1981 = vunpack.c.h.b16 %v1586
        %v1982 = vunpack.c.l.b16 %v1587
        %v1983 = vunpack.c.h.b16 %v1587
        %v1984 = vunpack.c.l.b16 %v1588
        %v1985 = vunpack.c.h.b16 %v1588
        %v1986 = vunpack.c.l.b16 %v1589
        %v1987 = vunpack.c.h.b16 %v1589
        %v1988 = vunpack.c.l.b16 %v1590
        %v1989 = vunpack.c.h.b16 %v1590
        %v1990 = vunpack.c.l.b16 %v1591
        %v1991 = vunpack.c.h.b16 %v1591
        %v1992 = vunpack.c.l.b16 %v1592
        %v1993 = vunpack.c.h.b16 %v1592
        %v1994 = vunpack.c.l.b16 %v1593
        %v1995 = vunpack.c.h.b16 %v1593
        %v1996 = vunpack.c.l.b16 %v1594
        %v1997 = vunpack.c.h.b16 %v1594
        %v1998 = vunpack.c.l.b16 %v1595
        %v1999 = vunpack.c.h.b16 %v1595
        %v2000 = vunpack.c.l.b16 %v1596
        %v2001 = vunpack.c.h.b16 %v1596
        %v2002 = vunpack.c.l.b16 %v1597
        %v2003 = vunpack.c.h.b16 %v1597
        %v2004 = vunpack.c.l.b16 %v1598
        %v2005 = vunpack.c.h.b16 %v1598
        %v2006 = vunpack.c.l.b16 %v1599
        %v2007 = vunpack.c.h.b16 %v1599
        %v2008 = vunpack.c.l.b16 %v1600
        %v2009 = vunpack.c.h.b16 %v1600
        %v2010 = vunpack.c.l.b16 %v1601
        %v2011 = vunpack.c.h.b16 %v1601
        %v2012 = vunpack.c.l.b16 %v1602
        %v2013 = vunpack.c.h.b16 %v1602
        %v2014 = vunpack.c.l.b16 %v1603
        %v2015 = vunpack.c.h.b16 %v1603
        %v2016 = vunpack.c.l.b16 %v1604
        %v2017 = vunpack.c.h.b16 %v1604
        %v2018 = vunpack.c.l.b16 %v1605
        %v2019 = vunpack.c.h.b16 %v1605
        %v2020 = vunpack.c.l.b16 %v1606
        %v2021 = vunpack.c.h.b16 %v1606
        %v2022 = vunpack.c.l.b16 %v1607
        %v2023 = vunpack.c.h.b16 %v1607
        %v2024 = vunpack.c.l.b16 %v1608
        %v2025 = vunpack.c.h.b16 %v1608
        %v2026 = vunpack.c.l.b16 %v1609
        %v2027 = vunpack.c.h.b16 %v1609
        %v2028 = vpack.c.b16 %v1968, %v1964
        %v2029 = vpack.c.b16 %v1969, %v1965
        %v2030 = vpack.c.b16 %v1970, %v1966
        %v2031 = vpack.c.b16 %v1971, %v1967
        %v2032 = vpack.c.b16 %v1976, %v1972
        %v2033 = vpack.c.b16 %v1977, %v1973
        %v2034 = vpack.c.b16 %v1978, %v1974
        %v2035 = vpack.c.b16 %v1979, %v1975
        %v2036 = vpack.c.b16 %v1984, %v1980
        %v2037 = vpack.c.b16 %v1985, %v1981
        %v2038 = vpack.c.b16 %v1986, %v1982
        %v2039 = vpack.c.b16 %v1987, %v1983
        %v2040 = vpack.c.b16 %v1992, %v1988
        %v2041 = vpack.c.b16 %v1993, %v1989
        %v2042 = vpack.c.b16 %v1994, %v1990
        %v2043 = vpack.c.b16 %v1995, %v1991
        %v2044 = vpack.c.b16 %v2000, %v1996
        %v2045 = vpack.c.b16 %v2001, %v1997
        %v2046 = vpack.c.b16 %v2002, %v1998
        %v2047 = vpack.c.b16 %v2003, %v1999
        %v2048 = vpack.c.b16 %v2008, %v2004
        %v2049 = vpack.c.b16 %v2009, %v2005
        %v2050 = vpack.c.b16 %v2010, %v2006
        %v2051 = vpack.c.b16 %v2011, %v2007
        %v2052 = vpack.c.b16 %v2016, %v2012
        %v2053 = vpack.c.b16 %v2017, %v2013
        %v2054 = vpack.c.b16 %v2018, %v2014
        %v2055 = vpack.c.b16 %v2019, %v2015
        %v2056 = vpack.c.b16 %v2024, %v2020
        %v2057 = vpack.c.b16 %v2025, %v2021
        %v2058 = vpack.c.b16 %v2026, %v2022
        %v2059 = vpack.c.b16 %v2027, %v2023
        %2092 = vmatprep.subr.bf16.mxu0 %v2029
        %2093 = vmatpush1.bf16.msra.mxu0 %v2028
        %2094 = vmatprep.subr.bf16.mxu0 %v2033
        %2095 = vmatpush1.bf16.msra.mxu0 %v2032
        %2096 = vmatprep.subr.bf16.mxu0 %v2037
        %2097 = vmatpush1.bf16.msra.mxu0 %v2036
        %2098 = vmatprep.subr.bf16.mxu0 %v2041
        %2099 = vmatpush1.bf16.msra.mxu0 %v2040
        %2100 = vmatprep.subr.bf16.mxu0 %v2045
        %2101 = vmatpush1.bf16.msra.mxu0 %v2044
        %2102 = vmatprep.subr.bf16.mxu0 %v2049
        %2103 = vmatpush1.bf16.msra.mxu0 %v2048
        %2104 = vmatprep.subr.bf16.mxu0 %v2053
        %2105 = vmatpush1.bf16.msra.mxu0 %v2052
        %2106 = vmatprep.subr.bf16.mxu0 %v2057
        %2107 = vmatpush1.bf16.msra.mxu0 %v2056
        %2108 = vmatprep.subr.bf16.mxu0 0
        %2109 = vmatpush1.bf16.msra.mxu0 0
        %2110 = vmatprep.subr.bf16.mxu0 0
        %2111 = vmatpush1.bf16.msra.mxu0 0
        %2112 = vmatprep.subr.bf16.mxu0 0
        %2113 = vmatpush1.bf16.msra.mxu0 0
        %2114 = vmatprep.subr.bf16.mxu0 0
        %2115 = vmatpush1.bf16.msra.mxu0 0
        %2116 = vmatprep.subr.bf16.mxu0 0
        %2117 = vmatpush1.bf16.msra.mxu0 0
        %2118 = vmatprep.subr.bf16.mxu0 0
        %2119 = vmatpush1.bf16.msra.mxu0 0
        %2120 = vmatprep.subr.bf16.mxu0 0
        %2121 = vmatpush1.bf16.msra.mxu0 0
        %2122 = vmatprep.subr.bf16.mxu0 0
        %2123 = vmatpush1.bf16.msra.mxu0 0
        %2124 = vmatprep.mubr.bf16.mxu0 0
        %2125 = vmatmul.mubr.bf16.gmra.mrb[0].mxu0 %v1687
        %v2126 = vpop.f32.mrb[0].mxu0
        %v2127 = vadd.f32 0.0, %v2126
        %v2128 = vpop.f32.mrb[0].mxu0
        %v2129 = vadd.f32 0.0, %v2128
        %v2130 = vpop.f32.mrb[0].mxu0
        %v2131 = vpop.f32.mrb[0].mxu0
        %2132 = vdwg.mxu0
        %2133 = vmatprep.subr.bf16.mxu0 %v2031
        %2134 = vmatpush1.bf16.msra.mxu0 %v2030
        %2135 = vmatprep.subr.bf16.mxu0 %v2035
        %2136 = vmatpush1.bf16.msra.mxu0 %v2034
        %2137 = vmatprep.subr.bf16.mxu0 %v2039
        %2138 = vmatpush1.bf16.msra.mxu0 %v2038
        %2139 = vmatprep.subr.bf16.mxu0 %v2043
        %2140 = vmatpush1.bf16.msra.mxu0 %v2042
        %2141 = vmatprep.subr.bf16.mxu0 %v2047
        %2142 = vmatpush1.bf16.msra.mxu0 %v2046
        %2143 = vmatprep.subr.bf16.mxu0 %v2051
        %2144 = vmatpush1.bf16.msra.mxu0 %v2050
        %2145 = vmatprep.subr.bf16.mxu0 %v2055
        %2146 = vmatpush1.bf16.msra.mxu0 %v2054
        %2147 = vmatprep.subr.bf16.mxu0 %v2059
        %2148 = vmatpush1.bf16.msra.mxu0 %v2058
        %2149 = vmatprep.subr.bf16.mxu0 0
        %2150 = vmatpush1.bf16.msra.mxu0 0
        %2151 = vmatprep.subr.bf16.mxu0 0
        %2152 = vmatpush1.bf16.msra.mxu0 0
        %2153 = vmatprep.subr.bf16.mxu0 0
        %2154 = vmatpush1.bf16.msra.mxu0 0
        %2155 = vmatprep.subr.bf16.mxu0 0
        %2156 = vmatpush1.bf16.msra.mxu0 0
        %2157 = vmatprep.subr.bf16.mxu0 0
        %2158 = vmatpush1.bf16.msra.mxu0 0
        %2159 = vmatprep.subr.bf16.mxu0 0
        %2160 = vmatpush1.bf16.msra.mxu0 0
        %2161 = vmatprep.subr.bf16.mxu0 0
        %2162 = vmatpush1.bf16.msra.mxu0 0
        %2163 = vmatprep.subr.bf16.mxu0 0
        %2164 = vmatpush1.bf16.msra.mxu0 0
        %2165 = vmatprep.mubr.bf16.mxu0 0
        %2166 = vmatmul.mubr.bf16.gmra.mrb[0].mxu0 %v1687
        %v2167 = vpop.f32.mrb[0].mxu0
        %v2168 = vadd.f32 0.0, %v2167
        %v2169 = vpop.f32.mrb[0].mxu0
        %v2170 = vadd.f32 0.0, %v2169
        %v2171 = vpop.f32.mrb[0].mxu0
        %v2172 = vpop.f32.mrb[0].mxu0
        %2173 = vdwg.mxu0
        %v2206 = vunpack.c.l.b16 %v1610
        %v2207 = vunpack.c.h.b16 %v1610
        %v2208 = vunpack.c.l.b16 %v1611
        %v2209 = vunpack.c.h.b16 %v1611
        %v2210 = vunpack.c.l.b16 %v1612
        %v2211 = vunpack.c.h.b16 %v1612
        %v2212 = vunpack.c.l.b16 %v1613
        %v2213 = vunpack.c.h.b16 %v1613
        %v2214 = vunpack.c.l.b16 %v1614
        %v2215 = vunpack.c.h.b16 %v1614
        %v2216 = vunpack.c.l.b16 %v1615
        %v2217 = vunpack.c.h.b16 %v1615
        %v2218 = vunpack.c.l.b16 %v1616
        %v2219 = vunpack.c.h.b16 %v1616
        %v2220 = vunpack.c.l.b16 %v1617
        %v2221 = vunpack.c.h.b16 %v1617
        %v2222 = vunpack.c.l.b16 %v1618
        %v2223 = vunpack.c.h.b16 %v1618
        %v2224 = vunpack.c.l.b16 %v1619
        %v2225 = vunpack.c.h.b16 %v1619
        %v2226 = vunpack.c.l.b16 %v1620
        %v2227 = vunpack.c.h.b16 %v1620
        %v2228 = vunpack.c.l.b16 %v1621
        %v2229 = vunpack.c.h.b16 %v1621
        %v2230 = vunpack.c.l.b16 %v1622
        %v2231 = vunpack.c.h.b16 %v1622
        %v2232 = vunpack.c.l.b16 %v1623
        %v2233 = vunpack.c.h.b16 %v1623
        %v2234 = vunpack.c.l.b16 %v1624
        %v2235 = vunpack.c.h.b16 %v1624
        %v2236 = vunpack.c.l.b16 %v1625
        %v2237 = vunpack.c.h.b16 %v1625
        %v2238 = vunpack.c.l.b16 %v1626
        %v2239 = vunpack.c.h.b16 %v1626
        %v2240 = vunpack.c.l.b16 %v1627
        %v2241 = vunpack.c.h.b16 %v1627
        %v2242 = vunpack.c.l.b16 %v1628
        %v2243 = vunpack.c.h.b16 %v1628
        %v2244 = vunpack.c.l.b16 %v1629
        %v2245 = vunpack.c.h.b16 %v1629
        %v2246 = vunpack.c.l.b16 %v1630
        %v2247 = vunpack.c.h.b16 %v1630
        %v2248 = vunpack.c.l.b16 %v1631
        %v2249 = vunpack.c.h.b16 %v1631
        %v2250 = vunpack.c.l.b16 %v1632
        %v2251 = vunpack.c.h.b16 %v1632
        %v2252 = vunpack.c.l.b16 %v1633
        %v2253 = vunpack.c.h.b16 %v1633
        %v2254 = vunpack.c.l.b16 %v1634
        %v2255 = vunpack.c.h.b16 %v1634
        %v2256 = vunpack.c.l.b16 %v1635
        %v2257 = vunpack.c.h.b16 %v1635
        %v2258 = vunpack.c.l.b16 %v1636
        %v2259 = vunpack.c.h.b16 %v1636
        %v2260 = vunpack.c.l.b16 %v1637
        %v2261 = vunpack.c.h.b16 %v1637
        %v2262 = vunpack.c.l.b16 %v1638
        %v2263 = vunpack.c.h.b16 %v1638
        %v2264 = vunpack.c.l.b16 %v1639
        %v2265 = vunpack.c.h.b16 %v1639
        %v2266 = vunpack.c.l.b16 %v1640
        %v2267 = vunpack.c.h.b16 %v1640
        %v2268 = vunpack.c.l.b16 %v1641
        %v2269 = vunpack.c.h.b16 %v1641
        %v2270 = vpack.c.b16 %v2210, %v2206
        %v2271 = vpack.c.b16 %v2211, %v2207
        %v2272 = vpack.c.b16 %v2212, %v2208
        %v2273 = vpack.c.b16 %v2213, %v2209
        %v2274 = vpack.c.b16 %v2218, %v2214
        %v2275 = vpack.c.b16 %v2219, %v2215
        %v2276 = vpack.c.b16 %v2220, %v2216
        %v2277 = vpack.c.b16 %v2221, %v2217
        %v2278 = vpack.c.b16 %v2226, %v2222
        %v2279 = vpack.c.b16 %v2227, %v2223
        %v2280 = vpack.c.b16 %v2228, %v2224
        %v2281 = vpack.c.b16 %v2229, %v2225
        %v2282 = vpack.c.b16 %v2234, %v2230
        %v2283 = vpack.c.b16 %v2235, %v2231
        %v2284 = vpack.c.b16 %v2236, %v2232
        %v2285 = vpack.c.b16 %v2237, %v2233
        %v2286 = vpack.c.b16 %v2242, %v2238
        %v2287 = vpack.c.b16 %v2243, %v2239
        %v2288 = vpack.c.b16 %v2244, %v2240
        %v2289 = vpack.c.b16 %v2245, %v2241
        %v2290 = vpack.c.b16 %v2250, %v2246
        %v2291 = vpack.c.b16 %v2251, %v2247
        %v2292 = vpack.c.b16 %v2252, %v2248
        %v2293 = vpack.c.b16 %v2253, %v2249
        %v2294 = vpack.c.b16 %v2258, %v2254
        %v2295 = vpack.c.b16 %v2259, %v2255
        %v2296 = vpack.c.b16 %v2260, %v2256
        %v2297 = vpack.c.b16 %v2261, %v2257
        %v2298 = vpack.c.b16 %v2266, %v2262
        %v2299 = vpack.c.b16 %v2267, %v2263
        %v2300 = vpack.c.b16 %v2268, %v2264
        %v2301 = vpack.c.b16 %v2269, %v2265
        %2334 = vmatprep.subr.bf16.mxu0 %v2271
        %2335 = vmatpush1.bf16.msra.mxu0 %v2270
        %2336 = vmatprep.subr.bf16.mxu0 %v2275
        %2337 = vmatpush1.bf16.msra.mxu0 %v2274
        %2338 = vmatprep.subr.bf16.mxu0 %v2279
        %2339 = vmatpush1.bf16.msra.mxu0 %v2278
        %2340 = vmatprep.subr.bf16.mxu0 %v2283
        %2341 = vmatpush1.bf16.msra.mxu0 %v2282
        %2342 = vmatprep.subr.bf16.mxu0 %v2287
        %2343 = vmatpush1.bf16.msra.mxu0 %v2286
        %2344 = vmatprep.subr.bf16.mxu0 %v2291
        %2345 = vmatpush1.bf16.msra.mxu0 %v2290
        %2346 = vmatprep.subr.bf16.mxu0 %v2295
        %2347 = vmatpush1.bf16.msra.mxu0 %v2294
        %2348 = vmatprep.subr.bf16.mxu0 %v2299
        %2349 = vmatpush1.bf16.msra.mxu0 %v2298
        %2350 = vmatprep.subr.bf16.mxu0 0
        %2351 = vmatpush1.bf16.msra.mxu0 0
        %2352 = vmatprep.subr.bf16.mxu0 0
        %2353 = vmatpush1.bf16.msra.mxu0 0
        %2354 = vmatprep.subr.bf16.mxu0 0
        %2355 = vmatpush1.bf16.msra.mxu0 0
        %2356 = vmatprep.subr.bf16.mxu0 0
        %2357 = vmatpush1.bf16.msra.mxu0 0
        %2358 = vmatprep.subr.bf16.mxu0 0
        %2359 = vmatpush1.bf16.msra.mxu0 0
        %2360 = vmatprep.subr.bf16.mxu0 0
        %2361 = vmatpush1.bf16.msra.mxu0 0
        %2362 = vmatprep.subr.bf16.mxu0 0
        %2363 = vmatpush1.bf16.msra.mxu0 0
        %2364 = vmatprep.subr.bf16.mxu0 0
        %2365 = vmatpush1.bf16.msra.mxu0 0
        %2366 = vmatprep.mubr.bf16.mxu0 0
        %2367 = vmatmul.mubr.bf16.gmra.mrb[0].mxu0 %v1688
        %v2368 = vpop.f32.mrb[0].mxu0
        %v2369 = vadd.f32 0.0, %v2368
        %v2370 = vpop.f32.mrb[0].mxu0
        %v2371 = vadd.f32 0.0, %v2370
        %v2372 = vpop.f32.mrb[0].mxu0
        %v2373 = vpop.f32.mrb[0].mxu0
        %2374 = vdwg.mxu0
        %2375 = vmatprep.subr.bf16.mxu0 %v2273
        %2376 = vmatpush1.bf16.msra.mxu0 %v2272
        %2377 = vmatprep.subr.bf16.mxu0 %v2277
        %2378 = vmatpush1.bf16.msra.mxu0 %v2276
        %2379 = vmatprep.subr.bf16.mxu0 %v2281
        %2380 = vmatpush1.bf16.msra.mxu0 %v2280
        %2381 = vmatprep.subr.bf16.mxu0 %v2285
        %2382 = vmatpush1.bf16.msra.mxu0 %v2284
        %2383 = vmatprep.subr.bf16.mxu0 %v2289
        %2384 = vmatpush1.bf16.msra.mxu0 %v2288
        %2385 = vmatprep.subr.bf16.mxu0 %v2293
        %2386 = vmatpush1.bf16.msra.mxu0 %v2292
        %2387 = vmatprep.subr.bf16.mxu0 %v2297
        %2388 = vmatpush1.bf16.msra.mxu0 %v2296
        %2389 = vmatprep.subr.bf16.mxu0 %v2301
        %2390 = vmatpush1.bf16.msra.mxu0 %v2300
        %2391 = vmatprep.subr.bf16.mxu0 0
        %2392 = vmatpush1.bf16.msra.mxu0 0
        %2393 = vmatprep.subr.bf16.mxu0 0
        %2394 = vmatpush1.bf16.msra.mxu0 0
        %2395 = vmatprep.subr.bf16.mxu0 0
        %2396 = vmatpush1.bf16.msra.mxu0 0
        %2397 = vmatprep.subr.bf16.mxu0 0
        %2398 = vmatpush1.bf16.msra.mxu0 0
        %2399 = vmatprep.subr.bf16.mxu0 0
        %2400 = vmatpush1.bf16.msra.mxu0 0
        %2401 = vmatprep.subr.bf16.mxu0 0
        %2402 = vmatpush1.bf16.msra.mxu0 0
        %2403 = vmatprep.subr.bf16.mxu0 0
        %2404 = vmatpush1.bf16.msra.mxu0 0
        %2405 = vmatprep.subr.bf16.mxu0 0
        %2406 = vmatpush1.bf16.msra.mxu0 0
        %2407 = vmatprep.mubr.bf16.mxu0 0
        %2408 = vmatmul.mubr.bf16.gmra.mrb[0].mxu0 %v1688
        %v2409 = vpop.f32.mrb[0].mxu0
        %v2410 = vadd.f32 0.0, %v2409
        %v2411 = vpop.f32.mrb[0].mxu0
        %v2412 = vadd.f32 0.0, %v2411
        %v2413 = vpop.f32.mrb[0].mxu0
        %v2414 = vpop.f32.mrb[0].mxu0
        %2415 = vdwg.mxu0
        %v2448 = vunpack.c.l.b16 %v1642
        %v2449 = vunpack.c.h.b16 %v1642
        %v2450 = vunpack.c.l.b16 %v1643
        %v2451 = vunpack.c.h.b16 %v1643
        %v2452 = vunpack.c.l.b16 %v1644
        %v2453 = vunpack.c.h.b16 %v1644
        %v2454 = vunpack.c.l.b16 %v1645
        %v2455 = vunpack.c.h.b16 %v1645
        %v2456 = vunpack.c.l.b16 %v1646
        %v2457 = vunpack.c.h.b16 %v1646
        %v2458 = vunpack.c.l.b16 %v1647
        %v2459 = vunpack.c.h.b16 %v1647
        %v2460 = vunpack.c.l.b16 %v1648
        %v2461 = vunpack.c.h.b16 %v1648
        %v2462 = vunpack.c.l.b16 %v1649
        %v2463 = vunpack.c.h.b16 %v1649
        %v2464 = vunpack.c.l.b16 %v1650
        %v2465 = vunpack.c.h.b16 %v1650
        %v2466 = vunpack.c.l.b16 %v1651
        %v2467 = vunpack.c.h.b16 %v1651
        %v2468 = vunpack.c.l.b16 %v1652
        %v2469 = vunpack.c.h.b16 %v1652
        %v2470 = vunpack.c.l.b16 %v1653
        %v2471 = vunpack.c.h.b16 %v1653
        %v2472 = vunpack.c.l.b16 %v1654
        %v2473 = vunpack.c.h.b16 %v1654
        %v2474 = vunpack.c.l.b16 %v1655
        %v2475 = vunpack.c.h.b16 %v1655
        %v2476 = vunpack.c.l.b16 %v1656
        %v2477 = vunpack.c.h.b16 %v1656
        %v2478 = vunpack.c.l.b16 %v1657
        %v2479 = vunpack.c.h.b16 %v1657
        %v2480 = vunpack.c.l.b16 %v1658
        %v2481 = vunpack.c.h.b16 %v1658
        %v2482 = vunpack.c.l.b16 %v1659
        %v2483 = vunpack.c.h.b16 %v1659
        %v2484 = vunpack.c.l.b16 %v1660
        %v2485 = vunpack.c.h.b16 %v1660
        %v2486 = vunpack.c.l.b16 %v1661
        %v2487 = vunpack.c.h.b16 %v1661
        %v2488 = vunpack.c.l.b16 %v1662
        %v2489 = vunpack.c.h.b16 %v1662
        %v2490 = vunpack.c.l.b16 %v1663
        %v2491 = vunpack.c.h.b16 %v1663
        %v2492 = vunpack.c.l.b16 %v1664
        %v2493 = vunpack.c.h.b16 %v1664
        %v2494 = vunpack.c.l.b16 %v1665
        %v2495 = vunpack.c.h.b16 %v1665
        %v2496 = vunpack.c.l.b16 %v1666
        %v2497 = vunpack.c.h.b16 %v1666
        %v2498 = vunpack.c.l.b16 %v1667
        %v2499 = vunpack.c.h.b16 %v1667
        %v2500 = vunpack.c.l.b16 %v1668
        %v2501 = vunpack.c.h.b16 %v1668
        %v2502 = vunpack.c.l.b16 %v1669
        %v2503 = vunpack.c.h.b16 %v1669
        %v2504 = vunpack.c.l.b16 %v1670
        %v2505 = vunpack.c.h.b16 %v1670
        %v2506 = vunpack.c.l.b16 %v1671
        %v2507 = vunpack.c.h.b16 %v1671
        %v2508 = vunpack.c.l.b16 %v1672
        %v2509 = vunpack.c.h.b16 %v1672
        %v2510 = vunpack.c.l.b16 %v1673
        %v2511 = vunpack.c.h.b16 %v1673
        %v2512 = vpack.c.b16 %v2452, %v2448
        %v2513 = vpack.c.b16 %v2453, %v2449
        %v2514 = vpack.c.b16 %v2454, %v2450
        %v2515 = vpack.c.b16 %v2455, %v2451
        %v2516 = vpack.c.b16 %v2460, %v2456
        %v2517 = vpack.c.b16 %v2461, %v2457
        %v2518 = vpack.c.b16 %v2462, %v2458
        %v2519 = vpack.c.b16 %v2463, %v2459
        %v2520 = vpack.c.b16 %v2468, %v2464
        %v2521 = vpack.c.b16 %v2469, %v2465
        %v2522 = vpack.c.b16 %v2470, %v2466
        %v2523 = vpack.c.b16 %v2471, %v2467
        %v2524 = vpack.c.b16 %v2476, %v2472
        %v2525 = vpack.c.b16 %v2477, %v2473
        %v2526 = vpack.c.b16 %v2478, %v2474
        %v2527 = vpack.c.b16 %v2479, %v2475
        %v2528 = vpack.c.b16 %v2484, %v2480
        %v2529 = vpack.c.b16 %v2485, %v2481
        %v2530 = vpack.c.b16 %v2486, %v2482
        %v2531 = vpack.c.b16 %v2487, %v2483
        %v2532 = vpack.c.b16 %v2492, %v2488
        %v2533 = vpack.c.b16 %v2493, %v2489
        %v2534 = vpack.c.b16 %v2494, %v2490
        %v2535 = vpack.c.b16 %v2495, %v2491
        %v2536 = vpack.c.b16 %v2500, %v2496
        %v2537 = vpack.c.b16 %v2501, %v2497
        %v2538 = vpack.c.b16 %v2502, %v2498
        %v2539 = vpack.c.b16 %v2503, %v2499
        %v2540 = vpack.c.b16 %v2508, %v2504
        %v2541 = vpack.c.b16 %v2509, %v2505
        %v2542 = vpack.c.b16 %v2510, %v2506
        %v2543 = vpack.c.b16 %v2511, %v2507
        %2576 = vmatprep.subr.bf16.mxu0 %v2513
        %2577 = vmatpush1.bf16.msra.mxu0 %v2512
        %2578 = vmatprep.subr.bf16.mxu0 %v2517
        %2579 = vmatpush1.bf16.msra.mxu0 %v2516
        %2580 = vmatprep.subr.bf16.mxu0 %v2521
        %2581 = vmatpush1.bf16.msra.mxu0 %v2520
        %2582 = vmatprep.subr.bf16.mxu0 %v2525
        %2583 = vmatpush1.bf16.msra.mxu0 %v2524
        %2584 = vmatprep.subr.bf16.mxu0 %v2529
        %2585 = vmatpush1.bf16.msra.mxu0 %v2528
        %2586 = vmatprep.subr.bf16.mxu0 %v2533
        %2587 = vmatpush1.bf16.msra.mxu0 %v2532
        %2588 = vmatprep.subr.bf16.mxu0 %v2537
        %2589 = vmatpush1.bf16.msra.mxu0 %v2536
        %2590 = vmatprep.subr.bf16.mxu0 %v2541
        %2591 = vmatpush1.bf16.msra.mxu0 %v2540
        %2592 = vmatprep.subr.bf16.mxu0 0
        %2593 = vmatpush1.bf16.msra.mxu0 0
        %2594 = vmatprep.subr.bf16.mxu0 0
        %2595 = vmatpush1.bf16.msra.mxu0 0
        %2596 = vmatprep.subr.bf16.mxu0 0
        %2597 = vmatpush1.bf16.msra.mxu0 0
        %2598 = vmatprep.subr.bf16.mxu0 0
        %2599 = vmatpush1.bf16.msra.mxu0 0
        %2600 = vmatprep.subr.bf16.mxu0 0
        %2601 = vmatpush1.bf16.msra.mxu0 0
        %2602 = vmatprep.subr.bf16.mxu0 0
        %2603 = vmatpush1.bf16.msra.mxu0 0
        %2604 = vmatprep.subr.bf16.mxu0 0
        %2605 = vmatpush1.bf16.msra.mxu0 0
        %2606 = vmatprep.subr.bf16.mxu0 0
        %2607 = vmatpush1.bf16.msra.mxu0 0
        %2608 = vmatprep.mubr.bf16.mxu0 0
        %2609 = vmatmul.mubr.bf16.gmra.mrb[0].mxu0 %v1689
        %v2610 = vpop.f32.mrb[0].mxu0
        %v2611 = vadd.f32 0.0, %v2610
        %v2612 = vpop.f32.mrb[0].mxu0
        %v2613 = vadd.f32 0.0, %v2612
        %v2614 = vpop.f32.mrb[0].mxu0
        %v2615 = vpop.f32.mrb[0].mxu0
        %2616 = vdwg.mxu0
        %2617 = vmatprep.subr.bf16.mxu0 %v2515
        %2618 = vmatpush1.bf16.msra.mxu0 %v2514
        %2619 = vmatprep.subr.bf16.mxu0 %v2519
        %2620 = vmatpush1.bf16.msra.mxu0 %v2518
        %2621 = vmatprep.subr.bf16.mxu0 %v2523
        %2622 = vmatpush1.bf16.msra.mxu0 %v2522
        %2623 = vmatprep.subr.bf16.mxu0 %v2527
        %2624 = vmatpush1.bf16.msra.mxu0 %v2526
        %2625 = vmatprep.subr.bf16.mxu0 %v2531
        %2626 = vmatpush1.bf16.msra.mxu0 %v2530
        %2627 = vmatprep.subr.bf16.mxu0 %v2535
        %2628 = vmatpush1.bf16.msra.mxu0 %v2534
        %2629 = vmatprep.subr.bf16.mxu0 %v2539
        %2630 = vmatpush1.bf16.msra.mxu0 %v2538
        %2631 = vmatprep.subr.bf16.mxu0 %v2543
        %2632 = vmatpush1.bf16.msra.mxu0 %v2542
        %2633 = vmatprep.subr.bf16.mxu0 0
        %2634 = vmatpush1.bf16.msra.mxu0 0
        %2635 = vmatprep.subr.bf16.mxu0 0
        %2636 = vmatpush1.bf16.msra.mxu0 0
        %2637 = vmatprep.subr.bf16.mxu0 0
        %2638 = vmatpush1.bf16.msra.mxu0 0
        %2639 = vmatprep.subr.bf16.mxu0 0
        %2640 = vmatpush1.bf16.msra.mxu0 0
        %2641 = vmatprep.subr.bf16.mxu0 0
        %2642 = vmatpush1.bf16.msra.mxu0 0
        %2643 = vmatprep.subr.bf16.mxu0 0
        %2644 = vmatpush1.bf16.msra.mxu0 0
        %2645 = vmatprep.subr.bf16.mxu0 0
        %2646 = vmatpush1.bf16.msra.mxu0 0
        %2647 = vmatprep.subr.bf16.mxu0 0
        %2648 = vmatpush1.bf16.msra.mxu0 0
        %2649 = vmatprep.mubr.bf16.mxu0 0
        %2650 = vmatmul.mubr.bf16.gmra.mrb[0].mxu0 %v1689
        %v2651 = vpop.f32.mrb[0].mxu0
        %v2652 = vadd.f32 0.0, %v2651
        %v2653 = vpop.f32.mrb[0].mxu0
        %v2654 = vadd.f32 0.0, %v2653
        %v2655 = vpop.f32.mrb[0].mxu0
        %v2656 = vpop.f32.mrb[0].mxu0
        %2657 = vdwg.mxu0
        %v2674 = vcombine.low %v1885, %v1887
        %v2675 = vcombine.low %v1926, %v1928
        %v2677 = vunpack.c.l.s4 1983009808
        %v2678 = vunpack.c.0.s8 %v2677
        %v2679 = vlaneseq
        %v2680 = vshrl.u32 %v2679, 7
        %v2681 = vsub.s32 %v2678, %v2680
        %v2682 = vrot.slane %v2674, %v2681
        %v2684 = vunpack.c.l.s4 1983009808
        %v2685 = vunpack.c.0.s8 %v2684
        %v2686 = vlaneseq
        %v2687 = vshrl.u32 %v2686, 7
        %v2688 = vsub.s32 %v2685, %v2687
        %v2689 = vrot.slane %v2675, %v2688
        %v2690 = vcombine.low %v2682, %v2689
        %v2691 = vcombine.low %v2127, %v2129
        %v2692 = vcombine.low %v2168, %v2170
        %v2694 = vunpack.c.l.s4 1983009808
        %v2695 = vunpack.c.0.s8 %v2694
        %v2696 = vlaneseq
        %v2697 = vshrl.u32 %v2696, 7
        %v2698 = vsub.s32 %v2695, %v2697
        %v2699 = vrot.slane %v2691, %v2698
        %v2701 = vunpack.c.l.s4 1983009808
        %v2702 = vunpack.c.0.s8 %v2701
        %v2703 = vlaneseq
        %v2704 = vshrl.u32 %v2703, 7
        %v2705 = vsub.s32 %v2702, %v2704
        %v2706 = vrot.slane %v2692, %v2705
        %v2707 = vcombine.low %v2699, %v2706
        %v2708 = vcombine.low %v2369, %v2371
        %v2709 = vcombine.low %v2410, %v2412
        %v2711 = vunpack.c.l.s4 1983009808
        %v2712 = vunpack.c.0.s8 %v2711
        %v2713 = vlaneseq
        %v2714 = vshrl.u32 %v2713, 7
        %v2715 = vsub.s32 %v2712, %v2714
        %v2716 = vrot.slane %v2708, %v2715
        %v2718 = vunpack.c.l.s4 1983009808
        %v2719 = vunpack.c.0.s8 %v2718
        %v2720 = vlaneseq
        %v2721 = vshrl.u32 %v2720, 7
        %v2722 = vsub.s32 %v2719, %v2721
        %v2723 = vrot.slane %v2709, %v2722
        %v2724 = vcombine.low %v2716, %v2723
        %v2725 = vcombine.low %v2611, %v2613
        %v2726 = vcombine.low %v2652, %v2654
        %v2728 = vunpack.c.l.s4 1983009808
        %v2729 = vunpack.c.0.s8 %v2728
        %v2730 = vlaneseq
        %v2731 = vshrl.u32 %v2730, 7
        %v2732 = vsub.s32 %v2729, %v2731
        %v2733 = vrot.slane %v2725, %v2732
        %v2735 = vunpack.c.l.s4 1983009808
        %v2736 = vunpack.c.0.s8 %v2735
        %v2737 = vlaneseq
        %v2738 = vshrl.u32 %v2737, 7
        %v2739 = vsub.s32 %v2736, %v2738
        %v2740 = vrot.slane %v2726, %v2739
        %v2741 = vcombine.low %v2733, %v2740
        %v2746 = vadd.f32 %v1682, %v2690
        %v2747 = vadd.f32 %v1683, %v2707
        %v2748 = vadd.f32 %v1684, %v2724
        %v2749 = vadd.f32 %v1685, %v2741
        %v2750 = vmul.f32 %v2746, 0.5
        %v2751 = vmul.f32 %v2747, 0.5
        %v2752 = vmul.f32 %v2748, 0.5
        %v2753 = vmul.f32 %v2749, 0.5
        %v2754 = vtanh.pop %v2750
        %v2755 = vtanh.pop %v2751
        %v2756 = vtanh.pop %v2752
        %v2757 = vtanh.pop %v2753
        %v2758 = vadd.f32 %v2754, 1.0
        %v2759 = vadd.f32 %v2755, 1.0
        %v2760 = vadd.f32 %v2756, 1.0
        %v2761 = vadd.f32 %v2757, 1.0
        %v2762 = vmul.f32 %v2758, 0.5
        %v2763 = vmul.f32 %v2759, 0.5
        %v2764 = vmul.f32 %v2760, 0.5
        %v2765 = vmul.f32 %v2761, 0.5
        %v2770 = vrot.slane %v2746, 2
        %v2771 = vrot.slane %v2747, 2
        %v2772 = vrot.slane %v2748, 2
        %v2773 = vrot.slane %v2749, 2
        %v2778 = vmul.f32 %v2770, 0.5
        %v2779 = vmul.f32 %v2771, 0.5
        %v2780 = vmul.f32 %v2772, 0.5
        %v2781 = vmul.f32 %v2773, 0.5
        %v2782 = vtanh.pop %v2778
        %v2783 = vtanh.pop %v2779
        %v2784 = vtanh.pop %v2780
        %v2785 = vtanh.pop %v2781
        %v2786 = vadd.f32 %v2782, 1.0
        %v2787 = vadd.f32 %v2783, 1.0
        %v2788 = vadd.f32 %v2784, 1.0
        %v2789 = vadd.f32 %v2785, 1.0
        %v2790 = vmul.f32 %v2786, 0.5
        %v2791 = vmul.f32 %v2787, 0.5
        %v2792 = vmul.f32 %v2788, 0.5
        %v2793 = vmul.f32 %v2789, 0.5
        %v2794 = vrot.slane %v2746, 4
        %v2795 = vrot.slane %v2747, 4
        %v2796 = vrot.slane %v2748, 4
        %v2797 = vrot.slane %v2749, 4
        %v2802 = vtanh.pop %v2794
        %v2803 = vtanh.pop %v2795
        %v2804 = vtanh.pop %v2796
        %v2805 = vtanh.pop %v2797
        %v2806 = vrot.slane %v2746, 6
        %v2807 = vrot.slane %v2747, 6
        %v2808 = vrot.slane %v2748, 6
        %v2809 = vrot.slane %v2749, 6
        %v2814 = vmul.f32 %v2806, 0.5
        %v2815 = vmul.f32 %v2807, 0.5
        %v2816 = vmul.f32 %v2808, 0.5
        %v2817 = vmul.f32 %v2809, 0.5
        %v2818 = vtanh.pop %v2814
        %v2819 = vtanh.pop %v2815
        %v2820 = vtanh.pop %v2816
        %v2821 = vtanh.pop %v2817
        %v2822 = vadd.f32 %v2818, 1.0
        %v2823 = vadd.f32 %v2819, 1.0
        %v2824 = vadd.f32 %v2820, 1.0
        %v2825 = vadd.f32 %v2821, 1.0
        %v2826 = vmul.f32 %v2822, 0.5
        %v2827 = vmul.f32 %v2823, 0.5
        %v2828 = vmul.f32 %v2824, 0.5
        %v2829 = vmul.f32 %v2825, 0.5
        %v2830 = vmul.f32 %v2790, %v1678
        %v2831 = vmul.f32 %v2791, %v1679
        %v2832 = vmul.f32 %v2792, %v1680
        %v2833 = vmul.f32 %v2793, %v1681
        %v2834 = vmul.f32 %v2762, %v2802
        %v2835 = vmul.f32 %v2763, %v2803
        %v2836 = vmul.f32 %v2764, %v2804
        %v2837 = vmul.f32 %v2765, %v2805
        %v2838 = vadd.f32 %v2830, %v2834
        %v2839 = vadd.f32 %v2831, %v2835
        %v2840 = vadd.f32 %v2832, %v2836
        %v2841 = vadd.f32 %v2833, %v2837
        %v2842 = vtanh.pop %v2838
        %v2843 = vtanh.pop %v2839
        %v2844 = vtanh.pop %v2840
        %v2845 = vtanh.pop %v2841
        %v2846 = vmul.f32 %v2826, %v2842
        %v2847 = vmul.f32 %v2827, %v2843
        %v2848 = vmul.f32 %v2828, %v2844
        %v2849 = vmul.f32 %v2829, %v2845
        %s2850 = scalar_lea.vmem [#allocation2], 32
        %v2851 = vld [vmem:[%s2850] sm:$0xff]
        %v2852 = vld [vmem:[%s2850 + $0x8] sm:$0xff]
        %v2853 = vld [vmem:[%s2850 + $0x10] sm:$0xff]
        %v2854 = vld [vmem:[%s2850 + $0x18] sm:$0xff]
        %v2855 = vpack.c.bf16 %v2846, %v2846
        %v2856 = vpack.c.bf16 %v2847, %v2847
        %v2857 = vpack.c.bf16 %v2848, %v2848
        %v2858 = vpack.c.bf16 %v2849, %v2849
        %2859 = vmatprep.subr.bf16.mxu0 %v1787
        %2860 = vmatpush1.bf16.msra.mxu0 %v1786
        %2861 = vmatprep.subr.bf16.mxu0 %v1791
        %2862 = vmatpush1.bf16.msra.mxu0 %v1790
        %2863 = vmatprep.subr.bf16.mxu0 %v1795
        %2864 = vmatpush1.bf16.msra.mxu0 %v1794
        %2865 = vmatprep.subr.bf16.mxu0 %v1799
        %2866 = vmatpush1.bf16.msra.mxu0 %v1798
        %2867 = vmatprep.subr.bf16.mxu0 %v1803
        %2868 = vmatpush1.bf16.msra.mxu0 %v1802
        %2869 = vmatprep.subr.bf16.mxu0 %v1807
        %2870 = vmatpush1.bf16.msra.mxu0 %v1806
        %2871 = vmatprep.subr.bf16.mxu0 %v1811
        %2872 = vmatpush1.bf16.msra.mxu0 %v1810
        %2873 = vmatprep.subr.bf16.mxu0 %v1815
        %2874 = vmatpush1.bf16.msra.mxu0 %v1814
        %2875 = vmatprep.subr.bf16.mxu0 0
        %2876 = vmatpush1.bf16.msra.mxu0 0
        %2877 = vmatprep.subr.bf16.mxu0 0
        %2878 = vmatpush1.bf16.msra.mxu0 0
        %2879 = vmatprep.subr.bf16.mxu0 0
        %2880 = vmatpush1.bf16.msra.mxu0 0
        %2881 = vmatprep.subr.bf16.mxu0 0
        %2882 = vmatpush1.bf16.msra.mxu0 0
        %2883 = vmatprep.subr.bf16.mxu0 0
        %2884 = vmatpush1.bf16.msra.mxu0 0
        %2885 = vmatprep.subr.bf16.mxu0 0
        %2886 = vmatpush1.bf16.msra.mxu0 0
        %2887 = vmatprep.subr.bf16.mxu0 0
        %2888 = vmatpush1.bf16.msra.mxu0 0
        %2889 = vmatprep.subr.bf16.mxu0 0
        %2890 = vmatpush1.bf16.msra.mxu0 0
        %2891 = vmatprep.mubr.bf16.mxu0 0
        %2892 = vmatmul.mubr.bf16.gmra.mrb[0].mxu0 %v2855
        %v2893 = vpop.f32.mrb[0].mxu0
        %v2894 = vadd.f32 0.0, %v2893
        %v2895 = vpop.f32.mrb[0].mxu0
        %v2896 = vadd.f32 0.0, %v2895
        %v2897 = vpop.f32.mrb[0].mxu0
        %v2898 = vpop.f32.mrb[0].mxu0
        %2899 = vdwg.mxu0
        %2900 = vmatprep.subr.bf16.mxu0 %v1789
        %2901 = vmatpush1.bf16.msra.mxu0 %v1788
        %2902 = vmatprep.subr.bf16.mxu0 %v1793
        %2903 = vmatpush1.bf16.msra.mxu0 %v1792
        %2904 = vmatprep.subr.bf16.mxu0 %v1797
        %2905 = vmatpush1.bf16.msra.mxu0 %v1796
        %2906 = vmatprep.subr.bf16.mxu0 %v1801
        %2907 = vmatpush1.bf16.msra.mxu0 %v1800
        %2908 = vmatprep.subr.bf16.mxu0 %v1805
        %2909 = vmatpush1.bf16.msra.mxu0 %v1804
        %2910 = vmatprep.subr.bf16.mxu0 %v1809
        %2911 = vmatpush1.bf16.msra.mxu0 %v1808
        %2912 = vmatprep.subr.bf16.mxu0 %v1813
        %2913 = vmatpush1.bf16.msra.mxu0 %v1812
        %2914 = vmatprep.subr.bf16.mxu0 %v1817
        %2915 = vmatpush1.bf16.msra.mxu0 %v1816
        %2916 = vmatprep.subr.bf16.mxu0 0
        %2917 = vmatpush1.bf16.msra.mxu0 0
        %2918 = vmatprep.subr.bf16.mxu0 0
        %2919 = vmatpush1.bf16.msra.mxu0 0
        %2920 = vmatprep.subr.bf16.mxu0 0
        %2921 = vmatpush1.bf16.msra.mxu0 0
        %2922 = vmatprep.subr.bf16.mxu0 0
        %2923 = vmatpush1.bf16.msra.mxu0 0
        %2924 = vmatprep.subr.bf16.mxu0 0
        %2925 = vmatpush1.bf16.msra.mxu0 0
        %2926 = vmatprep.subr.bf16.mxu0 0
        %2927 = vmatpush1.bf16.msra.mxu0 0
        %2928 = vmatprep.subr.bf16.mxu0 0
        %2929 = vmatpush1.bf16.msra.mxu0 0
        %2930 = vmatprep.subr.bf16.mxu0 0
        %2931 = vmatpush1.bf16.msra.mxu0 0
        %2932 = vmatprep.mubr.bf16.mxu0 0
        %2933 = vmatmul.mubr.bf16.gmra.mrb[0].mxu0 %v2855
        %v2934 = vpop.f32.mrb[0].mxu0
        %v2935 = vadd.f32 0.0, %v2934
        %v2936 = vpop.f32.mrb[0].mxu0
        %v2937 = vadd.f32 0.0, %v2936
        %v2938 = vpop.f32.mrb[0].mxu0
        %v2939 = vpop.f32.mrb[0].mxu0
        %2940 = vdwg.mxu0
        %2941 = vmatprep.subr.bf16.mxu0 %v2029
        %2942 = vmatpush1.bf16.msra.mxu0 %v2028
        %2943 = vmatprep.subr.bf16.mxu0 %v2033
        %2944 = vmatpush1.bf16.msra.mxu0 %v2032
        %2945 = vmatprep.subr.bf16.mxu0 %v2037
        %2946 = vmatpush1.bf16.msra.mxu0 %v2036
        %2947 = vmatprep.subr.bf16.mxu0 %v2041
        %2948 = vmatpush1.bf16.msra.mxu0 %v2040
        %2949 = vmatprep.subr.bf16.mxu0 %v2045
        %2950 = vmatpush1.bf16.msra.mxu0 %v2044
        %2951 = vmatprep.subr.bf16.mxu0 %v2049
        %2952 = vmatpush1.bf16.msra.mxu0 %v2048
        %2953 = vmatprep.subr.bf16.mxu0 %v2053
        %2954 = vmatpush1.bf16.msra.mxu0 %v2052
        %2955 = vmatprep.subr.bf16.mxu0 %v2057
        %2956 = vmatpush1.bf16.msra.mxu0 %v2056
        %2957 = vmatprep.subr.bf16.mxu0 0
        %2958 = vmatpush1.bf16.msra.mxu0 0
        %2959 = vmatprep.subr.bf16.mxu0 0
        %2960 = vmatpush1.bf16.msra.mxu0 0
        %2961 = vmatprep.subr.bf16.mxu0 0
        %2962 = vmatpush1.bf16.msra.mxu0 0
        %2963 = vmatprep.subr.bf16.mxu0 0
        %2964 = vmatpush1.bf16.msra.mxu0 0
        %2965 = vmatprep.subr.bf16.mxu0 0
        %2966 = vmatpush1.bf16.msra.mxu0 0
        %2967 = vmatprep.subr.bf16.mxu0 0
        %2968 = vmatpush1.bf16.msra.mxu0 0
        %2969 = vmatprep.subr.bf16.mxu0 0
        %2970 = vmatpush1.bf16.msra.mxu0 0
        %2971 = vmatprep.subr.bf16.mxu0 0
        %2972 = vmatpush1.bf16.msra.mxu0 0
        %2973 = vmatprep.mubr.bf16.mxu0 0
        %2974 = vmatmul.mubr.bf16.gmra.mrb[0].mxu0 %v2856
        %v2975 = vpop.f32.mrb[0].mxu0
        %v2976 = vadd.f32 0.0, %v2975
        %v2977 = vpop.f32.mrb[0].mxu0
        %v2978 = vadd.f32 0.0, %v2977
        %v2979 = vpop.f32.mrb[0].mxu0
        %v2980 = vpop.f32.mrb[0].mxu0
        %2981 = vdwg.mxu0
        %2982 = vmatprep.subr.bf16.mxu0 %v2031
        %2983 = vmatpush1.bf16.msra.mxu0 %v2030
        %2984 = vmatprep.subr.bf16.mxu0 %v2035
        %2985 = vmatpush1.bf16.msra.mxu0 %v2034
        %2986 = vmatprep.subr.bf16.mxu0 %v2039
        %2987 = vmatpush1.bf16.msra.mxu0 %v2038
        %2988 = vmatprep.subr.bf16.mxu0 %v2043
        %2989 = vmatpush1.bf16.msra.mxu0 %v2042
        %2990 = vmatprep.subr.bf16.mxu0 %v2047
        %2991 = vmatpush1.bf16.msra.mxu0 %v2046
        %2992 = vmatprep.subr.bf16.mxu0 %v2051
        %2993 = vmatpush1.bf16.msra.mxu0 %v2050
        %2994 = vmatprep.subr.bf16.mxu0 %v2055
        %2995 = vmatpush1.bf16.msra.mxu0 %v2054
        %2996 = vmatprep.subr.bf16.mxu0 %v2059
        %2997 = vmatpush1.bf16.msra.mxu0 %v2058
        %2998 = vmatprep.subr.bf16.mxu0 0
        %2999 = vmatpush1.bf16.msra.mxu0 0
        %3000 = vmatprep.subr.bf16.mxu0 0
        %3001 = vmatpush1.bf16.msra.mxu0 0
        %3002 = vmatprep.subr.bf16.mxu0 0
        %3003 = vmatpush1.bf16.msra.mxu0 0
        %3004 = vmatprep.subr.bf16.mxu0 0
        %3005 = vmatpush1.bf16.msra.mxu0 0
        %3006 = vmatprep.subr.bf16.mxu0 0
        %3007 = vmatpush1.bf16.msra.mxu0 0
        %3008 = vmatprep.subr.bf16.mxu0 0
        %3009 = vmatpush1.bf16.msra.mxu0 0
        %3010 = vmatprep.subr.bf16.mxu0 0
        %3011 = vmatpush1.bf16.msra.mxu0 0
        %3012 = vmatprep.subr.bf16.mxu0 0
        %3013 = vmatpush1.bf16.msra.mxu0 0
        %3014 = vmatprep.mubr.bf16.mxu0 0
        %3015 = vmatmul.mubr.bf16.gmra.mrb[0].mxu0 %v2856
        %v3016 = vpop.f32.mrb[0].mxu0
        %v3017 = vadd.f32 0.0, %v3016
        %v3018 = vpop.f32.mrb[0].mxu0
        %v3019 = vadd.f32 0.0, %v3018
        %v3020 = vpop.f32.mrb[0].mxu0
        %v3021 = vpop.f32.mrb[0].mxu0
        %3022 = vdwg.mxu0
        %3023 = vmatprep.subr.bf16.mxu0 %v2271
        %3024 = vmatpush1.bf16.msra.mxu0 %v2270
        %3025 = vmatprep.subr.bf16.mxu0 %v2275
        %3026 = vmatpush1.bf16.msra.mxu0 %v2274
        %3027 = vmatprep.subr.bf16.mxu0 %v2279
        %3028 = vmatpush1.bf16.msra.mxu0 %v2278
        %3029 = vmatprep.subr.bf16.mxu0 %v2283
        %3030 = vmatpush1.bf16.msra.mxu0 %v2282
        %3031 = vmatprep.subr.bf16.mxu0 %v2287
        %3032 = vmatpush1.bf16.msra.mxu0 %v2286
        %3033 = vmatprep.subr.bf16.mxu0 %v2291
        %3034 = vmatpush1.bf16.msra.mxu0 %v2290
        %3035 = vmatprep.subr.bf16.mxu0 %v2295
        %3036 = vmatpush1.bf16.msra.mxu0 %v2294
        %3037 = vmatprep.subr.bf16.mxu0 %v2299
        %3038 = vmatpush1.bf16.msra.mxu0 %v2298
        %3039 = vmatprep.subr.bf16.mxu0 0
        %3040 = vmatpush1.bf16.msra.mxu0 0
        %3041 = vmatprep.subr.bf16.mxu0 0
        %3042 = vmatpush1.bf16.msra.mxu0 0
        %3043 = vmatprep.subr.bf16.mxu0 0
        %3044 = vmatpush1.bf16.msra.mxu0 0
        %3045 = vmatprep.subr.bf16.mxu0 0
        %3046 = vmatpush1.bf16.msra.mxu0 0
        %3047 = vmatprep.subr.bf16.mxu0 0
        %3048 = vmatpush1.bf16.msra.mxu0 0
        %3049 = vmatprep.subr.bf16.mxu0 0
        %3050 = vmatpush1.bf16.msra.mxu0 0
        %3051 = vmatprep.subr.bf16.mxu0 0
        %3052 = vmatpush1.bf16.msra.mxu0 0
        %3053 = vmatprep.subr.bf16.mxu0 0
        %3054 = vmatpush1.bf16.msra.mxu0 0
        %3055 = vmatprep.mubr.bf16.mxu0 0
        %3056 = vmatmul.mubr.bf16.gmra.mrb[0].mxu0 %v2857
        %v3057 = vpop.f32.mrb[0].mxu0
        %v3058 = vadd.f32 0.0, %v3057
        %v3059 = vpop.f32.mrb[0].mxu0
        %v3060 = vadd.f32 0.0, %v3059
        %v3061 = vpop.f32.mrb[0].mxu0
        %v3062 = vpop.f32.mrb[0].mxu0
        %3063 = vdwg.mxu0
        %3064 = vmatprep.subr.bf16.mxu0 %v2273
        %3065 = vmatpush1.bf16.msra.mxu0 %v2272
        %3066 = vmatprep.subr.bf16.mxu0 %v2277
        %3067 = vmatpush1.bf16.msra.mxu0 %v2276
        %3068 = vmatprep.subr.bf16.mxu0 %v2281
        %3069 = vmatpush1.bf16.msra.mxu0 %v2280
        %3070 = vmatprep.subr.bf16.mxu0 %v2285
        %3071 = vmatpush1.bf16.msra.mxu0 %v2284
        %3072 = vmatprep.subr.bf16.mxu0 %v2289
        %3073 = vmatpush1.bf16.msra.mxu0 %v2288
        %3074 = vmatprep.subr.bf16.mxu0 %v2293
        %3075 = vmatpush1.bf16.msra.mxu0 %v2292
        %3076 = vmatprep.subr.bf16.mxu0 %v2297
        %3077 = vmatpush1.bf16.msra.mxu0 %v2296
        %3078 = vmatprep.subr.bf16.mxu0 %v2301
        %3079 = vmatpush1.bf16.msra.mxu0 %v2300
        %3080 = vmatprep.subr.bf16.mxu0 0
        %3081 = vmatpush1.bf16.msra.mxu0 0
        %3082 = vmatprep.subr.bf16.mxu0 0
        %3083 = vmatpush1.bf16.msra.mxu0 0
        %3084 = vmatprep.subr.bf16.mxu0 0
        %3085 = vmatpush1.bf16.msra.mxu0 0
        %3086 = vmatprep.subr.bf16.mxu0 0
        %3087 = vmatpush1.bf16.msra.mxu0 0
        %3088 = vmatprep.subr.bf16.mxu0 0
        %3089 = vmatpush1.bf16.msra.mxu0 0
        %3090 = vmatprep.subr.bf16.mxu0 0
        %3091 = vmatpush1.bf16.msra.mxu0 0
        %3092 = vmatprep.subr.bf16.mxu0 0
        %3093 = vmatpush1.bf16.msra.mxu0 0
        %3094 = vmatprep.subr.bf16.mxu0 0
        %3095 = vmatpush1.bf16.msra.mxu0 0
        %3096 = vmatprep.mubr.bf16.mxu0 0
        %3097 = vmatmul.mubr.bf16.gmra.mrb[0].mxu0 %v2857
        %v3098 = vpop.f32.mrb[0].mxu0
        %v3099 = vadd.f32 0.0, %v3098
        %v3100 = vpop.f32.mrb[0].mxu0
        %v3101 = vadd.f32 0.0, %v3100
        %v3102 = vpop.f32.mrb[0].mxu0
        %v3103 = vpop.f32.mrb[0].mxu0
        %3104 = vdwg.mxu0
        %3105 = vmatprep.subr.bf16.mxu0 %v2513
        %3106 = vmatpush1.bf16.msra.mxu0 %v2512
        %3107 = vmatprep.subr.bf16.mxu0 %v2517
        %3108 = vmatpush1.bf16.msra.mxu0 %v2516
        %3109 = vmatprep.subr.bf16.mxu0 %v2521
        %3110 = vmatpush1.bf16.msra.mxu0 %v2520
        %3111 = vmatprep.subr.bf16.mxu0 %v2525
        %3112 = vmatpush1.bf16.msra.mxu0 %v2524
        %3113 = vmatprep.subr.bf16.mxu0 %v2529
        %3114 = vmatpush1.bf16.msra.mxu0 %v2528
        %3115 = vmatprep.subr.bf16.mxu0 %v2533
        %3116 = vmatpush1.bf16.msra.mxu0 %v2532
        %3117 = vmatprep.subr.bf16.mxu0 %v2537
        %3118 = vmatpush1.bf16.msra.mxu0 %v2536
        %3119 = vmatprep.subr.bf16.mxu0 %v2541
        %3120 = vmatpush1.bf16.msra.mxu0 %v2540
        %3121 = vmatprep.subr.bf16.mxu0 0
        %3122 = vmatpush1.bf16.msra.mxu0 0
        %3123 = vmatprep.subr.bf16.mxu0 0
        %3124 = vmatpush1.bf16.msra.mxu0 0
        %3125 = vmatprep.subr.bf16.mxu0 0
        %3126 = vmatpush1.bf16.msra.mxu0 0
        %3127 = vmatprep.subr.bf16.mxu0 0
        %3128 = vmatpush1.bf16.msra.mxu0 0
        %3129 = vmatprep.subr.bf16.mxu0 0
        %3130 = vmatpush1.bf16.msra.mxu0 0
        %3131 = vmatprep.subr.bf16.mxu0 0
        %3132 = vmatpush1.bf16.msra.mxu0 0
        %3133 = vmatprep.subr.bf16.mxu0 0
        %3134 = vmatpush1.bf16.msra.mxu0 0
        %3135 = vmatprep.subr.bf16.mxu0 0
        %3136 = vmatpush1.bf16.msra.mxu0 0
        %3137 = vmatprep.mubr.bf16.mxu0 0
        %3138 = vmatmul.mubr.bf16.gmra.mrb[0].mxu0 %v2858
        %v3139 = vpop.f32.mrb[0].mxu0
        %v3140 = vadd.f32 0.0, %v3139
        %v3141 = vpop.f32.mrb[0].mxu0
        %v3142 = vadd.f32 0.0, %v3141
        %v3143 = vpop.f32.mrb[0].mxu0
        %v3144 = vpop.f32.mrb[0].mxu0
        %3145 = vdwg.mxu0
        %3146 = vmatprep.subr.bf16.mxu0 %v2515
        %3147 = vmatpush1.bf16.msra.mxu0 %v2514
        %3148 = vmatprep.subr.bf16.mxu0 %v2519
        %3149 = vmatpush1.bf16.msra.mxu0 %v2518
        %3150 = vmatprep.subr.bf16.mxu0 %v2523
        %3151 = vmatpush1.bf16.msra.mxu0 %v2522
        %3152 = vmatprep.subr.bf16.mxu0 %v2527
        %3153 = vmatpush1.bf16.msra.mxu0 %v2526
        %3154 = vmatprep.subr.bf16.mxu0 %v2531
        %3155 = vmatpush1.bf16.msra.mxu0 %v2530
        %3156 = vmatprep.subr.bf16.mxu0 %v2535
        %3157 = vmatpush1.bf16.msra.mxu0 %v2534
        %3158 = vmatprep.subr.bf16.mxu0 %v2539
        %3159 = vmatpush1.bf16.msra.mxu0 %v2538
        %3160 = vmatprep.subr.bf16.mxu0 %v2543
        %3161 = vmatpush1.bf16.msra.mxu0 %v2542
        %3162 = vmatprep.subr.bf16.mxu0 0
        %3163 = vmatpush1.bf16.msra.mxu0 0
        %3164 = vmatprep.subr.bf16.mxu0 0
        %3165 = vmatpush1.bf16.msra.mxu0 0
        %3166 = vmatprep.subr.bf16.mxu0 0
        %3167 = vmatpush1.bf16.msra.mxu0 0
        %3168 = vmatprep.subr.bf16.mxu0 0
        %3169 = vmatpush1.bf16.msra.mxu0 0
        %3170 = vmatprep.subr.bf16.mxu0 0
        %3171 = vmatpush1.bf16.msra.mxu0 0
        %3172 = vmatprep.subr.bf16.mxu0 0
        %3173 = vmatpush1.bf16.msra.mxu0 0
        %3174 = vmatprep.subr.bf16.mxu0 0
        %3175 = vmatpush1.bf16.msra.mxu0 0
        %3176 = vmatprep.subr.bf16.mxu0 0
        %3177 = vmatpush1.bf16.msra.mxu0 0
        %3178 = vmatprep.mubr.bf16.mxu0 0
        %3179 = vmatmul.mubr.bf16.gmra.mrb[0].mxu0 %v2858
        %v3180 = vpop.f32.mrb[0].mxu0
        %v3181 = vadd.f32 0.0, %v3180
        %v3182 = vpop.f32.mrb[0].mxu0
        %v3183 = vadd.f32 0.0, %v3182
        %v3184 = vpop.f32.mrb[0].mxu0
        %v3185 = vpop.f32.mrb[0].mxu0
        %3186 = vdwg.mxu0
        %v3203 = vcombine.low %v2894, %v2896
        %v3204 = vcombine.low %v2935, %v2937
        %v3206 = vunpack.c.l.s4 1983009808
        %v3207 = vunpack.c.0.s8 %v3206
        %v3208 = vlaneseq
        %v3209 = vshrl.u32 %v3208, 7
        %v3210 = vsub.s32 %v3207, %v3209
        %v3211 = vrot.slane %v3203, %v3210
        %v3213 = vunpack.c.l.s4 1983009808
        %v3214 = vunpack.c.0.s8 %v3213
        %v3215 = vlaneseq
        %v3216 = vshrl.u32 %v3215, 7
        %v3217 = vsub.s32 %v3214, %v3216
        %v3218 = vrot.slane %v3204, %v3217
        %v3219 = vcombine.low %v3211, %v3218
        %v3220 = vcombine.low %v2976, %v2978
        %v3221 = vcombine.low %v3017, %v3019
        %v3223 = vunpack.c.l.s4 1983009808
        %v3224 = vunpack.c.0.s8 %v3223
        %v3225 = vlaneseq
        %v3226 = vshrl.u32 %v3225, 7
        %v3227 = vsub.s32 %v3224, %v3226
        %v3228 = vrot.slane %v3220, %v3227
        %v3230 = vunpack.c.l.s4 1983009808
        %v3231 = vunpack.c.0.s8 %v3230
        %v3232 = vlaneseq
        %v3233 = vshrl.u32 %v3232, 7
        %v3234 = vsub.s32 %v3231, %v3233
        %v3235 = vrot.slane %v3221, %v3234
        %v3236 = vcombine.low %v3228, %v3235
        %v3237 = vcombine.low %v3058, %v3060
        %v3238 = vcombine.low %v3099, %v3101
        %v3240 = vunpack.c.l.s4 1983009808
        %v3241 = vunpack.c.0.s8 %v3240
        %v3242 = vlaneseq
        %v3243 = vshrl.u32 %v3242, 7
        %v3244 = vsub.s32 %v3241, %v3243
        %v3245 = vrot.slane %v3237, %v3244
        %v3247 = vunpack.c.l.s4 1983009808
        %v3248 = vunpack.c.0.s8 %v3247
        %v3249 = vlaneseq
        %v3250 = vshrl.u32 %v3249, 7
        %v3251 = vsub.s32 %v3248, %v3250
        %v3252 = vrot.slane %v3238, %v3251
        %v3253 = vcombine.low %v3245, %v3252
        %v3254 = vcombine.low %v3140, %v3142
        %v3255 = vcombine.low %v3181, %v3183
        %v3257 = vunpack.c.l.s4 1983009808
        %v3258 = vunpack.c.0.s8 %v3257
        %v3259 = vlaneseq
        %v3260 = vshrl.u32 %v3259, 7
        %v3261 = vsub.s32 %v3258, %v3260
        %v3262 = vrot.slane %v3254, %v3261
        %v3264 = vunpack.c.l.s4 1983009808
        %v3265 = vunpack.c.0.s8 %v3264
        %v3266 = vlaneseq
        %v3267 = vshrl.u32 %v3266, 7
        %v3268 = vsub.s32 %v3265, %v3267
        %v3269 = vrot.slane %v3255, %v3268
        %v3270 = vcombine.low %v3262, %v3269
        %v3275 = vadd.f32 %v2851, %v3219
        %v3276 = vadd.f32 %v2852, %v3236
        %v3277 = vadd.f32 %v2853, %v3253
        %v3278 = vadd.f32 %v2854, %v3270
        %v3279 = vmul.f32 %v3275, 0.5
        %v3280 = vmul.f32 %v3276, 0.5
        %v3281 = vmul.f32 %v3277, 0.5
        %v3282 = vmul.f32 %v3278, 0.5
        %v3283 = vtanh.pop %v3279
        %v3284 = vtanh.pop %v3280
        %v3285 = vtanh.pop %v3281
        %v3286 = vtanh.pop %v3282
        %v3287 = vadd.f32 %v3283, 1.0
        %v3288 = vadd.f32 %v3284, 1.0
        %v3289 = vadd.f32 %v3285, 1.0
        %v3290 = vadd.f32 %v3286, 1.0
        %v3291 = vmul.f32 %v3287, 0.5
        %v3292 = vmul.f32 %v3288, 0.5
        %v3293 = vmul.f32 %v3289, 0.5
        %v3294 = vmul.f32 %v3290, 0.5
        %v3299 = vrot.slane %v3275, 2
        %v3300 = vrot.slane %v3276, 2
        %v3301 = vrot.slane %v3277, 2
        %v3302 = vrot.slane %v3278, 2
        %v3307 = vmul.f32 %v3299, 0.5
        %v3308 = vmul.f32 %v3300, 0.5
        %v3309 = vmul.f32 %v3301, 0.5
        %v3310 = vmul.f32 %v3302, 0.5
        %v3311 = vtanh.pop %v3307
        %v3312 = vtanh.pop %v3308
        %v3313 = vtanh.pop %v3309
        %v3314 = vtanh.pop %v3310
        %v3315 = vadd.f32 %v3311, 1.0
        %v3316 = vadd.f32 %v3312, 1.0
        %v3317 = vadd.f32 %v3313, 1.0
        %v3318 = vadd.f32 %v3314, 1.0
        %v3319 = vmul.f32 %v3315, 0.5
        %v3320 = vmul.f32 %v3316, 0.5
        %v3321 = vmul.f32 %v3317, 0.5
        %v3322 = vmul.f32 %v3318, 0.5
        %v3323 = vrot.slane %v3275, 4
        %v3324 = vrot.slane %v3276, 4
        %v3325 = vrot.slane %v3277, 4
        %v3326 = vrot.slane %v3278, 4
        %v3331 = vtanh.pop %v3323
        %v3332 = vtanh.pop %v3324
        %v3333 = vtanh.pop %v3325
        %v3334 = vtanh.pop %v3326
        %v3335 = vrot.slane %v3275, 6
        %v3336 = vrot.slane %v3276, 6
        %v3337 = vrot.slane %v3277, 6
        %v3338 = vrot.slane %v3278, 6
        %v3343 = vmul.f32 %v3335, 0.5
        %v3344 = vmul.f32 %v3336, 0.5
        %v3345 = vmul.f32 %v3337, 0.5
        %v3346 = vmul.f32 %v3338, 0.5
        %v3347 = vtanh.pop %v3343
        %v3348 = vtanh.pop %v3344
        %v3349 = vtanh.pop %v3345
        %v3350 = vtanh.pop %v3346
        %v3351 = vadd.f32 %v3347, 1.0
        %v3352 = vadd.f32 %v3348, 1.0
        %v3353 = vadd.f32 %v3349, 1.0
        %v3354 = vadd.f32 %v3350, 1.0
        %v3355 = vmul.f32 %v3351, 0.5
        %v3356 = vmul.f32 %v3352, 0.5
        %v3357 = vmul.f32 %v3353, 0.5
        %v3358 = vmul.f32 %v3354, 0.5
        %v3359 = vmul.f32 %v3319, %v2838
        %v3360 = vmul.f32 %v3320, %v2839
        %v3361 = vmul.f32 %v3321, %v2840
        %v3362 = vmul.f32 %v3322, %v2841
        %v3363 = vmul.f32 %v3291, %v3331
        %v3364 = vmul.f32 %v3292, %v3332
        %v3365 = vmul.f32 %v3293, %v3333
        %v3366 = vmul.f32 %v3294, %v3334
        %v3367 = vadd.f32 %v3359, %v3363
        %v3368 = vadd.f32 %v3360, %v3364
        %v3369 = vadd.f32 %v3361, %v3365
        %v3370 = vadd.f32 %v3362, %v3366
        %v3371 = vtanh.pop %v3367
        %v3372 = vtanh.pop %v3368
        %v3373 = vtanh.pop %v3369
        %v3374 = vtanh.pop %v3370
        %v3375 = vmul.f32 %v3355, %v3371
        %v3376 = vmul.f32 %v3356, %v3372
        %v3377 = vmul.f32 %v3357, %v3373
        %v3378 = vmul.f32 %v3358, %v3374
        %s3379 = scalar_lea.vmem [#allocation2], 64
        %v3380 = vld [vmem:[%s3379] sm:$0xff]
        %v3381 = vld [vmem:[%s3379 + $0x8] sm:$0xff]
        %v3382 = vld [vmem:[%s3379 + $0x10] sm:$0xff]
        %v3383 = vld [vmem:[%s3379 + $0x18] sm:$0xff]
        %v3384 = vpack.c.bf16 %v3375, %v3375
        %v3385 = vpack.c.bf16 %v3376, %v3376
        %v3386 = vpack.c.bf16 %v3377, %v3377
        %v3387 = vpack.c.bf16 %v3378, %v3378
        %3388 = vmatprep.subr.bf16.mxu0 %v1787
        %3389 = vmatpush1.bf16.msra.mxu0 %v1786
        %3390 = vmatprep.subr.bf16.mxu0 %v1791
        %3391 = vmatpush1.bf16.msra.mxu0 %v1790
        %3392 = vmatprep.subr.bf16.mxu0 %v1795
        %3393 = vmatpush1.bf16.msra.mxu0 %v1794
        %3394 = vmatprep.subr.bf16.mxu0 %v1799
        %3395 = vmatpush1.bf16.msra.mxu0 %v1798
        %3396 = vmatprep.subr.bf16.mxu0 %v1803
        %3397 = vmatpush1.bf16.msra.mxu0 %v1802
        %3398 = vmatprep.subr.bf16.mxu0 %v1807
        %3399 = vmatpush1.bf16.msra.mxu0 %v1806
        %3400 = vmatprep.subr.bf16.mxu0 %v1811
        %3401 = vmatpush1.bf16.msra.mxu0 %v1810
        %3402 = vmatprep.subr.bf16.mxu0 %v1815
        %3403 = vmatpush1.bf16.msra.mxu0 %v1814
        %3404 = vmatprep.subr.bf16.mxu0 0
        %3405 = vmatpush1.bf16.msra.mxu0 0
        %3406 = vmatprep.subr.bf16.mxu0 0
        %3407 = vmatpush1.bf16.msra.mxu0 0
        %3408 = vmatprep.subr.bf16.mxu0 0
        %3409 = vmatpush1.bf16.msra.mxu0 0
        %3410 = vmatprep.subr.bf16.mxu0 0
        %3411 = vmatpush1.bf16.msra.mxu0 0
        %3412 = vmatprep.subr.bf16.mxu0 0
        %3413 = vmatpush1.bf16.msra.mxu0 0
        %3414 = vmatprep.subr.bf16.mxu0 0
        %3415 = vmatpush1.bf16.msra.mxu0 0
        %3416 = vmatprep.subr.bf16.mxu0 0
        %3417 = vmatpush1.bf16.msra.mxu0 0
        %3418 = vmatprep.subr.bf16.mxu0 0
        %3419 = vmatpush1.bf16.msra.mxu0 0
        %3420 = vmatprep.mubr.bf16.mxu0 0
        %3421 = vmatmul.mubr.bf16.gmra.mrb[0].mxu0 %v3384
        %v3422 = vpop.f32.mrb[0].mxu0
        %v3423 = vadd.f32 0.0, %v3422
        %v3424 = vpop.f32.mrb[0].mxu0
        %v3425 = vadd.f32 0.0, %v3424
        %v3426 = vpop.f32.mrb[0].mxu0
        %v3427 = vpop.f32.mrb[0].mxu0
        %3428 = vdwg.mxu0
        %3429 = vmatprep.subr.bf16.mxu0 %v1789
        %3430 = vmatpush1.bf16.msra.mxu0 %v1788
        %3431 = vmatprep.subr.bf16.mxu0 %v1793
        %3432 = vmatpush1.bf16.msra.mxu0 %v1792
        %3433 = vmatprep.subr.bf16.mxu0 %v1797
        %3434 = vmatpush1.bf16.msra.mxu0 %v1796
        %3435 = vmatprep.subr.bf16.mxu0 %v1801
        %3436 = vmatpush1.bf16.msra.mxu0 %v1800
        %3437 = vmatprep.subr.bf16.mxu0 %v1805
        %3438 = vmatpush1.bf16.msra.mxu0 %v1804
        %3439 = vmatprep.subr.bf16.mxu0 %v1809
        %3440 = vmatpush1.bf16.msra.mxu0 %v1808
        %3441 = vmatprep.subr.bf16.mxu0 %v1813
        %3442 = vmatpush1.bf16.msra.mxu0 %v1812
        %3443 = vmatprep.subr.bf16.mxu0 %v1817
        %3444 = vmatpush1.bf16.msra.mxu0 %v1816
        %3445 = vmatprep.subr.bf16.mxu0 0
        %3446 = vmatpush1.bf16.msra.mxu0 0
        %3447 = vmatprep.subr.bf16.mxu0 0
        %3448 = vmatpush1.bf16.msra.mxu0 0
        %3449 = vmatprep.subr.bf16.mxu0 0
        %3450 = vmatpush1.bf16.msra.mxu0 0
        %3451 = vmatprep.subr.bf16.mxu0 0
        %3452 = vmatpush1.bf16.msra.mxu0 0
        %3453 = vmatprep.subr.bf16.mxu0 0
        %3454 = vmatpush1.bf16.msra.mxu0 0
        %3455 = vmatprep.subr.bf16.mxu0 0
        %3456 = vmatpush1.bf16.msra.mxu0 0
        %3457 = vmatprep.subr.bf16.mxu0 0
        %3458 = vmatpush1.bf16.msra.mxu0 0
        %3459 = vmatprep.subr.bf16.mxu0 0
        %3460 = vmatpush1.bf16.msra.mxu0 0
        %3461 = vmatprep.mubr.bf16.mxu0 0
        %3462 = vmatmul.mubr.bf16.gmra.mrb[0].mxu0 %v3384
        %v3463 = vpop.f32.mrb[0].mxu0
        %v3464 = vadd.f32 0.0, %v3463
        %v3465 = vpop.f32.mrb[0].mxu0
        %v3466 = vadd.f32 0.0, %v3465
        %v3467 = vpop.f32.mrb[0].mxu0
        %v3468 = vpop.f32.mrb[0].mxu0
        %3469 = vdwg.mxu0
        %3470 = vmatprep.subr.bf16.mxu0 %v2029
        %3471 = vmatpush1.bf16.msra.mxu0 %v2028
        %3472 = vmatprep.subr.bf16.mxu0 %v2033
        %3473 = vmatpush1.bf16.msra.mxu0 %v2032
        %3474 = vmatprep.subr.bf16.mxu0 %v2037
        %3475 = vmatpush1.bf16.msra.mxu0 %v2036
        %3476 = vmatprep.subr.bf16.mxu0 %v2041
        %3477 = vmatpush1.bf16.msra.mxu0 %v2040
        %3478 = vmatprep.subr.bf16.mxu0 %v2045
        %3479 = vmatpush1.bf16.msra.mxu0 %v2044
        %3480 = vmatprep.subr.bf16.mxu0 %v2049
        %3481 = vmatpush1.bf16.msra.mxu0 %v2048
        %3482 = vmatprep.subr.bf16.mxu0 %v2053
        %3483 = vmatpush1.bf16.msra.mxu0 %v2052
        %3484 = vmatprep.subr.bf16.mxu0 %v2057
        %3485 = vmatpush1.bf16.msra.mxu0 %v2056
        %3486 = vmatprep.subr.bf16.mxu0 0
        %3487 = vmatpush1.bf16.msra.mxu0 0
        %3488 = vmatprep.subr.bf16.mxu0 0
        %3489 = vmatpush1.bf16.msra.mxu0 0
        %3490 = vmatprep.subr.bf16.mxu0 0
        %3491 = vmatpush1.bf16.msra.mxu0 0
        %3492 = vmatprep.subr.bf16.mxu0 0
        %3493 = vmatpush1.bf16.msra.mxu0 0
        %3494 = vmatprep.subr.bf16.mxu0 0
        %3495 = vmatpush1.bf16.msra.mxu0 0
        %3496 = vmatprep.subr.bf16.mxu0 0
        %3497 = vmatpush1.bf16.msra.mxu0 0
        %3498 = vmatprep.subr.bf16.mxu0 0
        %3499 = vmatpush1.bf16.msra.mxu0 0
        %3500 = vmatprep.subr.bf16.mxu0 0
        %3501 = vmatpush1.bf16.msra.mxu0 0
        %3502 = vmatprep.mubr.bf16.mxu0 0
        %3503 = vmatmul.mubr.bf16.gmra.mrb[0].mxu0 %v3385
        %v3504 = vpop.f32.mrb[0].mxu0
        %v3505 = vadd.f32 0.0, %v3504
        %v3506 = vpop.f32.mrb[0].mxu0
        %v3507 = vadd.f32 0.0, %v3506
        %v3508 = vpop.f32.mrb[0].mxu0
        %v3509 = vpop.f32.mrb[0].mxu0
        %3510 = vdwg.mxu0
        %3511 = vmatprep.subr.bf16.mxu0 %v2031
        %3512 = vmatpush1.bf16.msra.mxu0 %v2030
        %3513 = vmatprep.subr.bf16.mxu0 %v2035
        %3514 = vmatpush1.bf16.msra.mxu0 %v2034
        %3515 = vmatprep.subr.bf16.mxu0 %v2039
        %3516 = vmatpush1.bf16.msra.mxu0 %v2038
        %3517 = vmatprep.subr.bf16.mxu0 %v2043
        %3518 = vmatpush1.bf16.msra.mxu0 %v2042
        %3519 = vmatprep.subr.bf16.mxu0 %v2047
        %3520 = vmatpush1.bf16.msra.mxu0 %v2046
        %3521 = vmatprep.subr.bf16.mxu0 %v2051
        %3522 = vmatpush1.bf16.msra.mxu0 %v2050
        %3523 = vmatprep.subr.bf16.mxu0 %v2055
        %3524 = vmatpush1.bf16.msra.mxu0 %v2054
        %3525 = vmatprep.subr.bf16.mxu0 %v2059
        %3526 = vmatpush1.bf16.msra.mxu0 %v2058
        %3527 = vmatprep.subr.bf16.mxu0 0
        %3528 = vmatpush1.bf16.msra.mxu0 0
        %3529 = vmatprep.subr.bf16.mxu0 0
        %3530 = vmatpush1.bf16.msra.mxu0 0
        %3531 = vmatprep.subr.bf16.mxu0 0
        %3532 = vmatpush1.bf16.msra.mxu0 0
        %3533 = vmatprep.subr.bf16.mxu0 0
        %3534 = vmatpush1.bf16.msra.mxu0 0
        %3535 = vmatprep.subr.bf16.mxu0 0
        %3536 = vmatpush1.bf16.msra.mxu0 0
        %3537 = vmatprep.subr.bf16.mxu0 0
        %3538 = vmatpush1.bf16.msra.mxu0 0
        %3539 = vmatprep.subr.bf16.mxu0 0
        %3540 = vmatpush1.bf16.msra.mxu0 0
        %3541 = vmatprep.subr.bf16.mxu0 0
        %3542 = vmatpush1.bf16.msra.mxu0 0
        %3543 = vmatprep.mubr.bf16.mxu0 0
        %3544 = vmatmul.mubr.bf16.gmra.mrb[0].mxu0 %v3385
        %v3545 = vpop.f32.mrb[0].mxu0
        %v3546 = vadd.f32 0.0, %v3545
        %v3547 = vpop.f32.mrb[0].mxu0
        %v3548 = vadd.f32 0.0, %v3547
        %v3549 = vpop.f32.mrb[0].mxu0
        %v3550 = vpop.f32.mrb[0].mxu0
        %3551 = vdwg.mxu0
        %3552 = vmatprep.subr.bf16.mxu0 %v2271
        %3553 = vmatpush1.bf16.msra.mxu0 %v2270
        %3554 = vmatprep.subr.bf16.mxu0 %v2275
        %3555 = vmatpush1.bf16.msra.mxu0 %v2274
        %3556 = vmatprep.subr.bf16.mxu0 %v2279
        %3557 = vmatpush1.bf16.msra.mxu0 %v2278
        %3558 = vmatprep.subr.bf16.mxu0 %v2283
        %3559 = vmatpush1.bf16.msra.mxu0 %v2282
        %3560 = vmatprep.subr.bf16.mxu0 %v2287
        %3561 = vmatpush1.bf16.msra.mxu0 %v2286
        %3562 = vmatprep.subr.bf16.mxu0 %v2291
        %3563 = vmatpush1.bf16.msra.mxu0 %v2290
        %3564 = vmatprep.subr.bf16.mxu0 %v2295
        %3565 = vmatpush1.bf16.msra.mxu0 %v2294
        %3566 = vmatprep.subr.bf16.mxu0 %v2299
        %3567 = vmatpush1.bf16.msra.mxu0 %v2298
        %3568 = vmatprep.subr.bf16.mxu0 0
        %3569 = vmatpush1.bf16.msra.mxu0 0
        %3570 = vmatprep.subr.bf16.mxu0 0
        %3571 = vmatpush1.bf16.msra.mxu0 0
        %3572 = vmatprep.subr.bf16.mxu0 0
        %3573 = vmatpush1.bf16.msra.mxu0 0
        %3574 = vmatprep.subr.bf16.mxu0 0
        %3575 = vmatpush1.bf16.msra.mxu0 0
        %3576 = vmatprep.subr.bf16.mxu0 0
        %3577 = vmatpush1.bf16.msra.mxu0 0
        %3578 = vmatprep.subr.bf16.mxu0 0
        %3579 = vmatpush1.bf16.msra.mxu0 0
        %3580 = vmatprep.subr.bf16.mxu0 0
        %3581 = vmatpush1.bf16.msra.mxu0 0
        %3582 = vmatprep.subr.bf16.mxu0 0
        %3583 = vmatpush1.bf16.msra.mxu0 0
        %3584 = vmatprep.mubr.bf16.mxu0 0
        %3585 = vmatmul.mubr.bf16.gmra.mrb[0].mxu0 %v3386
        %v3586 = vpop.f32.mrb[0].mxu0
        %v3587 = vadd.f32 0.0, %v3586
        %v3588 = vpop.f32.mrb[0].mxu0
        %v3589 = vadd.f32 0.0, %v3588
        %v3590 = vpop.f32.mrb[0].mxu0
        %v3591 = vpop.f32.mrb[0].mxu0
        %3592 = vdwg.mxu0
        %3593 = vmatprep.subr.bf16.mxu0 %v2273
        %3594 = vmatpush1.bf16.msra.mxu0 %v2272
        %3595 = vmatprep.subr.bf16.mxu0 %v2277
        %3596 = vmatpush1.bf16.msra.mxu0 %v2276
        %3597 = vmatprep.subr.bf16.mxu0 %v2281
        %3598 = vmatpush1.bf16.msra.mxu0 %v2280
        %3599 = vmatprep.subr.bf16.mxu0 %v2285
        %3600 = vmatpush1.bf16.msra.mxu0 %v2284
        %3601 = vmatprep.subr.bf16.mxu0 %v2289
        %3602 = vmatpush1.bf16.msra.mxu0 %v2288
        %3603 = vmatprep.subr.bf16.mxu0 %v2293
        %3604 = vmatpush1.bf16.msra.mxu0 %v2292
        %3605 = vmatprep.subr.bf16.mxu0 %v2297
        %3606 = vmatpush1.bf16.msra.mxu0 %v2296
        %3607 = vmatprep.subr.bf16.mxu0 %v2301
        %3608 = vmatpush1.bf16.msra.mxu0 %v2300
        %3609 = vmatprep.subr.bf16.mxu0 0
        %3610 = vmatpush1.bf16.msra.mxu0 0
        %3611 = vmatprep.subr.bf16.mxu0 0
        %3612 = vmatpush1.bf16.msra.mxu0 0
        %3613 = vmatprep.subr.bf16.mxu0 0
        %3614 = vmatpush1.bf16.msra.mxu0 0
        %3615 = vmatprep.subr.bf16.mxu0 0
        %3616 = vmatpush1.bf16.msra.mxu0 0
        %3617 = vmatprep.subr.bf16.mxu0 0
        %3618 = vmatpush1.bf16.msra.mxu0 0
        %3619 = vmatprep.subr.bf16.mxu0 0
        %3620 = vmatpush1.bf16.msra.mxu0 0
        %3621 = vmatprep.subr.bf16.mxu0 0
        %3622 = vmatpush1.bf16.msra.mxu0 0
        %3623 = vmatprep.subr.bf16.mxu0 0
        %3624 = vmatpush1.bf16.msra.mxu0 0
        %3625 = vmatprep.mubr.bf16.mxu0 0
        %3626 = vmatmul.mubr.bf16.gmra.mrb[0].mxu0 %v3386
        %v3627 = vpop.f32.mrb[0].mxu0
        %v3628 = vadd.f32 0.0, %v3627
        %v3629 = vpop.f32.mrb[0].mxu0
        %v3630 = vadd.f32 0.0, %v3629
        %v3631 = vpop.f32.mrb[0].mxu0
        %v3632 = vpop.f32.mrb[0].mxu0
        %3633 = vdwg.mxu0
        %3634 = vmatprep.subr.bf16.mxu0 %v2513
        %3635 = vmatpush1.bf16.msra.mxu0 %v2512
        %3636 = vmatprep.subr.bf16.mxu0 %v2517
        %3637 = vmatpush1.bf16.msra.mxu0 %v2516
        %3638 = vmatprep.subr.bf16.mxu0 %v2521
        %3639 = vmatpush1.bf16.msra.mxu0 %v2520
        %3640 = vmatprep.subr.bf16.mxu0 %v2525
        %3641 = vmatpush1.bf16.msra.mxu0 %v2524
        %3642 = vmatprep.subr.bf16.mxu0 %v2529
        %3643 = vmatpush1.bf16.msra.mxu0 %v2528
        %3644 = vmatprep.subr.bf16.mxu0 %v2533
        %3645 = vmatpush1.bf16.msra.mxu0 %v2532
        %3646 = vmatprep.subr.bf16.mxu0 %v2537
        %3647 = vmatpush1.bf16.msra.mxu0 %v2536
        %3648 = vmatprep.subr.bf16.mxu0 %v2541
        %3649 = vmatpush1.bf16.msra.mxu0 %v2540
        %3650 = vmatprep.subr.bf16.mxu0 0
        %3651 = vmatpush1.bf16.msra.mxu0 0
        %3652 = vmatprep.subr.bf16.mxu0 0
        %3653 = vmatpush1.bf16.msra.mxu0 0
        %3654 = vmatprep.subr.bf16.mxu0 0
        %3655 = vmatpush1.bf16.msra.mxu0 0
        %3656 = vmatprep.subr.bf16.mxu0 0
        %3657 = vmatpush1.bf16.msra.mxu0 0
        %3658 = vmatprep.subr.bf16.mxu0 0
        %3659 = vmatpush1.bf16.msra.mxu0 0
        %3660 = vmatprep.subr.bf16.mxu0 0
        %3661 = vmatpush1.bf16.msra.mxu0 0
        %3662 = vmatprep.subr.bf16.mxu0 0
        %3663 = vmatpush1.bf16.msra.mxu0 0
        %3664 = vmatprep.subr.bf16.mxu0 0
        %3665 = vmatpush1.bf16.msra.mxu0 0
        %3666 = vmatprep.mubr.bf16.mxu0 0
        %3667 = vmatmul.mubr.bf16.gmra.mrb[0].mxu0 %v3387
        %v3668 = vpop.f32.mrb[0].mxu0
        %v3669 = vadd.f32 0.0, %v3668
        %v3670 = vpop.f32.mrb[0].mxu0
        %v3671 = vadd.f32 0.0, %v3670
        %v3672 = vpop.f32.mrb[0].mxu0
        %v3673 = vpop.f32.mrb[0].mxu0
        %3674 = vdwg.mxu0
        %3675 = vmatprep.subr.bf16.mxu0 %v2515
        %3676 = vmatpush1.bf16.msra.mxu0 %v2514
        %3677 = vmatprep.subr.bf16.mxu0 %v2519
        %3678 = vmatpush1.bf16.msra.mxu0 %v2518
        %3679 = vmatprep.subr.bf16.mxu0 %v2523
        %3680 = vmatpush1.bf16.msra.mxu0 %v2522
        %3681 = vmatprep.subr.bf16.mxu0 %v2527
        %3682 = vmatpush1.bf16.msra.mxu0 %v2526
        %3683 = vmatprep.subr.bf16.mxu0 %v2531
        %3684 = vmatpush1.bf16.msra.mxu0 %v2530
        %3685 = vmatprep.subr.bf16.mxu0 %v2535
        %3686 = vmatpush1.bf16.msra.mxu0 %v2534
        %3687 = vmatprep.subr.bf16.mxu0 %v2539
        %3688 = vmatpush1.bf16.msra.mxu0 %v2538
        %3689 = vmatprep.subr.bf16.mxu0 %v2543
        %3690 = vmatpush1.bf16.msra.mxu0 %v2542
        %3691 = vmatprep.subr.bf16.mxu0 0
        %3692 = vmatpush1.bf16.msra.mxu0 0
        %3693 = vmatprep.subr.bf16.mxu0 0
        %3694 = vmatpush1.bf16.msra.mxu0 0
        %3695 = vmatprep.subr.bf16.mxu0 0
        %3696 = vmatpush1.bf16.msra.mxu0 0
        %3697 = vmatprep.subr.bf16.mxu0 0
        %3698 = vmatpush1.bf16.msra.mxu0 0
        %3699 = vmatprep.subr.bf16.mxu0 0
        %3700 = vmatpush1.bf16.msra.mxu0 0
        %3701 = vmatprep.subr.bf16.mxu0 0
        %3702 = vmatpush1.bf16.msra.mxu0 0
        %3703 = vmatprep.subr.bf16.mxu0 0
        %3704 = vmatpush1.bf16.msra.mxu0 0
        %3705 = vmatprep.subr.bf16.mxu0 0
        %3706 = vmatpush1.bf16.msra.mxu0 0
        %3707 = vmatprep.mubr.bf16.mxu0 0
        %3708 = vmatmul.mubr.bf16.gmra.mrb[0].mxu0 %v3387
        %v3709 = vpop.f32.mrb[0].mxu0
        %v3710 = vadd.f32 0.0, %v3709
        %v3711 = vpop.f32.mrb[0].mxu0
        %v3712 = vadd.f32 0.0, %v3711
        %v3713 = vpop.f32.mrb[0].mxu0
        %v3714 = vpop.f32.mrb[0].mxu0
        %3715 = vdwg.mxu0
        %v3732 = vcombine.low %v3423, %v3425
        %v3733 = vcombine.low %v3464, %v3466
        %v3735 = vunpack.c.l.s4 1983009808
        %v3736 = vunpack.c.0.s8 %v3735
        %v3737 = vlaneseq
        %v3738 = vshrl.u32 %v3737, 7
        %v3739 = vsub.s32 %v3736, %v3738
        %v3740 = vrot.slane %v3732, %v3739
        %v3742 = vunpack.c.l.s4 1983009808
        %v3743 = vunpack.c.0.s8 %v3742
        %v3744 = vlaneseq
        %v3745 = vshrl.u32 %v3744, 7
        %v3746 = vsub.s32 %v3743, %v3745
        %v3747 = vrot.slane %v3733, %v3746
        %v3748 = vcombine.low %v3740, %v3747
        %v3749 = vcombine.low %v3505, %v3507
        %v3750 = vcombine.low %v3546, %v3548
        %v3752 = vunpack.c.l.s4 1983009808
        %v3753 = vunpack.c.0.s8 %v3752
        %v3754 = vlaneseq
        %v3755 = vshrl.u32 %v3754, 7
        %v3756 = vsub.s32 %v3753, %v3755
        %v3757 = vrot.slane %v3749, %v3756
        %v3759 = vunpack.c.l.s4 1983009808
        %v3760 = vunpack.c.0.s8 %v3759
        %v3761 = vlaneseq
        %v3762 = vshrl.u32 %v3761, 7
        %v3763 = vsub.s32 %v3760, %v3762
        %v3764 = vrot.slane %v3750, %v3763
        %v3765 = vcombine.low %v3757, %v3764
        %v3766 = vcombine.low %v3587, %v3589
        %v3767 = vcombine.low %v3628, %v3630
        %v3769 = vunpack.c.l.s4 1983009808
        %v3770 = vunpack.c.0.s8 %v3769
        %v3771 = vlaneseq
        %v3772 = vshrl.u32 %v3771, 7
        %v3773 = vsub.s32 %v3770, %v3772
        %v3774 = vrot.slane %v3766, %v3773
        %v3776 = vunpack.c.l.s4 1983009808
        %v3777 = vunpack.c.0.s8 %v3776
        %v3778 = vlaneseq
        %v3779 = vshrl.u32 %v3778, 7
        %v3780 = vsub.s32 %v3777, %v3779
        %v3781 = vrot.slane %v3767, %v3780
        %v3782 = vcombine.low %v3774, %v3781
        %v3783 = vcombine.low %v3669, %v3671
        %v3784 = vcombine.low %v3710, %v3712
        %v3786 = vunpack.c.l.s4 1983009808
        %v3787 = vunpack.c.0.s8 %v3786
        %v3788 = vlaneseq
        %v3789 = vshrl.u32 %v3788, 7
        %v3790 = vsub.s32 %v3787, %v3789
        %v3791 = vrot.slane %v3783, %v3790
        %v3793 = vunpack.c.l.s4 1983009808
        %v3794 = vunpack.c.0.s8 %v3793
        %v3795 = vlaneseq
        %v3796 = vshrl.u32 %v3795, 7
        %v3797 = vsub.s32 %v3794, %v3796
        %v3798 = vrot.slane %v3784, %v3797
        %v3799 = vcombine.low %v3791, %v3798
        %v3804 = vadd.f32 %v3380, %v3748
        %v3805 = vadd.f32 %v3381, %v3765
        %v3806 = vadd.f32 %v3382, %v3782
        %v3807 = vadd.f32 %v3383, %v3799
        %v3808 = vmul.f32 %v3804, 0.5
        %v3809 = vmul.f32 %v3805, 0.5
        %v3810 = vmul.f32 %v3806, 0.5
        %v3811 = vmul.f32 %v3807, 0.5
        %v3812 = vtanh.pop %v3808
        %v3813 = vtanh.pop %v3809
        %v3814 = vtanh.pop %v3810
        %v3815 = vtanh.pop %v3811
        %v3816 = vadd.f32 %v3812, 1.0
        %v3817 = vadd.f32 %v3813, 1.0
        %v3818 = vadd.f32 %v3814, 1.0
        %v3819 = vadd.f32 %v3815, 1.0
        %v3820 = vmul.f32 %v3816, 0.5
        %v3821 = vmul.f32 %v3817, 0.5
        %v3822 = vmul.f32 %v3818, 0.5
        %v3823 = vmul.f32 %v3819, 0.5
        %v3828 = vrot.slane %v3804, 2
        %v3829 = vrot.slane %v3805, 2
        %v3830 = vrot.slane %v3806, 2
        %v3831 = vrot.slane %v3807, 2
        %v3836 = vmul.f32 %v3828, 0.5
        %v3837 = vmul.f32 %v3829, 0.5
        %v3838 = vmul.f32 %v3830, 0.5
        %v3839 = vmul.f32 %v3831, 0.5
        %v3840 = vtanh.pop %v3836
        %v3841 = vtanh.pop %v3837
        %v3842 = vtanh.pop %v3838
        %v3843 = vtanh.pop %v3839
        %v3844 = vadd.f32 %v3840, 1.0
        %v3845 = vadd.f32 %v3841, 1.0
        %v3846 = vadd.f32 %v3842, 1.0
        %v3847 = vadd.f32 %v3843, 1.0
        %v3848 = vmul.f32 %v3844, 0.5
        %v3849 = vmul.f32 %v3845, 0.5
        %v3850 = vmul.f32 %v3846, 0.5
        %v3851 = vmul.f32 %v3847, 0.5
        %v3852 = vrot.slane %v3804, 4
        %v3853 = vrot.slane %v3805, 4
        %v3854 = vrot.slane %v3806, 4
        %v3855 = vrot.slane %v3807, 4
        %v3860 = vtanh.pop %v3852
        %v3861 = vtanh.pop %v3853
        %v3862 = vtanh.pop %v3854
        %v3863 = vtanh.pop %v3855
        %v3864 = vrot.slane %v3804, 6
        %v3865 = vrot.slane %v3805, 6
        %v3866 = vrot.slane %v3806, 6
        %v3867 = vrot.slane %v3807, 6
        %v3872 = vmul.f32 %v3864, 0.5
        %v3873 = vmul.f32 %v3865, 0.5
        %v3874 = vmul.f32 %v3866, 0.5
        %v3875 = vmul.f32 %v3867, 0.5
        %v3876 = vtanh.pop %v3872
        %v3877 = vtanh.pop %v3873
        %v3878 = vtanh.pop %v3874
        %v3879 = vtanh.pop %v3875
        %v3880 = vadd.f32 %v3876, 1.0
        %v3881 = vadd.f32 %v3877, 1.0
        %v3882 = vadd.f32 %v3878, 1.0
        %v3883 = vadd.f32 %v3879, 1.0
        %v3884 = vmul.f32 %v3880, 0.5
        %v3885 = vmul.f32 %v3881, 0.5
        %v3886 = vmul.f32 %v3882, 0.5
        %v3887 = vmul.f32 %v3883, 0.5
        %v3888 = vmul.f32 %v3848, %v3367
        %v3889 = vmul.f32 %v3849, %v3368
        %v3890 = vmul.f32 %v3850, %v3369
        %v3891 = vmul.f32 %v3851, %v3370
        %v3892 = vmul.f32 %v3820, %v3860
        %v3893 = vmul.f32 %v3821, %v3861
        %v3894 = vmul.f32 %v3822, %v3862
        %v3895 = vmul.f32 %v3823, %v3863
        %v3896 = vadd.f32 %v3888, %v3892
        %v3897 = vadd.f32 %v3889, %v3893
        %v3898 = vadd.f32 %v3890, %v3894
        %v3899 = vadd.f32 %v3891, %v3895
        %v3900 = vtanh.pop %v3896
        %v3901 = vtanh.pop %v3897
        %v3902 = vtanh.pop %v3898
        %v3903 = vtanh.pop %v3899
        %v3904 = vmul.f32 %v3884, %v3900
        %v3905 = vmul.f32 %v3885, %v3901
        %v3906 = vmul.f32 %v3886, %v3902
        %v3907 = vmul.f32 %v3887, %v3903
        %s3908 = scalar_lea.vmem [#allocation2], 96
        %v3909 = vld [vmem:[%s3908] sm:$0xff]
        %v3910 = vld [vmem:[%s3908 + $0x8] sm:$0xff]
        %v3911 = vld [vmem:[%s3908 + $0x10] sm:$0xff]
        %v3912 = vld [vmem:[%s3908 + $0x18] sm:$0xff]
        %v3913 = vpack.c.bf16 %v3904, %v3904
        %v3914 = vpack.c.bf16 %v3905, %v3905
        %v3915 = vpack.c.bf16 %v3906, %v3906
        %v3916 = vpack.c.bf16 %v3907, %v3907
        %3917 = vmatprep.subr.bf16.mxu0 %v1787
        %3918 = vmatpush1.bf16.msra.mxu0 %v1786
        %3919 = vmatprep.subr.bf16.mxu0 %v1791
        %3920 = vmatpush1.bf16.msra.mxu0 %v1790
        %3921 = vmatprep.subr.bf16.mxu0 %v1795
        %3922 = vmatpush1.bf16.msra.mxu0 %v1794
        %3923 = vmatprep.subr.bf16.mxu0 %v1799
        %3924 = vmatpush1.bf16.msra.mxu0 %v1798
        %3925 = vmatprep.subr.bf16.mxu0 %v1803
        %3926 = vmatpush1.bf16.msra.mxu0 %v1802
        %3927 = vmatprep.subr.bf16.mxu0 %v1807
        %3928 = vmatpush1.bf16.msra.mxu0 %v1806
        %3929 = vmatprep.subr.bf16.mxu0 %v1811
        %3930 = vmatpush1.bf16.msra.mxu0 %v1810
        %3931 = vmatprep.subr.bf16.mxu0 %v1815
        %3932 = vmatpush1.bf16.msra.mxu0 %v1814
        %3933 = vmatprep.subr.bf16.mxu0 0
        %3934 = vmatpush1.bf16.msra.mxu0 0
        %3935 = vmatprep.subr.bf16.mxu0 0
        %3936 = vmatpush1.bf16.msra.mxu0 0
        %3937 = vmatprep.subr.bf16.mxu0 0
        %3938 = vmatpush1.bf16.msra.mxu0 0
        %3939 = vmatprep.subr.bf16.mxu0 0
        %3940 = vmatpush1.bf16.msra.mxu0 0
        %3941 = vmatprep.subr.bf16.mxu0 0
        %3942 = vmatpush1.bf16.msra.mxu0 0
        %3943 = vmatprep.subr.bf16.mxu0 0
        %3944 = vmatpush1.bf16.msra.mxu0 0
        %3945 = vmatprep.subr.bf16.mxu0 0
        %3946 = vmatpush1.bf16.msra.mxu0 0
        %3947 = vmatprep.subr.bf16.mxu0 0
        %3948 = vmatpush1.bf16.msra.mxu0 0
        %3949 = vmatprep.mubr.bf16.mxu0 0
        %3950 = vmatmul.mubr.bf16.gmra.mrb[0].mxu0 %v3913
        %v3951 = vpop.f32.mrb[0].mxu0
        %v3952 = vadd.f32 0.0, %v3951
        %v3953 = vpop.f32.mrb[0].mxu0
        %v3954 = vadd.f32 0.0, %v3953
        %v3955 = vpop.f32.mrb[0].mxu0
        %v3956 = vpop.f32.mrb[0].mxu0
        %3957 = vdwg.mxu0
        %3958 = vmatprep.subr.bf16.mxu0 %v1789
        %3959 = vmatpush1.bf16.msra.mxu0 %v1788
        %3960 = vmatprep.subr.bf16.mxu0 %v1793
        %3961 = vmatpush1.bf16.msra.mxu0 %v1792
        %3962 = vmatprep.subr.bf16.mxu0 %v1797
        %3963 = vmatpush1.bf16.msra.mxu0 %v1796
        %3964 = vmatprep.subr.bf16.mxu0 %v1801
        %3965 = vmatpush1.bf16.msra.mxu0 %v1800
        %3966 = vmatprep.subr.bf16.mxu0 %v1805
        %3967 = vmatpush1.bf16.msra.mxu0 %v1804
        %3968 = vmatprep.subr.bf16.mxu0 %v1809
        %3969 = vmatpush1.bf16.msra.mxu0 %v1808
        %3970 = vmatprep.subr.bf16.mxu0 %v1813
        %3971 = vmatpush1.bf16.msra.mxu0 %v1812
        %3972 = vmatprep.subr.bf16.mxu0 %v1817
        %3973 = vmatpush1.bf16.msra.mxu0 %v1816
        %3974 = vmatprep.subr.bf16.mxu0 0
        %3975 = vmatpush1.bf16.msra.mxu0 0
        %3976 = vmatprep.subr.bf16.mxu0 0
        %3977 = vmatpush1.bf16.msra.mxu0 0
        %3978 = vmatprep.subr.bf16.mxu0 0
        %3979 = vmatpush1.bf16.msra.mxu0 0
        %3980 = vmatprep.subr.bf16.mxu0 0
        %3981 = vmatpush1.bf16.msra.mxu0 0
        %3982 = vmatprep.subr.bf16.mxu0 0
        %3983 = vmatpush1.bf16.msra.mxu0 0
        %3984 = vmatprep.subr.bf16.mxu0 0
        %3985 = vmatpush1.bf16.msra.mxu0 0
        %3986 = vmatprep.subr.bf16.mxu0 0
        %3987 = vmatpush1.bf16.msra.mxu0 0
        %3988 = vmatprep.subr.bf16.mxu0 0
        %3989 = vmatpush1.bf16.msra.mxu0 0
        %3990 = vmatprep.mubr.bf16.mxu0 0
        %3991 = vmatmul.mubr.bf16.gmra.mrb[0].mxu0 %v3913
        %v3992 = vpop.f32.mrb[0].mxu0
        %v3993 = vadd.f32 0.0, %v3992
        %v3994 = vpop.f32.mrb[0].mxu0
        %v3995 = vadd.f32 0.0, %v3994
        %v3996 = vpop.f32.mrb[0].mxu0
        %v3997 = vpop.f32.mrb[0].mxu0
        %3998 = vdwg.mxu0
        %3999 = vmatprep.subr.bf16.mxu0 %v2029
        %4000 = vmatpush1.bf16.msra.mxu0 %v2028
        %4001 = vmatprep.subr.bf16.mxu0 %v2033
        %4002 = vmatpush1.bf16.msra.mxu0 %v2032
        %4003 = vmatprep.subr.bf16.mxu0 %v2037
        %4004 = vmatpush1.bf16.msra.mxu0 %v2036
        %4005 = vmatprep.subr.bf16.mxu0 %v2041
        %4006 = vmatpush1.bf16.msra.mxu0 %v2040
        %4007 = vmatprep.subr.bf16.mxu0 %v2045
        %4008 = vmatpush1.bf16.msra.mxu0 %v2044
        %4009 = vmatprep.subr.bf16.mxu0 %v2049
        %4010 = vmatpush1.bf16.msra.mxu0 %v2048
        %4011 = vmatprep.subr.bf16.mxu0 %v2053
        %4012 = vmatpush1.bf16.msra.mxu0 %v2052
        %4013 = vmatprep.subr.bf16.mxu0 %v2057
        %4014 = vmatpush1.bf16.msra.mxu0 %v2056
        %4015 = vmatprep.subr.bf16.mxu0 0
        %4016 = vmatpush1.bf16.msra.mxu0 0
        %4017 = vmatprep.subr.bf16.mxu0 0
        %4018 = vmatpush1.bf16.msra.mxu0 0
        %4019 = vmatprep.subr.bf16.mxu0 0
        %4020 = vmatpush1.bf16.msra.mxu0 0
        %4021 = vmatprep.subr.bf16.mxu0 0
        %4022 = vmatpush1.bf16.msra.mxu0 0
        %4023 = vmatprep.subr.bf16.mxu0 0
        %4024 = vmatpush1.bf16.msra.mxu0 0
        %4025 = vmatprep.subr.bf16.mxu0 0
        %4026 = vmatpush1.bf16.msra.mxu0 0
        %4027 = vmatprep.subr.bf16.mxu0 0
        %4028 = vmatpush1.bf16.msra.mxu0 0
        %4029 = vmatprep.subr.bf16.mxu0 0
        %4030 = vmatpush1.bf16.msra.mxu0 0
        %4031 = vmatprep.mubr.bf16.mxu0 0
        %4032 = vmatmul.mubr.bf16.gmra.mrb[0].mxu0 %v3914
        %v4033 = vpop.f32.mrb[0].mxu0
        %v4034 = vadd.f32 0.0, %v4033
        %v4035 = vpop.f32.mrb[0].mxu0
        %v4036 = vadd.f32 0.0, %v4035
        %v4037 = vpop.f32.mrb[0].mxu0
        %v4038 = vpop.f32.mrb[0].mxu0
        %4039 = vdwg.mxu0
        %4040 = vmatprep.subr.bf16.mxu0 %v2031
        %4041 = vmatpush1.bf16.msra.mxu0 %v2030
        %4042 = vmatprep.subr.bf16.mxu0 %v2035
        %4043 = vmatpush1.bf16.msra.mxu0 %v2034
        %4044 = vmatprep.subr.bf16.mxu0 %v2039
        %4045 = vmatpush1.bf16.msra.mxu0 %v2038
        %4046 = vmatprep.subr.bf16.mxu0 %v2043
        %4047 = vmatpush1.bf16.msra.mxu0 %v2042
        %4048 = vmatprep.subr.bf16.mxu0 %v2047
        %4049 = vmatpush1.bf16.msra.mxu0 %v2046
        %4050 = vmatprep.subr.bf16.mxu0 %v2051
        %4051 = vmatpush1.bf16.msra.mxu0 %v2050
        %4052 = vmatprep.subr.bf16.mxu0 %v2055
        %4053 = vmatpush1.bf16.msra.mxu0 %v2054
        %4054 = vmatprep.subr.bf16.mxu0 %v2059
        %4055 = vmatpush1.bf16.msra.mxu0 %v2058
        %4056 = vmatprep.subr.bf16.mxu0 0
        %4057 = vmatpush1.bf16.msra.mxu0 0
        %4058 = vmatprep.subr.bf16.mxu0 0
        %4059 = vmatpush1.bf16.msra.mxu0 0
        %4060 = vmatprep.subr.bf16.mxu0 0
        %4061 = vmatpush1.bf16.msra.mxu0 0
        %4062 = vmatprep.subr.bf16.mxu0 0
        %4063 = vmatpush1.bf16.msra.mxu0 0
        %4064 = vmatprep.subr.bf16.mxu0 0
        %4065 = vmatpush1.bf16.msra.mxu0 0
        %4066 = vmatprep.subr.bf16.mxu0 0
        %4067 = vmatpush1.bf16.msra.mxu0 0
        %4068 = vmatprep.subr.bf16.mxu0 0
        %4069 = vmatpush1.bf16.msra.mxu0 0
        %4070 = vmatprep.subr.bf16.mxu0 0
        %4071 = vmatpush1.bf16.msra.mxu0 0
        %4072 = vmatprep.mubr.bf16.mxu0 0
        %4073 = vmatmul.mubr.bf16.gmra.mrb[0].mxu0 %v3914
        %v4074 = vpop.f32.mrb[0].mxu0
        %v4075 = vadd.f32 0.0, %v4074
        %v4076 = vpop.f32.mrb[0].mxu0
        %v4077 = vadd.f32 0.0, %v4076
        %v4078 = vpop.f32.mrb[0].mxu0
        %v4079 = vpop.f32.mrb[0].mxu0
        %4080 = vdwg.mxu0
        %4081 = vmatprep.subr.bf16.mxu0 %v2271
        %4082 = vmatpush1.bf16.msra.mxu0 %v2270
        %4083 = vmatprep.subr.bf16.mxu0 %v2275
        %4084 = vmatpush1.bf16.msra.mxu0 %v2274
        %4085 = vmatprep.subr.bf16.mxu0 %v2279
        %4086 = vmatpush1.bf16.msra.mxu0 %v2278
        %4087 = vmatprep.subr.bf16.mxu0 %v2283
        %4088 = vmatpush1.bf16.msra.mxu0 %v2282
        %4089 = vmatprep.subr.bf16.mxu0 %v2287
        %4090 = vmatpush1.bf16.msra.mxu0 %v2286
        %4091 = vmatprep.subr.bf16.mxu0 %v2291
        %4092 = vmatpush1.bf16.msra.mxu0 %v2290
        %4093 = vmatprep.subr.bf16.mxu0 %v2295
        %4094 = vmatpush1.bf16.msra.mxu0 %v2294
        %4095 = vmatprep.subr.bf16.mxu0 %v2299
        %4096 = vmatpush1.bf16.msra.mxu0 %v2298
        %4097 = vmatprep.subr.bf16.mxu0 0
        %4098 = vmatpush1.bf16.msra.mxu0 0
        %4099 = vmatprep.subr.bf16.mxu0 0
        %4100 = vmatpush1.bf16.msra.mxu0 0
        %4101 = vmatprep.subr.bf16.mxu0 0
        %4102 = vmatpush1.bf16.msra.mxu0 0
        %4103 = vmatprep.subr.bf16.mxu0 0
        %4104 = vmatpush1.bf16.msra.mxu0 0
        %4105 = vmatprep.subr.bf16.mxu0 0
        %4106 = vmatpush1.bf16.msra.mxu0 0
        %4107 = vmatprep.subr.bf16.mxu0 0
        %4108 = vmatpush1.bf16.msra.mxu0 0
        %4109 = vmatprep.subr.bf16.mxu0 0
        %4110 = vmatpush1.bf16.msra.mxu0 0
        %4111 = vmatprep.subr.bf16.mxu0 0
        %4112 = vmatpush1.bf16.msra.mxu0 0
        %4113 = vmatprep.mubr.bf16.mxu0 0
        %4114 = vmatmul.mubr.bf16.gmra.mrb[0].mxu0 %v3915
        %v4115 = vpop.f32.mrb[0].mxu0
        %v4116 = vadd.f32 0.0, %v4115
        %v4117 = vpop.f32.mrb[0].mxu0
        %v4118 = vadd.f32 0.0, %v4117
        %v4119 = vpop.f32.mrb[0].mxu0
        %v4120 = vpop.f32.mrb[0].mxu0
        %4121 = vdwg.mxu0
        %4122 = vmatprep.subr.bf16.mxu0 %v2273
        %4123 = vmatpush1.bf16.msra.mxu0 %v2272
        %4124 = vmatprep.subr.bf16.mxu0 %v2277
        %4125 = vmatpush1.bf16.msra.mxu0 %v2276
        %4126 = vmatprep.subr.bf16.mxu0 %v2281
        %4127 = vmatpush1.bf16.msra.mxu0 %v2280
        %4128 = vmatprep.subr.bf16.mxu0 %v2285
        %4129 = vmatpush1.bf16.msra.mxu0 %v2284
        %4130 = vmatprep.subr.bf16.mxu0 %v2289
        %4131 = vmatpush1.bf16.msra.mxu0 %v2288
        %4132 = vmatprep.subr.bf16.mxu0 %v2293
        %4133 = vmatpush1.bf16.msra.mxu0 %v2292
        %4134 = vmatprep.subr.bf16.mxu0 %v2297
        %4135 = vmatpush1.bf16.msra.mxu0 %v2296
        %4136 = vmatprep.subr.bf16.mxu0 %v2301
        %4137 = vmatpush1.bf16.msra.mxu0 %v2300
        %4138 = vmatprep.subr.bf16.mxu0 0
        %4139 = vmatpush1.bf16.msra.mxu0 0
        %4140 = vmatprep.subr.bf16.mxu0 0
        %4141 = vmatpush1.bf16.msra.mxu0 0
        %4142 = vmatprep.subr.bf16.mxu0 0
        %4143 = vmatpush1.bf16.msra.mxu0 0
        %4144 = vmatprep.subr.bf16.mxu0 0
        %4145 = vmatpush1.bf16.msra.mxu0 0
        %4146 = vmatprep.subr.bf16.mxu0 0
        %4147 = vmatpush1.bf16.msra.mxu0 0
        %4148 = vmatprep.subr.bf16.mxu0 0
        %4149 = vmatpush1.bf16.msra.mxu0 0
        %4150 = vmatprep.subr.bf16.mxu0 0
        %4151 = vmatpush1.bf16.msra.mxu0 0
        %4152 = vmatprep.subr.bf16.mxu0 0
        %4153 = vmatpush1.bf16.msra.mxu0 0
        %4154 = vmatprep.mubr.bf16.mxu0 0
        %4155 = vmatmul.mubr.bf16.gmra.mrb[0].mxu0 %v3915
        %v4156 = vpop.f32.mrb[0].mxu0
        %v4157 = vadd.f32 0.0, %v4156
        %v4158 = vpop.f32.mrb[0].mxu0
        %v4159 = vadd.f32 0.0, %v4158
        %v4160 = vpop.f32.mrb[0].mxu0
        %v4161 = vpop.f32.mrb[0].mxu0
        %4162 = vdwg.mxu0
        %4163 = vmatprep.subr.bf16.mxu0 %v2513
        %4164 = vmatpush1.bf16.msra.mxu0 %v2512
        %4165 = vmatprep.subr.bf16.mxu0 %v2517
        %4166 = vmatpush1.bf16.msra.mxu0 %v2516
        %4167 = vmatprep.subr.bf16.mxu0 %v2521
        %4168 = vmatpush1.bf16.msra.mxu0 %v2520
        %4169 = vmatprep.subr.bf16.mxu0 %v2525
        %4170 = vmatpush1.bf16.msra.mxu0 %v2524
        %4171 = vmatprep.subr.bf16.mxu0 %v2529
        %4172 = vmatpush1.bf16.msra.mxu0 %v2528
        %4173 = vmatprep.subr.bf16.mxu0 %v2533
        %4174 = vmatpush1.bf16.msra.mxu0 %v2532
        %4175 = vmatprep.subr.bf16.mxu0 %v2537
        %4176 = vmatpush1.bf16.msra.mxu0 %v2536
        %4177 = vmatprep.subr.bf16.mxu0 %v2541
        %4178 = vmatpush1.bf16.msra.mxu0 %v2540
        %4179 = vmatprep.subr.bf16.mxu0 0
        %4180 = vmatpush1.bf16.msra.mxu0 0
        %4181 = vmatprep.subr.bf16.mxu0 0
        %4182 = vmatpush1.bf16.msra.mxu0 0
        %4183 = vmatprep.subr.bf16.mxu0 0
        %4184 = vmatpush1.bf16.msra.mxu0 0
        %4185 = vmatprep.subr.bf16.mxu0 0
        %4186 = vmatpush1.bf16.msra.mxu0 0
        %4187 = vmatprep.subr.bf16.mxu0 0
        %4188 = vmatpush1.bf16.msra.mxu0 0
        %4189 = vmatprep.subr.bf16.mxu0 0
        %4190 = vmatpush1.bf16.msra.mxu0 0
        %4191 = vmatprep.subr.bf16.mxu0 0
        %4192 = vmatpush1.bf16.msra.mxu0 0
        %4193 = vmatprep.subr.bf16.mxu0 0
        %4194 = vmatpush1.bf16.msra.mxu0 0
        %4195 = vmatprep.mubr.bf16.mxu0 0
        %4196 = vmatmul.mubr.bf16.gmra.mrb[0].mxu0 %v3916
        %v4197 = vpop.f32.mrb[0].mxu0
        %v4198 = vadd.f32 0.0, %v4197
        %v4199 = vpop.f32.mrb[0].mxu0
        %v4200 = vadd.f32 0.0, %v4199
        %v4201 = vpop.f32.mrb[0].mxu0
        %v4202 = vpop.f32.mrb[0].mxu0
        %4203 = vdwg.mxu0
        %4204 = vmatprep.subr.bf16.mxu0 %v2515
        %4205 = vmatpush1.bf16.msra.mxu0 %v2514
        %4206 = vmatprep.subr.bf16.mxu0 %v2519
        %4207 = vmatpush1.bf16.msra.mxu0 %v2518
        %4208 = vmatprep.subr.bf16.mxu0 %v2523
        %4209 = vmatpush1.bf16.msra.mxu0 %v2522
        %4210 = vmatprep.subr.bf16.mxu0 %v2527
        %4211 = vmatpush1.bf16.msra.mxu0 %v2526
        %4212 = vmatprep.subr.bf16.mxu0 %v2531
        %4213 = vmatpush1.bf16.msra.mxu0 %v2530
        %4214 = vmatprep.subr.bf16.mxu0 %v2535
        %4215 = vmatpush1.bf16.msra.mxu0 %v2534
        %4216 = vmatprep.subr.bf16.mxu0 %v2539
        %4217 = vmatpush1.bf16.msra.mxu0 %v2538
        %4218 = vmatprep.subr.bf16.mxu0 %v2543
        %4219 = vmatpush1.bf16.msra.mxu0 %v2542
        %4220 = vmatprep.subr.bf16.mxu0 0
        %4221 = vmatpush1.bf16.msra.mxu0 0
        %4222 = vmatprep.subr.bf16.mxu0 0
        %4223 = vmatpush1.bf16.msra.mxu0 0
        %4224 = vmatprep.subr.bf16.mxu0 0
        %4225 = vmatpush1.bf16.msra.mxu0 0
        %4226 = vmatprep.subr.bf16.mxu0 0
        %4227 = vmatpush1.bf16.msra.mxu0 0
        %4228 = vmatprep.subr.bf16.mxu0 0
        %4229 = vmatpush1.bf16.msra.mxu0 0
        %4230 = vmatprep.subr.bf16.mxu0 0
        %4231 = vmatpush1.bf16.msra.mxu0 0
        %4232 = vmatprep.subr.bf16.mxu0 0
        %4233 = vmatpush1.bf16.msra.mxu0 0
        %4234 = vmatprep.subr.bf16.mxu0 0
        %4235 = vmatpush1.bf16.msra.mxu0 0
        %4236 = vmatprep.mubr.bf16.mxu0 0
        %4237 = vmatmul.mubr.bf16.gmra.mrb[0].mxu0 %v3916
        %v4238 = vpop.f32.mrb[0].mxu0
        %v4239 = vadd.f32 0.0, %v4238
        %v4240 = vpop.f32.mrb[0].mxu0
        %v4241 = vadd.f32 0.0, %v4240
        %v4242 = vpop.f32.mrb[0].mxu0
        %v4243 = vpop.f32.mrb[0].mxu0
        %4244 = vdwg.mxu0
        %v4261 = vcombine.low %v3952, %v3954
        %v4262 = vcombine.low %v3993, %v3995
        %v4264 = vunpack.c.l.s4 1983009808
        %v4265 = vunpack.c.0.s8 %v4264
        %v4266 = vlaneseq
        %v4267 = vshrl.u32 %v4266, 7
        %v4268 = vsub.s32 %v4265, %v4267
        %v4269 = vrot.slane %v4261, %v4268
        %v4271 = vunpack.c.l.s4 1983009808
        %v4272 = vunpack.c.0.s8 %v4271
        %v4273 = vlaneseq
        %v4274 = vshrl.u32 %v4273, 7
        %v4275 = vsub.s32 %v4272, %v4274
        %v4276 = vrot.slane %v4262, %v4275
        %v4277 = vcombine.low %v4269, %v4276
        %v4278 = vcombine.low %v4034, %v4036
        %v4279 = vcombine.low %v4075, %v4077
        %v4281 = vunpack.c.l.s4 1983009808
        %v4282 = vunpack.c.0.s8 %v4281
        %v4283 = vlaneseq
        %v4284 = vshrl.u32 %v4283, 7
        %v4285 = vsub.s32 %v4282, %v4284
        %v4286 = vrot.slane %v4278, %v4285
        %v4288 = vunpack.c.l.s4 1983009808
        %v4289 = vunpack.c.0.s8 %v4288
        %v4290 = vlaneseq
        %v4291 = vshrl.u32 %v4290, 7
        %v4292 = vsub.s32 %v4289, %v4291
        %v4293 = vrot.slane %v4279, %v4292
        %v4294 = vcombine.low %v4286, %v4293
        %v4295 = vcombine.low %v4116, %v4118
        %v4296 = vcombine.low %v4157, %v4159
        %v4298 = vunpack.c.l.s4 1983009808
        %v4299 = vunpack.c.0.s8 %v4298
        %v4300 = vlaneseq
        %v4301 = vshrl.u32 %v4300, 7
        %v4302 = vsub.s32 %v4299, %v4301
        %v4303 = vrot.slane %v4295, %v4302
        %v4305 = vunpack.c.l.s4 1983009808
        %v4306 = vunpack.c.0.s8 %v4305
        %v4307 = vlaneseq
        %v4308 = vshrl.u32 %v4307, 7
        %v4309 = vsub.s32 %v4306, %v4308
        %v4310 = vrot.slane %v4296, %v4309
        %v4311 = vcombine.low %v4303, %v4310
        %v4312 = vcombine.low %v4198, %v4200
        %v4313 = vcombine.low %v4239, %v4241
        %v4315 = vunpack.c.l.s4 1983009808
        %v4316 = vunpack.c.0.s8 %v4315
        %v4317 = vlaneseq
        %v4318 = vshrl.u32 %v4317, 7
        %v4319 = vsub.s32 %v4316, %v4318
        %v4320 = vrot.slane %v4312, %v4319
        %v4322 = vunpack.c.l.s4 1983009808
        %v4323 = vunpack.c.0.s8 %v4322
        %v4324 = vlaneseq
        %v4325 = vshrl.u32 %v4324, 7
        %v4326 = vsub.s32 %v4323, %v4325
        %v4327 = vrot.slane %v4313, %v4326
        %v4328 = vcombine.low %v4320, %v4327
        %v4333 = vadd.f32 %v3909, %v4277
        %v4334 = vadd.f32 %v3910, %v4294
        %v4335 = vadd.f32 %v3911, %v4311
        %v4336 = vadd.f32 %v3912, %v4328
        %v4337 = vmul.f32 %v4333, 0.5
        %v4338 = vmul.f32 %v4334, 0.5
        %v4339 = vmul.f32 %v4335, 0.5
        %v4340 = vmul.f32 %v4336, 0.5
        %v4341 = vtanh.pop %v4337
        %v4342 = vtanh.pop %v4338
        %v4343 = vtanh.pop %v4339
        %v4344 = vtanh.pop %v4340
        %v4345 = vadd.f32 %v4341, 1.0
        %v4346 = vadd.f32 %v4342, 1.0
        %v4347 = vadd.f32 %v4343, 1.0
        %v4348 = vadd.f32 %v4344, 1.0
        %v4349 = vmul.f32 %v4345, 0.5
        %v4350 = vmul.f32 %v4346, 0.5
        %v4351 = vmul.f32 %v4347, 0.5
        %v4352 = vmul.f32 %v4348, 0.5
        %v4357 = vrot.slane %v4333, 2
        %v4358 = vrot.slane %v4334, 2
        %v4359 = vrot.slane %v4335, 2
        %v4360 = vrot.slane %v4336, 2
        %v4365 = vmul.f32 %v4357, 0.5
        %v4366 = vmul.f32 %v4358, 0.5
        %v4367 = vmul.f32 %v4359, 0.5
        %v4368 = vmul.f32 %v4360, 0.5
        %v4369 = vtanh.pop %v4365
        %v4370 = vtanh.pop %v4366
        %v4371 = vtanh.pop %v4367
        %v4372 = vtanh.pop %v4368
        %v4373 = vadd.f32 %v4369, 1.0
        %v4374 = vadd.f32 %v4370, 1.0
        %v4375 = vadd.f32 %v4371, 1.0
        %v4376 = vadd.f32 %v4372, 1.0
        %v4377 = vmul.f32 %v4373, 0.5
        %v4378 = vmul.f32 %v4374, 0.5
        %v4379 = vmul.f32 %v4375, 0.5
        %v4380 = vmul.f32 %v4376, 0.5
        %v4381 = vrot.slane %v4333, 4
        %v4382 = vrot.slane %v4334, 4
        %v4383 = vrot.slane %v4335, 4
        %v4384 = vrot.slane %v4336, 4
        %v4389 = vtanh.pop %v4381
        %v4390 = vtanh.pop %v4382
        %v4391 = vtanh.pop %v4383
        %v4392 = vtanh.pop %v4384
        %v4393 = vrot.slane %v4333, 6
        %v4394 = vrot.slane %v4334, 6
        %v4395 = vrot.slane %v4335, 6
        %v4396 = vrot.slane %v4336, 6
        %v4401 = vmul.f32 %v4393, 0.5
        %v4402 = vmul.f32 %v4394, 0.5
        %v4403 = vmul.f32 %v4395, 0.5
        %v4404 = vmul.f32 %v4396, 0.5
        %v4405 = vtanh.pop %v4401
        %v4406 = vtanh.pop %v4402
        %v4407 = vtanh.pop %v4403
        %v4408 = vtanh.pop %v4404
        %v4409 = vadd.f32 %v4405, 1.0
        %v4410 = vadd.f32 %v4406, 1.0
        %v4411 = vadd.f32 %v4407, 1.0
        %v4412 = vadd.f32 %v4408, 1.0
        %v4413 = vmul.f32 %v4409, 0.5
        %v4414 = vmul.f32 %v4410, 0.5
        %v4415 = vmul.f32 %v4411, 0.5
        %v4416 = vmul.f32 %v4412, 0.5
        %v4417 = vmul.f32 %v4377, %v3896
        %v4418 = vmul.f32 %v4378, %v3897
        %v4419 = vmul.f32 %v4379, %v3898
        %v4420 = vmul.f32 %v4380, %v3899
        %v4421 = vmul.f32 %v4349, %v4389
        %v4422 = vmul.f32 %v4350, %v4390
        %v4423 = vmul.f32 %v4351, %v4391
        %v4424 = vmul.f32 %v4352, %v4392
        %v4425 = vadd.f32 %v4417, %v4421
        %v4426 = vadd.f32 %v4418, %v4422
        %v4427 = vadd.f32 %v4419, %v4423
        %v4428 = vadd.f32 %v4420, %v4424
        %v4429 = vtanh.pop %v4425
        %v4430 = vtanh.pop %v4426
        %v4431 = vtanh.pop %v4427
        %v4432 = vtanh.pop %v4428
        %v4433 = vmul.f32 %v4413, %v4429
        %v4434 = vmul.f32 %v4414, %v4430
        %v4435 = vmul.f32 %v4415, %v4431
        %v4436 = vmul.f32 %v4416, %v4432
        %s4437 = scalar_lea.vmem [#allocation2], 128
        %v4438 = vld [vmem:[%s4437] sm:$0xff]
        %v4439 = vld [vmem:[%s4437 + $0x8] sm:$0xff]
        %v4440 = vld [vmem:[%s4437 + $0x10] sm:$0xff]
        %v4441 = vld [vmem:[%s4437 + $0x18] sm:$0xff]
        %v4442 = vpack.c.bf16 %v4433, %v4433
        %v4443 = vpack.c.bf16 %v4434, %v4434
        %v4444 = vpack.c.bf16 %v4435, %v4435
        %v4445 = vpack.c.bf16 %v4436, %v4436
        %4446 = vmatprep.subr.bf16.mxu0 %v1787
        %4447 = vmatpush1.bf16.msra.mxu0 %v1786
        %4448 = vmatprep.subr.bf16.mxu0 %v1791
        %4449 = vmatpush1.bf16.msra.mxu0 %v1790
        %4450 = vmatprep.subr.bf16.mxu0 %v1795
        %4451 = vmatpush1.bf16.msra.mxu0 %v1794
        %4452 = vmatprep.subr.bf16.mxu0 %v1799
        %4453 = vmatpush1.bf16.msra.mxu0 %v1798
        %4454 = vmatprep.subr.bf16.mxu0 %v1803
        %4455 = vmatpush1.bf16.msra.mxu0 %v1802
        %4456 = vmatprep.subr.bf16.mxu0 %v1807
        %4457 = vmatpush1.bf16.msra.mxu0 %v1806
        %4458 = vmatprep.subr.bf16.mxu0 %v1811
        %4459 = vmatpush1.bf16.msra.mxu0 %v1810
        %4460 = vmatprep.subr.bf16.mxu0 %v1815
        %4461 = vmatpush1.bf16.msra.mxu0 %v1814
        %4462 = vmatprep.subr.bf16.mxu0 0
        %4463 = vmatpush1.bf16.msra.mxu0 0
        %4464 = vmatprep.subr.bf16.mxu0 0
        %4465 = vmatpush1.bf16.msra.mxu0 0
        %4466 = vmatprep.subr.bf16.mxu0 0
        %4467 = vmatpush1.bf16.msra.mxu0 0
        %4468 = vmatprep.subr.bf16.mxu0 0
        %4469 = vmatpush1.bf16.msra.mxu0 0
        %4470 = vmatprep.subr.bf16.mxu0 0
        %4471 = vmatpush1.bf16.msra.mxu0 0
        %4472 = vmatprep.subr.bf16.mxu0 0
        %4473 = vmatpush1.bf16.msra.mxu0 0
        %4474 = vmatprep.subr.bf16.mxu0 0
        %4475 = vmatpush1.bf16.msra.mxu0 0
        %4476 = vmatprep.subr.bf16.mxu0 0
        %4477 = vmatpush1.bf16.msra.mxu0 0
        %4478 = vmatprep.mubr.bf16.mxu0 0
        %4479 = vmatmul.mubr.bf16.gmra.mrb[0].mxu0 %v4442
        %v4480 = vpop.f32.mrb[0].mxu0
        %v4481 = vadd.f32 0.0, %v4480
        %v4482 = vpop.f32.mrb[0].mxu0
        %v4483 = vadd.f32 0.0, %v4482
        %v4484 = vpop.f32.mrb[0].mxu0
        %v4485 = vpop.f32.mrb[0].mxu0
        %4486 = vdwg.mxu0
        %4487 = vmatprep.subr.bf16.mxu0 %v1789
        %4488 = vmatpush1.bf16.msra.mxu0 %v1788
        %4489 = vmatprep.subr.bf16.mxu0 %v1793
        %4490 = vmatpush1.bf16.msra.mxu0 %v1792
        %4491 = vmatprep.subr.bf16.mxu0 %v1797
        %4492 = vmatpush1.bf16.msra.mxu0 %v1796
        %4493 = vmatprep.subr.bf16.mxu0 %v1801
        %4494 = vmatpush1.bf16.msra.mxu0 %v1800
        %4495 = vmatprep.subr.bf16.mxu0 %v1805
        %4496 = vmatpush1.bf16.msra.mxu0 %v1804
        %4497 = vmatprep.subr.bf16.mxu0 %v1809
        %4498 = vmatpush1.bf16.msra.mxu0 %v1808
        %4499 = vmatprep.subr.bf16.mxu0 %v1813
        %4500 = vmatpush1.bf16.msra.mxu0 %v1812
        %4501 = vmatprep.subr.bf16.mxu0 %v1817
        %4502 = vmatpush1.bf16.msra.mxu0 %v1816
        %4503 = vmatprep.subr.bf16.mxu0 0
        %4504 = vmatpush1.bf16.msra.mxu0 0
        %4505 = vmatprep.subr.bf16.mxu0 0
        %4506 = vmatpush1.bf16.msra.mxu0 0
        %4507 = vmatprep.subr.bf16.mxu0 0
        %4508 = vmatpush1.bf16.msra.mxu0 0
        %4509 = vmatprep.subr.bf16.mxu0 0
        %4510 = vmatpush1.bf16.msra.mxu0 0
        %4511 = vmatprep.subr.bf16.mxu0 0
        %4512 = vmatpush1.bf16.msra.mxu0 0
        %4513 = vmatprep.subr.bf16.mxu0 0
        %4514 = vmatpush1.bf16.msra.mxu0 0
        %4515 = vmatprep.subr.bf16.mxu0 0
        %4516 = vmatpush1.bf16.msra.mxu0 0
        %4517 = vmatprep.subr.bf16.mxu0 0
        %4518 = vmatpush1.bf16.msra.mxu0 0
        %4519 = vmatprep.mubr.bf16.mxu0 0
        %4520 = vmatmul.mubr.bf16.gmra.mrb[0].mxu0 %v4442
        %v4521 = vpop.f32.mrb[0].mxu0
        %v4522 = vadd.f32 0.0, %v4521
        %v4523 = vpop.f32.mrb[0].mxu0
        %v4524 = vadd.f32 0.0, %v4523
        %v4525 = vpop.f32.mrb[0].mxu0
        %v4526 = vpop.f32.mrb[0].mxu0
        %4527 = vdwg.mxu0
        %4528 = vmatprep.subr.bf16.mxu0 %v2029
        %4529 = vmatpush1.bf16.msra.mxu0 %v2028
        %4530 = vmatprep.subr.bf16.mxu0 %v2033
        %4531 = vmatpush1.bf16.msra.mxu0 %v2032
        %4532 = vmatprep.subr.bf16.mxu0 %v2037
        %4533 = vmatpush1.bf16.msra.mxu0 %v2036
        %4534 = vmatprep.subr.bf16.mxu0 %v2041
        %4535 = vmatpush1.bf16.msra.mxu0 %v2040
        %4536 = vmatprep.subr.bf16.mxu0 %v2045
        %4537 = vmatpush1.bf16.msra.mxu0 %v2044
        %4538 = vmatprep.subr.bf16.mxu0 %v2049
        %4539 = vmatpush1.bf16.msra.mxu0 %v2048
        %4540 = vmatprep.subr.bf16.mxu0 %v2053
        %4541 = vmatpush1.bf16.msra.mxu0 %v2052
        %4542 = vmatprep.subr.bf16.mxu0 %v2057
        %4543 = vmatpush1.bf16.msra.mxu0 %v2056
        %4544 = vmatprep.subr.bf16.mxu0 0
        %4545 = vmatpush1.bf16.msra.mxu0 0
        %4546 = vmatprep.subr.bf16.mxu0 0
        %4547 = vmatpush1.bf16.msra.mxu0 0
        %4548 = vmatprep.subr.bf16.mxu0 0
        %4549 = vmatpush1.bf16.msra.mxu0 0
        %4550 = vmatprep.subr.bf16.mxu0 0
        %4551 = vmatpush1.bf16.msra.mxu0 0
        %4552 = vmatprep.subr.bf16.mxu0 0
        %4553 = vmatpush1.bf16.msra.mxu0 0
        %4554 = vmatprep.subr.bf16.mxu0 0
        %4555 = vmatpush1.bf16.msra.mxu0 0
        %4556 = vmatprep.subr.bf16.mxu0 0
        %4557 = vmatpush1.bf16.msra.mxu0 0
        %4558 = vmatprep.subr.bf16.mxu0 0
        %4559 = vmatpush1.bf16.msra.mxu0 0
        %4560 = vmatprep.mubr.bf16.mxu0 0
        %4561 = vmatmul.mubr.bf16.gmra.mrb[0].mxu0 %v4443
        %v4562 = vpop.f32.mrb[0].mxu0
        %v4563 = vadd.f32 0.0, %v4562
        %v4564 = vpop.f32.mrb[0].mxu0
        %v4565 = vadd.f32 0.0, %v4564
        %v4566 = vpop.f32.mrb[0].mxu0
        %v4567 = vpop.f32.mrb[0].mxu0
        %4568 = vdwg.mxu0
        %4569 = vmatprep.subr.bf16.mxu0 %v2031
        %4570 = vmatpush1.bf16.msra.mxu0 %v2030
        %4571 = vmatprep.subr.bf16.mxu0 %v2035
        %4572 = vmatpush1.bf16.msra.mxu0 %v2034
        %4573 = vmatprep.subr.bf16.mxu0 %v2039
        %4574 = vmatpush1.bf16.msra.mxu0 %v2038
        %4575 = vmatprep.subr.bf16.mxu0 %v2043
        %4576 = vmatpush1.bf16.msra.mxu0 %v2042
        %4577 = vmatprep.subr.bf16.mxu0 %v2047
        %4578 = vmatpush1.bf16.msra.mxu0 %v2046
        %4579 = vmatprep.subr.bf16.mxu0 %v2051
        %4580 = vmatpush1.bf16.msra.mxu0 %v2050
        %4581 = vmatprep.subr.bf16.mxu0 %v2055
        %4582 = vmatpush1.bf16.msra.mxu0 %v2054
        %4583 = vmatprep.subr.bf16.mxu0 %v2059
        %4584 = vmatpush1.bf16.msra.mxu0 %v2058
        %4585 = vmatprep.subr.bf16.mxu0 0
        %4586 = vmatpush1.bf16.msra.mxu0 0
        %4587 = vmatprep.subr.bf16.mxu0 0
        %4588 = vmatpush1.bf16.msra.mxu0 0
        %4589 = vmatprep.subr.bf16.mxu0 0
        %4590 = vmatpush1.bf16.msra.mxu0 0
        %4591 = vmatprep.subr.bf16.mxu0 0
        %4592 = vmatpush1.bf16.msra.mxu0 0
        %4593 = vmatprep.subr.bf16.mxu0 0
        %4594 = vmatpush1.bf16.msra.mxu0 0
        %4595 = vmatprep.subr.bf16.mxu0 0
        %4596 = vmatpush1.bf16.msra.mxu0 0
        %4597 = vmatprep.subr.bf16.mxu0 0
        %4598 = vmatpush1.bf16.msra.mxu0 0
        %4599 = vmatprep.subr.bf16.mxu0 0
        %4600 = vmatpush1.bf16.msra.mxu0 0
        %4601 = vmatprep.mubr.bf16.mxu0 0
        %4602 = vmatmul.mubr.bf16.gmra.mrb[0].mxu0 %v4443
        %v4603 = vpop.f32.mrb[0].mxu0
        %v4604 = vadd.f32 0.0, %v4603
        %v4605 = vpop.f32.mrb[0].mxu0
        %v4606 = vadd.f32 0.0, %v4605
        %v4607 = vpop.f32.mrb[0].mxu0
        %v4608 = vpop.f32.mrb[0].mxu0
        %4609 = vdwg.mxu0
        %4610 = vmatprep.subr.bf16.mxu0 %v2271
        %4611 = vmatpush1.bf16.msra.mxu0 %v2270
        %4612 = vmatprep.subr.bf16.mxu0 %v2275
        %4613 = vmatpush1.bf16.msra.mxu0 %v2274
        %4614 = vmatprep.subr.bf16.mxu0 %v2279
        %4615 = vmatpush1.bf16.msra.mxu0 %v2278
        %4616 = vmatprep.subr.bf16.mxu0 %v2283
        %4617 = vmatpush1.bf16.msra.mxu0 %v2282
        %4618 = vmatprep.subr.bf16.mxu0 %v2287
        %4619 = vmatpush1.bf16.msra.mxu0 %v2286
        %4620 = vmatprep.subr.bf16.mxu0 %v2291
        %4621 = vmatpush1.bf16.msra.mxu0 %v2290
        %4622 = vmatprep.subr.bf16.mxu0 %v2295
        %4623 = vmatpush1.bf16.msra.mxu0 %v2294
        %4624 = vmatprep.subr.bf16.mxu0 %v2299
        %4625 = vmatpush1.bf16.msra.mxu0 %v2298
        %4626 = vmatprep.subr.bf16.mxu0 0
        %4627 = vmatpush1.bf16.msra.mxu0 0
        %4628 = vmatprep.subr.bf16.mxu0 0
        %4629 = vmatpush1.bf16.msra.mxu0 0
        %4630 = vmatprep.subr.bf16.mxu0 0
        %4631 = vmatpush1.bf16.msra.mxu0 0
        %4632 = vmatprep.subr.bf16.mxu0 0
        %4633 = vmatpush1.bf16.msra.mxu0 0
        %4634 = vmatprep.subr.bf16.mxu0 0
        %4635 = vmatpush1.bf16.msra.mxu0 0
        %4636 = vmatprep.subr.bf16.mxu0 0
        %4637 = vmatpush1.bf16.msra.mxu0 0
        %4638 = vmatprep.subr.bf16.mxu0 0
        %4639 = vmatpush1.bf16.msra.mxu0 0
        %4640 = vmatprep.subr.bf16.mxu0 0
        %4641 = vmatpush1.bf16.msra.mxu0 0
        %4642 = vmatprep.mubr.bf16.mxu0 0
        %4643 = vmatmul.mubr.bf16.gmra.mrb[0].mxu0 %v4444
        %v4644 = vpop.f32.mrb[0].mxu0
        %v4645 = vadd.f32 0.0, %v4644
        %v4646 = vpop.f32.mrb[0].mxu0
        %v4647 = vadd.f32 0.0, %v4646
        %v4648 = vpop.f32.mrb[0].mxu0
        %v4649 = vpop.f32.mrb[0].mxu0
        %4650 = vdwg.mxu0
        %4651 = vmatprep.subr.bf16.mxu0 %v2273
        %4652 = vmatpush1.bf16.msra.mxu0 %v2272
        %4653 = vmatprep.subr.bf16.mxu0 %v2277
        %4654 = vmatpush1.bf16.msra.mxu0 %v2276
        %4655 = vmatprep.subr.bf16.mxu0 %v2281
        %4656 = vmatpush1.bf16.msra.mxu0 %v2280
        %4657 = vmatprep.subr.bf16.mxu0 %v2285
        %4658 = vmatpush1.bf16.msra.mxu0 %v2284
        %4659 = vmatprep.subr.bf16.mxu0 %v2289
        %4660 = vmatpush1.bf16.msra.mxu0 %v2288
        %4661 = vmatprep.subr.bf16.mxu0 %v2293
        %4662 = vmatpush1.bf16.msra.mxu0 %v2292
        %4663 = vmatprep.subr.bf16.mxu0 %v2297
        %4664 = vmatpush1.bf16.msra.mxu0 %v2296
        %4665 = vmatprep.subr.bf16.mxu0 %v2301
        %4666 = vmatpush1.bf16.msra.mxu0 %v2300
        %4667 = vmatprep.subr.bf16.mxu0 0
        %4668 = vmatpush1.bf16.msra.mxu0 0
        %4669 = vmatprep.subr.bf16.mxu0 0
        %4670 = vmatpush1.bf16.msra.mxu0 0
        %4671 = vmatprep.subr.bf16.mxu0 0
        %4672 = vmatpush1.bf16.msra.mxu0 0
        %4673 = vmatprep.subr.bf16.mxu0 0
        %4674 = vmatpush1.bf16.msra.mxu0 0
        %4675 = vmatprep.subr.bf16.mxu0 0
        %4676 = vmatpush1.bf16.msra.mxu0 0
        %4677 = vmatprep.subr.bf16.mxu0 0
        %4678 = vmatpush1.bf16.msra.mxu0 0
        %4679 = vmatprep.subr.bf16.mxu0 0
        %4680 = vmatpush1.bf16.msra.mxu0 0
        %4681 = vmatprep.subr.bf16.mxu0 0
        %4682 = vmatpush1.bf16.msra.mxu0 0
        %4683 = vmatprep.mubr.bf16.mxu0 0
        %4684 = vmatmul.mubr.bf16.gmra.mrb[0].mxu0 %v4444
        %v4685 = vpop.f32.mrb[0].mxu0
        %v4686 = vadd.f32 0.0, %v4685
        %v4687 = vpop.f32.mrb[0].mxu0
        %v4688 = vadd.f32 0.0, %v4687
        %v4689 = vpop.f32.mrb[0].mxu0
        %v4690 = vpop.f32.mrb[0].mxu0
        %4691 = vdwg.mxu0
        %4692 = vmatprep.subr.bf16.mxu0 %v2513
        %4693 = vmatpush1.bf16.msra.mxu0 %v2512
        %4694 = vmatprep.subr.bf16.mxu0 %v2517
        %4695 = vmatpush1.bf16.msra.mxu0 %v2516
        %4696 = vmatprep.subr.bf16.mxu0 %v2521
        %4697 = vmatpush1.bf16.msra.mxu0 %v2520
        %4698 = vmatprep.subr.bf16.mxu0 %v2525
        %4699 = vmatpush1.bf16.msra.mxu0 %v2524
        %4700 = vmatprep.subr.bf16.mxu0 %v2529
        %4701 = vmatpush1.bf16.msra.mxu0 %v2528
        %4702 = vmatprep.subr.bf16.mxu0 %v2533
        %4703 = vmatpush1.bf16.msra.mxu0 %v2532
        %4704 = vmatprep.subr.bf16.mxu0 %v2537
        %4705 = vmatpush1.bf16.msra.mxu0 %v2536
        %4706 = vmatprep.subr.bf16.mxu0 %v2541
        %4707 = vmatpush1.bf16.msra.mxu0 %v2540
        %4708 = vmatprep.subr.bf16.mxu0 0
        %4709 = vmatpush1.bf16.msra.mxu0 0
        %4710 = vmatprep.subr.bf16.mxu0 0
        %4711 = vmatpush1.bf16.msra.mxu0 0
        %4712 = vmatprep.subr.bf16.mxu0 0
        %4713 = vmatpush1.bf16.msra.mxu0 0
        %4714 = vmatprep.subr.bf16.mxu0 0
        %4715 = vmatpush1.bf16.msra.mxu0 0
        %4716 = vmatprep.subr.bf16.mxu0 0
        %4717 = vmatpush1.bf16.msra.mxu0 0
        %4718 = vmatprep.subr.bf16.mxu0 0
        %4719 = vmatpush1.bf16.msra.mxu0 0
        %4720 = vmatprep.subr.bf16.mxu0 0
        %4721 = vmatpush1.bf16.msra.mxu0 0
        %4722 = vmatprep.subr.bf16.mxu0 0
        %4723 = vmatpush1.bf16.msra.mxu0 0
        %4724 = vmatprep.mubr.bf16.mxu0 0
        %4725 = vmatmul.mubr.bf16.gmra.mrb[0].mxu0 %v4445
        %v4726 = vpop.f32.mrb[0].mxu0
        %v4727 = vadd.f32 0.0, %v4726
        %v4728 = vpop.f32.mrb[0].mxu0
        %v4729 = vadd.f32 0.0, %v4728
        %v4730 = vpop.f32.mrb[0].mxu0
        %v4731 = vpop.f32.mrb[0].mxu0
        %4732 = vdwg.mxu0
        %4733 = vmatprep.subr.bf16.mxu0 %v2515
        %4734 = vmatpush1.bf16.msra.mxu0 %v2514
        %4735 = vmatprep.subr.bf16.mxu0 %v2519
        %4736 = vmatpush1.bf16.msra.mxu0 %v2518
        %4737 = vmatprep.subr.bf16.mxu0 %v2523
        %4738 = vmatpush1.bf16.msra.mxu0 %v2522
        %4739 = vmatprep.subr.bf16.mxu0 %v2527
        %4740 = vmatpush1.bf16.msra.mxu0 %v2526
        %4741 = vmatprep.subr.bf16.mxu0 %v2531
        %4742 = vmatpush1.bf16.msra.mxu0 %v2530
        %4743 = vmatprep.subr.bf16.mxu0 %v2535
        %4744 = vmatpush1.bf16.msra.mxu0 %v2534
        %4745 = vmatprep.subr.bf16.mxu0 %v2539
        %4746 = vmatpush1.bf16.msra.mxu0 %v2538
        %4747 = vmatprep.subr.bf16.mxu0 %v2543
        %4748 = vmatpush1.bf16.msra.mxu0 %v2542
        %4749 = vmatprep.subr.bf16.mxu0 0
        %4750 = vmatpush1.bf16.msra.mxu0 0
        %4751 = vmatprep.subr.bf16.mxu0 0
        %4752 = vmatpush1.bf16.msra.mxu0 0
        %4753 = vmatprep.subr.bf16.mxu0 0
        %4754 = vmatpush1.bf16.msra.mxu0 0
        %4755 = vmatprep.subr.bf16.mxu0 0
        %4756 = vmatpush1.bf16.msra.mxu0 0
        %4757 = vmatprep.subr.bf16.mxu0 0
        %4758 = vmatpush1.bf16.msra.mxu0 0
        %4759 = vmatprep.subr.bf16.mxu0 0
        %4760 = vmatpush1.bf16.msra.mxu0 0
        %4761 = vmatprep.subr.bf16.mxu0 0
        %4762 = vmatpush1.bf16.msra.mxu0 0
        %4763 = vmatprep.subr.bf16.mxu0 0
        %4764 = vmatpush1.bf16.msra.mxu0 0
        %4765 = vmatprep.mubr.bf16.mxu0 0
        %4766 = vmatmul.mubr.bf16.gmra.mrb[0].mxu0 %v4445
        %v4767 = vpop.f32.mrb[0].mxu0
        %v4768 = vadd.f32 0.0, %v4767
        %v4769 = vpop.f32.mrb[0].mxu0
        %v4770 = vadd.f32 0.0, %v4769
        %v4771 = vpop.f32.mrb[0].mxu0
        %v4772 = vpop.f32.mrb[0].mxu0
        %4773 = vdwg.mxu0
        %v4790 = vcombine.low %v4481, %v4483
        %v4791 = vcombine.low %v4522, %v4524
        %v4793 = vunpack.c.l.s4 1983009808
        %v4794 = vunpack.c.0.s8 %v4793
        %v4795 = vlaneseq
        %v4796 = vshrl.u32 %v4795, 7
        %v4797 = vsub.s32 %v4794, %v4796
        %v4798 = vrot.slane %v4790, %v4797
        %v4800 = vunpack.c.l.s4 1983009808
        %v4801 = vunpack.c.0.s8 %v4800
        %v4802 = vlaneseq
        %v4803 = vshrl.u32 %v4802, 7
        %v4804 = vsub.s32 %v4801, %v4803
        %v4805 = vrot.slane %v4791, %v4804
        %v4806 = vcombine.low %v4798, %v4805
        %v4807 = vcombine.low %v4563, %v4565
        %v4808 = vcombine.low %v4604, %v4606
        %v4810 = vunpack.c.l.s4 1983009808
        %v4811 = vunpack.c.0.s8 %v4810
        %v4812 = vlaneseq
        %v4813 = vshrl.u32 %v4812, 7
        %v4814 = vsub.s32 %v4811, %v4813
        %v4815 = vrot.slane %v4807, %v4814
        %v4817 = vunpack.c.l.s4 1983009808
        %v4818 = vunpack.c.0.s8 %v4817
        %v4819 = vlaneseq
        %v4820 = vshrl.u32 %v4819, 7
        %v4821 = vsub.s32 %v4818, %v4820
        %v4822 = vrot.slane %v4808, %v4821
        %v4823 = vcombine.low %v4815, %v4822
        %v4824 = vcombine.low %v4645, %v4647
        %v4825 = vcombine.low %v4686, %v4688
        %v4827 = vunpack.c.l.s4 1983009808
        %v4828 = vunpack.c.0.s8 %v4827
        %v4829 = vlaneseq
        %v4830 = vshrl.u32 %v4829, 7
        %v4831 = vsub.s32 %v4828, %v4830
        %v4832 = vrot.slane %v4824, %v4831
        %v4834 = vunpack.c.l.s4 1983009808
        %v4835 = vunpack.c.0.s8 %v4834
        %v4836 = vlaneseq
        %v4837 = vshrl.u32 %v4836, 7
        %v4838 = vsub.s32 %v4835, %v4837
        %v4839 = vrot.slane %v4825, %v4838
        %v4840 = vcombine.low %v4832, %v4839
        %v4841 = vcombine.low %v4727, %v4729
        %v4842 = vcombine.low %v4768, %v4770
        %v4844 = vunpack.c.l.s4 1983009808
        %v4845 = vunpack.c.0.s8 %v4844
        %v4846 = vlaneseq
        %v4847 = vshrl.u32 %v4846, 7
        %v4848 = vsub.s32 %v4845, %v4847
        %v4849 = vrot.slane %v4841, %v4848
        %v4851 = vunpack.c.l.s4 1983009808
        %v4852 = vunpack.c.0.s8 %v4851
        %v4853 = vlaneseq
        %v4854 = vshrl.u32 %v4853, 7
        %v4855 = vsub.s32 %v4852, %v4854
        %v4856 = vrot.slane %v4842, %v4855
        %v4857 = vcombine.low %v4849, %v4856
        %v4862 = vadd.f32 %v4438, %v4806
        %v4863 = vadd.f32 %v4439, %v4823
        %v4864 = vadd.f32 %v4440, %v4840
        %v4865 = vadd.f32 %v4441, %v4857
        %v4866 = vmul.f32 %v4862, 0.5
        %v4867 = vmul.f32 %v4863, 0.5
        %v4868 = vmul.f32 %v4864, 0.5
        %v4869 = vmul.f32 %v4865, 0.5
        %v4870 = vtanh.pop %v4866
        %v4871 = vtanh.pop %v4867
        %v4872 = vtanh.pop %v4868
        %v4873 = vtanh.pop %v4869
        %v4874 = vadd.f32 %v4870, 1.0
        %v4875 = vadd.f32 %v4871, 1.0
        %v4876 = vadd.f32 %v4872, 1.0
        %v4877 = vadd.f32 %v4873, 1.0
        %v4878 = vmul.f32 %v4874, 0.5
        %v4879 = vmul.f32 %v4875, 0.5
        %v4880 = vmul.f32 %v4876, 0.5
        %v4881 = vmul.f32 %v4877, 0.5
        %v4886 = vrot.slane %v4862, 2
        %v4887 = vrot.slane %v4863, 2
        %v4888 = vrot.slane %v4864, 2
        %v4889 = vrot.slane %v4865, 2
        %v4894 = vmul.f32 %v4886, 0.5
        %v4895 = vmul.f32 %v4887, 0.5
        %v4896 = vmul.f32 %v4888, 0.5
        %v4897 = vmul.f32 %v4889, 0.5
        %v4898 = vtanh.pop %v4894
        %v4899 = vtanh.pop %v4895
        %v4900 = vtanh.pop %v4896
        %v4901 = vtanh.pop %v4897
        %v4902 = vadd.f32 %v4898, 1.0
        %v4903 = vadd.f32 %v4899, 1.0
        %v4904 = vadd.f32 %v4900, 1.0
        %v4905 = vadd.f32 %v4901, 1.0
        %v4906 = vmul.f32 %v4902, 0.5
        %v4907 = vmul.f32 %v4903, 0.5
        %v4908 = vmul.f32 %v4904, 0.5
        %v4909 = vmul.f32 %v4905, 0.5
        %v4910 = vrot.slane %v4862, 4
        %v4911 = vrot.slane %v4863, 4
        %v4912 = vrot.slane %v4864, 4
        %v4913 = vrot.slane %v4865, 4
        %v4918 = vtanh.pop %v4910
        %v4919 = vtanh.pop %v4911
        %v4920 = vtanh.pop %v4912
        %v4921 = vtanh.pop %v4913
        %v4922 = vrot.slane %v4862, 6
        %v4923 = vrot.slane %v4863, 6
        %v4924 = vrot.slane %v4864, 6
        %v4925 = vrot.slane %v4865, 6
        %v4930 = vmul.f32 %v4922, 0.5
        %v4931 = vmul.f32 %v4923, 0.5
        %v4932 = vmul.f32 %v4924, 0.5
        %v4933 = vmul.f32 %v4925, 0.5
        %v4934 = vtanh.pop %v4930
        %v4935 = vtanh.pop %v4931
        %v4936 = vtanh.pop %v4932
        %v4937 = vtanh.pop %v4933
        %v4938 = vadd.f32 %v4934, 1.0
        %v4939 = vadd.f32 %v4935, 1.0
        %v4940 = vadd.f32 %v4936, 1.0
        %v4941 = vadd.f32 %v4937, 1.0
        %v4942 = vmul.f32 %v4938, 0.5
        %v4943 = vmul.f32 %v4939, 0.5
        %v4944 = vmul.f32 %v4940, 0.5
        %v4945 = vmul.f32 %v4941, 0.5
        %v4946 = vmul.f32 %v4906, %v4425
        %v4947 = vmul.f32 %v4907, %v4426
        %v4948 = vmul.f32 %v4908, %v4427
        %v4949 = vmul.f32 %v4909, %v4428
        %v4950 = vmul.f32 %v4878, %v4918
        %v4951 = vmul.f32 %v4879, %v4919
        %v4952 = vmul.f32 %v4880, %v4920
        %v4953 = vmul.f32 %v4881, %v4921
        %v4954 = vadd.f32 %v4946, %v4950
        %v4955 = vadd.f32 %v4947, %v4951
        %v4956 = vadd.f32 %v4948, %v4952
        %v4957 = vadd.f32 %v4949, %v4953
        %v4958 = vtanh.pop %v4954
        %v4959 = vtanh.pop %v4955
        %v4960 = vtanh.pop %v4956
        %v4961 = vtanh.pop %v4957
        %v4962 = vmul.f32 %v4942, %v4958
        %v4963 = vmul.f32 %v4943, %v4959
        %v4964 = vmul.f32 %v4944, %v4960
        %v4965 = vmul.f32 %v4945, %v4961
        %s4966 = scalar_lea.vmem [#allocation2], 160
        %v4967 = vld [vmem:[%s4966] sm:$0xff]
        %v4968 = vld [vmem:[%s4966 + $0x8] sm:$0xff]
        %v4969 = vld [vmem:[%s4966 + $0x10] sm:$0xff]
        %v4970 = vld [vmem:[%s4966 + $0x18] sm:$0xff]
        %v4971 = vpack.c.bf16 %v4962, %v4962
        %v4972 = vpack.c.bf16 %v4963, %v4963
        %v4973 = vpack.c.bf16 %v4964, %v4964
        %v4974 = vpack.c.bf16 %v4965, %v4965
        %4975 = vmatprep.subr.bf16.mxu0 %v1787
        %4976 = vmatpush1.bf16.msra.mxu0 %v1786
        %4977 = vmatprep.subr.bf16.mxu0 %v1791
        %4978 = vmatpush1.bf16.msra.mxu0 %v1790
        %4979 = vmatprep.subr.bf16.mxu0 %v1795
        %4980 = vmatpush1.bf16.msra.mxu0 %v1794
        %4981 = vmatprep.subr.bf16.mxu0 %v1799
        %4982 = vmatpush1.bf16.msra.mxu0 %v1798
        %4983 = vmatprep.subr.bf16.mxu0 %v1803
        %4984 = vmatpush1.bf16.msra.mxu0 %v1802
        %4985 = vmatprep.subr.bf16.mxu0 %v1807
        %4986 = vmatpush1.bf16.msra.mxu0 %v1806
        %4987 = vmatprep.subr.bf16.mxu0 %v1811
        %4988 = vmatpush1.bf16.msra.mxu0 %v1810
        %4989 = vmatprep.subr.bf16.mxu0 %v1815
        %4990 = vmatpush1.bf16.msra.mxu0 %v1814
        %4991 = vmatprep.subr.bf16.mxu0 0
        %4992 = vmatpush1.bf16.msra.mxu0 0
        %4993 = vmatprep.subr.bf16.mxu0 0
        %4994 = vmatpush1.bf16.msra.mxu0 0
        %4995 = vmatprep.subr.bf16.mxu0 0
        %4996 = vmatpush1.bf16.msra.mxu0 0
        %4997 = vmatprep.subr.bf16.mxu0 0
        %4998 = vmatpush1.bf16.msra.mxu0 0
        %4999 = vmatprep.subr.bf16.mxu0 0
        %5000 = vmatpush1.bf16.msra.mxu0 0
        %5001 = vmatprep.subr.bf16.mxu0 0
        %5002 = vmatpush1.bf16.msra.mxu0 0
        %5003 = vmatprep.subr.bf16.mxu0 0
        %5004 = vmatpush1.bf16.msra.mxu0 0
        %5005 = vmatprep.subr.bf16.mxu0 0
        %5006 = vmatpush1.bf16.msra.mxu0 0
        %5007 = vmatprep.mubr.bf16.mxu0 0
        %5008 = vmatmul.mubr.bf16.gmra.mrb[0].mxu0 %v4971
        %v5009 = vpop.f32.mrb[0].mxu0
        %v5010 = vadd.f32 0.0, %v5009
        %v5011 = vpop.f32.mrb[0].mxu0
        %v5012 = vadd.f32 0.0, %v5011
        %v5013 = vpop.f32.mrb[0].mxu0
        %v5014 = vpop.f32.mrb[0].mxu0
        %5015 = vdwg.mxu0
        %5016 = vmatprep.subr.bf16.mxu0 %v1789
        %5017 = vmatpush1.bf16.msra.mxu0 %v1788
        %5018 = vmatprep.subr.bf16.mxu0 %v1793
        %5019 = vmatpush1.bf16.msra.mxu0 %v1792
        %5020 = vmatprep.subr.bf16.mxu0 %v1797
        %5021 = vmatpush1.bf16.msra.mxu0 %v1796
        %5022 = vmatprep.subr.bf16.mxu0 %v1801
        %5023 = vmatpush1.bf16.msra.mxu0 %v1800
        %5024 = vmatprep.subr.bf16.mxu0 %v1805
        %5025 = vmatpush1.bf16.msra.mxu0 %v1804
        %5026 = vmatprep.subr.bf16.mxu0 %v1809
        %5027 = vmatpush1.bf16.msra.mxu0 %v1808
        %5028 = vmatprep.subr.bf16.mxu0 %v1813
        %5029 = vmatpush1.bf16.msra.mxu0 %v1812
        %5030 = vmatprep.subr.bf16.mxu0 %v1817
        %5031 = vmatpush1.bf16.msra.mxu0 %v1816
        %5032 = vmatprep.subr.bf16.mxu0 0
        %5033 = vmatpush1.bf16.msra.mxu0 0
        %5034 = vmatprep.subr.bf16.mxu0 0
        %5035 = vmatpush1.bf16.msra.mxu0 0
        %5036 = vmatprep.subr.bf16.mxu0 0
        %5037 = vmatpush1.bf16.msra.mxu0 0
        %5038 = vmatprep.subr.bf16.mxu0 0
        %5039 = vmatpush1.bf16.msra.mxu0 0
        %5040 = vmatprep.subr.bf16.mxu0 0
        %5041 = vmatpush1.bf16.msra.mxu0 0
        %5042 = vmatprep.subr.bf16.mxu0 0
        %5043 = vmatpush1.bf16.msra.mxu0 0
        %5044 = vmatprep.subr.bf16.mxu0 0
        %5045 = vmatpush1.bf16.msra.mxu0 0
        %5046 = vmatprep.subr.bf16.mxu0 0
        %5047 = vmatpush1.bf16.msra.mxu0 0
        %5048 = vmatprep.mubr.bf16.mxu0 0
        %5049 = vmatmul.mubr.bf16.gmra.mrb[0].mxu0 %v4971
        %v5050 = vpop.f32.mrb[0].mxu0
        %v5051 = vadd.f32 0.0, %v5050
        %v5052 = vpop.f32.mrb[0].mxu0
        %v5053 = vadd.f32 0.0, %v5052
        %v5054 = vpop.f32.mrb[0].mxu0
        %v5055 = vpop.f32.mrb[0].mxu0
        %5056 = vdwg.mxu0
        %5057 = vmatprep.subr.bf16.mxu0 %v2029
        %5058 = vmatpush1.bf16.msra.mxu0 %v2028
        %5059 = vmatprep.subr.bf16.mxu0 %v2033
        %5060 = vmatpush1.bf16.msra.mxu0 %v2032
        %5061 = vmatprep.subr.bf16.mxu0 %v2037
        %5062 = vmatpush1.bf16.msra.mxu0 %v2036
        %5063 = vmatprep.subr.bf16.mxu0 %v2041
        %5064 = vmatpush1.bf16.msra.mxu0 %v2040
        %5065 = vmatprep.subr.bf16.mxu0 %v2045
        %5066 = vmatpush1.bf16.msra.mxu0 %v2044
        %5067 = vmatprep.subr.bf16.mxu0 %v2049
        %5068 = vmatpush1.bf16.msra.mxu0 %v2048
        %5069 = vmatprep.subr.bf16.mxu0 %v2053
        %5070 = vmatpush1.bf16.msra.mxu0 %v2052
        %5071 = vmatprep.subr.bf16.mxu0 %v2057
        %5072 = vmatpush1.bf16.msra.mxu0 %v2056
        %5073 = vmatprep.subr.bf16.mxu0 0
        %5074 = vmatpush1.bf16.msra.mxu0 0
        %5075 = vmatprep.subr.bf16.mxu0 0
        %5076 = vmatpush1.bf16.msra.mxu0 0
        %5077 = vmatprep.subr.bf16.mxu0 0
        %5078 = vmatpush1.bf16.msra.mxu0 0
        %5079 = vmatprep.subr.bf16.mxu0 0
        %5080 = vmatpush1.bf16.msra.mxu0 0
        %5081 = vmatprep.subr.bf16.mxu0 0
        %5082 = vmatpush1.bf16.msra.mxu0 0
        %5083 = vmatprep.subr.bf16.mxu0 0
        %5084 = vmatpush1.bf16.msra.mxu0 0
        %5085 = vmatprep.subr.bf16.mxu0 0
        %5086 = vmatpush1.bf16.msra.mxu0 0
        %5087 = vmatprep.subr.bf16.mxu0 0
        %5088 = vmatpush1.bf16.msra.mxu0 0
        %5089 = vmatprep.mubr.bf16.mxu0 0
        %5090 = vmatmul.mubr.bf16.gmra.mrb[0].mxu0 %v4972
        %v5091 = vpop.f32.mrb[0].mxu0
        %v5092 = vadd.f32 0.0, %v5091
        %v5093 = vpop.f32.mrb[0].mxu0
        %v5094 = vadd.f32 0.0, %v5093
        %v5095 = vpop.f32.mrb[0].mxu0
        %v5096 = vpop.f32.mrb[0].mxu0
        %5097 = vdwg.mxu0
        %5098 = vmatprep.subr.bf16.mxu0 %v2031
        %5099 = vmatpush1.bf16.msra.mxu0 %v2030
        %5100 = vmatprep.subr.bf16.mxu0 %v2035
        %5101 = vmatpush1.bf16.msra.mxu0 %v2034
        %5102 = vmatprep.subr.bf16.mxu0 %v2039
        %5103 = vmatpush1.bf16.msra.mxu0 %v2038
        %5104 = vmatprep.subr.bf16.mxu0 %v2043
        %5105 = vmatpush1.bf16.msra.mxu0 %v2042
        %5106 = vmatprep.subr.bf16.mxu0 %v2047
        %5107 = vmatpush1.bf16.msra.mxu0 %v2046
        %5108 = vmatprep.subr.bf16.mxu0 %v2051
        %5109 = vmatpush1.bf16.msra.mxu0 %v2050
        %5110 = vmatprep.subr.bf16.mxu0 %v2055
        %5111 = vmatpush1.bf16.msra.mxu0 %v2054
        %5112 = vmatprep.subr.bf16.mxu0 %v2059
        %5113 = vmatpush1.bf16.msra.mxu0 %v2058
        %5114 = vmatprep.subr.bf16.mxu0 0
        %5115 = vmatpush1.bf16.msra.mxu0 0
        %5116 = vmatprep.subr.bf16.mxu0 0
        %5117 = vmatpush1.bf16.msra.mxu0 0
        %5118 = vmatprep.subr.bf16.mxu0 0
        %5119 = vmatpush1.bf16.msra.mxu0 0
        %5120 = vmatprep.subr.bf16.mxu0 0
        %5121 = vmatpush1.bf16.msra.mxu0 0
        %5122 = vmatprep.subr.bf16.mxu0 0
        %5123 = vmatpush1.bf16.msra.mxu0 0
        %5124 = vmatprep.subr.bf16.mxu0 0
        %5125 = vmatpush1.bf16.msra.mxu0 0
        %5126 = vmatprep.subr.bf16.mxu0 0
        %5127 = vmatpush1.bf16.msra.mxu0 0
        %5128 = vmatprep.subr.bf16.mxu0 0
        %5129 = vmatpush1.bf16.msra.mxu0 0
        %5130 = vmatprep.mubr.bf16.mxu0 0
        %5131 = vmatmul.mubr.bf16.gmra.mrb[0].mxu0 %v4972
        %v5132 = vpop.f32.mrb[0].mxu0
        %v5133 = vadd.f32 0.0, %v5132
        %v5134 = vpop.f32.mrb[0].mxu0
        %v5135 = vadd.f32 0.0, %v5134
        %v5136 = vpop.f32.mrb[0].mxu0
        %v5137 = vpop.f32.mrb[0].mxu0
        %5138 = vdwg.mxu0
        %5139 = vmatprep.subr.bf16.mxu0 %v2271
        %5140 = vmatpush1.bf16.msra.mxu0 %v2270
        %5141 = vmatprep.subr.bf16.mxu0 %v2275
        %5142 = vmatpush1.bf16.msra.mxu0 %v2274
        %5143 = vmatprep.subr.bf16.mxu0 %v2279
        %5144 = vmatpush1.bf16.msra.mxu0 %v2278
        %5145 = vmatprep.subr.bf16.mxu0 %v2283
        %5146 = vmatpush1.bf16.msra.mxu0 %v2282
        %5147 = vmatprep.subr.bf16.mxu0 %v2287
        %5148 = vmatpush1.bf16.msra.mxu0 %v2286
        %5149 = vmatprep.subr.bf16.mxu0 %v2291
        %5150 = vmatpush1.bf16.msra.mxu0 %v2290
        %5151 = vmatprep.subr.bf16.mxu0 %v2295
        %5152 = vmatpush1.bf16.msra.mxu0 %v2294
        %5153 = vmatprep.subr.bf16.mxu0 %v2299
        %5154 = vmatpush1.bf16.msra.mxu0 %v2298
        %5155 = vmatprep.subr.bf16.mxu0 0
        %5156 = vmatpush1.bf16.msra.mxu0 0
        %5157 = vmatprep.subr.bf16.mxu0 0
        %5158 = vmatpush1.bf16.msra.mxu0 0
        %5159 = vmatprep.subr.bf16.mxu0 0
        %5160 = vmatpush1.bf16.msra.mxu0 0
        %5161 = vmatprep.subr.bf16.mxu0 0
        %5162 = vmatpush1.bf16.msra.mxu0 0
        %5163 = vmatprep.subr.bf16.mxu0 0
        %5164 = vmatpush1.bf16.msra.mxu0 0
        %5165 = vmatprep.subr.bf16.mxu0 0
        %5166 = vmatpush1.bf16.msra.mxu0 0
        %5167 = vmatprep.subr.bf16.mxu0 0
        %5168 = vmatpush1.bf16.msra.mxu0 0
        %5169 = vmatprep.subr.bf16.mxu0 0
        %5170 = vmatpush1.bf16.msra.mxu0 0
        %5171 = vmatprep.mubr.bf16.mxu0 0
        %5172 = vmatmul.mubr.bf16.gmra.mrb[0].mxu0 %v4973
        %v5173 = vpop.f32.mrb[0].mxu0
        %v5174 = vadd.f32 0.0, %v5173
        %v5175 = vpop.f32.mrb[0].mxu0
        %v5176 = vadd.f32 0.0, %v5175
        %v5177 = vpop.f32.mrb[0].mxu0
        %v5178 = vpop.f32.mrb[0].mxu0
        %5179 = vdwg.mxu0
        %5180 = vmatprep.subr.bf16.mxu0 %v2273
        %5181 = vmatpush1.bf16.msra.mxu0 %v2272
        %5182 = vmatprep.subr.bf16.mxu0 %v2277
        %5183 = vmatpush1.bf16.msra.mxu0 %v2276
        %5184 = vmatprep.subr.bf16.mxu0 %v2281
        %5185 = vmatpush1.bf16.msra.mxu0 %v2280
        %5186 = vmatprep.subr.bf16.mxu0 %v2285
        %5187 = vmatpush1.bf16.msra.mxu0 %v2284
        %5188 = vmatprep.subr.bf16.mxu0 %v2289
        %5189 = vmatpush1.bf16.msra.mxu0 %v2288
        %5190 = vmatprep.subr.bf16.mxu0 %v2293
        %5191 = vmatpush1.bf16.msra.mxu0 %v2292
        %5192 = vmatprep.subr.bf16.mxu0 %v2297
        %5193 = vmatpush1.bf16.msra.mxu0 %v2296
        %5194 = vmatprep.subr.bf16.mxu0 %v2301
        %5195 = vmatpush1.bf16.msra.mxu0 %v2300
        %5196 = vmatprep.subr.bf16.mxu0 0
        %5197 = vmatpush1.bf16.msra.mxu0 0
        %5198 = vmatprep.subr.bf16.mxu0 0
        %5199 = vmatpush1.bf16.msra.mxu0 0
        %5200 = vmatprep.subr.bf16.mxu0 0
        %5201 = vmatpush1.bf16.msra.mxu0 0
        %5202 = vmatprep.subr.bf16.mxu0 0
        %5203 = vmatpush1.bf16.msra.mxu0 0
        %5204 = vmatprep.subr.bf16.mxu0 0
        %5205 = vmatpush1.bf16.msra.mxu0 0
        %5206 = vmatprep.subr.bf16.mxu0 0
        %5207 = vmatpush1.bf16.msra.mxu0 0
        %5208 = vmatprep.subr.bf16.mxu0 0
        %5209 = vmatpush1.bf16.msra.mxu0 0
        %5210 = vmatprep.subr.bf16.mxu0 0
        %5211 = vmatpush1.bf16.msra.mxu0 0
        %5212 = vmatprep.mubr.bf16.mxu0 0
        %5213 = vmatmul.mubr.bf16.gmra.mrb[0].mxu0 %v4973
        %v5214 = vpop.f32.mrb[0].mxu0
        %v5215 = vadd.f32 0.0, %v5214
        %v5216 = vpop.f32.mrb[0].mxu0
        %v5217 = vadd.f32 0.0, %v5216
        %v5218 = vpop.f32.mrb[0].mxu0
        %v5219 = vpop.f32.mrb[0].mxu0
        %5220 = vdwg.mxu0
        %5221 = vmatprep.subr.bf16.mxu0 %v2513
        %5222 = vmatpush1.bf16.msra.mxu0 %v2512
        %5223 = vmatprep.subr.bf16.mxu0 %v2517
        %5224 = vmatpush1.bf16.msra.mxu0 %v2516
        %5225 = vmatprep.subr.bf16.mxu0 %v2521
        %5226 = vmatpush1.bf16.msra.mxu0 %v2520
        %5227 = vmatprep.subr.bf16.mxu0 %v2525
        %5228 = vmatpush1.bf16.msra.mxu0 %v2524
        %5229 = vmatprep.subr.bf16.mxu0 %v2529
        %5230 = vmatpush1.bf16.msra.mxu0 %v2528
        %5231 = vmatprep.subr.bf16.mxu0 %v2533
        %5232 = vmatpush1.bf16.msra.mxu0 %v2532
        %5233 = vmatprep.subr.bf16.mxu0 %v2537
        %5234 = vmatpush1.bf16.msra.mxu0 %v2536
        %5235 = vmatprep.subr.bf16.mxu0 %v2541
        %5236 = vmatpush1.bf16.msra.mxu0 %v2540
        %5237 = vmatprep.subr.bf16.mxu0 0
        %5238 = vmatpush1.bf16.msra.mxu0 0
        %5239 = vmatprep.subr.bf16.mxu0 0
        %5240 = vmatpush1.bf16.msra.mxu0 0
        %5241 = vmatprep.subr.bf16.mxu0 0
        %5242 = vmatpush1.bf16.msra.mxu0 0
        %5243 = vmatprep.subr.bf16.mxu0 0
        %5244 = vmatpush1.bf16.msra.mxu0 0
        %5245 = vmatprep.subr.bf16.mxu0 0
        %5246 = vmatpush1.bf16.msra.mxu0 0
        %5247 = vmatprep.subr.bf16.mxu0 0
        %5248 = vmatpush1.bf16.msra.mxu0 0
        %5249 = vmatprep.subr.bf16.mxu0 0
        %5250 = vmatpush1.bf16.msra.mxu0 0
        %5251 = vmatprep.subr.bf16.mxu0 0
        %5252 = vmatpush1.bf16.msra.mxu0 0
        %5253 = vmatprep.mubr.bf16.mxu0 0
        %5254 = vmatmul.mubr.bf16.gmra.mrb[0].mxu0 %v4974
        %v5255 = vpop.f32.mrb[0].mxu0
        %v5256 = vadd.f32 0.0, %v5255
        %v5257 = vpop.f32.mrb[0].mxu0
        %v5258 = vadd.f32 0.0, %v5257
        %v5259 = vpop.f32.mrb[0].mxu0
        %v5260 = vpop.f32.mrb[0].mxu0
        %5261 = vdwg.mxu0
        %5262 = vmatprep.subr.bf16.mxu0 %v2515
        %5263 = vmatpush1.bf16.msra.mxu0 %v2514
        %5264 = vmatprep.subr.bf16.mxu0 %v2519
        %5265 = vmatpush1.bf16.msra.mxu0 %v2518
        %5266 = vmatprep.subr.bf16.mxu0 %v2523
        %5267 = vmatpush1.bf16.msra.mxu0 %v2522
        %5268 = vmatprep.subr.bf16.mxu0 %v2527
        %5269 = vmatpush1.bf16.msra.mxu0 %v2526
        %5270 = vmatprep.subr.bf16.mxu0 %v2531
        %5271 = vmatpush1.bf16.msra.mxu0 %v2530
        %5272 = vmatprep.subr.bf16.mxu0 %v2535
        %5273 = vmatpush1.bf16.msra.mxu0 %v2534
        %5274 = vmatprep.subr.bf16.mxu0 %v2539
        %5275 = vmatpush1.bf16.msra.mxu0 %v2538
        %5276 = vmatprep.subr.bf16.mxu0 %v2543
        %5277 = vmatpush1.bf16.msra.mxu0 %v2542
        %5278 = vmatprep.subr.bf16.mxu0 0
        %5279 = vmatpush1.bf16.msra.mxu0 0
        %5280 = vmatprep.subr.bf16.mxu0 0
        %5281 = vmatpush1.bf16.msra.mxu0 0
        %5282 = vmatprep.subr.bf16.mxu0 0
        %5283 = vmatpush1.bf16.msra.mxu0 0
        %5284 = vmatprep.subr.bf16.mxu0 0
        %5285 = vmatpush1.bf16.msra.mxu0 0
        %5286 = vmatprep.subr.bf16.mxu0 0
        %5287 = vmatpush1.bf16.msra.mxu0 0
        %5288 = vmatprep.subr.bf16.mxu0 0
        %5289 = vmatpush1.bf16.msra.mxu0 0
        %5290 = vmatprep.subr.bf16.mxu0 0
        %5291 = vmatpush1.bf16.msra.mxu0 0
        %5292 = vmatprep.subr.bf16.mxu0 0
        %5293 = vmatpush1.bf16.msra.mxu0 0
        %5294 = vmatprep.mubr.bf16.mxu0 0
        %5295 = vmatmul.mubr.bf16.gmra.mrb[0].mxu0 %v4974
        %v5296 = vpop.f32.mrb[0].mxu0
        %v5297 = vadd.f32 0.0, %v5296
        %v5298 = vpop.f32.mrb[0].mxu0
        %v5299 = vadd.f32 0.0, %v5298
        %v5300 = vpop.f32.mrb[0].mxu0
        %v5301 = vpop.f32.mrb[0].mxu0
        %5302 = vdwg.mxu0
        %v5319 = vcombine.low %v5010, %v5012
        %v5320 = vcombine.low %v5051, %v5053
        %v5322 = vunpack.c.l.s4 1983009808
        %v5323 = vunpack.c.0.s8 %v5322
        %v5324 = vlaneseq
        %v5325 = vshrl.u32 %v5324, 7
        %v5326 = vsub.s32 %v5323, %v5325
        %v5327 = vrot.slane %v5319, %v5326
        %v5329 = vunpack.c.l.s4 1983009808
        %v5330 = vunpack.c.0.s8 %v5329
        %v5331 = vlaneseq
        %v5332 = vshrl.u32 %v5331, 7
        %v5333 = vsub.s32 %v5330, %v5332
        %v5334 = vrot.slane %v5320, %v5333
        %v5335 = vcombine.low %v5327, %v5334
        %v5336 = vcombine.low %v5092, %v5094
        %v5337 = vcombine.low %v5133, %v5135
        %v5339 = vunpack.c.l.s4 1983009808
        %v5340 = vunpack.c.0.s8 %v5339
        %v5341 = vlaneseq
        %v5342 = vshrl.u32 %v5341, 7
        %v5343 = vsub.s32 %v5340, %v5342
        %v5344 = vrot.slane %v5336, %v5343
        %v5346 = vunpack.c.l.s4 1983009808
        %v5347 = vunpack.c.0.s8 %v5346
        %v5348 = vlaneseq
        %v5349 = vshrl.u32 %v5348, 7
        %v5350 = vsub.s32 %v5347, %v5349
        %v5351 = vrot.slane %v5337, %v5350
        %v5352 = vcombine.low %v5344, %v5351
        %v5353 = vcombine.low %v5174, %v5176
        %v5354 = vcombine.low %v5215, %v5217
        %v5356 = vunpack.c.l.s4 1983009808
        %v5357 = vunpack.c.0.s8 %v5356
        %v5358 = vlaneseq
        %v5359 = vshrl.u32 %v5358, 7
        %v5360 = vsub.s32 %v5357, %v5359
        %v5361 = vrot.slane %v5353, %v5360
        %v5363 = vunpack.c.l.s4 1983009808
        %v5364 = vunpack.c.0.s8 %v5363
        %v5365 = vlaneseq
        %v5366 = vshrl.u32 %v5365, 7
        %v5367 = vsub.s32 %v5364, %v5366
        %v5368 = vrot.slane %v5354, %v5367
        %v5369 = vcombine.low %v5361, %v5368
        %v5370 = vcombine.low %v5256, %v5258
        %v5371 = vcombine.low %v5297, %v5299
        %v5373 = vunpack.c.l.s4 1983009808
        %v5374 = vunpack.c.0.s8 %v5373
        %v5375 = vlaneseq
        %v5376 = vshrl.u32 %v5375, 7
        %v5377 = vsub.s32 %v5374, %v5376
        %v5378 = vrot.slane %v5370, %v5377
        %v5380 = vunpack.c.l.s4 1983009808
        %v5381 = vunpack.c.0.s8 %v5380
        %v5382 = vlaneseq
        %v5383 = vshrl.u32 %v5382, 7
        %v5384 = vsub.s32 %v5381, %v5383
        %v5385 = vrot.slane %v5371, %v5384
        %v5386 = vcombine.low %v5378, %v5385
        %v5391 = vadd.f32 %v4967, %v5335
        %v5392 = vadd.f32 %v4968, %v5352
        %v5393 = vadd.f32 %v4969, %v5369
        %v5394 = vadd.f32 %v4970, %v5386
        %v5395 = vmul.f32 %v5391, 0.5
        %v5396 = vmul.f32 %v5392, 0.5
        %v5397 = vmul.f32 %v5393, 0.5
        %v5398 = vmul.f32 %v5394, 0.5
        %v5399 = vtanh.pop %v5395
        %v5400 = vtanh.pop %v5396
        %v5401 = vtanh.pop %v5397
        %v5402 = vtanh.pop %v5398
        %v5403 = vadd.f32 %v5399, 1.0
        %v5404 = vadd.f32 %v5400, 1.0
        %v5405 = vadd.f32 %v5401, 1.0
        %v5406 = vadd.f32 %v5402, 1.0
        %v5407 = vmul.f32 %v5403, 0.5
        %v5408 = vmul.f32 %v5404, 0.5
        %v5409 = vmul.f32 %v5405, 0.5
        %v5410 = vmul.f32 %v5406, 0.5
        %v5415 = vrot.slane %v5391, 2
        %v5416 = vrot.slane %v5392, 2
        %v5417 = vrot.slane %v5393, 2
        %v5418 = vrot.slane %v5394, 2
        %v5423 = vmul.f32 %v5415, 0.5
        %v5424 = vmul.f32 %v5416, 0.5
        %v5425 = vmul.f32 %v5417, 0.5
        %v5426 = vmul.f32 %v5418, 0.5
        %v5427 = vtanh.pop %v5423
        %v5428 = vtanh.pop %v5424
        %v5429 = vtanh.pop %v5425
        %v5430 = vtanh.pop %v5426
        %v5431 = vadd.f32 %v5427, 1.0
        %v5432 = vadd.f32 %v5428, 1.0
        %v5433 = vadd.f32 %v5429, 1.0
        %v5434 = vadd.f32 %v5430, 1.0
        %v5435 = vmul.f32 %v5431, 0.5
        %v5436 = vmul.f32 %v5432, 0.5
        %v5437 = vmul.f32 %v5433, 0.5
        %v5438 = vmul.f32 %v5434, 0.5
        %v5439 = vrot.slane %v5391, 4
        %v5440 = vrot.slane %v5392, 4
        %v5441 = vrot.slane %v5393, 4
        %v5442 = vrot.slane %v5394, 4
        %v5447 = vtanh.pop %v5439
        %v5448 = vtanh.pop %v5440
        %v5449 = vtanh.pop %v5441
        %v5450 = vtanh.pop %v5442
        %v5451 = vrot.slane %v5391, 6
        %v5452 = vrot.slane %v5392, 6
        %v5453 = vrot.slane %v5393, 6
        %v5454 = vrot.slane %v5394, 6
        %v5459 = vmul.f32 %v5451, 0.5
        %v5460 = vmul.f32 %v5452, 0.5
        %v5461 = vmul.f32 %v5453, 0.5
        %v5462 = vmul.f32 %v5454, 0.5
        %v5463 = vtanh.pop %v5459
        %v5464 = vtanh.pop %v5460
        %v5465 = vtanh.pop %v5461
        %v5466 = vtanh.pop %v5462
        %v5467 = vadd.f32 %v5463, 1.0
        %v5468 = vadd.f32 %v5464, 1.0
        %v5469 = vadd.f32 %v5465, 1.0
        %v5470 = vadd.f32 %v5466, 1.0
        %v5471 = vmul.f32 %v5467, 0.5
        %v5472 = vmul.f32 %v5468, 0.5
        %v5473 = vmul.f32 %v5469, 0.5
        %v5474 = vmul.f32 %v5470, 0.5
        %v5475 = vmul.f32 %v5435, %v4954
        %v5476 = vmul.f32 %v5436, %v4955
        %v5477 = vmul.f32 %v5437, %v4956
        %v5478 = vmul.f32 %v5438, %v4957
        %v5479 = vmul.f32 %v5407, %v5447
        %v5480 = vmul.f32 %v5408, %v5448
        %v5481 = vmul.f32 %v5409, %v5449
        %v5482 = vmul.f32 %v5410, %v5450
        %v5483 = vadd.f32 %v5475, %v5479
        %v5484 = vadd.f32 %v5476, %v5480
        %v5485 = vadd.f32 %v5477, %v5481
        %v5486 = vadd.f32 %v5478, %v5482
        %v5487 = vtanh.pop %v5483
        %v5488 = vtanh.pop %v5484
        %v5489 = vtanh.pop %v5485
        %v5490 = vtanh.pop %v5486
        %v5491 = vmul.f32 %v5471, %v5487
        %v5492 = vmul.f32 %v5472, %v5488
        %v5493 = vmul.f32 %v5473, %v5489
        %v5494 = vmul.f32 %v5474, %v5490
        %s5495 = scalar_lea.vmem [#allocation2], 192
        %v5496 = vld [vmem:[%s5495] sm:$0xff]
        %v5497 = vld [vmem:[%s5495 + $0x8] sm:$0xff]
        %v5498 = vld [vmem:[%s5495 + $0x10] sm:$0xff]
        %v5499 = vld [vmem:[%s5495 + $0x18] sm:$0xff]
        %v5500 = vpack.c.bf16 %v5491, %v5491
        %v5501 = vpack.c.bf16 %v5492, %v5492
        %v5502 = vpack.c.bf16 %v5493, %v5493
        %v5503 = vpack.c.bf16 %v5494, %v5494
        %5504 = vmatprep.subr.bf16.mxu0 %v1787
        %5505 = vmatpush1.bf16.msra.mxu0 %v1786
        %5506 = vmatprep.subr.bf16.mxu0 %v1791
        %5507 = vmatpush1.bf16.msra.mxu0 %v1790
        %5508 = vmatprep.subr.bf16.mxu0 %v1795
        %5509 = vmatpush1.bf16.msra.mxu0 %v1794
        %5510 = vmatprep.subr.bf16.mxu0 %v1799
        %5511 = vmatpush1.bf16.msra.mxu0 %v1798
        %5512 = vmatprep.subr.bf16.mxu0 %v1803
        %5513 = vmatpush1.bf16.msra.mxu0 %v1802
        %5514 = vmatprep.subr.bf16.mxu0 %v1807
        %5515 = vmatpush1.bf16.msra.mxu0 %v1806
        %5516 = vmatprep.subr.bf16.mxu0 %v1811
        %5517 = vmatpush1.bf16.msra.mxu0 %v1810
        %5518 = vmatprep.subr.bf16.mxu0 %v1815
        %5519 = vmatpush1.bf16.msra.mxu0 %v1814
        %5520 = vmatprep.subr.bf16.mxu0 0
        %5521 = vmatpush1.bf16.msra.mxu0 0
        %5522 = vmatprep.subr.bf16.mxu0 0
        %5523 = vmatpush1.bf16.msra.mxu0 0
        %5524 = vmatprep.subr.bf16.mxu0 0
        %5525 = vmatpush1.bf16.msra.mxu0 0
        %5526 = vmatprep.subr.bf16.mxu0 0
        %5527 = vmatpush1.bf16.msra.mxu0 0
        %5528 = vmatprep.subr.bf16.mxu0 0
        %5529 = vmatpush1.bf16.msra.mxu0 0
        %5530 = vmatprep.subr.bf16.mxu0 0
        %5531 = vmatpush1.bf16.msra.mxu0 0
        %5532 = vmatprep.subr.bf16.mxu0 0
        %5533 = vmatpush1.bf16.msra.mxu0 0
        %5534 = vmatprep.subr.bf16.mxu0 0
        %5535 = vmatpush1.bf16.msra.mxu0 0
        %5536 = vmatprep.mubr.bf16.mxu0 0
        %5537 = vmatmul.mubr.bf16.gmra.mrb[0].mxu0 %v5500
        %v5538 = vpop.f32.mrb[0].mxu0
        %v5539 = vadd.f32 0.0, %v5538
        %v5540 = vpop.f32.mrb[0].mxu0
        %v5541 = vadd.f32 0.0, %v5540
        %v5542 = vpop.f32.mrb[0].mxu0
        %v5543 = vpop.f32.mrb[0].mxu0
        %5544 = vdwg.mxu0
        %5545 = vmatprep.subr.bf16.mxu0 %v1789
        %5546 = vmatpush1.bf16.msra.mxu0 %v1788
        %5547 = vmatprep.subr.bf16.mxu0 %v1793
        %5548 = vmatpush1.bf16.msra.mxu0 %v1792
        %5549 = vmatprep.subr.bf16.mxu0 %v1797
        %5550 = vmatpush1.bf16.msra.mxu0 %v1796
        %5551 = vmatprep.subr.bf16.mxu0 %v1801
        %5552 = vmatpush1.bf16.msra.mxu0 %v1800
        %5553 = vmatprep.subr.bf16.mxu0 %v1805
        %5554 = vmatpush1.bf16.msra.mxu0 %v1804
        %5555 = vmatprep.subr.bf16.mxu0 %v1809
        %5556 = vmatpush1.bf16.msra.mxu0 %v1808
        %5557 = vmatprep.subr.bf16.mxu0 %v1813
        %5558 = vmatpush1.bf16.msra.mxu0 %v1812
        %5559 = vmatprep.subr.bf16.mxu0 %v1817
        %5560 = vmatpush1.bf16.msra.mxu0 %v1816
        %5561 = vmatprep.subr.bf16.mxu0 0
        %5562 = vmatpush1.bf16.msra.mxu0 0
        %5563 = vmatprep.subr.bf16.mxu0 0
        %5564 = vmatpush1.bf16.msra.mxu0 0
        %5565 = vmatprep.subr.bf16.mxu0 0
        %5566 = vmatpush1.bf16.msra.mxu0 0
        %5567 = vmatprep.subr.bf16.mxu0 0
        %5568 = vmatpush1.bf16.msra.mxu0 0
        %5569 = vmatprep.subr.bf16.mxu0 0
        %5570 = vmatpush1.bf16.msra.mxu0 0
        %5571 = vmatprep.subr.bf16.mxu0 0
        %5572 = vmatpush1.bf16.msra.mxu0 0
        %5573 = vmatprep.subr.bf16.mxu0 0
        %5574 = vmatpush1.bf16.msra.mxu0 0
        %5575 = vmatprep.subr.bf16.mxu0 0
        %5576 = vmatpush1.bf16.msra.mxu0 0
        %5577 = vmatprep.mubr.bf16.mxu0 0
        %5578 = vmatmul.mubr.bf16.gmra.mrb[0].mxu0 %v5500
        %v5579 = vpop.f32.mrb[0].mxu0
        %v5580 = vadd.f32 0.0, %v5579
        %v5581 = vpop.f32.mrb[0].mxu0
        %v5582 = vadd.f32 0.0, %v5581
        %v5583 = vpop.f32.mrb[0].mxu0
        %v5584 = vpop.f32.mrb[0].mxu0
        %5585 = vdwg.mxu0
        %5586 = vmatprep.subr.bf16.mxu0 %v2029
        %5587 = vmatpush1.bf16.msra.mxu0 %v2028
        %5588 = vmatprep.subr.bf16.mxu0 %v2033
        %5589 = vmatpush1.bf16.msra.mxu0 %v2032
        %5590 = vmatprep.subr.bf16.mxu0 %v2037
        %5591 = vmatpush1.bf16.msra.mxu0 %v2036
        %5592 = vmatprep.subr.bf16.mxu0 %v2041
        %5593 = vmatpush1.bf16.msra.mxu0 %v2040
        %5594 = vmatprep.subr.bf16.mxu0 %v2045
        %5595 = vmatpush1.bf16.msra.mxu0 %v2044
        %5596 = vmatprep.subr.bf16.mxu0 %v2049
        %5597 = vmatpush1.bf16.msra.mxu0 %v2048
        %5598 = vmatprep.subr.bf16.mxu0 %v2053
        %5599 = vmatpush1.bf16.msra.mxu0 %v2052
        %5600 = vmatprep.subr.bf16.mxu0 %v2057
        %5601 = vmatpush1.bf16.msra.mxu0 %v2056
        %5602 = vmatprep.subr.bf16.mxu0 0
        %5603 = vmatpush1.bf16.msra.mxu0 0
        %5604 = vmatprep.subr.bf16.mxu0 0
        %5605 = vmatpush1.bf16.msra.mxu0 0
        %5606 = vmatprep.subr.bf16.mxu0 0
        %5607 = vmatpush1.bf16.msra.mxu0 0
        %5608 = vmatprep.subr.bf16.mxu0 0
        %5609 = vmatpush1.bf16.msra.mxu0 0
        %5610 = vmatprep.subr.bf16.mxu0 0
        %5611 = vmatpush1.bf16.msra.mxu0 0
        %5612 = vmatprep.subr.bf16.mxu0 0
        %5613 = vmatpush1.bf16.msra.mxu0 0
        %5614 = vmatprep.subr.bf16.mxu0 0
        %5615 = vmatpush1.bf16.msra.mxu0 0
        %5616 = vmatprep.subr.bf16.mxu0 0
        %5617 = vmatpush1.bf16.msra.mxu0 0
        %5618 = vmatprep.mubr.bf16.mxu0 0
        %5619 = vmatmul.mubr.bf16.gmra.mrb[0].mxu0 %v5501
        %v5620 = vpop.f32.mrb[0].mxu0
        %v5621 = vadd.f32 0.0, %v5620
        %v5622 = vpop.f32.mrb[0].mxu0
        %v5623 = vadd.f32 0.0, %v5622
        %v5624 = vpop.f32.mrb[0].mxu0
        %v5625 = vpop.f32.mrb[0].mxu0
        %5626 = vdwg.mxu0
        %5627 = vmatprep.subr.bf16.mxu0 %v2031
        %5628 = vmatpush1.bf16.msra.mxu0 %v2030
        %5629 = vmatprep.subr.bf16.mxu0 %v2035
        %5630 = vmatpush1.bf16.msra.mxu0 %v2034
        %5631 = vmatprep.subr.bf16.mxu0 %v2039
        %5632 = vmatpush1.bf16.msra.mxu0 %v2038
        %5633 = vmatprep.subr.bf16.mxu0 %v2043
        %5634 = vmatpush1.bf16.msra.mxu0 %v2042
        %5635 = vmatprep.subr.bf16.mxu0 %v2047
        %5636 = vmatpush1.bf16.msra.mxu0 %v2046
        %5637 = vmatprep.subr.bf16.mxu0 %v2051
        %5638 = vmatpush1.bf16.msra.mxu0 %v2050
        %5639 = vmatprep.subr.bf16.mxu0 %v2055
        %5640 = vmatpush1.bf16.msra.mxu0 %v2054
        %5641 = vmatprep.subr.bf16.mxu0 %v2059
        %5642 = vmatpush1.bf16.msra.mxu0 %v2058
        %5643 = vmatprep.subr.bf16.mxu0 0
        %5644 = vmatpush1.bf16.msra.mxu0 0
        %5645 = vmatprep.subr.bf16.mxu0 0
        %5646 = vmatpush1.bf16.msra.mxu0 0
        %5647 = vmatprep.subr.bf16.mxu0 0
        %5648 = vmatpush1.bf16.msra.mxu0 0
        %5649 = vmatprep.subr.bf16.mxu0 0
        %5650 = vmatpush1.bf16.msra.mxu0 0
        %5651 = vmatprep.subr.bf16.mxu0 0
        %5652 = vmatpush1.bf16.msra.mxu0 0
        %5653 = vmatprep.subr.bf16.mxu0 0
        %5654 = vmatpush1.bf16.msra.mxu0 0
        %5655 = vmatprep.subr.bf16.mxu0 0
        %5656 = vmatpush1.bf16.msra.mxu0 0
        %5657 = vmatprep.subr.bf16.mxu0 0
        %5658 = vmatpush1.bf16.msra.mxu0 0
        %5659 = vmatprep.mubr.bf16.mxu0 0
        %5660 = vmatmul.mubr.bf16.gmra.mrb[0].mxu0 %v5501
        %v5661 = vpop.f32.mrb[0].mxu0
        %v5662 = vadd.f32 0.0, %v5661
        %v5663 = vpop.f32.mrb[0].mxu0
        %v5664 = vadd.f32 0.0, %v5663
        %v5665 = vpop.f32.mrb[0].mxu0
        %v5666 = vpop.f32.mrb[0].mxu0
        %5667 = vdwg.mxu0
        %5668 = vmatprep.subr.bf16.mxu0 %v2271
        %5669 = vmatpush1.bf16.msra.mxu0 %v2270
        %5670 = vmatprep.subr.bf16.mxu0 %v2275
        %5671 = vmatpush1.bf16.msra.mxu0 %v2274
        %5672 = vmatprep.subr.bf16.mxu0 %v2279
        %5673 = vmatpush1.bf16.msra.mxu0 %v2278
        %5674 = vmatprep.subr.bf16.mxu0 %v2283
        %5675 = vmatpush1.bf16.msra.mxu0 %v2282
        %5676 = vmatprep.subr.bf16.mxu0 %v2287
        %5677 = vmatpush1.bf16.msra.mxu0 %v2286
        %5678 = vmatprep.subr.bf16.mxu0 %v2291
        %5679 = vmatpush1.bf16.msra.mxu0 %v2290
        %5680 = vmatprep.subr.bf16.mxu0 %v2295
        %5681 = vmatpush1.bf16.msra.mxu0 %v2294
        %5682 = vmatprep.subr.bf16.mxu0 %v2299
        %5683 = vmatpush1.bf16.msra.mxu0 %v2298
        %5684 = vmatprep.subr.bf16.mxu0 0
        %5685 = vmatpush1.bf16.msra.mxu0 0
        %5686 = vmatprep.subr.bf16.mxu0 0
        %5687 = vmatpush1.bf16.msra.mxu0 0
        %5688 = vmatprep.subr.bf16.mxu0 0
        %5689 = vmatpush1.bf16.msra.mxu0 0
        %5690 = vmatprep.subr.bf16.mxu0 0
        %5691 = vmatpush1.bf16.msra.mxu0 0
        %5692 = vmatprep.subr.bf16.mxu0 0
        %5693 = vmatpush1.bf16.msra.mxu0 0
        %5694 = vmatprep.subr.bf16.mxu0 0
        %5695 = vmatpush1.bf16.msra.mxu0 0
        %5696 = vmatprep.subr.bf16.mxu0 0
        %5697 = vmatpush1.bf16.msra.mxu0 0
        %5698 = vmatprep.subr.bf16.mxu0 0
        %5699 = vmatpush1.bf16.msra.mxu0 0
        %5700 = vmatprep.mubr.bf16.mxu0 0
        %5701 = vmatmul.mubr.bf16.gmra.mrb[0].mxu0 %v5502
        %v5702 = vpop.f32.mrb[0].mxu0
        %v5703 = vadd.f32 0.0, %v5702
        %v5704 = vpop.f32.mrb[0].mxu0
        %v5705 = vadd.f32 0.0, %v5704
        %v5706 = vpop.f32.mrb[0].mxu0
        %v5707 = vpop.f32.mrb[0].mxu0
        %5708 = vdwg.mxu0
        %5709 = vmatprep.subr.bf16.mxu0 %v2273
        %5710 = vmatpush1.bf16.msra.mxu0 %v2272
        %5711 = vmatprep.subr.bf16.mxu0 %v2277
        %5712 = vmatpush1.bf16.msra.mxu0 %v2276
        %5713 = vmatprep.subr.bf16.mxu0 %v2281
        %5714 = vmatpush1.bf16.msra.mxu0 %v2280
        %5715 = vmatprep.subr.bf16.mxu0 %v2285
        %5716 = vmatpush1.bf16.msra.mxu0 %v2284
        %5717 = vmatprep.subr.bf16.mxu0 %v2289
        %5718 = vmatpush1.bf16.msra.mxu0 %v2288
        %5719 = vmatprep.subr.bf16.mxu0 %v2293
        %5720 = vmatpush1.bf16.msra.mxu0 %v2292
        %5721 = vmatprep.subr.bf16.mxu0 %v2297
        %5722 = vmatpush1.bf16.msra.mxu0 %v2296
        %5723 = vmatprep.subr.bf16.mxu0 %v2301
        %5724 = vmatpush1.bf16.msra.mxu0 %v2300
        %5725 = vmatprep.subr.bf16.mxu0 0
        %5726 = vmatpush1.bf16.msra.mxu0 0
        %5727 = vmatprep.subr.bf16.mxu0 0
        %5728 = vmatpush1.bf16.msra.mxu0 0
        %5729 = vmatprep.subr.bf16.mxu0 0
        %5730 = vmatpush1.bf16.msra.mxu0 0
        %5731 = vmatprep.subr.bf16.mxu0 0
        %5732 = vmatpush1.bf16.msra.mxu0 0
        %5733 = vmatprep.subr.bf16.mxu0 0
        %5734 = vmatpush1.bf16.msra.mxu0 0
        %5735 = vmatprep.subr.bf16.mxu0 0
        %5736 = vmatpush1.bf16.msra.mxu0 0
        %5737 = vmatprep.subr.bf16.mxu0 0
        %5738 = vmatpush1.bf16.msra.mxu0 0
        %5739 = vmatprep.subr.bf16.mxu0 0
        %5740 = vmatpush1.bf16.msra.mxu0 0
        %5741 = vmatprep.mubr.bf16.mxu0 0
        %5742 = vmatmul.mubr.bf16.gmra.mrb[0].mxu0 %v5502
        %v5743 = vpop.f32.mrb[0].mxu0
        %v5744 = vadd.f32 0.0, %v5743
        %v5745 = vpop.f32.mrb[0].mxu0
        %v5746 = vadd.f32 0.0, %v5745
        %v5747 = vpop.f32.mrb[0].mxu0
        %v5748 = vpop.f32.mrb[0].mxu0
        %5749 = vdwg.mxu0
        %5750 = vmatprep.subr.bf16.mxu0 %v2513
        %5751 = vmatpush1.bf16.msra.mxu0 %v2512
        %5752 = vmatprep.subr.bf16.mxu0 %v2517
        %5753 = vmatpush1.bf16.msra.mxu0 %v2516
        %5754 = vmatprep.subr.bf16.mxu0 %v2521
        %5755 = vmatpush1.bf16.msra.mxu0 %v2520
        %5756 = vmatprep.subr.bf16.mxu0 %v2525
        %5757 = vmatpush1.bf16.msra.mxu0 %v2524
        %5758 = vmatprep.subr.bf16.mxu0 %v2529
        %5759 = vmatpush1.bf16.msra.mxu0 %v2528
        %5760 = vmatprep.subr.bf16.mxu0 %v2533
        %5761 = vmatpush1.bf16.msra.mxu0 %v2532
        %5762 = vmatprep.subr.bf16.mxu0 %v2537
        %5763 = vmatpush1.bf16.msra.mxu0 %v2536
        %5764 = vmatprep.subr.bf16.mxu0 %v2541
        %5765 = vmatpush1.bf16.msra.mxu0 %v2540
        %5766 = vmatprep.subr.bf16.mxu0 0
        %5767 = vmatpush1.bf16.msra.mxu0 0
        %5768 = vmatprep.subr.bf16.mxu0 0
        %5769 = vmatpush1.bf16.msra.mxu0 0
        %5770 = vmatprep.subr.bf16.mxu0 0
        %5771 = vmatpush1.bf16.msra.mxu0 0
        %5772 = vmatprep.subr.bf16.mxu0 0
        %5773 = vmatpush1.bf16.msra.mxu0 0
        %5774 = vmatprep.subr.bf16.mxu0 0
        %5775 = vmatpush1.bf16.msra.mxu0 0
        %5776 = vmatprep.subr.bf16.mxu0 0
        %5777 = vmatpush1.bf16.msra.mxu0 0
        %5778 = vmatprep.subr.bf16.mxu0 0
        %5779 = vmatpush1.bf16.msra.mxu0 0
        %5780 = vmatprep.subr.bf16.mxu0 0
        %5781 = vmatpush1.bf16.msra.mxu0 0
        %5782 = vmatprep.mubr.bf16.mxu0 0
        %5783 = vmatmul.mubr.bf16.gmra.mrb[0].mxu0 %v5503
        %v5784 = vpop.f32.mrb[0].mxu0
        %v5785 = vadd.f32 0.0, %v5784
        %v5786 = vpop.f32.mrb[0].mxu0
        %v5787 = vadd.f32 0.0, %v5786
        %v5788 = vpop.f32.mrb[0].mxu0
        %v5789 = vpop.f32.mrb[0].mxu0
        %5790 = vdwg.mxu0
        %5791 = vmatprep.subr.bf16.mxu0 %v2515
        %5792 = vmatpush1.bf16.msra.mxu0 %v2514
        %5793 = vmatprep.subr.bf16.mxu0 %v2519
        %5794 = vmatpush1.bf16.msra.mxu0 %v2518
        %5795 = vmatprep.subr.bf16.mxu0 %v2523
        %5796 = vmatpush1.bf16.msra.mxu0 %v2522
        %5797 = vmatprep.subr.bf16.mxu0 %v2527
        %5798 = vmatpush1.bf16.msra.mxu0 %v2526
        %5799 = vmatprep.subr.bf16.mxu0 %v2531
        %5800 = vmatpush1.bf16.msra.mxu0 %v2530
        %5801 = vmatprep.subr.bf16.mxu0 %v2535
        %5802 = vmatpush1.bf16.msra.mxu0 %v2534
        %5803 = vmatprep.subr.bf16.mxu0 %v2539
        %5804 = vmatpush1.bf16.msra.mxu0 %v2538
        %5805 = vmatprep.subr.bf16.mxu0 %v2543
        %5806 = vmatpush1.bf16.msra.mxu0 %v2542
        %5807 = vmatprep.subr.bf16.mxu0 0
        %5808 = vmatpush1.bf16.msra.mxu0 0
        %5809 = vmatprep.subr.bf16.mxu0 0
        %5810 = vmatpush1.bf16.msra.mxu0 0
        %5811 = vmatprep.subr.bf16.mxu0 0
        %5812 = vmatpush1.bf16.msra.mxu0 0
        %5813 = vmatprep.subr.bf16.mxu0 0
        %5814 = vmatpush1.bf16.msra.mxu0 0
        %5815 = vmatprep.subr.bf16.mxu0 0
        %5816 = vmatpush1.bf16.msra.mxu0 0
        %5817 = vmatprep.subr.bf16.mxu0 0
        %5818 = vmatpush1.bf16.msra.mxu0 0
        %5819 = vmatprep.subr.bf16.mxu0 0
        %5820 = vmatpush1.bf16.msra.mxu0 0
        %5821 = vmatprep.subr.bf16.mxu0 0
        %5822 = vmatpush1.bf16.msra.mxu0 0
        %5823 = vmatprep.mubr.bf16.mxu0 0
        %5824 = vmatmul.mubr.bf16.gmra.mrb[0].mxu0 %v5503
        %v5825 = vpop.f32.mrb[0].mxu0
        %v5826 = vadd.f32 0.0, %v5825
        %v5827 = vpop.f32.mrb[0].mxu0
        %v5828 = vadd.f32 0.0, %v5827
        %v5829 = vpop.f32.mrb[0].mxu0
        %v5830 = vpop.f32.mrb[0].mxu0
        %5831 = vdwg.mxu0
        %v5848 = vcombine.low %v5539, %v5541
        %v5849 = vcombine.low %v5580, %v5582
        %v5851 = vunpack.c.l.s4 1983009808
        %v5852 = vunpack.c.0.s8 %v5851
        %v5853 = vlaneseq
        %v5854 = vshrl.u32 %v5853, 7
        %v5855 = vsub.s32 %v5852, %v5854
        %v5856 = vrot.slane %v5848, %v5855
        %v5858 = vunpack.c.l.s4 1983009808
        %v5859 = vunpack.c.0.s8 %v5858
        %v5860 = vlaneseq
        %v5861 = vshrl.u32 %v5860, 7
        %v5862 = vsub.s32 %v5859, %v5861
        %v5863 = vrot.slane %v5849, %v5862
        %v5864 = vcombine.low %v5856, %v5863
        %v5865 = vcombine.low %v5621, %v5623
        %v5866 = vcombine.low %v5662, %v5664
        %v5868 = vunpack.c.l.s4 1983009808
        %v5869 = vunpack.c.0.s8 %v5868
        %v5870 = vlaneseq
        %v5871 = vshrl.u32 %v5870, 7
        %v5872 = vsub.s32 %v5869, %v5871
        %v5873 = vrot.slane %v5865, %v5872
        %v5875 = vunpack.c.l.s4 1983009808
        %v5876 = vunpack.c.0.s8 %v5875
        %v5877 = vlaneseq
        %v5878 = vshrl.u32 %v5877, 7
        %v5879 = vsub.s32 %v5876, %v5878
        %v5880 = vrot.slane %v5866, %v5879
        %v5881 = vcombine.low %v5873, %v5880
        %v5882 = vcombine.low %v5703, %v5705
        %v5883 = vcombine.low %v5744, %v5746
        %v5885 = vunpack.c.l.s4 1983009808
        %v5886 = vunpack.c.0.s8 %v5885
        %v5887 = vlaneseq
        %v5888 = vshrl.u32 %v5887, 7
        %v5889 = vsub.s32 %v5886, %v5888
        %v5890 = vrot.slane %v5882, %v5889
        %v5892 = vunpack.c.l.s4 1983009808
        %v5893 = vunpack.c.0.s8 %v5892
        %v5894 = vlaneseq
        %v5895 = vshrl.u32 %v5894, 7
        %v5896 = vsub.s32 %v5893, %v5895
        %v5897 = vrot.slane %v5883, %v5896
        %v5898 = vcombine.low %v5890, %v5897
        %v5899 = vcombine.low %v5785, %v5787
        %v5900 = vcombine.low %v5826, %v5828
        %v5902 = vunpack.c.l.s4 1983009808
        %v5903 = vunpack.c.0.s8 %v5902
        %v5904 = vlaneseq
        %v5905 = vshrl.u32 %v5904, 7
        %v5906 = vsub.s32 %v5903, %v5905
        %v5907 = vrot.slane %v5899, %v5906
        %v5909 = vunpack.c.l.s4 1983009808
        %v5910 = vunpack.c.0.s8 %v5909
        %v5911 = vlaneseq
        %v5912 = vshrl.u32 %v5911, 7
        %v5913 = vsub.s32 %v5910, %v5912
        %v5914 = vrot.slane %v5900, %v5913
        %v5915 = vcombine.low %v5907, %v5914
        %v5920 = vadd.f32 %v5496, %v5864
        %v5921 = vadd.f32 %v5497, %v5881
        %v5922 = vadd.f32 %v5498, %v5898
        %v5923 = vadd.f32 %v5499, %v5915
        %v5924 = vmul.f32 %v5920, 0.5
        %v5925 = vmul.f32 %v5921, 0.5
        %v5926 = vmul.f32 %v5922, 0.5
        %v5927 = vmul.f32 %v5923, 0.5
        %v5928 = vtanh.pop %v5924
        %v5929 = vtanh.pop %v5925
        %v5930 = vtanh.pop %v5926
        %v5931 = vtanh.pop %v5927
        %v5932 = vadd.f32 %v5928, 1.0
        %v5933 = vadd.f32 %v5929, 1.0
        %v5934 = vadd.f32 %v5930, 1.0
        %v5935 = vadd.f32 %v5931, 1.0
        %v5936 = vmul.f32 %v5932, 0.5
        %v5937 = vmul.f32 %v5933, 0.5
        %v5938 = vmul.f32 %v5934, 0.5
        %v5939 = vmul.f32 %v5935, 0.5
        %v5944 = vrot.slane %v5920, 2
        %v5945 = vrot.slane %v5921, 2
        %v5946 = vrot.slane %v5922, 2
        %v5947 = vrot.slane %v5923, 2
        %v5952 = vmul.f32 %v5944, 0.5
        %v5953 = vmul.f32 %v5945, 0.5
        %v5954 = vmul.f32 %v5946, 0.5
        %v5955 = vmul.f32 %v5947, 0.5
        %v5956 = vtanh.pop %v5952
        %v5957 = vtanh.pop %v5953
        %v5958 = vtanh.pop %v5954
        %v5959 = vtanh.pop %v5955
        %v5960 = vadd.f32 %v5956, 1.0
        %v5961 = vadd.f32 %v5957, 1.0
        %v5962 = vadd.f32 %v5958, 1.0
        %v5963 = vadd.f32 %v5959, 1.0
        %v5964 = vmul.f32 %v5960, 0.5
        %v5965 = vmul.f32 %v5961, 0.5
        %v5966 = vmul.f32 %v5962, 0.5
        %v5967 = vmul.f32 %v5963, 0.5
        %v5968 = vrot.slane %v5920, 4
        %v5969 = vrot.slane %v5921, 4
        %v5970 = vrot.slane %v5922, 4
        %v5971 = vrot.slane %v5923, 4
        %v5976 = vtanh.pop %v5968
        %v5977 = vtanh.pop %v5969
        %v5978 = vtanh.pop %v5970
        %v5979 = vtanh.pop %v5971
        %v5980 = vrot.slane %v5920, 6
        %v5981 = vrot.slane %v5921, 6
        %v5982 = vrot.slane %v5922, 6
        %v5983 = vrot.slane %v5923, 6
        %v5988 = vmul.f32 %v5980, 0.5
        %v5989 = vmul.f32 %v5981, 0.5
        %v5990 = vmul.f32 %v5982, 0.5
        %v5991 = vmul.f32 %v5983, 0.5
        %v5992 = vtanh.pop %v5988
        %v5993 = vtanh.pop %v5989
        %v5994 = vtanh.pop %v5990
        %v5995 = vtanh.pop %v5991
        %v5996 = vadd.f32 %v5992, 1.0
        %v5997 = vadd.f32 %v5993, 1.0
        %v5998 = vadd.f32 %v5994, 1.0
        %v5999 = vadd.f32 %v5995, 1.0
        %v6000 = vmul.f32 %v5996, 0.5
        %v6001 = vmul.f32 %v5997, 0.5
        %v6002 = vmul.f32 %v5998, 0.5
        %v6003 = vmul.f32 %v5999, 0.5
        %v6004 = vmul.f32 %v5964, %v5483
        %v6005 = vmul.f32 %v5965, %v5484
        %v6006 = vmul.f32 %v5966, %v5485
        %v6007 = vmul.f32 %v5967, %v5486
        %v6008 = vmul.f32 %v5936, %v5976
        %v6009 = vmul.f32 %v5937, %v5977
        %v6010 = vmul.f32 %v5938, %v5978
        %v6011 = vmul.f32 %v5939, %v5979
        %v6012 = vadd.f32 %v6004, %v6008
        %v6013 = vadd.f32 %v6005, %v6009
        %v6014 = vadd.f32 %v6006, %v6010
        %v6015 = vadd.f32 %v6007, %v6011
        %v6016 = vtanh.pop %v6012
        %v6017 = vtanh.pop %v6013
        %v6018 = vtanh.pop %v6014
        %v6019 = vtanh.pop %v6015
        %v6020 = vmul.f32 %v6000, %v6016
        %v6021 = vmul.f32 %v6001, %v6017
        %v6022 = vmul.f32 %v6002, %v6018
        %v6023 = vmul.f32 %v6003, %v6019
        %s6024 = scalar_lea.vmem [#allocation2], 224
        %v6025 = vld [vmem:[%s6024] sm:$0xff]
        %v6026 = vld [vmem:[%s6024 + $0x8] sm:$0xff]
        %v6027 = vld [vmem:[%s6024 + $0x10] sm:$0xff]
        %v6028 = vld [vmem:[%s6024 + $0x18] sm:$0xff]
        %v6029 = vpack.c.bf16 %v6020, %v6020
        %v6030 = vpack.c.bf16 %v6021, %v6021
        %v6031 = vpack.c.bf16 %v6022, %v6022
        %v6032 = vpack.c.bf16 %v6023, %v6023
        %6033 = vmatprep.subr.bf16.mxu0 %v1787
        %6034 = vmatpush1.bf16.msra.mxu0 %v1786
        %6035 = vmatprep.subr.bf16.mxu0 %v1791
        %6036 = vmatpush1.bf16.msra.mxu0 %v1790
        %6037 = vmatprep.subr.bf16.mxu0 %v1795
        %6038 = vmatpush1.bf16.msra.mxu0 %v1794
        %6039 = vmatprep.subr.bf16.mxu0 %v1799
        %6040 = vmatpush1.bf16.msra.mxu0 %v1798
        %6041 = vmatprep.subr.bf16.mxu0 %v1803
        %6042 = vmatpush1.bf16.msra.mxu0 %v1802
        %6043 = vmatprep.subr.bf16.mxu0 %v1807
        %6044 = vmatpush1.bf16.msra.mxu0 %v1806
        %6045 = vmatprep.subr.bf16.mxu0 %v1811
        %6046 = vmatpush1.bf16.msra.mxu0 %v1810
        %6047 = vmatprep.subr.bf16.mxu0 %v1815
        %6048 = vmatpush1.bf16.msra.mxu0 %v1814
        %6049 = vmatprep.subr.bf16.mxu0 0
        %6050 = vmatpush1.bf16.msra.mxu0 0
        %6051 = vmatprep.subr.bf16.mxu0 0
        %6052 = vmatpush1.bf16.msra.mxu0 0
        %6053 = vmatprep.subr.bf16.mxu0 0
        %6054 = vmatpush1.bf16.msra.mxu0 0
        %6055 = vmatprep.subr.bf16.mxu0 0
        %6056 = vmatpush1.bf16.msra.mxu0 0
        %6057 = vmatprep.subr.bf16.mxu0 0
        %6058 = vmatpush1.bf16.msra.mxu0 0
        %6059 = vmatprep.subr.bf16.mxu0 0
        %6060 = vmatpush1.bf16.msra.mxu0 0
        %6061 = vmatprep.subr.bf16.mxu0 0
        %6062 = vmatpush1.bf16.msra.mxu0 0
        %6063 = vmatprep.subr.bf16.mxu0 0
        %6064 = vmatpush1.bf16.msra.mxu0 0
        %6065 = vmatprep.mubr.bf16.mxu0 0
        %6066 = vmatmul.mubr.bf16.gmra.mrb[0].mxu0 %v6029
        %v6067 = vpop.f32.mrb[0].mxu0
        %v6068 = vadd.f32 0.0, %v6067
        %v6069 = vpop.f32.mrb[0].mxu0
        %v6070 = vadd.f32 0.0, %v6069
        %v6071 = vpop.f32.mrb[0].mxu0
        %v6072 = vpop.f32.mrb[0].mxu0
        %6073 = vdwg.mxu0
        %6074 = vmatprep.subr.bf16.mxu0 %v1789
        %6075 = vmatpush1.bf16.msra.mxu0 %v1788
        %6076 = vmatprep.subr.bf16.mxu0 %v1793
        %6077 = vmatpush1.bf16.msra.mxu0 %v1792
        %6078 = vmatprep.subr.bf16.mxu0 %v1797
        %6079 = vmatpush1.bf16.msra.mxu0 %v1796
        %6080 = vmatprep.subr.bf16.mxu0 %v1801
        %6081 = vmatpush1.bf16.msra.mxu0 %v1800
        %6082 = vmatprep.subr.bf16.mxu0 %v1805
        %6083 = vmatpush1.bf16.msra.mxu0 %v1804
        %6084 = vmatprep.subr.bf16.mxu0 %v1809
        %6085 = vmatpush1.bf16.msra.mxu0 %v1808
        %6086 = vmatprep.subr.bf16.mxu0 %v1813
        %6087 = vmatpush1.bf16.msra.mxu0 %v1812
        %6088 = vmatprep.subr.bf16.mxu0 %v1817
        %6089 = vmatpush1.bf16.msra.mxu0 %v1816
        %6090 = vmatprep.subr.bf16.mxu0 0
        %6091 = vmatpush1.bf16.msra.mxu0 0
        %6092 = vmatprep.subr.bf16.mxu0 0
        %6093 = vmatpush1.bf16.msra.mxu0 0
        %6094 = vmatprep.subr.bf16.mxu0 0
        %6095 = vmatpush1.bf16.msra.mxu0 0
        %6096 = vmatprep.subr.bf16.mxu0 0
        %6097 = vmatpush1.bf16.msra.mxu0 0
        %6098 = vmatprep.subr.bf16.mxu0 0
        %6099 = vmatpush1.bf16.msra.mxu0 0
        %6100 = vmatprep.subr.bf16.mxu0 0
        %6101 = vmatpush1.bf16.msra.mxu0 0
        %6102 = vmatprep.subr.bf16.mxu0 0
        %6103 = vmatpush1.bf16.msra.mxu0 0
        %6104 = vmatprep.subr.bf16.mxu0 0
        %6105 = vmatpush1.bf16.msra.mxu0 0
        %6106 = vmatprep.mubr.bf16.mxu0 0
        %6107 = vmatmul.mubr.bf16.gmra.mrb[0].mxu0 %v6029
        %v6108 = vpop.f32.mrb[0].mxu0
        %v6109 = vadd.f32 0.0, %v6108
        %v6110 = vpop.f32.mrb[0].mxu0
        %v6111 = vadd.f32 0.0, %v6110
        %v6112 = vpop.f32.mrb[0].mxu0
        %v6113 = vpop.f32.mrb[0].mxu0
        %6114 = vdwg.mxu0
        %6115 = vmatprep.subr.bf16.mxu0 %v2029
        %6116 = vmatpush1.bf16.msra.mxu0 %v2028
        %6117 = vmatprep.subr.bf16.mxu0 %v2033
        %6118 = vmatpush1.bf16.msra.mxu0 %v2032
        %6119 = vmatprep.subr.bf16.mxu0 %v2037
        %6120 = vmatpush1.bf16.msra.mxu0 %v2036
        %6121 = vmatprep.subr.bf16.mxu0 %v2041
        %6122 = vmatpush1.bf16.msra.mxu0 %v2040
        %6123 = vmatprep.subr.bf16.mxu0 %v2045
        %6124 = vmatpush1.bf16.msra.mxu0 %v2044
        %6125 = vmatprep.subr.bf16.mxu0 %v2049
        %6126 = vmatpush1.bf16.msra.mxu0 %v2048
        %6127 = vmatprep.subr.bf16.mxu0 %v2053
        %6128 = vmatpush1.bf16.msra.mxu0 %v2052
        %6129 = vmatprep.subr.bf16.mxu0 %v2057
        %6130 = vmatpush1.bf16.msra.mxu0 %v2056
        %6131 = vmatprep.subr.bf16.mxu0 0
        %6132 = vmatpush1.bf16.msra.mxu0 0
        %6133 = vmatprep.subr.bf16.mxu0 0
        %6134 = vmatpush1.bf16.msra.mxu0 0
        %6135 = vmatprep.subr.bf16.mxu0 0
        %6136 = vmatpush1.bf16.msra.mxu0 0
        %6137 = vmatprep.subr.bf16.mxu0 0
        %6138 = vmatpush1.bf16.msra.mxu0 0
        %6139 = vmatprep.subr.bf16.mxu0 0
        %6140 = vmatpush1.bf16.msra.mxu0 0
        %6141 = vmatprep.subr.bf16.mxu0 0
        %6142 = vmatpush1.bf16.msra.mxu0 0
        %6143 = vmatprep.subr.bf16.mxu0 0
        %6144 = vmatpush1.bf16.msra.mxu0 0
        %6145 = vmatprep.subr.bf16.mxu0 0
        %6146 = vmatpush1.bf16.msra.mxu0 0
        %6147 = vmatprep.mubr.bf16.mxu0 0
        %6148 = vmatmul.mubr.bf16.gmra.mrb[0].mxu0 %v6030
        %v6149 = vpop.f32.mrb[0].mxu0
        %v6150 = vadd.f32 0.0, %v6149
        %v6151 = vpop.f32.mrb[0].mxu0
        %v6152 = vadd.f32 0.0, %v6151
        %v6153 = vpop.f32.mrb[0].mxu0
        %v6154 = vpop.f32.mrb[0].mxu0
        %6155 = vdwg.mxu0
        %6156 = vmatprep.subr.bf16.mxu0 %v2031
        %6157 = vmatpush1.bf16.msra.mxu0 %v2030
        %6158 = vmatprep.subr.bf16.mxu0 %v2035
        %6159 = vmatpush1.bf16.msra.mxu0 %v2034
        %6160 = vmatprep.subr.bf16.mxu0 %v2039
        %6161 = vmatpush1.bf16.msra.mxu0 %v2038
        %6162 = vmatprep.subr.bf16.mxu0 %v2043
        %6163 = vmatpush1.bf16.msra.mxu0 %v2042
        %6164 = vmatprep.subr.bf16.mxu0 %v2047
        %6165 = vmatpush1.bf16.msra.mxu0 %v2046
        %6166 = vmatprep.subr.bf16.mxu0 %v2051
        %6167 = vmatpush1.bf16.msra.mxu0 %v2050
        %6168 = vmatprep.subr.bf16.mxu0 %v2055
        %6169 = vmatpush1.bf16.msra.mxu0 %v2054
        %6170 = vmatprep.subr.bf16.mxu0 %v2059
        %6171 = vmatpush1.bf16.msra.mxu0 %v2058
        %6172 = vmatprep.subr.bf16.mxu0 0
        %6173 = vmatpush1.bf16.msra.mxu0 0
        %6174 = vmatprep.subr.bf16.mxu0 0
        %6175 = vmatpush1.bf16.msra.mxu0 0
        %6176 = vmatprep.subr.bf16.mxu0 0
        %6177 = vmatpush1.bf16.msra.mxu0 0
        %6178 = vmatprep.subr.bf16.mxu0 0
        %6179 = vmatpush1.bf16.msra.mxu0 0
        %6180 = vmatprep.subr.bf16.mxu0 0
        %6181 = vmatpush1.bf16.msra.mxu0 0
        %6182 = vmatprep.subr.bf16.mxu0 0
        %6183 = vmatpush1.bf16.msra.mxu0 0
        %6184 = vmatprep.subr.bf16.mxu0 0
        %6185 = vmatpush1.bf16.msra.mxu0 0
        %6186 = vmatprep.subr.bf16.mxu0 0
        %6187 = vmatpush1.bf16.msra.mxu0 0
        %6188 = vmatprep.mubr.bf16.mxu0 0
        %6189 = vmatmul.mubr.bf16.gmra.mrb[0].mxu0 %v6030
        %v6190 = vpop.f32.mrb[0].mxu0
        %v6191 = vadd.f32 0.0, %v6190
        %v6192 = vpop.f32.mrb[0].mxu0
        %v6193 = vadd.f32 0.0, %v6192
        %v6194 = vpop.f32.mrb[0].mxu0
        %v6195 = vpop.f32.mrb[0].mxu0
        %6196 = vdwg.mxu0
        %6197 = vmatprep.subr.bf16.mxu0 %v2271
        %6198 = vmatpush1.bf16.msra.mxu0 %v2270
        %6199 = vmatprep.subr.bf16.mxu0 %v2275
        %6200 = vmatpush1.bf16.msra.mxu0 %v2274
        %6201 = vmatprep.subr.bf16.mxu0 %v2279
        %6202 = vmatpush1.bf16.msra.mxu0 %v2278
        %6203 = vmatprep.subr.bf16.mxu0 %v2283
        %6204 = vmatpush1.bf16.msra.mxu0 %v2282
        %6205 = vmatprep.subr.bf16.mxu0 %v2287
        %6206 = vmatpush1.bf16.msra.mxu0 %v2286
        %6207 = vmatprep.subr.bf16.mxu0 %v2291
        %6208 = vmatpush1.bf16.msra.mxu0 %v2290
        %6209 = vmatprep.subr.bf16.mxu0 %v2295
        %6210 = vmatpush1.bf16.msra.mxu0 %v2294
        %6211 = vmatprep.subr.bf16.mxu0 %v2299
        %6212 = vmatpush1.bf16.msra.mxu0 %v2298
        %6213 = vmatprep.subr.bf16.mxu0 0
        %6214 = vmatpush1.bf16.msra.mxu0 0
        %6215 = vmatprep.subr.bf16.mxu0 0
        %6216 = vmatpush1.bf16.msra.mxu0 0
        %6217 = vmatprep.subr.bf16.mxu0 0
        %6218 = vmatpush1.bf16.msra.mxu0 0
        %6219 = vmatprep.subr.bf16.mxu0 0
        %6220 = vmatpush1.bf16.msra.mxu0 0
        %6221 = vmatprep.subr.bf16.mxu0 0
        %6222 = vmatpush1.bf16.msra.mxu0 0
        %6223 = vmatprep.subr.bf16.mxu0 0
        %6224 = vmatpush1.bf16.msra.mxu0 0
        %6225 = vmatprep.subr.bf16.mxu0 0
        %6226 = vmatpush1.bf16.msra.mxu0 0
        %6227 = vmatprep.subr.bf16.mxu0 0
        %6228 = vmatpush1.bf16.msra.mxu0 0
        %6229 = vmatprep.mubr.bf16.mxu0 0
        %6230 = vmatmul.mubr.bf16.gmra.mrb[0].mxu0 %v6031
        %v6231 = vpop.f32.mrb[0].mxu0
        %v6232 = vadd.f32 0.0, %v6231
        %v6233 = vpop.f32.mrb[0].mxu0
        %v6234 = vadd.f32 0.0, %v6233
        %v6235 = vpop.f32.mrb[0].mxu0
        %v6236 = vpop.f32.mrb[0].mxu0
        %6237 = vdwg.mxu0
        %6238 = vmatprep.subr.bf16.mxu0 %v2273
        %6239 = vmatpush1.bf16.msra.mxu0 %v2272
        %6240 = vmatprep.subr.bf16.mxu0 %v2277
        %6241 = vmatpush1.bf16.msra.mxu0 %v2276
        %6242 = vmatprep.subr.bf16.mxu0 %v2281
        %6243 = vmatpush1.bf16.msra.mxu0 %v2280
        %6244 = vmatprep.subr.bf16.mxu0 %v2285
        %6245 = vmatpush1.bf16.msra.mxu0 %v2284
        %6246 = vmatprep.subr.bf16.mxu0 %v2289
        %6247 = vmatpush1.bf16.msra.mxu0 %v2288
        %6248 = vmatprep.subr.bf16.mxu0 %v2293
        %6249 = vmatpush1.bf16.msra.mxu0 %v2292
        %6250 = vmatprep.subr.bf16.mxu0 %v2297
        %6251 = vmatpush1.bf16.msra.mxu0 %v2296
        %6252 = vmatprep.subr.bf16.mxu0 %v2301
        %6253 = vmatpush1.bf16.msra.mxu0 %v2300
        %6254 = vmatprep.subr.bf16.mxu0 0
        %6255 = vmatpush1.bf16.msra.mxu0 0
        %6256 = vmatprep.subr.bf16.mxu0 0
        %6257 = vmatpush1.bf16.msra.mxu0 0
        %6258 = vmatprep.subr.bf16.mxu0 0
        %6259 = vmatpush1.bf16.msra.mxu0 0
        %6260 = vmatprep.subr.bf16.mxu0 0
        %6261 = vmatpush1.bf16.msra.mxu0 0
        %6262 = vmatprep.subr.bf16.mxu0 0
        %6263 = vmatpush1.bf16.msra.mxu0 0
        %6264 = vmatprep.subr.bf16.mxu0 0
        %6265 = vmatpush1.bf16.msra.mxu0 0
        %6266 = vmatprep.subr.bf16.mxu0 0
        %6267 = vmatpush1.bf16.msra.mxu0 0
        %6268 = vmatprep.subr.bf16.mxu0 0
        %6269 = vmatpush1.bf16.msra.mxu0 0
        %6270 = vmatprep.mubr.bf16.mxu0 0
        %6271 = vmatmul.mubr.bf16.gmra.mrb[0].mxu0 %v6031
        %v6272 = vpop.f32.mrb[0].mxu0
        %v6273 = vadd.f32 0.0, %v6272
        %v6274 = vpop.f32.mrb[0].mxu0
        %v6275 = vadd.f32 0.0, %v6274
        %v6276 = vpop.f32.mrb[0].mxu0
        %v6277 = vpop.f32.mrb[0].mxu0
        %6278 = vdwg.mxu0
        %6279 = vmatprep.subr.bf16.mxu0 %v2513
        %6280 = vmatpush1.bf16.msra.mxu0 %v2512
        %6281 = vmatprep.subr.bf16.mxu0 %v2517
        %6282 = vmatpush1.bf16.msra.mxu0 %v2516
        %6283 = vmatprep.subr.bf16.mxu0 %v2521
        %6284 = vmatpush1.bf16.msra.mxu0 %v2520
        %6285 = vmatprep.subr.bf16.mxu0 %v2525
        %6286 = vmatpush1.bf16.msra.mxu0 %v2524
        %6287 = vmatprep.subr.bf16.mxu0 %v2529
        %6288 = vmatpush1.bf16.msra.mxu0 %v2528
        %6289 = vmatprep.subr.bf16.mxu0 %v2533
        %6290 = vmatpush1.bf16.msra.mxu0 %v2532
        %6291 = vmatprep.subr.bf16.mxu0 %v2537
        %6292 = vmatpush1.bf16.msra.mxu0 %v2536
        %6293 = vmatprep.subr.bf16.mxu0 %v2541
        %6294 = vmatpush1.bf16.msra.mxu0 %v2540
        %6295 = vmatprep.subr.bf16.mxu0 0
        %6296 = vmatpush1.bf16.msra.mxu0 0
        %6297 = vmatprep.subr.bf16.mxu0 0
        %6298 = vmatpush1.bf16.msra.mxu0 0
        %6299 = vmatprep.subr.bf16.mxu0 0
        %6300 = vmatpush1.bf16.msra.mxu0 0
        %6301 = vmatprep.subr.bf16.mxu0 0
        %6302 = vmatpush1.bf16.msra.mxu0 0
        %6303 = vmatprep.subr.bf16.mxu0 0
        %6304 = vmatpush1.bf16.msra.mxu0 0
        %6305 = vmatprep.subr.bf16.mxu0 0
        %6306 = vmatpush1.bf16.msra.mxu0 0
        %6307 = vmatprep.subr.bf16.mxu0 0
        %6308 = vmatpush1.bf16.msra.mxu0 0
        %6309 = vmatprep.subr.bf16.mxu0 0
        %6310 = vmatpush1.bf16.msra.mxu0 0
        %6311 = vmatprep.mubr.bf16.mxu0 0
        %6312 = vmatmul.mubr.bf16.gmra.mrb[0].mxu0 %v6032
        %v6313 = vpop.f32.mrb[0].mxu0
        %v6314 = vadd.f32 0.0, %v6313
        %v6315 = vpop.f32.mrb[0].mxu0
        %v6316 = vadd.f32 0.0, %v6315
        %v6317 = vpop.f32.mrb[0].mxu0
        %v6318 = vpop.f32.mrb[0].mxu0
        %6319 = vdwg.mxu0
        %6320 = vmatprep.subr.bf16.mxu0 %v2515
        %6321 = vmatpush1.bf16.msra.mxu0 %v2514
        %6322 = vmatprep.subr.bf16.mxu0 %v2519
        %6323 = vmatpush1.bf16.msra.mxu0 %v2518
        %6324 = vmatprep.subr.bf16.mxu0 %v2523
        %6325 = vmatpush1.bf16.msra.mxu0 %v2522
        %6326 = vmatprep.subr.bf16.mxu0 %v2527
        %6327 = vmatpush1.bf16.msra.mxu0 %v2526
        %6328 = vmatprep.subr.bf16.mxu0 %v2531
        %6329 = vmatpush1.bf16.msra.mxu0 %v2530
        %6330 = vmatprep.subr.bf16.mxu0 %v2535
        %6331 = vmatpush1.bf16.msra.mxu0 %v2534
        %6332 = vmatprep.subr.bf16.mxu0 %v2539
        %6333 = vmatpush1.bf16.msra.mxu0 %v2538
        %6334 = vmatprep.subr.bf16.mxu0 %v2543
        %6335 = vmatpush1.bf16.msra.mxu0 %v2542
        %6336 = vmatprep.subr.bf16.mxu0 0
        %6337 = vmatpush1.bf16.msra.mxu0 0
        %6338 = vmatprep.subr.bf16.mxu0 0
        %6339 = vmatpush1.bf16.msra.mxu0 0
        %6340 = vmatprep.subr.bf16.mxu0 0
        %6341 = vmatpush1.bf16.msra.mxu0 0
        %6342 = vmatprep.subr.bf16.mxu0 0
        %6343 = vmatpush1.bf16.msra.mxu0 0
        %6344 = vmatprep.subr.bf16.mxu0 0
        %6345 = vmatpush1.bf16.msra.mxu0 0
        %6346 = vmatprep.subr.bf16.mxu0 0
        %6347 = vmatpush1.bf16.msra.mxu0 0
        %6348 = vmatprep.subr.bf16.mxu0 0
        %6349 = vmatpush1.bf16.msra.mxu0 0
        %6350 = vmatprep.subr.bf16.mxu0 0
        %6351 = vmatpush1.bf16.msra.mxu0 0
        %6352 = vmatprep.mubr.bf16.mxu0 0
        %6353 = vmatmul.mubr.bf16.gmra.mrb[0].mxu0 %v6032
        %v6354 = vpop.f32.mrb[0].mxu0
        %v6355 = vadd.f32 0.0, %v6354
        %v6356 = vpop.f32.mrb[0].mxu0
        %v6357 = vadd.f32 0.0, %v6356
        %v6358 = vpop.f32.mrb[0].mxu0
        %v6359 = vpop.f32.mrb[0].mxu0
        %6360 = vdwg.mxu0
        %v6377 = vcombine.low %v6068, %v6070
        %v6378 = vcombine.low %v6109, %v6111
        %v6380 = vunpack.c.l.s4 1983009808
        %v6381 = vunpack.c.0.s8 %v6380
        %v6382 = vlaneseq
        %v6383 = vshrl.u32 %v6382, 7
        %v6384 = vsub.s32 %v6381, %v6383
        %v6385 = vrot.slane %v6377, %v6384
        %v6387 = vunpack.c.l.s4 1983009808
        %v6388 = vunpack.c.0.s8 %v6387
        %v6389 = vlaneseq
        %v6390 = vshrl.u32 %v6389, 7
        %v6391 = vsub.s32 %v6388, %v6390
        %v6392 = vrot.slane %v6378, %v6391
        %v6393 = vcombine.low %v6385, %v6392
        %v6394 = vcombine.low %v6150, %v6152
        %v6395 = vcombine.low %v6191, %v6193
        %v6397 = vunpack.c.l.s4 1983009808
        %v6398 = vunpack.c.0.s8 %v6397
        %v6399 = vlaneseq
        %v6400 = vshrl.u32 %v6399, 7
        %v6401 = vsub.s32 %v6398, %v6400
        %v6402 = vrot.slane %v6394, %v6401
        %v6404 = vunpack.c.l.s4 1983009808
        %v6405 = vunpack.c.0.s8 %v6404
        %v6406 = vlaneseq
        %v6407 = vshrl.u32 %v6406, 7
        %v6408 = vsub.s32 %v6405, %v6407
        %v6409 = vrot.slane %v6395, %v6408
        %v6410 = vcombine.low %v6402, %v6409
        %v6411 = vcombine.low %v6232, %v6234
        %v6412 = vcombine.low %v6273, %v6275
        %v6414 = vunpack.c.l.s4 1983009808
        %v6415 = vunpack.c.0.s8 %v6414
        %v6416 = vlaneseq
        %v6417 = vshrl.u32 %v6416, 7
        %v6418 = vsub.s32 %v6415, %v6417
        %v6419 = vrot.slane %v6411, %v6418
        %v6421 = vunpack.c.l.s4 1983009808
        %v6422 = vunpack.c.0.s8 %v6421
        %v6423 = vlaneseq
        %v6424 = vshrl.u32 %v6423, 7
        %v6425 = vsub.s32 %v6422, %v6424
        %v6426 = vrot.slane %v6412, %v6425
        %v6427 = vcombine.low %v6419, %v6426
        %v6428 = vcombine.low %v6314, %v6316
        %v6429 = vcombine.low %v6355, %v6357
        %v6431 = vunpack.c.l.s4 1983009808
        %v6432 = vunpack.c.0.s8 %v6431
        %v6433 = vlaneseq
        %v6434 = vshrl.u32 %v6433, 7
        %v6435 = vsub.s32 %v6432, %v6434
        %v6436 = vrot.slane %v6428, %v6435
        %v6438 = vunpack.c.l.s4 1983009808
        %v6439 = vunpack.c.0.s8 %v6438
        %v6440 = vlaneseq
        %v6441 = vshrl.u32 %v6440, 7
        %v6442 = vsub.s32 %v6439, %v6441
        %v6443 = vrot.slane %v6429, %v6442
        %v6444 = vcombine.low %v6436, %v6443
        %v6449 = vadd.f32 %v6025, %v6393
        %v6450 = vadd.f32 %v6026, %v6410
        %v6451 = vadd.f32 %v6027, %v6427
        %v6452 = vadd.f32 %v6028, %v6444
        %v6453 = vmul.f32 %v6449, 0.5
        %v6454 = vmul.f32 %v6450, 0.5
        %v6455 = vmul.f32 %v6451, 0.5
        %v6456 = vmul.f32 %v6452, 0.5
        %v6457 = vtanh.pop %v6453
        %v6458 = vtanh.pop %v6454
        %v6459 = vtanh.pop %v6455
        %v6460 = vtanh.pop %v6456
        %v6461 = vadd.f32 %v6457, 1.0
        %v6462 = vadd.f32 %v6458, 1.0
        %v6463 = vadd.f32 %v6459, 1.0
        %v6464 = vadd.f32 %v6460, 1.0
        %v6465 = vmul.f32 %v6461, 0.5
        %v6466 = vmul.f32 %v6462, 0.5
        %v6467 = vmul.f32 %v6463, 0.5
        %v6468 = vmul.f32 %v6464, 0.5
        %v6473 = vrot.slane %v6449, 2
        %v6474 = vrot.slane %v6450, 2
        %v6475 = vrot.slane %v6451, 2
        %v6476 = vrot.slane %v6452, 2
        %v6481 = vmul.f32 %v6473, 0.5
        %v6482 = vmul.f32 %v6474, 0.5
        %v6483 = vmul.f32 %v6475, 0.5
        %v6484 = vmul.f32 %v6476, 0.5
        %v6485 = vtanh.pop %v6481
        %v6486 = vtanh.pop %v6482
        %v6487 = vtanh.pop %v6483
        %v6488 = vtanh.pop %v6484
        %v6489 = vadd.f32 %v6485, 1.0
        %v6490 = vadd.f32 %v6486, 1.0
        %v6491 = vadd.f32 %v6487, 1.0
        %v6492 = vadd.f32 %v6488, 1.0
        %v6493 = vmul.f32 %v6489, 0.5
        %v6494 = vmul.f32 %v6490, 0.5
        %v6495 = vmul.f32 %v6491, 0.5
        %v6496 = vmul.f32 %v6492, 0.5
        %v6497 = vrot.slane %v6449, 4
        %v6498 = vrot.slane %v6450, 4
        %v6499 = vrot.slane %v6451, 4
        %v6500 = vrot.slane %v6452, 4
        %v6505 = vtanh.pop %v6497
        %v6506 = vtanh.pop %v6498
        %v6507 = vtanh.pop %v6499
        %v6508 = vtanh.pop %v6500
        %v6509 = vrot.slane %v6449, 6
        %v6510 = vrot.slane %v6450, 6
        %v6511 = vrot.slane %v6451, 6
        %v6512 = vrot.slane %v6452, 6
        %v6517 = vmul.f32 %v6509, 0.5
        %v6518 = vmul.f32 %v6510, 0.5
        %v6519 = vmul.f32 %v6511, 0.5
        %v6520 = vmul.f32 %v6512, 0.5
        %v6521 = vtanh.pop %v6517
        %v6522 = vtanh.pop %v6518
        %v6523 = vtanh.pop %v6519
        %v6524 = vtanh.pop %v6520
        %v6525 = vadd.f32 %v6521, 1.0
        %v6526 = vadd.f32 %v6522, 1.0
        %v6527 = vadd.f32 %v6523, 1.0
        %v6528 = vadd.f32 %v6524, 1.0
        %v6529 = vmul.f32 %v6525, 0.5
        %v6530 = vmul.f32 %v6526, 0.5
        %v6531 = vmul.f32 %v6527, 0.5
        %v6532 = vmul.f32 %v6528, 0.5
        %v6533 = vmul.f32 %v6493, %v6012
        %v6534 = vmul.f32 %v6494, %v6013
        %v6535 = vmul.f32 %v6495, %v6014
        %v6536 = vmul.f32 %v6496, %v6015
        %v6537 = vmul.f32 %v6465, %v6505
        %v6538 = vmul.f32 %v6466, %v6506
        %v6539 = vmul.f32 %v6467, %v6507
        %v6540 = vmul.f32 %v6468, %v6508
        %v6541 = vadd.f32 %v6533, %v6537
        %v6542 = vadd.f32 %v6534, %v6538
        %v6543 = vadd.f32 %v6535, %v6539
        %v6544 = vadd.f32 %v6536, %v6540
        %v6545 = vtanh.pop %v6541
        %v6546 = vtanh.pop %v6542
        %v6547 = vtanh.pop %v6543
        %v6548 = vtanh.pop %v6544
        %v6549 = vmul.f32 %v6529, %v6545
        %v6550 = vmul.f32 %v6530, %v6546
        %v6551 = vmul.f32 %v6531, %v6547
        %v6552 = vmul.f32 %v6532, %v6548
        %6553 = vst [vmem:[#allocation3] sm:$0x3] %v6549
        %6554 = vst [vmem:[#allocation3 + $0x2] sm:$0x3] %v6550
        %6555 = vst [vmem:[#allocation3 + $0x4] sm:$0x3] %v6551
        %6556 = vst [vmem:[#allocation3 + $0x6] sm:$0x3] %v6552
        %6557 = vst [vmem:[#allocation4] sm:$0x3] %v6541
        %6558 = vst [vmem:[#allocation4 + $0x2] sm:$0x3] %v6542
        %6559 = vst [vmem:[#allocation4 + $0x4] sm:$0x3] %v6543
        %6560 = vst [vmem:[#allocation4 + $0x6] sm:$0x3] %v6544
        %p6561 = scmp.eq.s32.totalorder %s18, 1
        // Predicated region
        $region49: #{node_forward.1} parent=43 // pred_check
          %p6562 = pneg %p6561
        $region50: #{node_forward.1} parent=43 // pred_check_branch
          %6564 = sbr.rel (%p6562) target = $region52
        $region51: #{node_forward.1} parent=43 // pred_region
          %v6565 = vld [vmem:[%s5] sm:$0x1]
          %v6567 = vlaneseq
          %v6568 = vshrl.u32 %v6567, 7
          %v6569 = vsub.s32 0, %v6568
          %v6570 = vrot.slane %v6565, %v6569
          %v6572 = vadd.f32 %v6570, 0.0
          %v6573 = vpack.c.bf16 %v6549, %v6549
          %v6574 = vld [vmem:[%s4] sm:$0xf]
          %v6575 = vld [vmem:[%s4 + $0x4] sm:$0xf]
          %v6576 = vld [vmem:[%s4 + $0x8] sm:$0xf]
          %v6577 = vld [vmem:[%s4 + $0xc] sm:$0xf]
          %v6578 = vld [vmem:[%s4 + $0x10] sm:$0xf]
          %v6579 = vld [vmem:[%s4 + $0x14] sm:$0xf]
          %v6580 = vld [vmem:[%s4 + $0x18] sm:$0xf]
          %v6581 = vld [vmem:[%s4 + $0x1c] sm:$0xf]
          %v6582 = vld [vmem:[%s4 + $0x20] sm:$0xf]
          %v6583 = vld [vmem:[%s4 + $0x24] sm:$0xf]
          %v6584 = vld [vmem:[%s4 + $0x28] sm:$0xf]
          %v6585 = vld [vmem:[%s4 + $0x2c] sm:$0xf]
          %v6586 = vld [vmem:[%s4 + $0x30] sm:$0xf]
          %v6587 = vld [vmem:[%s4 + $0x34] sm:$0xf]
          %v6588 = vld [vmem:[%s4 + $0x38] sm:$0xf]
          %v6589 = vld [vmem:[%s4 + $0x3c] sm:$0xf]
          %v6606 = vunpack.c.l.b16 %v6574
          %v6607 = vunpack.c.l.b16 %v6575
          %v6608 = vunpack.c.l.b16 %v6576
          %v6609 = vunpack.c.l.b16 %v6577
          %v6610 = vunpack.c.l.b16 %v6578
          %v6611 = vunpack.c.l.b16 %v6579
          %v6612 = vunpack.c.l.b16 %v6580
          %v6613 = vunpack.c.l.b16 %v6581
          %v6614 = vunpack.c.l.b16 %v6582
          %v6615 = vunpack.c.l.b16 %v6583
          %v6616 = vunpack.c.l.b16 %v6584
          %v6617 = vunpack.c.l.b16 %v6585
          %v6618 = vunpack.c.l.b16 %v6586
          %v6619 = vunpack.c.l.b16 %v6587
          %v6620 = vunpack.c.l.b16 %v6588
          %v6621 = vunpack.c.l.b16 %v6589
          %v6622 = vpack.c.b16 %v6607, %v6606
          %v6623 = vpack.c.b16 %v6609, %v6608
          %v6624 = vpack.c.b16 %v6611, %v6610
          %v6625 = vpack.c.b16 %v6613, %v6612
          %v6626 = vpack.c.b16 %v6615, %v6614
          %v6627 = vpack.c.b16 %v6617, %v6616
          %v6628 = vpack.c.b16 %v6619, %v6618
          %v6629 = vpack.c.b16 %v6621, %v6620
          %6638 = vmatprep.subr.bf16.mxu0 0
          %6639 = vmatpush1.bf16.msra.mxu0 %v6622
          %6640 = vmatprep.subr.bf16.mxu0 0
          %6641 = vmatpush1.bf16.msra.mxu0 %v6623
          %6642 = vmatprep.subr.bf16.mxu0 0
          %6643 = vmatpush1.bf16.msra.mxu0 %v6624
          %6644 = vmatprep.subr.bf16.mxu0 0
          %6645 = vmatpush1.bf16.msra.mxu0 %v6625
          %6646 = vmatprep.subr.bf16.mxu0 0
          %6647 = vmatpush1.bf16.msra.mxu0 %v6626
          %6648 = vmatprep.subr.bf16.mxu0 0
          %6649 = vmatpush1.bf16.msra.mxu0 %v6627
          %6650 = vmatprep.subr.bf16.mxu0 0
          %6651 = vmatpush1.bf16.msra.mxu0 %v6628
          %6652 = vmatprep.subr.bf16.mxu0 0
          %6653 = vmatpush1.bf16.msra.mxu0 %v6629
          %6654 = vmatprep.subr.bf16.mxu0 0
          %6655 = vmatpush1.bf16.msra.mxu0 0
          %6656 = vmatprep.subr.bf16.mxu0 0
          %6657 = vmatpush1.bf16.msra.mxu0 0
          %6658 = vmatprep.subr.bf16.mxu0 0
          %6659 = vmatpush1.bf16.msra.mxu0 0
          %6660 = vmatprep.subr.bf16.mxu0 0
          %6661 = vmatpush1.bf16.msra.mxu0 0
          %6662 = vmatprep.subr.bf16.mxu0 0
          %6663 = vmatpush1.bf16.msra.mxu0 0
          %6664 = vmatprep.subr.bf16.mxu0 0
          %6665 = vmatpush1.bf16.msra.mxu0 0
          %6666 = vmatprep.subr.bf16.mxu0 0
          %6667 = vmatpush1.bf16.msra.mxu0 0
          %6668 = vmatprep.subr.bf16.mxu0 0
          %6669 = vmatpush1.bf16.msra.mxu0 0
          %6670 = vmatprep.mubr.bf16.mxu0 0
          %6671 = vmatmul.mubr.bf16.gmra.mrb[0].mxu0 %v6573
          %v6672 = vpop.f32.mrb[0].mxu0
          %v6673 = vadd.f32 0.0, %v6672
          %v6674 = vpop.f32.mrb[0].mxu0
          %v6675 = vpop.f32.mrb[0].mxu0
          %v6676 = vpop.f32.mrb[0].mxu0
          %6677 = vdwg.mxu0
          %v6678 = vadd.f32 %v6572, %v6673
          %v6679 = vpack.c.bf16 %v6550, %v6550
          %s6680 = scalar_lea.vmem %s4, 64
          %v6681 = vld [vmem:[%s6680] sm:$0xf]
          %v6682 = vld [vmem:[%s6680 + $0x4] sm:$0xf]
          %v6683 = vld [vmem:[%s6680 + $0x8] sm:$0xf]
          %v6684 = vld [vmem:[%s6680 + $0xc] sm:$0xf]
          %v6685 = vld [vmem:[%s6680 + $0x10] sm:$0xf]
          %v6686 = vld [vmem:[%s6680 + $0x14] sm:$0xf]
          %v6687 = vld [vmem:[%s6680 + $0x18] sm:$0xf]
          %v6688 = vld [vmem:[%s6680 + $0x1c] sm:$0xf]
          %v6689 = vld [vmem:[%s6680 + $0x20] sm:$0xf]
          %v6690 = vld [vmem:[%s6680 + $0x24] sm:$0xf]
          %v6691 = vld [vmem:[%s6680 + $0x28] sm:$0xf]
          %v6692 = vld [vmem:[%s6680 + $0x2c] sm:$0xf]
          %v6693 = vld [vmem:[%s6680 + $0x30] sm:$0xf]
          %v6694 = vld [vmem:[%s6680 + $0x34] sm:$0xf]
          %v6695 = vld [vmem:[%s6680 + $0x38] sm:$0xf]
          %v6696 = vld [vmem:[%s6680 + $0x3c] sm:$0xf]
          %v6713 = vunpack.c.l.b16 %v6681
          %v6714 = vunpack.c.l.b16 %v6682
          %v6715 = vunpack.c.l.b16 %v6683
          %v6716 = vunpack.c.l.b16 %v6684
          %v6717 = vunpack.c.l.b16 %v6685
          %v6718 = vunpack.c.l.b16 %v6686
          %v6719 = vunpack.c.l.b16 %v6687
          %v6720 = vunpack.c.l.b16 %v6688
          %v6721 = vunpack.c.l.b16 %v6689
          %v6722 = vunpack.c.l.b16 %v6690
          %v6723 = vunpack.c.l.b16 %v6691
          %v6724 = vunpack.c.l.b16 %v6692
          %v6725 = vunpack.c.l.b16 %v6693
          %v6726 = vunpack.c.l.b16 %v6694
          %v6727 = vunpack.c.l.b16 %v6695
          %v6728 = vunpack.c.l.b16 %v6696
          %v6729 = vpack.c.b16 %v6714, %v6713
          %v6730 = vpack.c.b16 %v6716, %v6715
          %v6731 = vpack.c.b16 %v6718, %v6717
          %v6732 = vpack.c.b16 %v6720, %v6719
          %v6733 = vpack.c.b16 %v6722, %v6721
          %v6734 = vpack.c.b16 %v6724, %v6723
          %v6735 = vpack.c.b16 %v6726, %v6725
          %v6736 = vpack.c.b16 %v6728, %v6727
          %6745 = vmatprep.subr.bf16.mxu0 0
          %6746 = vmatpush1.bf16.msra.mxu0 %v6729
          %6747 = vmatprep.subr.bf16.mxu0 0
          %6748 = vmatpush1.bf16.msra.mxu0 %v6730
          %6749 = vmatprep.subr.bf16.mxu0 0
          %6750 = vmatpush1.bf16.msra.mxu0 %v6731
          %6751 = vmatprep.subr.bf16.mxu0 0
          %6752 = vmatpush1.bf16.msra.mxu0 %v6732
          %6753 = vmatprep.subr.bf16.mxu0 0
          %6754 = vmatpush1.bf16.msra.mxu0 %v6733
          %6755 = vmatprep.subr.bf16.mxu0 0
          %6756 = vmatpush1.bf16.msra.mxu0 %v6734
          %6757 = vmatprep.subr.bf16.mxu0 0
          %6758 = vmatpush1.bf16.msra.mxu0 %v6735
          %6759 = vmatprep.subr.bf16.mxu0 0
          %6760 = vmatpush1.bf16.msra.mxu0 %v6736
          %6761 = vmatprep.subr.bf16.mxu0 0
          %6762 = vmatpush1.bf16.msra.mxu0 0
          %6763 = vmatprep.subr.bf16.mxu0 0
          %6764 = vmatpush1.bf16.msra.mxu0 0
          %6765 = vmatprep.subr.bf16.mxu0 0
          %6766 = vmatpush1.bf16.msra.mxu0 0
          %6767 = vmatprep.subr.bf16.mxu0 0
          %6768 = vmatpush1.bf16.msra.mxu0 0
          %6769 = vmatprep.subr.bf16.mxu0 0
          %6770 = vmatpush1.bf16.msra.mxu0 0
          %6771 = vmatprep.subr.bf16.mxu0 0
          %6772 = vmatpush1.bf16.msra.mxu0 0
          %6773 = vmatprep.subr.bf16.mxu0 0
          %6774 = vmatpush1.bf16.msra.mxu0 0
          %6775 = vmatprep.subr.bf16.mxu0 0
          %6776 = vmatpush1.bf16.msra.mxu0 0
          %6777 = vmatprep.mubr.bf16.mxu0 0
          %6778 = vmatmul.mubr.bf16.gmra.mrb[0].mxu0 %v6679
          %v6779 = vpop.f32.mrb[0].mxu0
          %v6780 = vadd.f32 0.0, %v6779
          %v6781 = vpop.f32.mrb[0].mxu0
          %v6782 = vpop.f32.mrb[0].mxu0
          %v6783 = vpop.f32.mrb[0].mxu0
          %6784 = vdwg.mxu0
          %v6785 = vadd.f32 %v6678, %v6780
          %v6786 = vpack.c.bf16 %v6551, %v6551
          %s6787 = scalar_lea.vmem %s4, 128
          %v6788 = vld [vmem:[%s6787] sm:$0xf]
          %v6789 = vld [vmem:[%s6787 + $0x4] sm:$0xf]
          %v6790 = vld [vmem:[%s6787 + $0x8] sm:$0xf]
          %v6791 = vld [vmem:[%s6787 + $0xc] sm:$0xf]
          %v6792 = vld [vmem:[%s6787 + $0x10] sm:$0xf]
          %v6793 = vld [vmem:[%s6787 + $0x14] sm:$0xf]
          %v6794 = vld [vmem:[%s6787 + $0x18] sm:$0xf]
          %v6795 = vld [vmem:[%s6787 + $0x1c] sm:$0xf]
          %v6796 = vld [vmem:[%s6787 + $0x20] sm:$0xf]
          %v6797 = vld [vmem:[%s6787 + $0x24] sm:$0xf]
          %v6798 = vld [vmem:[%s6787 + $0x28] sm:$0xf]
          %v6799 = vld [vmem:[%s6787 + $0x2c] sm:$0xf]
          %v6800 = vld [vmem:[%s6787 + $0x30] sm:$0xf]
          %v6801 = vld [vmem:[%s6787 + $0x34] sm:$0xf]
          %v6802 = vld [vmem:[%s6787 + $0x38] sm:$0xf]
          %v6803 = vld [vmem:[%s6787 + $0x3c] sm:$0xf]
          %v6820 = vunpack.c.l.b16 %v6788
          %v6821 = vunpack.c.l.b16 %v6789
          %v6822 = vunpack.c.l.b16 %v6790
          %v6823 = vunpack.c.l.b16 %v6791
          %v6824 = vunpack.c.l.b16 %v6792
          %v6825 = vunpack.c.l.b16 %v6793
          %v6826 = vunpack.c.l.b16 %v6794
          %v6827 = vunpack.c.l.b16 %v6795
          %v6828 = vunpack.c.l.b16 %v6796
          %v6829 = vunpack.c.l.b16 %v6797
          %v6830 = vunpack.c.l.b16 %v6798
          %v6831 = vunpack.c.l.b16 %v6799
          %v6832 = vunpack.c.l.b16 %v6800
          %v6833 = vunpack.c.l.b16 %v6801
          %v6834 = vunpack.c.l.b16 %v6802
          %v6835 = vunpack.c.l.b16 %v6803
          %v6836 = vpack.c.b16 %v6821, %v6820
          %v6837 = vpack.c.b16 %v6823, %v6822
          %v6838 = vpack.c.b16 %v6825, %v6824
          %v6839 = vpack.c.b16 %v6827, %v6826
          %v6840 = vpack.c.b16 %v6829, %v6828
          %v6841 = vpack.c.b16 %v6831, %v6830
          %v6842 = vpack.c.b16 %v6833, %v6832
          %v6843 = vpack.c.b16 %v6835, %v6834
          %6852 = vmatprep.subr.bf16.mxu0 0
          %6853 = vmatpush1.bf16.msra.mxu0 %v6836
          %6854 = vmatprep.subr.bf16.mxu0 0
          %6855 = vmatpush1.bf16.msra.mxu0 %v6837
          %6856 = vmatprep.subr.bf16.mxu0 0
          %6857 = vmatpush1.bf16.msra.mxu0 %v6838
          %6858 = vmatprep.subr.bf16.mxu0 0
          %6859 = vmatpush1.bf16.msra.mxu0 %v6839
          %6860 = vmatprep.subr.bf16.mxu0 0
          %6861 = vmatpush1.bf16.msra.mxu0 %v6840
          %6862 = vmatprep.subr.bf16.mxu0 0
          %6863 = vmatpush1.bf16.msra.mxu0 %v6841
          %6864 = vmatprep.subr.bf16.mxu0 0
          %6865 = vmatpush1.bf16.msra.mxu0 %v6842
          %6866 = vmatprep.subr.bf16.mxu0 0
          %6867 = vmatpush1.bf16.msra.mxu0 %v6843
          %6868 = vmatprep.subr.bf16.mxu0 0
          %6869 = vmatpush1.bf16.msra.mxu0 0
          %6870 = vmatprep.subr.bf16.mxu0 0
          %6871 = vmatpush1.bf16.msra.mxu0 0
          %6872 = vmatprep.subr.bf16.mxu0 0
          %6873 = vmatpush1.bf16.msra.mxu0 0
          %6874 = vmatprep.subr.bf16.mxu0 0
          %6875 = vmatpush1.bf16.msra.mxu0 0
          %6876 = vmatprep.subr.bf16.mxu0 0
          %6877 = vmatpush1.bf16.msra.mxu0 0
          %6878 = vmatprep.subr.bf16.mxu0 0
          %6879 = vmatpush1.bf16.msra.mxu0 0
          %6880 = vmatprep.subr.bf16.mxu0 0
          %6881 = vmatpush1.bf16.msra.mxu0 0
          %6882 = vmatprep.subr.bf16.mxu0 0
          %6883 = vmatpush1.bf16.msra.mxu0 0
          %6884 = vmatprep.mubr.bf16.mxu0 0
          %6885 = vmatmul.mubr.bf16.gmra.mrb[0].mxu0 %v6786
          %v6886 = vpop.f32.mrb[0].mxu0
          %v6887 = vadd.f32 0.0, %v6886
          %v6888 = vpop.f32.mrb[0].mxu0
          %v6889 = vpop.f32.mrb[0].mxu0
          %v6890 = vpop.f32.mrb[0].mxu0
          %6891 = vdwg.mxu0
          %v6892 = vadd.f32 %v6785, %v6887
          %v6893 = vpack.c.bf16 %v6552, %v6552
          %s6894 = scalar_lea.vmem %s4, 192
          %v6895 = vld [vmem:[%s6894] sm:$0xf]
          %v6896 = vld [vmem:[%s6894 + $0x4] sm:$0xf]
          %v6897 = vld [vmem:[%s6894 + $0x8] sm:$0xf]
          %v6898 = vld [vmem:[%s6894 + $0xc] sm:$0xf]
          %v6899 = vld [vmem:[%s6894 + $0x10] sm:$0xf]
          %v6900 = vld [vmem:[%s6894 + $0x14] sm:$0xf]
          %v6901 = vld [vmem:[%s6894 + $0x18] sm:$0xf]
          %v6902 = vld [vmem:[%s6894 + $0x1c] sm:$0xf]
          %v6903 = vld [vmem:[%s6894 + $0x20] sm:$0xf]
          %v6904 = vld [vmem:[%s6894 + $0x24] sm:$0xf]
          %v6905 = vld [vmem:[%s6894 + $0x28] sm:$0xf]
          %v6906 = vld [vmem:[%s6894 + $0x2c] sm:$0xf]
          %v6907 = vld [vmem:[%s6894 + $0x30] sm:$0xf]
          %v6908 = vld [vmem:[%s6894 + $0x34] sm:$0xf]
          %v6909 = vld [vmem:[%s6894 + $0x38] sm:$0xf]
          %v6910 = vld [vmem:[%s6894 + $0x3c] sm:$0xf]
          %v6927 = vunpack.c.l.b16 %v6895
          %v6928 = vunpack.c.l.b16 %v6896
          %v6929 = vunpack.c.l.b16 %v6897
          %v6930 = vunpack.c.l.b16 %v6898
          %v6931 = vunpack.c.l.b16 %v6899
          %v6932 = vunpack.c.l.b16 %v6900
          %v6933 = vunpack.c.l.b16 %v6901
          %v6934 = vunpack.c.l.b16 %v6902
          %v6935 = vunpack.c.l.b16 %v6903
          %v6936 = vunpack.c.l.b16 %v6904
          %v6937 = vunpack.c.l.b16 %v6905
          %v6938 = vunpack.c.l.b16 %v6906
          %v6939 = vunpack.c.l.b16 %v6907
          %v6940 = vunpack.c.l.b16 %v6908
          %v6941 = vunpack.c.l.b16 %v6909
          %v6942 = vunpack.c.l.b16 %v6910
          %v6943 = vpack.c.b16 %v6928, %v6927
          %v6944 = vpack.c.b16 %v6930, %v6929
          %v6945 = vpack.c.b16 %v6932, %v6931
          %v6946 = vpack.c.b16 %v6934, %v6933
          %v6947 = vpack.c.b16 %v6936, %v6935
          %v6948 = vpack.c.b16 %v6938, %v6937
          %v6949 = vpack.c.b16 %v6940, %v6939
          %v6950 = vpack.c.b16 %v6942, %v6941
          %6959 = vmatprep.subr.bf16.mxu0 0
          %6960 = vmatpush1.bf16.msra.mxu0 %v6943
          %6961 = vmatprep.subr.bf16.mxu0 0
          %6962 = vmatpush1.bf16.msra.mxu0 %v6944
          %6963 = vmatprep.subr.bf16.mxu0 0
          %6964 = vmatpush1.bf16.msra.mxu0 %v6945
          %6965 = vmatprep.subr.bf16.mxu0 0
          %6966 = vmatpush1.bf16.msra.mxu0 %v6946
          %6967 = vmatprep.subr.bf16.mxu0 0
          %6968 = vmatpush1.bf16.msra.mxu0 %v6947
          %6969 = vmatprep.subr.bf16.mxu0 0
          %6970 = vmatpush1.bf16.msra.mxu0 %v6948
          %6971 = vmatprep.subr.bf16.mxu0 0
          %6972 = vmatpush1.bf16.msra.mxu0 %v6949
          %6973 = vmatprep.subr.bf16.mxu0 0
          %6974 = vmatpush1.bf16.msra.mxu0 %v6950
          %6975 = vmatprep.subr.bf16.mxu0 0
          %6976 = vmatpush1.bf16.msra.mxu0 0
          %6977 = vmatprep.subr.bf16.mxu0 0
          %6978 = vmatpush1.bf16.msra.mxu0 0
          %6979 = vmatprep.subr.bf16.mxu0 0
          %6980 = vmatpush1.bf16.msra.mxu0 0
          %6981 = vmatprep.subr.bf16.mxu0 0
          %6982 = vmatpush1.bf16.msra.mxu0 0
          %6983 = vmatprep.subr.bf16.mxu0 0
          %6984 = vmatpush1.bf16.msra.mxu0 0
          %6985 = vmatprep.subr.bf16.mxu0 0
          %6986 = vmatpush1.bf16.msra.mxu0 0
          %6987 = vmatprep.subr.bf16.mxu0 0
          %6988 = vmatpush1.bf16.msra.mxu0 0
          %6989 = vmatprep.subr.bf16.mxu0 0
          %6990 = vmatpush1.bf16.msra.mxu0 0
          %6991 = vmatprep.mubr.bf16.mxu0 0
          %6992 = vmatmul.mubr.bf16.gmra.mrb[0].mxu0 %v6893
          %v6993 = vpop.f32.mrb[0].mxu0
          %v6994 = vadd.f32 0.0, %v6993
          %v6995 = vpop.f32.mrb[0].mxu0
          %v6996 = vpop.f32.mrb[0].mxu0
          %v6997 = vpop.f32.mrb[0].mxu0
          %6998 = vdwg.mxu0
          %v6999 = vadd.f32 %v6892, %v6994
          %v7000 = vmul.f32 %v6999, 0.5
          %7001 = vst [vmem:[#allocation5] sm:$0x3] %v7000
        $region52: #{node_forward.1} parent=43 // pred_fallthru
          _
        // Predicated region
        $region53: #{node_forward.1} parent=43 // pred_check
          %p7002 = pneg %p162
        $region54: #{node_forward.1} parent=43 // pred_check_branch
          %7004 = sbr.rel (%p7002) target = $region56
        $region55: #{node_forward.1} parent=43 // pred_region
          %s7006 = ssub.s32 32, 32
          %7007 = vsyncadd [#allocation6], %s7006
          %s7009 = sshll.u32 [#allocation5], 4
          %s7010 = int_to_ptr.vmem [resolvable:$true] %s7009
          %7012 = dma.vmem_to_hbm [thread:$0]  %s7010, 32, %s6, [#allocation6]
        $region56: #{node_forward.1} parent=43 // pred_fallthru
          _
        // Predicated region
        $region57: #{node_forward.1} parent=43 // pred_check
          %p7013 = pneg %p162
        $region58: #{node_forward.1} parent=43 // pred_check_branch
          %7015 = sbr.rel (%p7013) target = $region60
        $region59: #{node_forward.1} parent=43 // pred_region
          %7016 = dma.done [#allocation6], 32
        $region60: #{node_forward.1} parent=43 // pred_fallthru
          _
      $region44: #{node_forward.1} parent=5 // pred_fallthru
        _
      %p7017 = scmp.le.s32.totalorder 2, %s13
      // Predicated region
      $region61: #{node_forward.1} parent=5 // pred_check
        %p7018 = pneg %p7017
      $region62: #{node_forward.1} parent=5 // pred_check_branch
        %7020 = sbr.rel (%p7018) target = $region64
      $region63: #{node_forward.1} parent=5 // pred_region
        %s7021 = ssub.s32 %s13, 2
      $region64: #{node_forward.1} parent=5 // pred_fallthru
        _
    $region6: #{node_forward.1} parent=1 // loop_footer
      %s17 = sadd.s32 1, %s13
    $region7: #{node_forward.1} parent=1 // loop_footer_branch
      %12 = sbr.rel target = $region3
    $region8: #{node_forward.1} parent=1 // loop_exit
      _
    %7022 = vsyncpa [#allocation6], 1
    %s7023 = scalar_lea.sflag [#allocation6], 1
    %7024 = vsyncpa %s7023, 1

</llo_original>
